<compile_context>
chip_gen: v5e
topology: v5e:2x2
jax: 0.10.0
libtpu: 0.0.40
codegen_flags: <defaults>
</compile_context>

<pallas_src>
import functools

import jax
import jax.numpy as jnp
from jax.experimental import pallas as pl
from jax.experimental.pallas import tpu as pltpu


def batch_norm_groups(ni):
    return max(1, ni // 4)


def _silu(v):
    return v * (1.0 / (1.0 + jnp.exp(-v)))


# ------------------------------ in-kernel helpers ------------------------------

def _gn_silu(x2, gamma, beta, m_cg, m_gc, inv_cnt, eps, mask=None):
    """Centered GroupNorm + SiLU on a (M, C) slab.  gamma/beta: (1, C).

    m_cg: (C, G) 0/1 membership, m_gc: (G, C) = m_cg.T (hoisted constants).
    If `mask` (M, 1) is given, masked-out rows are zero on input and are forced back to zero
    on output (used for the padded-column layout of stage 2)."""
    s = jnp.sum(x2, axis=0, keepdims=True)                                     # (1, C)
    gmean = jnp.dot(s, m_cg, preferred_element_type=jnp.float32) * inv_cnt     # (1, G)
    mean_c = jnp.dot(gmean, m_gc, preferred_element_type=jnp.float32)          # (1, C)
    xc = x2 - mean_c
    if mask is not None:
        xc = xc * mask
    sq = jnp.sum(xc * xc, axis=0, keepdims=True)                               # (1, C)
    gvar = jnp.dot(sq, m_cg, preferred_element_type=jnp.float32) * inv_cnt     # (1, G)
    rstd_c = jnp.dot(jax.lax.rsqrt(gvar + eps), m_gc,
                     preferred_element_type=jnp.float32)                       # (1, C)
    act = _silu(xc * (rstd_c * gamma) + beta)
    if mask is not None:
        act = act * mask
    return act


def _conv3x3_flat(apad_ref, w_ref, h, wp):
    """3x3 conv as 9 contiguous-window MXU dots over the flat padded scratch.

    apad_ref: (rows, Cin) bf16 with padded pixel (py, px) at row py*wp + px.
    w_ref: (9, Cin, nf) bf16.  Returns (h*wp, nf) f32; columns x >= w of each padded
    row are junk and must be masked / sliced away by the caller."""
    m = h * wp
    acc = None
    for dy in range(3):
        for dx in range(3):
            off = dy * wp + dx                                   # static offset
            d = jnp.dot(apad_ref[off:off + m, :], w_ref[3 * dy + dx],
                        preferred_element_type=jnp.float32)
            acc = d if acc is None else acc + d
    return acc


# --------------------------------- fused kernel ---------------------------------

def _resblock_kernel(x_ref, g1_ref, be1_ref, mcg1_ref, mgc1_ref, w1_ref,
                     sc_ref, sh_ref,
                     g2_ref, be2_ref, mcg2_ref, mgc2_ref, w2_ref, bc2_ref, mask_ref,
                     *rest, eps, proj):
    if proj:
        wid_ref, bid_ref, o_ref, apad1_ref, apad2_ref = rest
    else:
        o_ref, apad1_ref, apad2_ref = rest

    h, w, ci = x_ref.shape[1], x_ref.shape[2], x_ref.shape[3]
    nf = o_ref.shape[3]
    wp = w + 2
    m = h * wp
    rows = apad1_ref.shape[0]
    ng1 = mcg1_ref.shape[1]
    ng2 = mcg2_ref.shape[1]
    bf = apad1_ref.dtype

    mask = mask_ref[...]                                          # (m, 1) f32 valid-column mask

    # --- cheap per-step halo/tail zeroing (NOT the whole scratch, and not pid==0-gated:
    #     scratch is per-core under megacore sharding, so every step re-establishes its halos).
    apad1_ref[0:wp + 1, :] = jnp.zeros((wp + 1, ci), bf)
    apad1_ref[wp + 1 + m:rows, :] = jnp.zeros((rows - wp - 1 - m, ci), bf)
    apad2_ref[0:wp + 1, :] = jnp.zeros((wp + 1, nf), bf)
    apad2_ref[wp + 1 + m:rows, :] = jnp.zeros((rows - wp - 1 - m, nf), bf)

    # ---------------- stage 1: GN1 -> SiLU -> conv1 -> FiLM ----------------
    inv1 = 1.0 / float(h * w * (ci // ng1))
    act1 = _gn_silu(x_ref[0].reshape(h * w, ci), g1_ref[...], be1_ref[...],
                    mcg1_ref[...], mgc1_ref[...], inv1, eps)      # (h*w, ci) f32
    act1b = act1.astype(bf)

    # Stage into the flat padded scratch: per image row, one contiguous data store plus a
    # 2-row zero store for the gap (right halo of this row / left halo of the next).
    zero2 = jnp.zeros((2, ci), bf)
    for y in range(h):
        base = wp + 1 + y * wp
        apad1_ref[base:base + w, :] = act1b[y * w:(y + 1) * w, :]
        apad1_ref[base + w:base + w + 2, :] = zero2

    acc1 = _conv3x3_flat(apad1_ref, w1_ref, h, wp)                # (m, nf) f32, junk cols
    # FiLM with conv1 bias folded into the shift by the wrapper; the mask zeroes the two
    # junk columns per padded row so GN2 statistics stay exact.
    y1m = (acc1 * sc_ref[0] + sh_ref[0]) * mask                   # (m, nf) f32

    # ---------------- stage 2: GN2 -> SiLU -> conv2 -> + residual ----------------
    inv2 = 1.0 / float(h * w * (nf // ng2))
    act2 = _gn_silu(y1m, g2_ref[...], be2_ref[...],
                    mcg2_ref[...], mgc2_ref[...], inv2, eps, mask=mask)
    # y1m is already in padded-column layout -> one contiguous store (gap columns are zero).
    apad2_ref[wp + 1:wp + 1 + m, :] = act2.astype(bf)

    acc2 = _conv3x3_flat(apad2_ref, w2_ref, h, wp)                # (m, nf) f32
    y2 = acc2.reshape(h, wp, nf)[:, :w, :] + bc2_ref[...]         # slice valid cols, add bias

    if proj:                                                      # ni != nf: 1x1 idconv
        xin = x_ref[0].reshape(h * w, ci).astype(bf)
        skip = (jnp.dot(xin, wid_ref[...], preferred_element_type=jnp.float32)
                + bid_ref[...]).reshape(h, w, nf)
    else:                                                         # ni == nf: fc.noop
        skip = x_ref[0]
    o_ref[0] = (y2 + skip).astype(o_ref.dtype)


# ----------------------------- pallas_call wrapper ------------------------------

def _vmem_limit_bytes():
    """Generation-aware scoped-VMEM limit: ~3/4 of physical, capped at 100 MiB."""
    try:
        cap = pltpu.get_tpu_info().vmem_capacity_bytes
        return int(min(cap * 3 // 4, 100 * 1024 * 1024))
    except Exception:
        return 48 * 1024 * 1024                                   # safe everywhere (<= v7x 64 MiB)


def _membership(c, g):
    gs = c // g
    cg = (jnp.arange(c)[:, None] // gs == jnp.arange(g)[None, :]).astype(jnp.float32)
    return cg, cg.T                                               # (C, G), (G, C)


def _resblock_call(x, g1, be1, mcg1, mgc1, w1, sc, sh,
                   g2, be2, mcg2, mgc2, w2, bc2, mask, wid, bid, *, eps):
    n, h, w, ci = x.shape
    nf = w1.shape[-1]
    ng1, ng2 = mcg1.shape[1], mcg2.shape[1]
    wp = w + 2
    m = h * wp
    rows = -(-((h + 2) * wp + 2) // 8) * 8                        # flat padded scratch rows
    proj = wid is not None

    in_specs = [
        pl.BlockSpec((1, h, w, ci), lambda i: (i, 0, 0, 0)),      # x
        pl.BlockSpec((1, ci), lambda i: (0, 0)),                  # gamma1
        pl.BlockSpec((1, ci), lambda i: (0, 0)),                  # beta1
        pl.BlockSpec((ci, ng1), lambda i: (0, 0)),                # membership C->G (stage 1)
        pl.BlockSpec((ng1, ci), lambda i: (0, 0)),                # membership G->C (stage 1)
        pl.BlockSpec((9, ci, nf), lambda i: (0, 0, 0)),           # conv1 weights (bf16)
        pl.BlockSpec((1, 1, nf), lambda i: (i, 0, 0)),            # FiLM scale (per sample)
        pl.BlockSpec((1, 1, nf), lambda i: (i, 0, 0)),            # FiLM shift+bias (per sample)
        pl.BlockSpec((1, nf), lambda i: (0, 0)),                  # gamma2
        pl.BlockSpec((1, nf), lambda i: (0, 0)),                  # beta2
        pl.BlockSpec((nf, ng2), lambda i: (0, 0)),                # membership C->G (stage 2)
        pl.BlockSpec((ng2, nf), lambda i: (0, 0)),                # membership G->C (stage 2)
        pl.BlockSpec((9, nf, nf), lambda i: (0, 0, 0)),           # conv2 weights (bf16)
        pl.BlockSpec((1, nf), lambda i: (0, 0)),                  # conv2 bias
        pl.BlockSpec((m, 1), lambda i: (0, 0)),                   # valid-column mask (constant)
    ]
    args = [x, g1, be1, mcg1, mgc1, w1, sc, sh, g2, be2, mcg2, mgc2, w2, bc2, mask]
    if proj:
        in_specs += [pl.BlockSpec((ci, nf), lambda i: (0, 0)),    # idconv weight (bf16)
                     pl.BlockSpec((1, nf), lambda i: (0, 0))]     # idconv bias
        args += [wid, bid]

    kernel = functools.partial(_resblock_kernel, eps=eps, proj=proj)
    return pl.pallas_call(
        kernel,
        out_shape=jax.ShapeDtypeStruct((n, h, w, nf), jnp.float32),
        grid=(n,),
        in_specs=in_specs,
        out_specs=pl.BlockSpec((1, h, w, nf), lambda i: (i, 0, 0, 0)),
        scratch_shapes=[pltpu.VMEM((rows, ci), jnp.bfloat16),     # padded GN1/SiLU activation
                        pltpu.VMEM((rows, nf), jnp.bfloat16)],    # padded GN2/SiLU activation
        compiler_params=pltpu.CompilerParams(
            dimension_semantics=("parallel",),
            vmem_limit_bytes=_vmem_limit_bytes()),
    )(*args)


# ------------------------------------ forward -----------------------------------

def resblock_forward(params, x_nchw, t, *, eps=1e-5):
    """ResBlock forward (attn_chans == 0, cross_feat=None). x: NCHW, t: (N, n_emb)."""
    n, ci, hh, ww = x_nchw.shape
    x = jnp.transpose(x_nchw, (0, 2, 3, 1)).astype(jnp.float32)   # NHWC, channels on lanes
    groups = params["groups"]
    nf = params["w1"].shape[-1]
    assert ci % groups == 0 and nf % groups == 0, "channels must divide num_groups"

    # FiLM conditioning depends only on t -> hoisted; fold conv1 bias into the shift:
    #   (conv + bc1) * (1 + s) + sh  ==  conv * (1 + s) + (sh + bc1 * (1 + s))
    ta = _silu(t.astype(jnp.float32))
    emb = ta @ params["w_emb"] + params["b_emb"]                  # (N, 2*nf)
    scale, shift = emb[:, :nf], emb[:, nf:]
    sc_eff = 1.0 + scale
    sh_eff = shift + params["bc1"].reshape(1, nf) * sc_eff
    sc_eff = sc_eff.reshape(n, 1, nf)
    sh_eff = sh_eff.reshape(n, 1, nf)

    # Hoisted constants: group-membership matrices and the valid-column mask.
    mcg1, mgc1 = _membership(ci, groups)
    mcg2, mgc2 = _membership(nf, groups)
    wp = ww + 2
    mask = ((jnp.arange(hh * wp) % wp) < ww).astype(jnp.float32).reshape(hh * wp, 1)

    # bf16 MXU operands (f32 accumulation happens inside the kernel).
    w1 = params["w1"].reshape(9, ci, nf).astype(jnp.bfloat16)     # HWIO -> (9, Cin, nf)
    w2 = params["w2"].reshape(9, nf, nf).astype(jnp.bfloat16)
    wid = params.get("wid")
    bid = params.get("bid")
    if wid is not None:
        wid = wid.astype(jnp.bfloat16)

    out = _resblock_call(x, params["g1"], params["be1"], mcg1, mgc1, w1,
                         sc_eff, sh_eff,
                         params["g2"], params["be2"], mcg2, mgc2, w2,
                         params["bc2"], mask, wid, bid, eps=eps)
    return jnp.transpose(out, (0, 3, 1, 2))                       # back to NCHW


# ------------------------------ pure-JAX reference ------------------------------

def _ref_gn_silu(x, gamma, beta, groups, eps=1e-5):
    n, h, w, c = x.shape
    xg = x.reshape(n, h * w, groups, c // groups)
    mean = xg.mean(axis=(1, 3), keepdims=True)
    var = ((xg - mean) ** 2).mean(axis=(1, 3), keepdims=True)
    xn = ((xg - mean) * jax.lax.rsqrt(var + eps)).reshape(n, h, w, c)
    return _silu(xn * gamma.reshape(1, 1, 1, c) + beta.reshape(1, 1, 1, c))


def _ref_conv3x3(x, w, b):
    out = jax.lax.conv_general_dilated(
        x, w, window_strides=(1, 1), padding="SAME",
        dimension_numbers=("NHWC", "HWIO", "NHWC"))
    return out + b.reshape(1, 1, 1, -1)


def resblock_reference(params, x_nchw, t, *, eps=1e-5):
    x = jnp.transpose(x_nchw, (0, 2, 3, 1)).astype(jnp.float32)
    g = params["groups"]
    nf = params["w1"].shape[-1]
    a1 = _ref_gn_silu(x, params["g1"].reshape(-1), params["be1"].reshape(-1), g, eps)
    y1 = _ref_conv3x3(a1, params["w1"], params["bc1"].reshape(-1))
    ta = _silu(t.astype(jnp.float32))
    emb = ta @ params["w_emb"] + params["b_emb"]
    scale, shift = emb[:, :nf], emb[:, nf:]
    y1 = y1 * (1.0 + scale[:, None, None, :]) + shift[:, None, None, :]
    a2 = _ref_gn_silu(y1, params["g2"].reshape(-1), params["be2"].reshape(-1), g, eps)
    y2 = _ref_conv3x3(a2, params["w2"], params["bc2"].reshape(-1))
    if params.get("wid") is None:
        skip = x
    else:
        skip = jnp.einsum("nhwc,cf->nhwf", x, params["wid"]) + params["bid"].reshape(1, 1, 1, -1)
    return jnp.transpose(y2 + skip, (0, 3, 1, 2))


# ------------------------------------- main --------------------------------------

def _make_params(key, n_emb, ni, nf, with_proj):
    ks = jax.random.split(key, 14)
    p = dict(
        groups=batch_norm_groups(ni),
        g1=1.0 + 0.1 * jax.random.normal(ks[0], (1, ni), jnp.float32),
        be1=0.1 * jax.random.normal(ks[1], (1, ni), jnp.float32),
        w1=0.1 * jax.random.normal(ks[2], (3, 3, ni, nf), jnp.float32),    # HWIO
        bc1=0.1 * jax.random.normal(ks[3], (1, nf), jnp.float32),
        g2=1.0 + 0.1 * jax.random.normal(ks[4], (1, nf), jnp.float32),
        be2=0.1 * jax.random.normal(ks[5], (1, nf), jnp.float32),
        w2=0.1 * jax.random.normal(ks[6], (3, 3, nf, nf), jnp.float32),
        bc2=0.1 * jax.random.normal(ks[7], (1, nf), jnp.float32),
        w_emb=0.1 * jax.random.normal(ks[8], (n_emb, 2 * nf), jnp.float32),  # FiLM Linear
        b_emb=0.1 * jax.random.normal(ks[9], (2 * nf,), jnp.float32),
        wid=None, bid=None,
    )
    if with_proj:
        p["wid"] = 0.1 * jax.random.normal(ks[10], (ni, nf), jnp.float32)
        p["bid"] = 0.1 * jax.random.normal(ks[11], (1, nf), jnp.float32)
    return p


def _check(params, x, t):
    out = jax.block_until_ready(resblock_forward(params, x, t))
    ref = jax.block_until_ready(resblock_reference(params, x, t))
    assert out.shape == ref.shape, (out.shape, ref.shape)
    rel = float(jnp.max(jnp.abs(out - ref)) / (jnp.max(jnp.abs(ref)) + 1e-6))
    # bf16 MXU operands bound the achievable tolerance vs. the f32 reference.
    assert rel < 3e-2, f"relative max err {rel}"


if __name__ == "__main__":
    key = jax.random.PRNGKey(0)
    k1, k2, k3, k4, k5, k6 = jax.random.split(key, 6)

    # Case 1: ni == nf (idconv = fc.noop).  C = 128 keeps the lane axis fully occupied.
    N, n_emb, ni, H, W = 2, 32, 128, 16, 16
    x1 = jax.random.normal(k1, (N, ni, H, W), jnp.float32)        # NCHW like PyTorch
    t1 = jax.random.normal(k2, (N, n_emb), jnp.float32)
    p1 = _make_params(k3, n_emb, ni, ni, with_proj=False)
    _check(p1, x1, t1)

    # Case 2: ni != nf (idconv = 1x1 projection residual).
    ni2, nf2, H2, W2 = 64, 128, 8, 8
    x2 = jax.random.normal(k4, (N, ni2, H2, W2), jnp.float32)
    t2 = jax.random.normal(k5, (N, n_emb), jnp.float32)
    p2 = _make_params(k6, n_emb, ni2, nf2, with_proj=True)
    _check(p2, x2, t2)

    print("KERNEL_OK")
</pallas_src>

<mosaic_0001>
module attributes {stable_mosaic.version = 11 : i64} {
  func.func @_resblock_kernel(%arg0: i32, %arg1: memref<1x16x16x128xf32, #tpu.memory_space<vmem>>, %arg2: memref<1x128xf32, #tpu.memory_space<vmem>>, %arg3: memref<1x128xf32, #tpu.memory_space<vmem>>, %arg4: memref<128x32xf32, #tpu.memory_space<vmem>>, %arg5: memref<32x128xf32, #tpu.memory_space<vmem>>, %arg6: memref<9x128x128xbf16, #tpu.memory_space<vmem>>, %arg7: memref<1x1x128xf32, #tpu.memory_space<vmem>>, %arg8: memref<1x1x128xf32, #tpu.memory_space<vmem>>, %arg9: memref<1x128xf32, #tpu.memory_space<vmem>>, %arg10: memref<1x128xf32, #tpu.memory_space<vmem>>, %arg11: memref<128x32xf32, #tpu.memory_space<vmem>>, %arg12: memref<32x128xf32, #tpu.memory_space<vmem>>, %arg13: memref<9x128x128xbf16, #tpu.memory_space<vmem>>, %arg14: memref<1x128xf32, #tpu.memory_space<vmem>>, %arg15: memref<288x1xf32, #tpu.memory_space<vmem>>, %arg16: memref<1x16x16x128xf32, #tpu.memory_space<vmem>>, %arg17: memref<328x128xbf16, #tpu.memory_space<vmem>>, %arg18: memref<328x128xbf16, #tpu.memory_space<vmem>>) attributes {dimension_semantics = [#tpu.dimension_semantics<parallel>], iteration_bounds = array<i64: 2>, scalar_prefetch = 0 : i64, scratch_operands = 2 : i64, tpu.core_type = #tpu.core_type<tc>, window_params = [{transform_indices = @transform_0, window_bounds = array<i64: 1, 16, 16, 128>}, {pipeline_mode = #tpu.pipeline_mode<synchronous>, transform_indices = @transform_1, window_bounds = array<i64: 1, 128>}, {pipeline_mode = #tpu.pipeline_mode<synchronous>, transform_indices = @transform_2, window_bounds = array<i64: 1, 128>}, {pipeline_mode = #tpu.pipeline_mode<synchronous>, transform_indices = @transform_3, window_bounds = array<i64: 128, 32>}, {pipeline_mode = #tpu.pipeline_mode<synchronous>, transform_indices = @transform_4, window_bounds = array<i64: 32, 128>}, {pipeline_mode = #tpu.pipeline_mode<synchronous>, transform_indices = @transform_5, window_bounds = array<i64: 9, 128, 128>}, {transform_indices = @transform_6, window_bounds = array<i64: 1, 1, 128>}, {transform_indices = @transform_7, window_bounds = array<i64: 1, 1, 128>}, {pipeline_mode = #tpu.pipeline_mode<synchronous>, transform_indices = @transform_8, window_bounds = array<i64: 1, 128>}, {pipeline_mode = #tpu.pipeline_mode<synchronous>, transform_indices = @transform_9, window_bounds = array<i64: 1, 128>}, {pipeline_mode = #tpu.pipeline_mode<synchronous>, transform_indices = @transform_10, window_bounds = array<i64: 128, 32>}, {pipeline_mode = #tpu.pipeline_mode<synchronous>, transform_indices = @transform_11, window_bounds = array<i64: 32, 128>}, {pipeline_mode = #tpu.pipeline_mode<synchronous>, transform_indices = @transform_12, window_bounds = array<i64: 9, 128, 128>}, {pipeline_mode = #tpu.pipeline_mode<synchronous>, transform_indices = @transform_13, window_bounds = array<i64: 1, 128>}, {pipeline_mode = #tpu.pipeline_mode<synchronous>, transform_indices = @transform_14, window_bounds = array<i64: 288, 1>}, {transform_indices = @transform_15, window_bounds = array<i64: 1, 16, 16, 128>}]} {
    %c0 = arith.constant 0 : index
    %c0_0 = arith.constant 0 : index
    %0 = vector.load %arg15[%c0, %c0_0] : memref<288x1xf32, #tpu.memory_space<vmem>>, vector<288x1xf32>
    %cst = arith.constant 0.000000e+00 : bf16
    %1 = vector.broadcast %cst : bf16 to vector<19x128xbf16>
    %c0_1 = arith.constant 0 : index
    %c0_2 = arith.constant 0 : index
    %2 = vector.load %arg17[%c0_1, %c0_2] : memref<328x128xbf16, #tpu.memory_space<vmem>>, vector<19x128xbf16>
    tpu.vector_store %arg17[%c0_1, %c0_2], %1 {strides = array<i32>} : memref<328x128xbf16, #tpu.memory_space<vmem>>, vector<19x128xbf16>,
    %cst_3 = arith.constant 0.000000e+00 : bf16
    %3 = vector.broadcast %cst_3 : bf16 to vector<21x128xbf16>
    %c307 = arith.constant 307 : index
    %c0_4 = arith.constant 0 : index
    %4 = vector.load %arg17[%c307, %c0_4] : memref<328x128xbf16, #tpu.memory_space<vmem>>, vector<21x128xbf16>
    tpu.vector_store %arg17[%c307, %c0_4], %3 {strides = array<i32>} : memref<328x128xbf16, #tpu.memory_space<vmem>>, vector<21x128xbf16>,
    %cst_5 = arith.constant 0.000000e+00 : bf16
    %5 = vector.broadcast %cst_5 : bf16 to vector<19x128xbf16>
    %c0_6 = arith.constant 0 : index
    %c0_7 = arith.constant 0 : index
    %6 = vector.load %arg18[%c0_6, %c0_7] : memref<328x128xbf16, #tpu.memory_space<vmem>>, vector<19x128xbf16>
    tpu.vector_store %arg18[%c0_6, %c0_7], %5 {strides = array<i32>} : memref<328x128xbf16, #tpu.memory_space<vmem>>, vector<19x128xbf16>,
    %cst_8 = arith.constant 0.000000e+00 : bf16
    %7 = vector.broadcast %cst_8 : bf16 to vector<21x128xbf16>
    %c307_9 = arith.constant 307 : index
    %c0_10 = arith.constant 0 : index
    %8 = vector.load %arg18[%c307_9, %c0_10] : memref<328x128xbf16, #tpu.memory_space<vmem>>, vector<21x128xbf16>
    tpu.vector_store %arg18[%c307_9, %c0_10], %7 {strides = array<i32>} : memref<328x128xbf16, #tpu.memory_space<vmem>>, vector<21x128xbf16>,
    %c0_11 = arith.constant 0 : index
    %c0_12 = arith.constant 0 : index
    %c0_13 = arith.constant 0 : index
    %c0_14 = arith.constant 0 : index
    %9 = vector.load %arg1[%c0_11, %c0_12, %c0_13, %c0_14] : memref<1x16x16x128xf32, #tpu.memory_space<vmem>>, vector<1x16x16x128xf32>
    %10 = vector.shape_cast %9 : vector<1x16x16x128xf32> to vector<16x16x128xf32>
    %11 = vector.shape_cast %10 : vector<16x16x128xf32> to vector<256x128xf32>
    %c0_15 = arith.constant 0 : index
    %c0_16 = arith.constant 0 : index
    %12 = vector.load %arg2[%c0_15, %c0_16] : memref<1x128xf32, #tpu.memory_space<vmem>>, vector<1x128xf32>
    %c0_17 = arith.constant 0 : index
    %c0_18 = arith.constant 0 : index
    %13 = vector.load %arg3[%c0_17, %c0_18] : memref<1x128xf32, #tpu.memory_space<vmem>>, vector<1x128xf32>
    %c0_19 = arith.constant 0 : index
    %c0_20 = arith.constant 0 : index
    %14 = vector.load %arg4[%c0_19, %c0_20] : memref<128x32xf32, #tpu.memory_space<vmem>>, vector<128x32xf32>
    %c0_21 = arith.constant 0 : index
    %c0_22 = arith.constant 0 : index
    %15 = vector.load %arg5[%c0_21, %c0_22] : memref<32x128xf32, #tpu.memory_space<vmem>>, vector<32x128xf32>
    %cst_23 = arith.constant dense<0.000000e+00> : vector<128xf32>
    %16 = vector.multi_reduction <add>, %11, %cst_23 [0] : vector<256x128xf32> to vector<128xf32>
    %17 = vector.shape_cast %16 : vector<128xf32> to vector<1x128xf32>
    %cst_24 = arith.constant dense<0.000000e+00> : vector<1x32xf32>
    %18 = tpu.matmul %17, %14, %cst_24 {dimension_numbers = #tpu.dot_dimension_numbers<[1], [0], [0], [1], [0, 0, 1, 1], [], []>} : vector<1x128xf32>, vector<128x32xf32>, vector<1x32xf32> -> vector<1x32xf32>
    %cst_25 = arith.constant 9.765625E-4 : f32
    %19 = vector.broadcast %cst_25 : f32 to vector<1x32xf32>
    %20 = arith.mulf %18, %19 : vector<1x32xf32>
    %cst_26 = arith.constant dense<0.000000e+00> : vector<1x128xf32>
    %21 = tpu.matmul %20, %15, %cst_26 {dimension_numbers = #tpu.dot_dimension_numbers<[1], [0], [0], [1], [0, 0, 1, 1], [], []>} : vector<1x32xf32>, vector<32x128xf32>, vector<1x128xf32> -> vector<1x128xf32>
    %22 = vector.broadcast %21 : vector<1x128xf32> to vector<256x128xf32>
    %23 = arith.subf %11, %22 : vector<256x128xf32>
    %24 = arith.mulf %23, %23 : vector<256x128xf32>
    %cst_27 = arith.constant dense<0.000000e+00> : vector<128xf32>
    %25 = vector.multi_reduction <add>, %24, %cst_27 [0] : vector<256x128xf32> to vector<128xf32>
    %26 = vector.shape_cast %25 : vector<128xf32> to vector<1x128xf32>
    %cst_28 = arith.constant dense<0.000000e+00> : vector<1x32xf32>
    %27 = tpu.matmul %26, %14, %cst_28 {dimension_numbers = #tpu.dot_dimension_numbers<[1], [0], [0], [1], [0, 0, 1, 1], [], []>} : vector<1x128xf32>, vector<128x32xf32>, vector<1x32xf32> -> vector<1x32xf32>
    %cst_29 = arith.constant 9.765625E-4 : f32
    %28 = vector.broadcast %cst_29 : f32 to vector<1x32xf32>
    %29 = arith.mulf %27, %28 : vector<1x32xf32>
    %cst_30 = arith.constant 9.99999974E-6 : f32
    %30 = vector.broadcast %cst_30 : f32 to vector<1x32xf32>
    %31 = arith.addf %29, %30 : vector<1x32xf32>
    %32 = math.rsqrt %31 : vector<1x32xf32>
    %cst_31 = arith.constant dense<0.000000e+00> : vector<1x128xf32>
    %33 = tpu.matmul %32, %15, %cst_31 {dimension_numbers = #tpu.dot_dimension_numbers<[1], [0], [0], [1], [0, 0, 1, 1], [], []>} : vector<1x32xf32>, vector<32x128xf32>, vector<1x128xf32> -> vector<1x128xf32>
    %34 = arith.mulf %33, %12 : vector<1x128xf32>
    %35 = vector.broadcast %34 : vector<1x128xf32> to vector<256x128xf32>
    %36 = arith.mulf %23, %35 : vector<256x128xf32>
    %37 = vector.broadcast %13 : vector<1x128xf32> to vector<256x128xf32>
    %38 = arith.addf %36, %37 : vector<256x128xf32>
    %cst_32 = arith.constant 0.000000e+00 : f32
    %39 = vector.broadcast %cst_32 : f32 to vector<256x128xf32>
    %40 = arith.subf %39, %38 : vector<256x128xf32>
    %41 = math.exp %40 : vector<256x128xf32>
    %cst_33 = arith.constant 1.000000e+00 : f32
    %42 = vector.broadcast %cst_33 : f32 to vector<256x128xf32>
    %43 = arith.addf %42, %41 : vector<256x128xf32>
    %cst_34 = arith.constant 1.000000e+00 : f32
    %44 = vector.broadcast %cst_34 : f32 to vector<256x128xf32>
    %45 = arith.divf %44, %43 : vector<256x128xf32>
    %46 = arith.mulf %38, %45 : vector<256x128xf32>
    %47 = arith.truncf %46 : vector<256x128xf32> to vector<256x128xbf16>
    %cst_35 = arith.constant 0.000000e+00 : bf16
    %48 = vector.broadcast %cst_35 : bf16 to vector<2x128xbf16>
    %49 = vector.extract_strided_slice %47 {offsets = [0, 0], sizes = [16, 128], strides = [1, 1]} : vector<256x128xbf16> to vector<16x128xbf16>
    %c19 = arith.constant 19 : index
    %c0_36 = arith.constant 0 : index
    %50 = vector.load %arg17[%c19, %c0_36] : memref<328x128xbf16, #tpu.memory_space<vmem>>, vector<16x128xbf16>
    tpu.vector_store %arg17[%c19, %c0_36], %49 {strides = array<i32>} : memref<328x128xbf16, #tpu.memory_space<vmem>>, vector<16x128xbf16>,
    %c35 = arith.constant 35 : index
    %c0_37 = arith.constant 0 : index
    %51 = vector.load %arg17[%c35, %c0_37] : memref<328x128xbf16, #tpu.memory_space<vmem>>, vector<2x128xbf16>
    tpu.vector_store %arg17[%c35, %c0_37], %48 {strides = array<i32>} : memref<328x128xbf16, #tpu.memory_space<vmem>>, vector<2x128xbf16>,
    %52 = vector.extract_strided_slice %47 {offsets = [16, 0], sizes = [16, 128], strides = [1, 1]} : vector<256x128xbf16> to vector<16x128xbf16>
    %c37 = arith.constant 37 : index
    %c0_38 = arith.constant 0 : index
    %53 = vector.load %arg17[%c37, %c0_38] : memref<328x128xbf16, #tpu.memory_space<vmem>>, vector<16x128xbf16>
    tpu.vector_store %arg17[%c37, %c0_38], %52 {strides = array<i32>} : memref<328x128xbf16, #tpu.memory_space<vmem>>, vector<16x128xbf16>,
    %c53 = arith.constant 53 : index
    %c0_39 = arith.constant 0 : index
    %54 = vector.load %arg17[%c53, %c0_39] : memref<328x128xbf16, #tpu.memory_space<vmem>>, vector<2x128xbf16>
    tpu.vector_store %arg17[%c53, %c0_39], %48 {strides = array<i32>} : memref<328x128xbf16, #tpu.memory_space<vmem>>, vector<2x128xbf16>,
    %55 = vector.extract_strided_slice %47 {offsets = [32, 0], sizes = [16, 128], strides = [1, 1]} : vector<256x128xbf16> to vector<16x128xbf16>
    %c55 = arith.constant 55 : index
    %c0_40 = arith.constant 0 : index
    %56 = vector.load %arg17[%c55, %c0_40] : memref<328x128xbf16, #tpu.memory_space<vmem>>, vector<16x128xbf16>
    tpu.vector_store %arg17[%c55, %c0_40], %55 {strides = array<i32>} : memref<328x128xbf16, #tpu.memory_space<vmem>>, vector<16x128xbf16>,
    %c71 = arith.constant 71 : index
    %c0_41 = arith.constant 0 : index
    %57 = vector.load %arg17[%c71, %c0_41] : memref<328x128xbf16, #tpu.memory_space<vmem>>, vector<2x128xbf16>
    tpu.vector_store %arg17[%c71, %c0_41], %48 {strides = array<i32>} : memref<328x128xbf16, #tpu.memory_space<vmem>>, vector<2x128xbf16>,
    %58 = vector.extract_strided_slice %47 {offsets = [48, 0], sizes = [16, 128], strides = [1, 1]} : vector<256x128xbf16> to vector<16x128xbf16>
    %c73 = arith.constant 73 : index
    %c0_42 = arith.constant 0 : index
    %59 = vector.load %arg17[%c73, %c0_42] : memref<328x128xbf16, #tpu.memory_space<vmem>>, vector<16x128xbf16>
    tpu.vector_store %arg17[%c73, %c0_42], %58 {strides = array<i32>} : memref<328x128xbf16, #tpu.memory_space<vmem>>, vector<16x128xbf16>,
    %c89 = arith.constant 89 : index
    %c0_43 = arith.constant 0 : index
    %60 = vector.load %arg17[%c89, %c0_43] : memref<328x128xbf16, #tpu.memory_space<vmem>>, vector<2x128xbf16>
    tpu.vector_store %arg17[%c89, %c0_43], %48 {strides = array<i32>} : memref<328x128xbf16, #tpu.memory_space<vmem>>, vector<2x128xbf16>,
    %61 = vector.extract_strided_slice %47 {offsets = [64, 0], sizes = [16, 128], strides = [1, 1]} : vector<256x128xbf16> to vector<16x128xbf16>
    %c91 = arith.constant 91 : index
    %c0_44 = arith.constant 0 : index
    %62 = vector.load %arg17[%c91, %c0_44] : memref<328x128xbf16, #tpu.memory_space<vmem>>, vector<16x128xbf16>
    tpu.vector_store %arg17[%c91, %c0_44], %61 {strides = array<i32>} : memref<328x128xbf16, #tpu.memory_space<vmem>>, vector<16x128xbf16>,
    %c107 = arith.constant 107 : index
    %c0_45 = arith.constant 0 : index
    %63 = vector.load %arg17[%c107, %c0_45] : memref<328x128xbf16, #tpu.memory_space<vmem>>, vector<2x128xbf16>
    tpu.vector_store %arg17[%c107, %c0_45], %48 {strides = array<i32>} : memref<328x128xbf16, #tpu.memory_space<vmem>>, vector<2x128xbf16>,
    %64 = vector.extract_strided_slice %47 {offsets = [80, 0], sizes = [16, 128], strides = [1, 1]} : vector<256x128xbf16> to vector<16x128xbf16>
    %c109 = arith.constant 109 : index
    %c0_46 = arith.constant 0 : index
    %65 = vector.load %arg17[%c109, %c0_46] : memref<328x128xbf16, #tpu.memory_space<vmem>>, vector<16x128xbf16>
    tpu.vector_store %arg17[%c109, %c0_46], %64 {strides = array<i32>} : memref<328x128xbf16, #tpu.memory_space<vmem>>, vector<16x128xbf16>,
    %c125 = arith.constant 125 : index
    %c0_47 = arith.constant 0 : index
    %66 = vector.load %arg17[%c125, %c0_47] : memref<328x128xbf16, #tpu.memory_space<vmem>>, vector<2x128xbf16>
    tpu.vector_store %arg17[%c125, %c0_47], %48 {strides = array<i32>} : memref<328x128xbf16, #tpu.memory_space<vmem>>, vector<2x128xbf16>,
    %67 = vector.extract_strided_slice %47 {offsets = [96, 0], sizes = [16, 128], strides = [1, 1]} : vector<256x128xbf16> to vector<16x128xbf16>
    %c127 = arith.constant 127 : index
    %c0_48 = arith.constant 0 : index
    %68 = vector.load %arg17[%c127, %c0_48] : memref<328x128xbf16, #tpu.memory_space<vmem>>, vector<16x128xbf16>
    tpu.vector_store %arg17[%c127, %c0_48], %67 {strides = array<i32>} : memref<328x128xbf16, #tpu.memory_space<vmem>>, vector<16x128xbf16>,
    %c143 = arith.constant 143 : index
    %c0_49 = arith.constant 0 : index
    %69 = vector.load %arg17[%c143, %c0_49] : memref<328x128xbf16, #tpu.memory_space<vmem>>, vector<2x128xbf16>
    tpu.vector_store %arg17[%c143, %c0_49], %48 {strides = array<i32>} : memref<328x128xbf16, #tpu.memory_space<vmem>>, vector<2x128xbf16>,
    %70 = vector.extract_strided_slice %47 {offsets = [112, 0], sizes = [16, 128], strides = [1, 1]} : vector<256x128xbf16> to vector<16x128xbf16>
    %c145 = arith.constant 145 : index
    %c0_50 = arith.constant 0 : index
    %71 = vector.load %arg17[%c145, %c0_50] : memref<328x128xbf16, #tpu.memory_space<vmem>>, vector<16x128xbf16>
    tpu.vector_store %arg17[%c145, %c0_50], %70 {strides = array<i32>} : memref<328x128xbf16, #tpu.memory_space<vmem>>, vector<16x128xbf16>,
    %c161 = arith.constant 161 : index
    %c0_51 = arith.constant 0 : index
    %72 = vector.load %arg17[%c161, %c0_51] : memref<328x128xbf16, #tpu.memory_space<vmem>>, vector<2x128xbf16>
    tpu.vector_store %arg17[%c161, %c0_51], %48 {strides = array<i32>} : memref<328x128xbf16, #tpu.memory_space<vmem>>, vector<2x128xbf16>,
    %73 = vector.extract_strided_slice %47 {offsets = [128, 0], sizes = [16, 128], strides = [1, 1]} : vector<256x128xbf16> to vector<16x128xbf16>
    %c163 = arith.constant 163 : index
    %c0_52 = arith.constant 0 : index
    %74 = vector.load %arg17[%c163, %c0_52] : memref<328x128xbf16, #tpu.memory_space<vmem>>, vector<16x128xbf16>
    tpu.vector_store %arg17[%c163, %c0_52], %73 {strides = array<i32>} : memref<328x128xbf16, #tpu.memory_space<vmem>>, vector<16x128xbf16>,
    %c179 = arith.constant 179 : index
    %c0_53 = arith.constant 0 : index
    %75 = vector.load %arg17[%c179, %c0_53] : memref<328x128xbf16, #tpu.memory_space<vmem>>, vector<2x128xbf16>
    tpu.vector_store %arg17[%c179, %c0_53], %48 {strides = array<i32>} : memref<328x128xbf16, #tpu.memory_space<vmem>>, vector<2x128xbf16>,
    %76 = vector.extract_strided_slice %47 {offsets = [144, 0], sizes = [16, 128], strides = [1, 1]} : vector<256x128xbf16> to vector<16x128xbf16>
    %c181 = arith.constant 181 : index
    %c0_54 = arith.constant 0 : index
    %77 = vector.load %arg17[%c181, %c0_54] : memref<328x128xbf16, #tpu.memory_space<vmem>>, vector<16x128xbf16>
    tpu.vector_store %arg17[%c181, %c0_54], %76 {strides = array<i32>} : memref<328x128xbf16, #tpu.memory_space<vmem>>, vector<16x128xbf16>,
    %c197 = arith.constant 197 : index
    %c0_55 = arith.constant 0 : index
    %78 = vector.load %arg17[%c197, %c0_55] : memref<328x128xbf16, #tpu.memory_space<vmem>>, vector<2x128xbf16>
    tpu.vector_store %arg17[%c197, %c0_55], %48 {strides = array<i32>} : memref<328x128xbf16, #tpu.memory_space<vmem>>, vector<2x128xbf16>,
    %79 = vector.extract_strided_slice %47 {offsets = [160, 0], sizes = [16, 128], strides = [1, 1]} : vector<256x128xbf16> to vector<16x128xbf16>
    %c199 = arith.constant 199 : index
    %c0_56 = arith.constant 0 : index
    %80 = vector.load %arg17[%c199, %c0_56] : memref<328x128xbf16, #tpu.memory_space<vmem>>, vector<16x128xbf16>
    tpu.vector_store %arg17[%c199, %c0_56], %79 {strides = array<i32>} : memref<328x128xbf16, #tpu.memory_space<vmem>>, vector<16x128xbf16>,
    %c215 = arith.constant 215 : index
    %c0_57 = arith.constant 0 : index
    %81 = vector.load %arg17[%c215, %c0_57] : memref<328x128xbf16, #tpu.memory_space<vmem>>, vector<2x128xbf16>
    tpu.vector_store %arg17[%c215, %c0_57], %48 {strides = array<i32>} : memref<328x128xbf16, #tpu.memory_space<vmem>>, vector<2x128xbf16>,
    %82 = vector.extract_strided_slice %47 {offsets = [176, 0], sizes = [16, 128], strides = [1, 1]} : vector<256x128xbf16> to vector<16x128xbf16>
    %c217 = arith.constant 217 : index
    %c0_58 = arith.constant 0 : index
    %83 = vector.load %arg17[%c217, %c0_58] : memref<328x128xbf16, #tpu.memory_space<vmem>>, vector<16x128xbf16>
    tpu.vector_store %arg17[%c217, %c0_58], %82 {strides = array<i32>} : memref<328x128xbf16, #tpu.memory_space<vmem>>, vector<16x128xbf16>,
    %c233 = arith.constant 233 : index
    %c0_59 = arith.constant 0 : index
    %84 = vector.load %arg17[%c233, %c0_59] : memref<328x128xbf16, #tpu.memory_space<vmem>>, vector<2x128xbf16>
    tpu.vector_store %arg17[%c233, %c0_59], %48 {strides = array<i32>} : memref<328x128xbf16, #tpu.memory_space<vmem>>, vector<2x128xbf16>,
    %85 = vector.extract_strided_slice %47 {offsets = [192, 0], sizes = [16, 128], strides = [1, 1]} : vector<256x128xbf16> to vector<16x128xbf16>
    %c235 = arith.constant 235 : index
    %c0_60 = arith.constant 0 : index
    %86 = vector.load %arg17[%c235, %c0_60] : memref<328x128xbf16, #tpu.memory_space<vmem>>, vector<16x128xbf16>
    tpu.vector_store %arg17[%c235, %c0_60], %85 {strides = array<i32>} : memref<328x128xbf16, #tpu.memory_space<vmem>>, vector<16x128xbf16>,
    %c251 = arith.constant 251 : index
    %c0_61 = arith.constant 0 : index
    %87 = vector.load %arg17[%c251, %c0_61] : memref<328x128xbf16, #tpu.memory_space<vmem>>, vector<2x128xbf16>
    tpu.vector_store %arg17[%c251, %c0_61], %48 {strides = array<i32>} : memref<328x128xbf16, #tpu.memory_space<vmem>>, vector<2x128xbf16>,
    %88 = vector.extract_strided_slice %47 {offsets = [208, 0], sizes = [16, 128], strides = [1, 1]} : vector<256x128xbf16> to vector<16x128xbf16>
    %c253 = arith.constant 253 : index
    %c0_62 = arith.constant 0 : index
    %89 = vector.load %arg17[%c253, %c0_62] : memref<328x128xbf16, #tpu.memory_space<vmem>>, vector<16x128xbf16>
    tpu.vector_store %arg17[%c253, %c0_62], %88 {strides = array<i32>} : memref<328x128xbf16, #tpu.memory_space<vmem>>, vector<16x128xbf16>,
    %c269 = arith.constant 269 : index
    %c0_63 = arith.constant 0 : index
    %90 = vector.load %arg17[%c269, %c0_63] : memref<328x128xbf16, #tpu.memory_space<vmem>>, vector<2x128xbf16>
    tpu.vector_store %arg17[%c269, %c0_63], %48 {strides = array<i32>} : memref<328x128xbf16, #tpu.memory_space<vmem>>, vector<2x128xbf16>,
    %91 = vector.extract_strided_slice %47 {offsets = [224, 0], sizes = [16, 128], strides = [1, 1]} : vector<256x128xbf16> to vector<16x128xbf16>
    %c271 = arith.constant 271 : index
    %c0_64 = arith.constant 0 : index
    %92 = vector.load %arg17[%c271, %c0_64] : memref<328x128xbf16, #tpu.memory_space<vmem>>, vector<16x128xbf16>
    tpu.vector_store %arg17[%c271, %c0_64], %91 {strides = array<i32>} : memref<328x128xbf16, #tpu.memory_space<vmem>>, vector<16x128xbf16>,
    %c287 = arith.constant 287 : index
    %c0_65 = arith.constant 0 : index
    %93 = vector.load %arg17[%c287, %c0_65] : memref<328x128xbf16, #tpu.memory_space<vmem>>, vector<2x128xbf16>
    tpu.vector_store %arg17[%c287, %c0_65], %48 {strides = array<i32>} : memref<328x128xbf16, #tpu.memory_space<vmem>>, vector<2x128xbf16>,
    %94 = vector.extract_strided_slice %47 {offsets = [240, 0], sizes = [16, 128], strides = [1, 1]} : vector<256x128xbf16> to vector<16x128xbf16>
    %c289 = arith.constant 289 : index
    %c0_66 = arith.constant 0 : index
    %95 = vector.load %arg17[%c289, %c0_66] : memref<328x128xbf16, #tpu.memory_space<vmem>>, vector<16x128xbf16>
    tpu.vector_store %arg17[%c289, %c0_66], %94 {strides = array<i32>} : memref<328x128xbf16, #tpu.memory_space<vmem>>, vector<16x128xbf16>,
    %c305 = arith.constant 305 : index
    %c0_67 = arith.constant 0 : index
    %96 = vector.load %arg17[%c305, %c0_67] : memref<328x128xbf16, #tpu.memory_space<vmem>>, vector<2x128xbf16>
    tpu.vector_store %arg17[%c305, %c0_67], %48 {strides = array<i32>} : memref<328x128xbf16, #tpu.memory_space<vmem>>, vector<2x128xbf16>,
    %c0_68 = arith.constant 0 : index
    %c0_69 = arith.constant 0 : index
    %97 = vector.load %arg17[%c0_68, %c0_69] : memref<328x128xbf16, #tpu.memory_space<vmem>>, vector<288x128xbf16>
    %c0_70 = arith.constant 0 : index
    %c0_71 = arith.constant 0 : index
    %c0_72 = arith.constant 0 : index
    %98 = vector.load %arg6[%c0_70, %c0_71, %c0_72] : memref<9x128x128xbf16, #tpu.memory_space<vmem>>, vector<1x128x128xbf16>
    %99 = vector.shape_cast %98 : vector<1x128x128xbf16> to vector<128x128xbf16>
    %cst_73 = arith.constant dense<0.000000e+00> : vector<288x128xf32>
    %100 = tpu.matmul %97, %99, %cst_73 {dimension_numbers = #tpu.dot_dimension_numbers<[1], [0], [0], [1], [0, 0, 1, 1], [], []>} : vector<288x128xbf16>, vector<128x128xbf16>, vector<288x128xf32> -> vector<288x128xf32>
    %c1 = arith.constant 1 : index
    %c0_74 = arith.constant 0 : index
    %101 = vector.load %arg17[%c1, %c0_74] : memref<328x128xbf16, #tpu.memory_space<vmem>>, vector<288x128xbf16>
    %c1_75 = arith.constant 1 : index
    %c0_76 = arith.constant 0 : index
    %c0_77 = arith.constant 0 : index
    %102 = vector.load %arg6[%c1_75, %c0_76, %c0_77] : memref<9x128x128xbf16, #tpu.memory_space<vmem>>, vector<1x128x128xbf16>
    %103 = vector.shape_cast %102 : vector<1x128x128xbf16> to vector<128x128xbf16>
    %cst_78 = arith.constant dense<0.000000e+00> : vector<288x128xf32>
    %104 = tpu.matmul %101, %103, %cst_78 {dimension_numbers = #tpu.dot_dimension_numbers<[1], [0], [0], [1], [0, 0, 1, 1], [], []>} : vector<288x128xbf16>, vector<128x128xbf16>, vector<288x128xf32> -> vector<288x128xf32>
    %105 = arith.addf %100, %104 : vector<288x128xf32>
    %c2 = arith.constant 2 : index
    %c0_79 = arith.constant 0 : index
    %106 = vector.load %arg17[%c2, %c0_79] : memref<328x128xbf16, #tpu.memory_space<vmem>>, vector<288x128xbf16>
    %c2_80 = arith.constant 2 : index
    %c0_81 = arith.constant 0 : index
    %c0_82 = arith.constant 0 : index
    %107 = vector.load %arg6[%c2_80, %c0_81, %c0_82] : memref<9x128x128xbf16, #tpu.memory_space<vmem>>, vector<1x128x128xbf16>
    %108 = vector.shape_cast %107 : vector<1x128x128xbf16> to vector<128x128xbf16>
    %cst_83 = arith.constant dense<0.000000e+00> : vector<288x128xf32>
    %109 = tpu.matmul %106, %108, %cst_83 {dimension_numbers = #tpu.dot_dimension_numbers<[1], [0], [0], [1], [0, 0, 1, 1], [], []>} : vector<288x128xbf16>, vector<128x128xbf16>, vector<288x128xf32> -> vector<288x128xf32>
    %110 = arith.addf %105, %109 : vector<288x128xf32>
    %c18 = arith.constant 18 : index
    %c0_84 = arith.constant 0 : index
    %111 = vector.load %arg17[%c18, %c0_84] : memref<328x128xbf16, #tpu.memory_space<vmem>>, vector<288x128xbf16>
    %c3 = arith.constant 3 : index
    %c0_85 = arith.constant 0 : index
    %c0_86 = arith.constant 0 : index
    %112 = vector.load %arg6[%c3, %c0_85, %c0_86] : memref<9x128x128xbf16, #tpu.memory_space<vmem>>, vector<1x128x128xbf16>
    %113 = vector.shape_cast %112 : vector<1x128x128xbf16> to vector<128x128xbf16>
    %cst_87 = arith.constant dense<0.000000e+00> : vector<288x128xf32>
    %114 = tpu.matmul %111, %113, %cst_87 {dimension_numbers = #tpu.dot_dimension_numbers<[1], [0], [0], [1], [0, 0, 1, 1], [], []>} : vector<288x128xbf16>, vector<128x128xbf16>, vector<288x128xf32> -> vector<288x128xf32>
    %115 = arith.addf %110, %114 : vector<288x128xf32>
    %c19_88 = arith.constant 19 : index
    %c0_89 = arith.constant 0 : index
    %116 = vector.load %arg17[%c19_88, %c0_89] : memref<328x128xbf16, #tpu.memory_space<vmem>>, vector<288x128xbf16>
    %c4 = arith.constant 4 : index
    %c0_90 = arith.constant 0 : index
    %c0_91 = arith.constant 0 : index
    %117 = vector.load %arg6[%c4, %c0_90, %c0_91] : memref<9x128x128xbf16, #tpu.memory_space<vmem>>, vector<1x128x128xbf16>
    %118 = vector.shape_cast %117 : vector<1x128x128xbf16> to vector<128x128xbf16>
    %cst_92 = arith.constant dense<0.000000e+00> : vector<288x128xf32>
    %119 = tpu.matmul %116, %118, %cst_92 {dimension_numbers = #tpu.dot_dimension_numbers<[1], [0], [0], [1], [0, 0, 1, 1], [], []>} : vector<288x128xbf16>, vector<128x128xbf16>, vector<288x128xf32> -> vector<288x128xf32>
    %120 = arith.addf %115, %119 : vector<288x128xf32>
    %c20 = arith.constant 20 : index
    %c0_93 = arith.constant 0 : index
    %121 = vector.load %arg17[%c20, %c0_93] : memref<328x128xbf16, #tpu.memory_space<vmem>>, vector<288x128xbf16>
    %c5 = arith.constant 5 : index
    %c0_94 = arith.constant 0 : index
    %c0_95 = arith.constant 0 : index
    %122 = vector.load %arg6[%c5, %c0_94, %c0_95] : memref<9x128x128xbf16, #tpu.memory_space<vmem>>, vector<1x128x128xbf16>
    %123 = vector.shape_cast %122 : vector<1x128x128xbf16> to vector<128x128xbf16>
    %cst_96 = arith.constant dense<0.000000e+00> : vector<288x128xf32>
    %124 = tpu.matmul %121, %123, %cst_96 {dimension_numbers = #tpu.dot_dimension_numbers<[1], [0], [0], [1], [0, 0, 1, 1], [], []>} : vector<288x128xbf16>, vector<128x128xbf16>, vector<288x128xf32> -> vector<288x128xf32>
    %125 = arith.addf %120, %124 : vector<288x128xf32>
    %c36 = arith.constant 36 : index
    %c0_97 = arith.constant 0 : index
    %126 = vector.load %arg17[%c36, %c0_97] : memref<328x128xbf16, #tpu.memory_space<vmem>>, vector<288x128xbf16>
    %c6 = arith.constant 6 : index
    %c0_98 = arith.constant 0 : index
    %c0_99 = arith.constant 0 : index
    %127 = vector.load %arg6[%c6, %c0_98, %c0_99] : memref<9x128x128xbf16, #tpu.memory_space<vmem>>, vector<1x128x128xbf16>
    %128 = vector.shape_cast %127 : vector<1x128x128xbf16> to vector<128x128xbf16>
    %cst_100 = arith.constant dense<0.000000e+00> : vector<288x128xf32>
    %129 = tpu.matmul %126, %128, %cst_100 {dimension_numbers = #tpu.dot_dimension_numbers<[1], [0], [0], [1], [0, 0, 1, 1], [], []>} : vector<288x128xbf16>, vector<128x128xbf16>, vector<288x128xf32> -> vector<288x128xf32>
    %130 = arith.addf %125, %129 : vector<288x128xf32>
    %c37_101 = arith.constant 37 : index
    %c0_102 = arith.constant 0 : index
    %131 = vector.load %arg17[%c37_101, %c0_102] : memref<328x128xbf16, #tpu.memory_space<vmem>>, vector<288x128xbf16>
    %c7 = arith.constant 7 : index
    %c0_103 = arith.constant 0 : index
    %c0_104 = arith.constant 0 : index
    %132 = vector.load %arg6[%c7, %c0_103, %c0_104] : memref<9x128x128xbf16, #tpu.memory_space<vmem>>, vector<1x128x128xbf16>
    %133 = vector.shape_cast %132 : vector<1x128x128xbf16> to vector<128x128xbf16>
    %cst_105 = arith.constant dense<0.000000e+00> : vector<288x128xf32>
    %134 = tpu.matmul %131, %133, %cst_105 {dimension_numbers = #tpu.dot_dimension_numbers<[1], [0], [0], [1], [0, 0, 1, 1], [], []>} : vector<288x128xbf16>, vector<128x128xbf16>, vector<288x128xf32> -> vector<288x128xf32>
    %135 = arith.addf %130, %134 : vector<288x128xf32>
    %c38 = arith.constant 38 : index
    %c0_106 = arith.constant 0 : index
    %136 = vector.load %arg17[%c38, %c0_106] : memref<328x128xbf16, #tpu.memory_space<vmem>>, vector<288x128xbf16>
    %c8 = arith.constant 8 : index
    %c0_107 = arith.constant 0 : index
    %c0_108 = arith.constant 0 : index
    %137 = vector.load %arg6[%c8, %c0_107, %c0_108] : memref<9x128x128xbf16, #tpu.memory_space<vmem>>, vector<1x128x128xbf16>
    %138 = vector.shape_cast %137 : vector<1x128x128xbf16> to vector<128x128xbf16>
    %cst_109 = arith.constant dense<0.000000e+00> : vector<288x128xf32>
    %139 = tpu.matmul %136, %138, %cst_109 {dimension_numbers = #tpu.dot_dimension_numbers<[1], [0], [0], [1], [0, 0, 1, 1], [], []>} : vector<288x128xbf16>, vector<128x128xbf16>, vector<288x128xf32> -> vector<288x128xf32>
    %140 = arith.addf %135, %139 : vector<288x128xf32>
    %c0_110 = arith.constant 0 : index
    %c0_111 = arith.constant 0 : index
    %c0_112 = arith.constant 0 : index
    %141 = vector.load %arg7[%c0_110, %c0_111, %c0_112] : memref<1x1x128xf32, #tpu.memory_space<vmem>>, vector<1x1x128xf32>
    %142 = vector.shape_cast %141 : vector<1x1x128xf32> to vector<1x128xf32>
    %143 = vector.broadcast %142 : vector<1x128xf32> to vector<288x128xf32>
    %144 = arith.mulf %140, %143 : vector<288x128xf32>
    %c0_113 = arith.constant 0 : index
    %c0_114 = arith.constant 0 : index
    %c0_115 = arith.constant 0 : index
    %145 = vector.load %arg8[%c0_113, %c0_114, %c0_115] : memref<1x1x128xf32, #tpu.memory_space<vmem>>, vector<1x1x128xf32>
    %146 = vector.shape_cast %145 : vector<1x1x128xf32> to vector<1x128xf32>
    %147 = vector.broadcast %146 : vector<1x128xf32> to vector<288x128xf32>
    %148 = arith.addf %144, %147 : vector<288x128xf32>
    %149 = vector.broadcast %0 : vector<288x1xf32> to vector<288x128xf32>
    %150 = arith.mulf %148, %149 : vector<288x128xf32>
    %c0_116 = arith.constant 0 : index
    %c0_117 = arith.constant 0 : index
    %151 = vector.load %arg9[%c0_116, %c0_117] : memref<1x128xf32, #tpu.memory_space<vmem>>, vector<1x128xf32>
    %c0_118 = arith.constant 0 : index
    %c0_119 = arith.constant 0 : index
    %152 = vector.load %arg10[%c0_118, %c0_119] : memref<1x128xf32, #tpu.memory_space<vmem>>, vector<1x128xf32>
    %c0_120 = arith.constant 0 : index
    %c0_121 = arith.constant 0 : index
    %153 = vector.load %arg11[%c0_120, %c0_121] : memref<128x32xf32, #tpu.memory_space<vmem>>, vector<128x32xf32>
    %c0_122 = arith.constant 0 : index
    %c0_123 = arith.constant 0 : index
    %154 = vector.load %arg12[%c0_122, %c0_123] : memref<32x128xf32, #tpu.memory_space<vmem>>, vector<32x128xf32>
    %cst_124 = arith.constant dense<0.000000e+00> : vector<128xf32>
    %155 = vector.multi_reduction <add>, %150, %cst_124 [0] : vector<288x128xf32> to vector<128xf32>
    %156 = vector.shape_cast %155 : vector<128xf32> to vector<1x128xf32>
    %cst_125 = arith.constant dense<0.000000e+00> : vector<1x32xf32>
    %157 = tpu.matmul %156, %153, %cst_125 {dimension_numbers = #tpu.dot_dimension_numbers<[1], [0], [0], [1], [0, 0, 1, 1], [], []>} : vector<1x128xf32>, vector<128x32xf32>, vector<1x32xf32> -> vector<1x32xf32>
    %cst_126 = arith.constant 9.765625E-4 : f32
    %158 = vector.broadcast %cst_126 : f32 to vector<1x32xf32>
    %159 = arith.mulf %157, %158 : vector<1x32xf32>
    %cst_127 = arith.constant dense<0.000000e+00> : vector<1x128xf32>
    %160 = tpu.matmul %159, %154, %cst_127 {dimension_numbers = #tpu.dot_dimension_numbers<[1], [0], [0], [1], [0, 0, 1, 1], [], []>} : vector<1x32xf32>, vector<32x128xf32>, vector<1x128xf32> -> vector<1x128xf32>
    %161 = vector.broadcast %160 : vector<1x128xf32> to vector<288x128xf32>
    %162 = arith.subf %150, %161 : vector<288x128xf32>
    %163 = vector.broadcast %0 : vector<288x1xf32> to vector<288x128xf32>
    %164 = arith.mulf %162, %163 : vector<288x128xf32>
    %165 = arith.mulf %164, %164 : vector<288x128xf32>
    %cst_128 = arith.constant dense<0.000000e+00> : vector<128xf32>
    %166 = vector.multi_reduction <add>, %165, %cst_128 [0] : vector<288x128xf32> to vector<128xf32>
    %167 = vector.shape_cast %166 : vector<128xf32> to vector<1x128xf32>
    %cst_129 = arith.constant dense<0.000000e+00> : vector<1x32xf32>
    %168 = tpu.matmul %167, %153, %cst_129 {dimension_numbers = #tpu.dot_dimension_numbers<[1], [0], [0], [1], [0, 0, 1, 1], [], []>} : vector<1x128xf32>, vector<128x32xf32>, vector<1x32xf32> -> vector<1x32xf32>
    %cst_130 = arith.constant 9.765625E-4 : f32
    %169 = vector.broadcast %cst_130 : f32 to vector<1x32xf32>
    %170 = arith.mulf %168, %169 : vector<1x32xf32>
    %cst_131 = arith.constant 9.99999974E-6 : f32
    %171 = vector.broadcast %cst_131 : f32 to vector<1x32xf32>
    %172 = arith.addf %170, %171 : vector<1x32xf32>
    %173 = math.rsqrt %172 : vector<1x32xf32>
    %cst_132 = arith.constant dense<0.000000e+00> : vector<1x128xf32>
    %174 = tpu.matmul %173, %154, %cst_132 {dimension_numbers = #tpu.dot_dimension_numbers<[1], [0], [0], [1], [0, 0, 1, 1], [], []>} : vector<1x32xf32>, vector<32x128xf32>, vector<1x128xf32> -> vector<1x128xf32>
    %175 = arith.mulf %174, %151 : vector<1x128xf32>
    %176 = vector.broadcast %175 : vector<1x128xf32> to vector<288x128xf32>
    %177 = arith.mulf %164, %176 : vector<288x128xf32>
    %178 = vector.broadcast %152 : vector<1x128xf32> to vector<288x128xf32>
    %179 = arith.addf %177, %178 : vector<288x128xf32>
    %cst_133 = arith.constant 0.000000e+00 : f32
    %180 = vector.broadcast %cst_133 : f32 to vector<288x128xf32>
    %181 = arith.subf %180, %179 : vector<288x128xf32>
    %182 = math.exp %181 : vector<288x128xf32>
    %cst_134 = arith.constant 1.000000e+00 : f32
    %183 = vector.broadcast %cst_134 : f32 to vector<288x128xf32>
    %184 = arith.addf %183, %182 : vector<288x128xf32>
    %cst_135 = arith.constant 1.000000e+00 : f32
    %185 = vector.broadcast %cst_135 : f32 to vector<288x128xf32>
    %186 = arith.divf %185, %184 : vector<288x128xf32>
    %187 = arith.mulf %179, %186 : vector<288x128xf32>
    %188 = vector.broadcast %0 : vector<288x1xf32> to vector<288x128xf32>
    %189 = arith.mulf %187, %188 : vector<288x128xf32>
    %190 = arith.truncf %189 : vector<288x128xf32> to vector<288x128xbf16>
    %c19_136 = arith.constant 19 : index
    %c0_137 = arith.constant 0 : index
    %191 = vector.load %arg18[%c19_136, %c0_137] : memref<328x128xbf16, #tpu.memory_space<vmem>>, vector<288x128xbf16>
    tpu.vector_store %arg18[%c19_136, %c0_137], %190 {strides = array<i32>} : memref<328x128xbf16, #tpu.memory_space<vmem>>, vector<288x128xbf16>,
    %c0_138 = arith.constant 0 : index
    %c0_139 = arith.constant 0 : index
    %192 = vector.load %arg18[%c0_138, %c0_139] : memref<328x128xbf16, #tpu.memory_space<vmem>>, vector<288x128xbf16>
    %c0_140 = arith.constant 0 : index
    %c0_141 = arith.constant 0 : index
    %c0_142 = arith.constant 0 : index
    %193 = vector.load %arg13[%c0_140, %c0_141, %c0_142] : memref<9x128x128xbf16, #tpu.memory_space<vmem>>, vector<1x128x128xbf16>
    %194 = vector.shape_cast %193 : vector<1x128x128xbf16> to vector<128x128xbf16>
    %cst_143 = arith.constant dense<0.000000e+00> : vector<288x128xf32>
    %195 = tpu.matmul %192, %194, %cst_143 {dimension_numbers = #tpu.dot_dimension_numbers<[1], [0], [0], [1], [0, 0, 1, 1], [], []>} : vector<288x128xbf16>, vector<128x128xbf16>, vector<288x128xf32> -> vector<288x128xf32>
    %c1_144 = arith.constant 1 : index
    %c0_145 = arith.constant 0 : index
    %196 = vector.load %arg18[%c1_144, %c0_145] : memref<328x128xbf16, #tpu.memory_space<vmem>>, vector<288x128xbf16>
    %c1_146 = arith.constant 1 : index
    %c0_147 = arith.constant 0 : index
    %c0_148 = arith.constant 0 : index
    %197 = vector.load %arg13[%c1_146, %c0_147, %c0_148] : memref<9x128x128xbf16, #tpu.memory_space<vmem>>, vector<1x128x128xbf16>
    %198 = vector.shape_cast %197 : vector<1x128x128xbf16> to vector<128x128xbf16>
    %cst_149 = arith.constant dense<0.000000e+00> : vector<288x128xf32>
    %199 = tpu.matmul %196, %198, %cst_149 {dimension_numbers = #tpu.dot_dimension_numbers<[1], [0], [0], [1], [0, 0, 1, 1], [], []>} : vector<288x128xbf16>, vector<128x128xbf16>, vector<288x128xf32> -> vector<288x128xf32>
    %200 = arith.addf %195, %199 : vector<288x128xf32>
    %c2_150 = arith.constant 2 : index
    %c0_151 = arith.constant 0 : index
    %201 = vector.load %arg18[%c2_150, %c0_151] : memref<328x128xbf16, #tpu.memory_space<vmem>>, vector<288x128xbf16>
    %c2_152 = arith.constant 2 : index
    %c0_153 = arith.constant 0 : index
    %c0_154 = arith.constant 0 : index
    %202 = vector.load %arg13[%c2_152, %c0_153, %c0_154] : memref<9x128x128xbf16, #tpu.memory_space<vmem>>, vector<1x128x128xbf16>
    %203 = vector.shape_cast %202 : vector<1x128x128xbf16> to vector<128x128xbf16>
    %cst_155 = arith.constant dense<0.000000e+00> : vector<288x128xf32>
    %204 = tpu.matmul %201, %203, %cst_155 {dimension_numbers = #tpu.dot_dimension_numbers<[1], [0], [0], [1], [0, 0, 1, 1], [], []>} : vector<288x128xbf16>, vector<128x128xbf16>, vector<288x128xf32> -> vector<288x128xf32>
    %205 = arith.addf %200, %204 : vector<288x128xf32>
    %c18_156 = arith.constant 18 : index
    %c0_157 = arith.constant 0 : index
    %206 = vector.load %arg18[%c18_156, %c0_157] : memref<328x128xbf16, #tpu.memory_space<vmem>>, vector<288x128xbf16>
    %c3_158 = arith.constant 3 : index
    %c0_159 = arith.constant 0 : index
    %c0_160 = arith.constant 0 : index
    %207 = vector.load %arg13[%c3_158, %c0_159, %c0_160] : memref<9x128x128xbf16, #tpu.memory_space<vmem>>, vector<1x128x128xbf16>
    %208 = vector.shape_cast %207 : vector<1x128x128xbf16> to vector<128x128xbf16>
    %cst_161 = arith.constant dense<0.000000e+00> : vector<288x128xf32>
    %209 = tpu.matmul %206, %208, %cst_161 {dimension_numbers = #tpu.dot_dimension_numbers<[1], [0], [0], [1], [0, 0, 1, 1], [], []>} : vector<288x128xbf16>, vector<128x128xbf16>, vector<288x128xf32> -> vector<288x128xf32>
    %210 = arith.addf %205, %209 : vector<288x128xf32>
    %c19_162 = arith.constant 19 : index
    %c0_163 = arith.constant 0 : index
    %211 = vector.load %arg18[%c19_162, %c0_163] : memref<328x128xbf16, #tpu.memory_space<vmem>>, vector<288x128xbf16>
    %c4_164 = arith.constant 4 : index
    %c0_165 = arith.constant 0 : index
    %c0_166 = arith.constant 0 : index
    %212 = vector.load %arg13[%c4_164, %c0_165, %c0_166] : memref<9x128x128xbf16, #tpu.memory_space<vmem>>, vector<1x128x128xbf16>
    %213 = vector.shape_cast %212 : vector<1x128x128xbf16> to vector<128x128xbf16>
    %cst_167 = arith.constant dense<0.000000e+00> : vector<288x128xf32>
    %214 = tpu.matmul %211, %213, %cst_167 {dimension_numbers = #tpu.dot_dimension_numbers<[1], [0], [0], [1], [0, 0, 1, 1], [], []>} : vector<288x128xbf16>, vector<128x128xbf16>, vector<288x128xf32> -> vector<288x128xf32>
    %215 = arith.addf %210, %214 : vector<288x128xf32>
    %c20_168 = arith.constant 20 : index
    %c0_169 = arith.constant 0 : index
    %216 = vector.load %arg18[%c20_168, %c0_169] : memref<328x128xbf16, #tpu.memory_space<vmem>>, vector<288x128xbf16>
    %c5_170 = arith.constant 5 : index
    %c0_171 = arith.constant 0 : index
    %c0_172 = arith.constant 0 : index
    %217 = vector.load %arg13[%c5_170, %c0_171, %c0_172] : memref<9x128x128xbf16, #tpu.memory_space<vmem>>, vector<1x128x128xbf16>
    %218 = vector.shape_cast %217 : vector<1x128x128xbf16> to vector<128x128xbf16>
    %cst_173 = arith.constant dense<0.000000e+00> : vector<288x128xf32>
    %219 = tpu.matmul %216, %218, %cst_173 {dimension_numbers = #tpu.dot_dimension_numbers<[1], [0], [0], [1], [0, 0, 1, 1], [], []>} : vector<288x128xbf16>, vector<128x128xbf16>, vector<288x128xf32> -> vector<288x128xf32>
    %220 = arith.addf %215, %219 : vector<288x128xf32>
    %c36_174 = arith.constant 36 : index
    %c0_175 = arith.constant 0 : index
    %221 = vector.load %arg18[%c36_174, %c0_175] : memref<328x128xbf16, #tpu.memory_space<vmem>>, vector<288x128xbf16>
    %c6_176 = arith.constant 6 : index
    %c0_177 = arith.constant 0 : index
    %c0_178 = arith.constant 0 : index
    %222 = vector.load %arg13[%c6_176, %c0_177, %c0_178] : memref<9x128x128xbf16, #tpu.memory_space<vmem>>, vector<1x128x128xbf16>
    %223 = vector.shape_cast %222 : vector<1x128x128xbf16> to vector<128x128xbf16>
    %cst_179 = arith.constant dense<0.000000e+00> : vector<288x128xf32>
    %224 = tpu.matmul %221, %223, %cst_179 {dimension_numbers = #tpu.dot_dimension_numbers<[1], [0], [0], [1], [0, 0, 1, 1], [], []>} : vector<288x128xbf16>, vector<128x128xbf16>, vector<288x128xf32> -> vector<288x128xf32>
    %225 = arith.addf %220, %224 : vector<288x128xf32>
    %c37_180 = arith.constant 37 : index
    %c0_181 = arith.constant 0 : index
    %226 = vector.load %arg18[%c37_180, %c0_181] : memref<328x128xbf16, #tpu.memory_space<vmem>>, vector<288x128xbf16>
    %c7_182 = arith.constant 7 : index
    %c0_183 = arith.constant 0 : index
    %c0_184 = arith.constant 0 : index
    %227 = vector.load %arg13[%c7_182, %c0_183, %c0_184] : memref<9x128x128xbf16, #tpu.memory_space<vmem>>, vector<1x128x128xbf16>
    %228 = vector.shape_cast %227 : vector<1x128x128xbf16> to vector<128x128xbf16>
    %cst_185 = arith.constant dense<0.000000e+00> : vector<288x128xf32>
    %229 = tpu.matmul %226, %228, %cst_185 {dimension_numbers = #tpu.dot_dimension_numbers<[1], [0], [0], [1], [0, 0, 1, 1], [], []>} : vector<288x128xbf16>, vector<128x128xbf16>, vector<288x128xf32> -> vector<288x128xf32>
    %230 = arith.addf %225, %229 : vector<288x128xf32>
    %c38_186 = arith.constant 38 : index
    %c0_187 = arith.constant 0 : index
    %231 = vector.load %arg18[%c38_186, %c0_187] : memref<328x128xbf16, #tpu.memory_space<vmem>>, vector<288x128xbf16>
    %c8_188 = arith.constant 8 : index
    %c0_189 = arith.constant 0 : index
    %c0_190 = arith.constant 0 : index
    %232 = vector.load %arg13[%c8_188, %c0_189, %c0_190] : memref<9x128x128xbf16, #tpu.memory_space<vmem>>, vector<1x128x128xbf16>
    %233 = vector.shape_cast %232 : vector<1x128x128xbf16> to vector<128x128xbf16>
    %cst_191 = arith.constant dense<0.000000e+00> : vector<288x128xf32>
    %234 = tpu.matmul %231, %233, %cst_191 {dimension_numbers = #tpu.dot_dimension_numbers<[1], [0], [0], [1], [0, 0, 1, 1], [], []>} : vector<288x128xbf16>, vector<128x128xbf16>, vector<288x128xf32> -> vector<288x128xf32>
    %235 = arith.addf %230, %234 : vector<288x128xf32>
    %236 = vector.shape_cast %235 : vector<288x128xf32> to vector<16x18x128xf32>
    %237 = vector.extract_strided_slice %236 {offsets = [0, 0, 0], sizes = [16, 16, 128], strides = [1, 1, 1]} : vector<16x18x128xf32> to vector<16x16x128xf32>
    %c0_192 = arith.constant 0 : index
    %c0_193 = arith.constant 0 : index
    %238 = vector.load %arg14[%c0_192, %c0_193] : memref<1x128xf32, #tpu.memory_space<vmem>>, vector<1x128xf32>
    %239 = vector.shape_cast %238 : vector<1x128xf32> to vector<1x1x128xf32>
    %240 = vector.broadcast %239 : vector<1x1x128xf32> to vector<16x16x128xf32>
    %241 = arith.addf %237, %240 : vector<16x16x128xf32>
    %c0_194 = arith.constant 0 : index
    %c0_195 = arith.constant 0 : index
    %c0_196 = arith.constant 0 : index
    %c0_197 = arith.constant 0 : index
    %242 = vector.load %arg1[%c0_194, %c0_195, %c0_196, %c0_197] : memref<1x16x16x128xf32, #tpu.memory_space<vmem>>, vector<1x16x16x128xf32>
    %243 = vector.shape_cast %242 : vector<1x16x16x128xf32> to vector<16x16x128xf32>
    %244 = arith.addf %241, %243 : vector<16x16x128xf32>
    %c0_198 = arith.constant 0 : index
    %c0_199 = arith.constant 0 : index
    %c0_200 = arith.constant 0 : index
    %c0_201 = arith.constant 0 : index
    %245 = vector.load %arg16[%c0_198, %c0_199, %c0_200, %c0_201] : memref<1x16x16x128xf32, #tpu.memory_space<vmem>>, vector<1x16x16x128xf32>
    %246 = vector.shape_cast %245 : vector<1x16x16x128xf32> to vector<16x16x128xf32>
    %247 = vector.shape_cast %244 : vector<16x16x128xf32> to vector<1x16x16x128xf32>
    tpu.vector_store %arg16[%c0_198, %c0_199, %c0_200, %c0_201], %247 {strides = array<i32>} : memref<1x16x16x128xf32, #tpu.memory_space<vmem>>, vector<1x16x16x128xf32>,
    return
  }
  func.func @transform_0(%arg0: i32) -> (i32, i32, i32, i32) {
    %c0_i32 = arith.constant 0 : i32
    %c0_i32_0 = arith.constant 0 : i32
    %c0_i32_1 = arith.constant 0 : i32
    %c0_i32_2 = arith.constant 0 : i32
    return %arg0, %c0_i32, %c0_i32_0, %c0_i32_1 : i32, i32, i32, i32
  }
  func.func @transform_1(%arg0: i32) -> (i32, i32) {
    %c0_i32 = arith.constant 0 : i32
    %c0_i32_0 = arith.constant 0 : i32
    %c0_i32_1 = arith.constant 0 : i32
    return %c0_i32, %c0_i32_0 : i32, i32
  }
  func.func @transform_2(%arg0: i32) -> (i32, i32) {
    %c0_i32 = arith.constant 0 : i32
    %c0_i32_0 = arith.constant 0 : i32
    %c0_i32_1 = arith.constant 0 : i32
    return %c0_i32, %c0_i32_0 : i32, i32
  }
  func.func @transform_3(%arg0: i32) -> (i32, i32) {
    %c0_i32 = arith.constant 0 : i32
    %c0_i32_0 = arith.constant 0 : i32
    %c0_i32_1 = arith.constant 0 : i32
    return %c0_i32, %c0_i32_0 : i32, i32
  }
  func.func @transform_4(%arg0: i32) -> (i32, i32) {
    %c0_i32 = arith.constant 0 : i32
    %c0_i32_0 = arith.constant 0 : i32
    %c0_i32_1 = arith.constant 0 : i32
    return %c0_i32, %c0_i32_0 : i32, i32
  }
  func.func @transform_5(%arg0: i32) -> (i32, i32, i32) {
    %c0_i32 = arith.constant 0 : i32
    %c0_i32_0 = arith.constant 0 : i32
    %c0_i32_1 = arith.constant 0 : i32
    %c0_i32_2 = arith.constant 0 : i32
    return %c0_i32, %c0_i32_0, %c0_i32_1 : i32, i32, i32
  }
  func.func @transform_6(%arg0: i32) -> (i32, i32, i32) {
    %c0_i32 = arith.constant 0 : i32
    %c0_i32_0 = arith.constant 0 : i32
    %c0_i32_1 = arith.constant 0 : i32
    return %arg0, %c0_i32, %c0_i32_0 : i32, i32, i32
  }
  func.func @transform_7(%arg0: i32) -> (i32, i32, i32) {
    %c0_i32 = arith.constant 0 : i32
    %c0_i32_0 = arith.constant 0 : i32
    %c0_i32_1 = arith.constant 0 : i32
    return %arg0, %c0_i32, %c0_i32_0 : i32, i32, i32
  }
  func.func @transform_8(%arg0: i32) -> (i32, i32) {
    %c0_i32 = arith.constant 0 : i32
    %c0_i32_0 = arith.constant 0 : i32
    %c0_i32_1 = arith.constant 0 : i32
    return %c0_i32, %c0_i32_0 : i32, i32
  }
  func.func @transform_9(%arg0: i32) -> (i32, i32) {
    %c0_i32 = arith.constant 0 : i32
    %c0_i32_0 = arith.constant 0 : i32
    %c0_i32_1 = arith.constant 0 : i32
    return %c0_i32, %c0_i32_0 : i32, i32
  }
  func.func @transform_10(%arg0: i32) -> (i32, i32) {
    %c0_i32 = arith.constant 0 : i32
    %c0_i32_0 = arith.constant 0 : i32
    %c0_i32_1 = arith.constant 0 : i32
    return %c0_i32, %c0_i32_0 : i32, i32
  }
  func.func @transform_11(%arg0: i32) -> (i32, i32) {
    %c0_i32 = arith.constant 0 : i32
    %c0_i32_0 = arith.constant 0 : i32
    %c0_i32_1 = arith.constant 0 : i32
    return %c0_i32, %c0_i32_0 : i32, i32
  }
  func.func @transform_12(%arg0: i32) -> (i32, i32, i32) {
    %c0_i32 = arith.constant 0 : i32
    %c0_i32_0 = arith.constant 0 : i32
    %c0_i32_1 = arith.constant 0 : i32
    %c0_i32_2 = arith.constant 0 : i32
    return %c0_i32, %c0_i32_0, %c0_i32_1 : i32, i32, i32
  }
  func.func @transform_13(%arg0: i32) -> (i32, i32) {
    %c0_i32 = arith.constant 0 : i32
    %c0_i32_0 = arith.constant 0 : i32
    %c0_i32_1 = arith.constant 0 : i32
    return %c0_i32, %c0_i32_0 : i32, i32
  }
  func.func @transform_14(%arg0: i32) -> (i32, i32) {
    %c0_i32 = arith.constant 0 : i32
    %c0_i32_0 = arith.constant 0 : i32
    %c0_i32_1 = arith.constant 0 : i32
    return %c0_i32, %c0_i32_0 : i32, i32
  }
  func.func @transform_15(%arg0: i32) -> (i32, i32, i32, i32) {
    %c0_i32 = arith.constant 0 : i32
    %c0_i32_0 = arith.constant 0 : i32
    %c0_i32_1 = arith.constant 0 : i32
    %c0_i32_2 = arith.constant 0 : i32
    return %arg0, %c0_i32, %c0_i32_0, %c0_i32_1 : i32, i32, i32, i32
  }
}

</mosaic_0001>

<llo_original>
// kernel: tpu_custom_call.1
$region0: #{tpu_custom_call.1}
  #allocation0 [shape = 'u32[]', space=smem, size = 0x4, offset = 0x4, fixed_abs, tag = 'smem constant byte address 0x4 - core index']
  #allocation1 [shape = 'u32[72,128]{1,0:T(1,128)}', space=vmem, size = 0x9000, scoped, tag = 'internal scratch']
  #allocation2 [shape = 'bf16[328,128]{1,0:T(8,128)(2,1)}', space=vmem, size = 0x14800, scoped, tag = 'scratch operand']
  #allocation3 [shape = 'bf16[328,128]{1,0:T(8,128)(2,1)}', space=vmem, size = 0x14800, scoped, tag = 'scratch operand']
  %s0 = inlined_call_operand.hbm [shape: f32[2,16,16,128], index: 0, kind: input, shape index: {}]
  %s1 = inlined_call_operand.vmem [shape: f32[1,128], index: 1, kind: input, shape index: {}]
  %s2 = inlined_call_operand.vmem [shape: f32[1,128], index: 2, kind: input, shape index: {}]
  %s3 = inlined_call_operand.vmem [shape: f32[128,32], index: 3, kind: input, shape index: {}]
  %s4 = inlined_call_operand.vmem [shape: f32[32,128], index: 4, kind: input, shape index: {}]
  %s5 = inlined_call_operand.hbm [shape: bf16[9,128,128], index: 5, kind: input, shape index: {}]
  %s6 = inlined_call_operand.vmem [shape: f32[2,1,128], index: 6, kind: input, shape index: {}]
  %s7 = inlined_call_operand.vmem [shape: f32[2,1,128], index: 7, kind: input, shape index: {}]
  %s8 = inlined_call_operand.vmem [shape: f32[1,128], index: 8, kind: input, shape index: {}]
  %s9 = inlined_call_operand.vmem [shape: f32[1,128], index: 9, kind: input, shape index: {}]
  %s10 = inlined_call_operand.vmem [shape: f32[128,32], index: 10, kind: input, shape index: {}]
  %s11 = inlined_call_operand.vmem [shape: f32[32,128], index: 11, kind: input, shape index: {}]
  %s12 = inlined_call_operand.hbm [shape: bf16[9,128,128], index: 12, kind: input, shape index: {}]
  %s13 = inlined_call_operand.vmem [shape: f32[1,128], index: 13, kind: input, shape index: {}]
  %s14 = inlined_call_operand.vmem [shape: f32[288,1], index: 14, kind: input, shape index: {}]
  %s15 = inlined_call_operand.hbm [shape: f32[2,16,16,128], index: 15, kind: output, shape index: {}]
  %s16 = sld [smem:[#allocation0]]
  $region105: #{tpu_custom_call.1} parent=0
    _
  %s18 = ssub.s32 1, %s16
  %s19 = scalar_select 0, %s18, %s16
  $region1: #{tpu_custom_call.1} parent=0
    #allocation4 [shape = 'u8[262144]{0}', space=vmem, size = 0x40000, scoped, tag = 'input window, operand 0']
    #allocation5 [shape = 's32[2]{0}', space=sflag, size = 0x8, scoped, tag = 'scoped memory for tpu_custom_call.1']
    #allocation6 [shape = 's32[2]{0}', space=sflag, size = 0x8, scoped, tag = 'scoped memory for tpu_custom_call.1']
    #allocation7 [shape = 'u8[294912]{0}', space=vmem, size = 0x48000, scoped, tag = 'input window, operand 5, single buffered']
    #allocation8 [shape = 's32[1]{0}', space=sflag, size = 0x4, scoped, tag = 'scoped memory for tpu_custom_call.1']
    #allocation9 [shape = 'u8[294912]{0}', space=vmem, size = 0x48000, scoped, tag = 'input window, operand 12, single buffered']
    #allocation10 [shape = 'u8[262144]{0}', space=vmem, size = 0x40000, scoped, tag = 'output window, operand 0']
    %20 = vsyncpa [#allocation5], 0
    %s21 = scalar_lea.sflag [#allocation5], 1
    %22 = vsyncpa %s21, 0
    %23 = vsyncpa [#allocation8], 0
    %24 = vsyncpa [#allocation6], 0
    %s25 = scalar_lea.sflag [#allocation6], 1
    %26 = vsyncpa %s25, 0
    loop: start=0, step=1, limit=4
    $region2: #{tpu_custom_call.1} parent=1 // loop_pre_header
      _
    $region3: #{tpu_custom_call.1} parent=1 // loop_header
      %s28 = sphi 0, %s32
      %p29 = scmp.ge.s32.totalorder %s28, 4
      %s38 = sphi 0, %s40
      %s41 = sphi 0, %s38
      %s42 = sphi 0, %s41
      %s58 = sphi 0, %s42
      %s62 = sphi 0, %s62
      %s64 = sphi 0, %s62
      %s65 = sphi 0, %s64
      %s79 = sphi 0, %s65
      %s83 = sphi 0, %s83
      %s85 = sphi 0, %s83
      %s86 = sphi 0, %s85
      %s100 = sphi 0, %s86
      %s104 = sphi 0, %s104
      %s106 = sphi 0, %s104
      %s107 = sphi 0, %s106
      %s121 = sphi 0, %s107
      %s125 = sphi 0, %s125
      %s127 = sphi 0, %s125
      %s128 = sphi 0, %s127
      %s142 = sphi 0, %s128
      %s146 = sphi 0, %s146
      %s148 = sphi 0, %s146
      %s149 = sphi 0, %s148
      %s163 = sphi 0, %s149
      %s169 = sphi 0, %s171
      %s172 = sphi 0, %s169
      %s173 = sphi 0, %s172
      %s189 = sphi 0, %s173
      %s195 = sphi 0, %s197
      %s198 = sphi 0, %s195
      %s199 = sphi 0, %s198
      %s215 = sphi 0, %s199
      %s219 = sphi 0, %s219
      %s221 = sphi 0, %s219
      %s222 = sphi 0, %s221
      %s236 = sphi 0, %s222
      %s240 = sphi 0, %s240
      %s242 = sphi 0, %s240
      %s243 = sphi 0, %s242
      %s257 = sphi 0, %s243
      %s261 = sphi 0, %s261
      %s263 = sphi 0, %s261
      %s264 = sphi 0, %s263
      %s278 = sphi 0, %s264
      %s282 = sphi 0, %s282
      %s284 = sphi 0, %s282
      %s285 = sphi 0, %s284
      %s299 = sphi 0, %s285
      %s303 = sphi 0, %s303
      %s305 = sphi 0, %s303
      %s306 = sphi 0, %s305
      %s320 = sphi 0, %s306
      %s324 = sphi 0, %s324
      %s326 = sphi 0, %s324
      %s327 = sphi 0, %s326
      %s341 = sphi 0, %s327
      %s345 = sphi 0, %s345
      %s347 = sphi 0, %s345
      %s348 = sphi 0, %s347
      %s362 = sphi 0, %s348
      %s368 = sphi 0, %s370
      %s371 = sphi 0, %s368
      %s372 = sphi 0, %s371
      %s388 = sphi 0, %s372
    $region4: #{tpu_custom_call.1} parent=1 // loop_header_branch
      %31 = sbr.rel (%p29) target = $region8
    $region5: #{tpu_custom_call.1} parent=1 // loop_body
      %s33 = ssub.s32 %s28, 1
      %s34 = ssub.s32 %s28, 2
      %s35 = sadd.s32 %s28, 1
      %s36 = ssub.s32 %s28, %s35
      %p37 = scmp.eq.s32.totalorder %s36, 0
      %s39 = sadd.s32 %s38, 1
      %s40 = scalar_select %p37, %s38, %s39
      %p43 = pneg %p37
      %p44 = scmp.eq.s32.totalorder %s28, 1
      %p45 = por %p43, %p44
      %p46 = scmp.ne.s32.totalorder %s38, %s41
      %p47 = scmp.eq.s32.totalorder %s28, 0
      %p48 = por %p46, %p47
      %p49 = scmp.ne.s32.totalorder %s38, %s41
      %p50 = scmp.eq.s32.totalorder %s33, 1
      %p51 = por %p49, %p50
      %p52 = scmp.ne.s32.totalorder %s41, %s42
      %p53 = scmp.eq.s32.totalorder %s33, 0
      %p54 = por %p52, %p53
      %p55 = scmp.ne.s32.totalorder %s41, %s42
      %p56 = scmp.eq.s32.totalorder %s34, 1
      %p57 = por %p55, %p56
      %p59 = scmp.ne.s32.totalorder %s42, %s58
      %p60 = scmp.eq.s32.totalorder %s34, 0
      %p61 = por %p59, %p60
      %s63 = sadd.s32 %s62, 1
      %p66 = scmp.eq.s32.totalorder %s28, 1
      %p67 = scmp.ne.s32.totalorder %s62, %s64
      %p68 = scmp.eq.s32.totalorder %s28, 0
      %p69 = por %p67, %p68
      %p70 = scmp.ne.s32.totalorder %s62, %s64
      %p71 = scmp.eq.s32.totalorder %s33, 1
      %p72 = por %p70, %p71
      %p73 = scmp.ne.s32.totalorder %s64, %s65
      %p74 = scmp.eq.s32.totalorder %s33, 0
      %p75 = por %p73, %p74
      %p76 = scmp.ne.s32.totalorder %s64, %s65
      %p77 = scmp.eq.s32.totalorder %s34, 1
      %p78 = por %p76, %p77
      %p80 = scmp.ne.s32.totalorder %s65, %s79
      %p81 = scmp.eq.s32.totalorder %s34, 0
      %p82 = por %p80, %p81
      %s84 = sadd.s32 %s83, 1
      %p87 = scmp.eq.s32.totalorder %s28, 1
      %p88 = scmp.ne.s32.totalorder %s83, %s85
      %p89 = scmp.eq.s32.totalorder %s28, 0
      %p90 = por %p88, %p89
      %p91 = scmp.ne.s32.totalorder %s83, %s85
      %p92 = scmp.eq.s32.totalorder %s33, 1
      %p93 = por %p91, %p92
      %p94 = scmp.ne.s32.totalorder %s85, %s86
      %p95 = scmp.eq.s32.totalorder %s33, 0
      %p96 = por %p94, %p95
      %p97 = scmp.ne.s32.totalorder %s85, %s86
      %p98 = scmp.eq.s32.totalorder %s34, 1
      %p99 = por %p97, %p98
      %p101 = scmp.ne.s32.totalorder %s86, %s100
      %p102 = scmp.eq.s32.totalorder %s34, 0
      %p103 = por %p101, %p102
      %s105 = sadd.s32 %s104, 1
      %p108 = scmp.eq.s32.totalorder %s28, 1
      %p109 = scmp.ne.s32.totalorder %s104, %s106
      %p110 = scmp.eq.s32.totalorder %s28, 0
      %p111 = por %p109, %p110
      %p112 = scmp.ne.s32.totalorder %s104, %s106
      %p113 = scmp.eq.s32.totalorder %s33, 1
      %p114 = por %p112, %p113
      %p115 = scmp.ne.s32.totalorder %s106, %s107
      %p116 = scmp.eq.s32.totalorder %s33, 0
      %p117 = por %p115, %p116
      %p118 = scmp.ne.s32.totalorder %s106, %s107
      %p119 = scmp.eq.s32.totalorder %s34, 1
      %p120 = por %p118, %p119
      %p122 = scmp.ne.s32.totalorder %s107, %s121
      %p123 = scmp.eq.s32.totalorder %s34, 0
      %p124 = por %p122, %p123
      %s126 = sadd.s32 %s125, 1
      %p129 = scmp.eq.s32.totalorder %s28, 1
      %p130 = scmp.ne.s32.totalorder %s125, %s127
      %p131 = scmp.eq.s32.totalorder %s28, 0
      %p132 = por %p130, %p131
      %p133 = scmp.ne.s32.totalorder %s125, %s127
      %p134 = scmp.eq.s32.totalorder %s33, 1
      %p135 = por %p133, %p134
      %p136 = scmp.ne.s32.totalorder %s127, %s128
      %p137 = scmp.eq.s32.totalorder %s33, 0
      %p138 = por %p136, %p137
      %p139 = scmp.ne.s32.totalorder %s127, %s128
      %p140 = scmp.eq.s32.totalorder %s34, 1
      %p141 = por %p139, %p140
      %p143 = scmp.ne.s32.totalorder %s128, %s142
      %p144 = scmp.eq.s32.totalorder %s34, 0
      %p145 = por %p143, %p144
      %s147 = sadd.s32 %s146, 1
      %p150 = scmp.eq.s32.totalorder %s28, 1
      %p151 = scmp.ne.s32.totalorder %s146, %s148
      %p152 = scmp.eq.s32.totalorder %s28, 0
      %p153 = por %p151, %p152
      %p154 = scmp.ne.s32.totalorder %s146, %s148
      %p155 = scmp.eq.s32.totalorder %s33, 1
      %p156 = por %p154, %p155
      %p157 = scmp.ne.s32.totalorder %s148, %s149
      %p158 = scmp.eq.s32.totalorder %s33, 0
      %p159 = por %p157, %p158
      %p160 = scmp.ne.s32.totalorder %s148, %s149
      %p161 = scmp.eq.s32.totalorder %s34, 1
      %p162 = por %p160, %p161
      %p164 = scmp.ne.s32.totalorder %s149, %s163
      %p165 = scmp.eq.s32.totalorder %s34, 0
      %p166 = por %p164, %p165
      %s167 = ssub.s32 %s28, %s35
      %p168 = scmp.eq.s32.totalorder %s167, 0
      %s170 = sadd.s32 %s169, 1
      %s171 = scalar_select %p168, %s169, %s170
      %p174 = pneg %p168
      %p175 = scmp.eq.s32.totalorder %s28, 1
      %p176 = por %p174, %p175
      %p177 = scmp.ne.s32.totalorder %s169, %s172
      %p178 = scmp.eq.s32.totalorder %s28, 0
      %p179 = por %p177, %p178
      %p180 = scmp.ne.s32.totalorder %s169, %s172
      %p181 = scmp.eq.s32.totalorder %s33, 1
      %p182 = por %p180, %p181
      %p183 = scmp.ne.s32.totalorder %s172, %s173
      %p184 = scmp.eq.s32.totalorder %s33, 0
      %p185 = por %p183, %p184
      %p186 = scmp.ne.s32.totalorder %s172, %s173
      %p187 = scmp.eq.s32.totalorder %s34, 1
      %p188 = por %p186, %p187
      %p190 = scmp.ne.s32.totalorder %s173, %s189
      %p191 = scmp.eq.s32.totalorder %s34, 0
      %p192 = por %p190, %p191
      %s193 = ssub.s32 %s28, %s35
      %p194 = scmp.eq.s32.totalorder %s193, 0
      %s196 = sadd.s32 %s195, 1
      %s197 = scalar_select %p194, %s195, %s196
      %p200 = pneg %p194
      %p201 = scmp.eq.s32.totalorder %s28, 1
      %p202 = por %p200, %p201
      %p203 = scmp.ne.s32.totalorder %s195, %s198
      %p204 = scmp.eq.s32.totalorder %s28, 0
      %p205 = por %p203, %p204
      %p206 = scmp.ne.s32.totalorder %s195, %s198
      %p207 = scmp.eq.s32.totalorder %s33, 1
      %p208 = por %p206, %p207
      %p209 = scmp.ne.s32.totalorder %s198, %s199
      %p210 = scmp.eq.s32.totalorder %s33, 0
      %p211 = por %p209, %p210
      %p212 = scmp.ne.s32.totalorder %s198, %s199
      %p213 = scmp.eq.s32.totalorder %s34, 1
      %p214 = por %p212, %p213
      %p216 = scmp.ne.s32.totalorder %s199, %s215
      %p217 = scmp.eq.s32.totalorder %s34, 0
      %p218 = por %p216, %p217
      %s220 = sadd.s32 %s219, 1
      %p223 = scmp.eq.s32.totalorder %s28, 1
      %p224 = scmp.ne.s32.totalorder %s219, %s221
      %p225 = scmp.eq.s32.totalorder %s28, 0
      %p226 = por %p224, %p225
      %p227 = scmp.ne.s32.totalorder %s219, %s221
      %p228 = scmp.eq.s32.totalorder %s33, 1
      %p229 = por %p227, %p228
      %p230 = scmp.ne.s32.totalorder %s221, %s222
      %p231 = scmp.eq.s32.totalorder %s33, 0
      %p232 = por %p230, %p231
      %p233 = scmp.ne.s32.totalorder %s221, %s222
      %p234 = scmp.eq.s32.totalorder %s34, 1
      %p235 = por %p233, %p234
      %p237 = scmp.ne.s32.totalorder %s222, %s236
      %p238 = scmp.eq.s32.totalorder %s34, 0
      %p239 = por %p237, %p238
      %s241 = sadd.s32 %s240, 1
      %p244 = scmp.eq.s32.totalorder %s28, 1
      %p245 = scmp.ne.s32.totalorder %s240, %s242
      %p246 = scmp.eq.s32.totalorder %s28, 0
      %p247 = por %p245, %p246
      %p248 = scmp.ne.s32.totalorder %s240, %s242
      %p249 = scmp.eq.s32.totalorder %s33, 1
      %p250 = por %p248, %p249
      %p251 = scmp.ne.s32.totalorder %s242, %s243
      %p252 = scmp.eq.s32.totalorder %s33, 0
      %p253 = por %p251, %p252
      %p254 = scmp.ne.s32.totalorder %s242, %s243
      %p255 = scmp.eq.s32.totalorder %s34, 1
      %p256 = por %p254, %p255
      %p258 = scmp.ne.s32.totalorder %s243, %s257
      %p259 = scmp.eq.s32.totalorder %s34, 0
      %p260 = por %p258, %p259
      %s262 = sadd.s32 %s261, 1
      %p265 = scmp.eq.s32.totalorder %s28, 1
      %p266 = scmp.ne.s32.totalorder %s261, %s263
      %p267 = scmp.eq.s32.totalorder %s28, 0
      %p268 = por %p266, %p267
      %p269 = scmp.ne.s32.totalorder %s261, %s263
      %p270 = scmp.eq.s32.totalorder %s33, 1
      %p271 = por %p269, %p270
      %p272 = scmp.ne.s32.totalorder %s263, %s264
      %p273 = scmp.eq.s32.totalorder %s33, 0
      %p274 = por %p272, %p273
      %p275 = scmp.ne.s32.totalorder %s263, %s264
      %p276 = scmp.eq.s32.totalorder %s34, 1
      %p277 = por %p275, %p276
      %p279 = scmp.ne.s32.totalorder %s264, %s278
      %p280 = scmp.eq.s32.totalorder %s34, 0
      %p281 = por %p279, %p280
      %s283 = sadd.s32 %s282, 1
      %p286 = scmp.eq.s32.totalorder %s28, 1
      %p287 = scmp.ne.s32.totalorder %s282, %s284
      %p288 = scmp.eq.s32.totalorder %s28, 0
      %p289 = por %p287, %p288
      %p290 = scmp.ne.s32.totalorder %s282, %s284
      %p291 = scmp.eq.s32.totalorder %s33, 1
      %p292 = por %p290, %p291
      %p293 = scmp.ne.s32.totalorder %s284, %s285
      %p294 = scmp.eq.s32.totalorder %s33, 0
      %p295 = por %p293, %p294
      %p296 = scmp.ne.s32.totalorder %s284, %s285
      %p297 = scmp.eq.s32.totalorder %s34, 1
      %p298 = por %p296, %p297
      %p300 = scmp.ne.s32.totalorder %s285, %s299
      %p301 = scmp.eq.s32.totalorder %s34, 0
      %p302 = por %p300, %p301
      %s304 = sadd.s32 %s303, 1
      %p307 = scmp.eq.s32.totalorder %s28, 1
      %p308 = scmp.ne.s32.totalorder %s303, %s305
      %p309 = scmp.eq.s32.totalorder %s28, 0
      %p310 = por %p308, %p309
      %p311 = scmp.ne.s32.totalorder %s303, %s305
      %p312 = scmp.eq.s32.totalorder %s33, 1
      %p313 = por %p311, %p312
      %p314 = scmp.ne.s32.totalorder %s305, %s306
      %p315 = scmp.eq.s32.totalorder %s33, 0
      %p316 = por %p314, %p315
      %p317 = scmp.ne.s32.totalorder %s305, %s306
      %p318 = scmp.eq.s32.totalorder %s34, 1
      %p319 = por %p317, %p318
      %p321 = scmp.ne.s32.totalorder %s306, %s320
      %p322 = scmp.eq.s32.totalorder %s34, 0
      %p323 = por %p321, %p322
      %s325 = sadd.s32 %s324, 1
      %p328 = scmp.eq.s32.totalorder %s28, 1
      %p329 = scmp.ne.s32.totalorder %s324, %s326
      %p330 = scmp.eq.s32.totalorder %s28, 0
      %p331 = por %p329, %p330
      %p332 = scmp.ne.s32.totalorder %s324, %s326
      %p333 = scmp.eq.s32.totalorder %s33, 1
      %p334 = por %p332, %p333
      %p335 = scmp.ne.s32.totalorder %s326, %s327
      %p336 = scmp.eq.s32.totalorder %s33, 0
      %p337 = por %p335, %p336
      %p338 = scmp.ne.s32.totalorder %s326, %s327
      %p339 = scmp.eq.s32.totalorder %s34, 1
      %p340 = por %p338, %p339
      %p342 = scmp.ne.s32.totalorder %s327, %s341
      %p343 = scmp.eq.s32.totalorder %s34, 0
      %p344 = por %p342, %p343
      %s346 = sadd.s32 %s345, 1
      %p349 = scmp.eq.s32.totalorder %s28, 1
      %p350 = scmp.ne.s32.totalorder %s345, %s347
      %p351 = scmp.eq.s32.totalorder %s28, 0
      %p352 = por %p350, %p351
      %p353 = scmp.ne.s32.totalorder %s345, %s347
      %p354 = scmp.eq.s32.totalorder %s33, 1
      %p355 = por %p353, %p354
      %p356 = scmp.ne.s32.totalorder %s347, %s348
      %p357 = scmp.eq.s32.totalorder %s33, 0
      %p358 = por %p356, %p357
      %p359 = scmp.ne.s32.totalorder %s347, %s348
      %p360 = scmp.eq.s32.totalorder %s34, 1
      %p361 = por %p359, %p360
      %p363 = scmp.ne.s32.totalorder %s348, %s362
      %p364 = scmp.eq.s32.totalorder %s34, 0
      %p365 = por %p363, %p364
      %s366 = ssub.s32 %s28, %s35
      %p367 = scmp.eq.s32.totalorder %s366, 0
      %s369 = sadd.s32 %s368, 1
      %s370 = scalar_select %p367, %s368, %s369
      %p373 = pneg %p367
      %p374 = scmp.eq.s32.totalorder %s28, 1
      %p375 = por %p373, %p374
      %p376 = scmp.ne.s32.totalorder %s368, %s371
      %p377 = scmp.eq.s32.totalorder %s28, 0
      %p378 = por %p376, %p377
      %p379 = scmp.ne.s32.totalorder %s368, %s371
      %p380 = scmp.eq.s32.totalorder %s33, 1
      %p381 = por %p379, %p380
      %p382 = scmp.ne.s32.totalorder %s371, %s372
      %p383 = scmp.eq.s32.totalorder %s33, 0
      %p384 = por %p382, %p383
      %p385 = scmp.ne.s32.totalorder %s371, %s372
      %p386 = scmp.eq.s32.totalorder %s34, 1
      %p387 = por %p385, %p386
      %p389 = scmp.ne.s32.totalorder %s372, %s388
      %p390 = scmp.eq.s32.totalorder %s34, 0
      %p391 = por %p389, %p390
      %p392 = scmp.le.s32.totalorder 1, %s28
      %p393 = scmp.lt.s32.totalorder %s28, 3
      %p394 = pnand %p392, %p393
      %p395 = pneg %p394
      // Predicated region
      $region9: #{tpu_custom_call.1} parent=5 // pred_check
        _
      $region10: #{tpu_custom_call.1} parent=5 // pred_check_branch
        %397 = sbr.rel (%p394) target = $region12
      $region11: #{tpu_custom_call.1} parent=5 // pred_region
        %s398 = ssub.s32 %s28, 1
        // Predicated region
        $region13: #{tpu_custom_call.1} parent=11 // pred_check
          %p399 = pneg %p75
        $region14: #{tpu_custom_call.1} parent=11 // pred_check_branch
          %401 = sbr.rel (%p399) target = $region16
        $region15: #{tpu_custom_call.1} parent=11 // pred_region
          _
        $region16: #{tpu_custom_call.1} parent=11 // pred_fallthru
          _
        // Predicated region
        $region17: #{tpu_custom_call.1} parent=11 // pred_check
          %p402 = pneg %p96
        $region18: #{tpu_custom_call.1} parent=11 // pred_check_branch
          %404 = sbr.rel (%p402) target = $region20
        $region19: #{tpu_custom_call.1} parent=11 // pred_region
          _
        $region20: #{tpu_custom_call.1} parent=11 // pred_fallthru
          _
        // Predicated region
        $region21: #{tpu_custom_call.1} parent=11 // pred_check
          %p405 = pneg %p117
        $region22: #{tpu_custom_call.1} parent=11 // pred_check_branch
          %407 = sbr.rel (%p405) target = $region24
        $region23: #{tpu_custom_call.1} parent=11 // pred_region
          _
        $region24: #{tpu_custom_call.1} parent=11 // pred_fallthru
          _
        // Predicated region
        $region25: #{tpu_custom_call.1} parent=11 // pred_check
          %p408 = pneg %p138
        $region26: #{tpu_custom_call.1} parent=11 // pred_check_branch
          %410 = sbr.rel (%p408) target = $region28
        $region27: #{tpu_custom_call.1} parent=11 // pred_region
          _
        $region28: #{tpu_custom_call.1} parent=11 // pred_fallthru
          _
        // Predicated region
        $region29: #{tpu_custom_call.1} parent=11 // pred_check
          %p411 = pneg %p159
        $region30: #{tpu_custom_call.1} parent=11 // pred_check_branch
          %413 = sbr.rel (%p411) target = $region32
        $region31: #{tpu_custom_call.1} parent=11 // pred_region
          %415 = vsyncadd [#allocation8], 0
          %s416 = sshll.u32 %s5, 4
          %s417 = int_to_ptr.hbm [resolvable:$true] %s416
          %s418 = sshll.u32 [#allocation7], 4
          %s419 = int_to_ptr.vmem [resolvable:$true] %s418
          %424 = dma.hbm_to_vmem [thread:$0]  %s417, 9216, %s419, [#allocation8], 64, 64, 4
        $region32: #{tpu_custom_call.1} parent=11 // pred_fallthru
          _
        // Predicated region
        $region33: #{tpu_custom_call.1} parent=11 // pred_check
          %p425 = pneg %p232
        $region34: #{tpu_custom_call.1} parent=11 // pred_check_branch
          %427 = sbr.rel (%p425) target = $region36
        $region35: #{tpu_custom_call.1} parent=11 // pred_region
          _
        $region36: #{tpu_custom_call.1} parent=11 // pred_fallthru
          _
        // Predicated region
        $region37: #{tpu_custom_call.1} parent=11 // pred_check
          %p428 = pneg %p253
        $region38: #{tpu_custom_call.1} parent=11 // pred_check_branch
          %430 = sbr.rel (%p428) target = $region40
        $region39: #{tpu_custom_call.1} parent=11 // pred_region
          _
        $region40: #{tpu_custom_call.1} parent=11 // pred_fallthru
          _
        // Predicated region
        $region41: #{tpu_custom_call.1} parent=11 // pred_check
          %p431 = pneg %p274
        $region42: #{tpu_custom_call.1} parent=11 // pred_check_branch
          %433 = sbr.rel (%p431) target = $region44
        $region43: #{tpu_custom_call.1} parent=11 // pred_region
          _
        $region44: #{tpu_custom_call.1} parent=11 // pred_fallthru
          _
        // Predicated region
        $region45: #{tpu_custom_call.1} parent=11 // pred_check
          %p434 = pneg %p295
        $region46: #{tpu_custom_call.1} parent=11 // pred_check_branch
          %436 = sbr.rel (%p434) target = $region48
        $region47: #{tpu_custom_call.1} parent=11 // pred_region
          _
        $region48: #{tpu_custom_call.1} parent=11 // pred_fallthru
          _
        // Predicated region
        $region49: #{tpu_custom_call.1} parent=11 // pred_check
          %p437 = pneg %p316
        $region50: #{tpu_custom_call.1} parent=11 // pred_check_branch
          %439 = sbr.rel (%p437) target = $region52
        $region51: #{tpu_custom_call.1} parent=11 // pred_region
          %441 = vsyncadd [#allocation8], 0
          %s442 = sshll.u32 %s12, 4
          %s443 = int_to_ptr.hbm [resolvable:$true] %s442
          %s444 = sshll.u32 [#allocation9], 4
          %s445 = int_to_ptr.vmem [resolvable:$true] %s444
          %450 = dma.hbm_to_vmem [thread:$0]  %s443, 9216, %s445, [#allocation8], 64, 64, 4
        $region52: #{tpu_custom_call.1} parent=11 // pred_fallthru
          _
        // Predicated region
        $region53: #{tpu_custom_call.1} parent=11 // pred_check
          %p451 = pneg %p337
        $region54: #{tpu_custom_call.1} parent=11 // pred_check_branch
          %453 = sbr.rel (%p451) target = $region56
        $region55: #{tpu_custom_call.1} parent=11 // pred_region
          _
        $region56: #{tpu_custom_call.1} parent=11 // pred_fallthru
          _
        // Predicated region
        $region57: #{tpu_custom_call.1} parent=11 // pred_check
          %p454 = pneg %p358
        $region58: #{tpu_custom_call.1} parent=11 // pred_check_branch
          %456 = sbr.rel (%p454) target = $region60
        $region59: #{tpu_custom_call.1} parent=11 // pred_region
          _
        $region60: #{tpu_custom_call.1} parent=11 // pred_fallthru
          _
      $region12: #{tpu_custom_call.1} parent=5 // pred_fallthru
        _
      %p457 = scmp.lt.s32.totalorder %s28, 2
      // Predicated region
      $region61: #{tpu_custom_call.1} parent=5 // pred_check
        %p458 = pneg %p457
      $region62: #{tpu_custom_call.1} parent=5 // pred_check_branch
        %460 = sbr.rel (%p458) target = $region64
      $region63: #{tpu_custom_call.1} parent=5 // pred_region
        // Predicated region
        $region65: #{tpu_custom_call.1} parent=63 // pred_check
          %p461 = pneg %p48
        $region66: #{tpu_custom_call.1} parent=63 // pred_check_branch
          %463 = sbr.rel (%p461) target = $region68
        $region67: #{tpu_custom_call.1} parent=63 // pred_region
          %s464 = sand.u32 %s38, 1
          %s465 = scalar_lea.sflag [#allocation5], %s464
          %s466 = sand.u32 %s38, 1
          %s467 = smul.addr %s466, 256
          %s468 = scalar_lea.vmem [#allocation4], %s467
          %470 = vsyncadd %s465, 0
          %s471 = smul.addr %s28, 32
          %s472 = smul.addr %s471, 8
          %s473 = scalar_lea.hbm %s0, %s472
          %s474 = sshll.u32 %s473, 4
          %s475 = int_to_ptr.hbm [resolvable:$true] %s474
          %s476 = sshll.u32 %s468, 4
          %s477 = int_to_ptr.vmem [resolvable:$true] %s476
          %482 = dma.hbm_to_vmem [thread:$0]  %s475, 4096, %s477, %s465, 128, 128, 8
        $region68: #{tpu_custom_call.1} parent=63 // pred_fallthru
          _
        // Predicated region
        $region69: #{tpu_custom_call.1} parent=63 // pred_check
          %p483 = pneg %p179
        $region70: #{tpu_custom_call.1} parent=63 // pred_check_branch
          %485 = sbr.rel (%p483) target = $region72
        $region71: #{tpu_custom_call.1} parent=63 // pred_region
          %p486 = scmp.lt.s32.totalorder %s28, 1
          %s487 = scalar_select %p486, %s28, 1
          %s488 = scalar_lea.vmem %s6, %s487
        $region72: #{tpu_custom_call.1} parent=63 // pred_fallthru
          _
        // Predicated region
        $region73: #{tpu_custom_call.1} parent=63 // pred_check
          %p489 = pneg %p205
        $region74: #{tpu_custom_call.1} parent=63 // pred_check_branch
          %491 = sbr.rel (%p489) target = $region76
        $region75: #{tpu_custom_call.1} parent=63 // pred_region
          %p492 = scmp.lt.s32.totalorder %s28, 1
          %s493 = scalar_select %p492, %s28, 1
          %s494 = scalar_lea.vmem %s7, %s493
        $region76: #{tpu_custom_call.1} parent=63 // pred_fallthru
          _
      $region64: #{tpu_custom_call.1} parent=5 // pred_fallthru
        _
      %p495 = scmp.le.s32.totalorder 1, %s28
      %p496 = scmp.lt.s32.totalorder %s28, 3
      %p497 = pnand %p495, %p496
      %p498 = pneg %p497
      // Predicated region
      $region77: #{tpu_custom_call.1} parent=5 // pred_check
        _
      $region78: #{tpu_custom_call.1} parent=5 // pred_check_branch
        %500 = sbr.rel (%p497) target = $region80
      $region79: #{tpu_custom_call.1} parent=5 // pred_region
        %s501 = ssub.s32 %s28, 1
        %s502 = sand.u32 %s41, 1
        %s503 = scalar_lea.sflag [#allocation5], %s502
        %s504 = sand.u32 %s41, 1
        %s505 = smul.addr %s504, 256
        %s506 = scalar_lea.vmem [#allocation4], %s505
        // Predicated region
        $region81: #{tpu_custom_call.1} parent=79 // pred_check
          %p507 = pneg %p54
        $region82: #{tpu_custom_call.1} parent=79 // pred_check_branch
          %509 = sbr.rel (%p507) target = $region84
        $region83: #{tpu_custom_call.1} parent=79 // pred_region
          %511 = dma.done %s503, 4096
        $region84: #{tpu_custom_call.1} parent=79 // pred_fallthru
          _
        // Predicated region
        $region85: #{tpu_custom_call.1} parent=79 // pred_check
          %p512 = pneg %p159
        $region86: #{tpu_custom_call.1} parent=79 // pred_check_branch
          %514 = sbr.rel (%p512) target = $region88
        $region87: #{tpu_custom_call.1} parent=79 // pred_region
          %516 = dma.done [#allocation8], 9216
        $region88: #{tpu_custom_call.1} parent=79 // pred_fallthru
          _
        // Predicated region
        $region89: #{tpu_custom_call.1} parent=79 // pred_check
          %p517 = pneg %p316
        $region90: #{tpu_custom_call.1} parent=79 // pred_check_branch
          %519 = sbr.rel (%p517) target = $region92
        $region91: #{tpu_custom_call.1} parent=79 // pred_region
          %521 = dma.done [#allocation8], 9216
        $region92: #{tpu_custom_call.1} parent=79 // pred_fallthru
          _
        %s522 = sand.u32 %s41, 1
        %s523 = scalar_lea.sflag [#allocation5], %s522
        %s524 = sand.u32 %s41, 1
        %s525 = smul.addr %s524, 256
        %s526 = scalar_lea.vmem [#allocation4], %s525
        %p527 = pneg %p54
        %p528 = pneg %p51
        %p529 = pneg %p75
        %p530 = pneg %p72
        %p531 = pneg %p96
        %p532 = pneg %p93
        %p533 = pneg %p117
        %p534 = pneg %p114
        %p535 = pneg %p138
        %p536 = pneg %p135
        %p537 = pneg %p159
        %p538 = pneg %p156
        %p539 = scmp.lt.s32.totalorder %s33, 1
        %s540 = scalar_select %p539, %s33, 1
        %s541 = scalar_lea.vmem %s6, %s540
        %p542 = pneg %p185
        %p543 = pneg %p182
        %p544 = scmp.lt.s32.totalorder %s33, 1
        %s545 = scalar_select %p544, %s33, 1
        %s546 = scalar_lea.vmem %s7, %s545
        %p547 = pneg %p211
        %p548 = pneg %p208
        %p549 = pneg %p232
        %p550 = pneg %p229
        %p551 = pneg %p253
        %p552 = pneg %p250
        %p553 = pneg %p274
        %p554 = pneg %p271
        %p555 = pneg %p295
        %p556 = pneg %p292
        %p557 = pneg %p316
        %p558 = pneg %p313
        %p559 = pneg %p337
        %p560 = pneg %p334
        %p561 = pneg %p358
        %p562 = pneg %p355
        %p563 = pneg %p384
        %p564 = pneg %p381
        %s565 = sand.u32 %s371, 1
        %s566 = scalar_lea.sflag [#allocation6], %s565
        %s567 = sand.u32 %s371, 1
        %s568 = smul.addr %s567, 256
        %s569 = scalar_lea.vmem [#allocation10], %s568
        %p570 = scmp.lt.s32.totalorder %s33, 1
        %s571 = scalar_select %p570, %s33, 1
        %s572 = scalar_lea.vmem %s6, %s571
        %p573 = scmp.lt.s32.totalorder %s33, 1
        %s574 = scalar_select %p573, %s33, 1
        %s575 = scalar_lea.vmem %s7, %s574
        %v577 = vld [vmem:[%s14] sm:$0xff]
        %v578 = vld [vmem:[%s14 + $0x8] sm:$0xff]
        %v579 = vld [vmem:[%s14 + $0x10] sm:$0xff]
        %v580 = vld [vmem:[%s14 + $0x18] sm:$0xff]
        %v581 = vld [vmem:[%s14 + $0x20] sm:$0xff]
        %v582 = vld [vmem:[%s14 + $0x28] sm:$0xff]
        %v583 = vld [vmem:[%s14 + $0x30] sm:$0xff]
        %v584 = vld [vmem:[%s14 + $0x38] sm:$0xff]
        %v585 = vld [vmem:[%s14 + $0x40] sm:$0xff]
        %v586 = vld [vmem:[%s14 + $0x48] sm:$0xff]
        %v587 = vld [vmem:[%s14 + $0x50] sm:$0xff]
        %v588 = vld [vmem:[%s14 + $0x58] sm:$0xff]
        %v589 = vld [vmem:[%s14 + $0x60] sm:$0xff]
        %v590 = vld [vmem:[%s14 + $0x68] sm:$0xff]
        %v591 = vld [vmem:[%s14 + $0x70] sm:$0xff]
        %v592 = vld [vmem:[%s14 + $0x78] sm:$0xff]
        %v593 = vld [vmem:[%s14 + $0x80] sm:$0xff]
        %v594 = vld [vmem:[%s14 + $0x88] sm:$0xff]
        %v595 = vld [vmem:[%s14 + $0x90] sm:$0xff]
        %v596 = vld [vmem:[%s14 + $0x98] sm:$0xff]
        %v597 = vld [vmem:[%s14 + $0xa0] sm:$0xff]
        %v598 = vld [vmem:[%s14 + $0xa8] sm:$0xff]
        %v599 = vld [vmem:[%s14 + $0xb0] sm:$0xff]
        %v600 = vld [vmem:[%s14 + $0xb8] sm:$0xff]
        %v601 = vld [vmem:[%s14 + $0xc0] sm:$0xff]
        %v602 = vld [vmem:[%s14 + $0xc8] sm:$0xff]
        %v603 = vld [vmem:[%s14 + $0xd0] sm:$0xff]
        %v604 = vld [vmem:[%s14 + $0xd8] sm:$0xff]
        %v605 = vld [vmem:[%s14 + $0xe0] sm:$0xff]
        %v606 = vld [vmem:[%s14 + $0xe8] sm:$0xff]
        %v607 = vld [vmem:[%s14 + $0xf0] sm:$0xff]
        %v608 = vld [vmem:[%s14 + $0xf8] sm:$0xff]
        %v609 = vld [vmem:[%s14 + $0x100] sm:$0xff]
        %v610 = vld [vmem:[%s14 + $0x108] sm:$0xff]
        %v611 = vld [vmem:[%s14 + $0x110] sm:$0xff]
        %v612 = vld [vmem:[%s14 + $0x118] sm:$0xff]
        %613 = vst [vmem:[#allocation2] sm:$0xf] 0
        %614 = vst [vmem:[#allocation2 + $0x4] sm:$0xf] 0
        %vm615 = vcmask 1041408
        %vm616 = vsmask.f32 1280
        %vm617 = vmand %vm615, %vm616
        %v618 = vld [vmem:[#allocation2 + $0x8] sm:$0x3]
        %v619 = vsel %vm617, 0, %v618
        %620 = vst [vmem:[#allocation2 + $0x8] sm:$0x3] %v619
        %vm621 = vcmask 1043457
        %vm622 = vsmask.f32 7942
        %vm623 = vmand %vm621, %vm622
        %v624 = vld [vmem:[#allocation2 + $0x98] sm:$0xe]
        %v625 = vsel %vm623, 0, %v624
        %626 = vst [vmem:[#allocation2 + $0x98] sm:$0xe] %v625
        %627 = vst [vmem:[#allocation2 + $0x9c] sm:$0xf] 0
        %628 = vst [vmem:[#allocation2 + $0xa0] sm:$0xf] 0
        %629 = vst [vmem:[#allocation3] sm:$0xf] 0
        %630 = vst [vmem:[#allocation3 + $0x4] sm:$0xf] 0
        %v631 = vld [vmem:[#allocation3 + $0x8] sm:$0x3]
        %v632 = vsel %vm617, 0, %v631
        %633 = vst [vmem:[#allocation3 + $0x8] sm:$0x3] %v632
        %v634 = vld [vmem:[#allocation3 + $0x98] sm:$0xe]
        %v635 = vsel %vm623, 0, %v634
        %636 = vst [vmem:[#allocation3 + $0x98] sm:$0xe] %v635
        %637 = vst [vmem:[#allocation3 + $0x9c] sm:$0xf] 0
        %638 = vst [vmem:[#allocation3 + $0xa0] sm:$0xf] 0
        %v639 = vld [vmem:[%s506] sm:$0xff]
        %v640 = vld [vmem:[%s506 + $0x8] sm:$0xff]
        %v641 = vld [vmem:[%s506 + $0x10] sm:$0xff]
        %v642 = vld [vmem:[%s506 + $0x18] sm:$0xff]
        %v643 = vld [vmem:[%s506 + $0x20] sm:$0xff]
        %v644 = vld [vmem:[%s506 + $0x28] sm:$0xff]
        %v645 = vld [vmem:[%s506 + $0x30] sm:$0xff]
        %v646 = vld [vmem:[%s506 + $0x38] sm:$0xff]
        %v647 = vld [vmem:[%s506 + $0x40] sm:$0xff]
        %v648 = vld [vmem:[%s506 + $0x48] sm:$0xff]
        %v649 = vld [vmem:[%s506 + $0x50] sm:$0xff]
        %v650 = vld [vmem:[%s506 + $0x58] sm:$0xff]
        %v651 = vld [vmem:[%s506 + $0x60] sm:$0xff]
        %v652 = vld [vmem:[%s506 + $0x68] sm:$0xff]
        %v653 = vld [vmem:[%s506 + $0x70] sm:$0xff]
        %v654 = vld [vmem:[%s506 + $0x78] sm:$0xff]
        %v655 = vld [vmem:[%s506 + $0x80] sm:$0xff]
        %v656 = vld [vmem:[%s506 + $0x88] sm:$0xff]
        %v657 = vld [vmem:[%s506 + $0x90] sm:$0xff]
        %v658 = vld [vmem:[%s506 + $0x98] sm:$0xff]
        %v659 = vld [vmem:[%s506 + $0xa0] sm:$0xff]
        %v660 = vld [vmem:[%s506 + $0xa8] sm:$0xff]
        %v661 = vld [vmem:[%s506 + $0xb0] sm:$0xff]
        %v662 = vld [vmem:[%s506 + $0xb8] sm:$0xff]
        %v663 = vld [vmem:[%s506 + $0xc0] sm:$0xff]
        %v664 = vld [vmem:[%s506 + $0xc8] sm:$0xff]
        %v665 = vld [vmem:[%s506 + $0xd0] sm:$0xff]
        %v666 = vld [vmem:[%s506 + $0xd8] sm:$0xff]
        %v667 = vld [vmem:[%s506 + $0xe0] sm:$0xff]
        %v668 = vld [vmem:[%s506 + $0xe8] sm:$0xff]
        %v669 = vld [vmem:[%s506 + $0xf0] sm:$0xff]
        %v670 = vld [vmem:[%s506 + $0xf8] sm:$0xff]
        %v671 = vld [vmem:[%s1] sm:$0x1]
        %v672 = vld [vmem:[%s2] sm:$0x1]
        %v673 = vld [vmem:[%s3] sm:$0xff]
        %v674 = vld [vmem:[%s3 + $0x8] sm:$0xff]
        %v675 = vld [vmem:[%s3 + $0x10] sm:$0xff]
        %v676 = vld [vmem:[%s3 + $0x18] sm:$0xff]
        %v677 = vld [vmem:[%s3 + $0x20] sm:$0xff]
        %v678 = vld [vmem:[%s3 + $0x28] sm:$0xff]
        %v679 = vld [vmem:[%s3 + $0x30] sm:$0xff]
        %v680 = vld [vmem:[%s3 + $0x38] sm:$0xff]
        %v681 = vld [vmem:[%s3 + $0x40] sm:$0xff]
        %v682 = vld [vmem:[%s3 + $0x48] sm:$0xff]
        %v683 = vld [vmem:[%s3 + $0x50] sm:$0xff]
        %v684 = vld [vmem:[%s3 + $0x58] sm:$0xff]
        %v685 = vld [vmem:[%s3 + $0x60] sm:$0xff]
        %v686 = vld [vmem:[%s3 + $0x68] sm:$0xff]
        %v687 = vld [vmem:[%s3 + $0x70] sm:$0xff]
        %v688 = vld [vmem:[%s3 + $0x78] sm:$0xff]
        %v689 = vld [vmem:[%s4] sm:$0xff]
        %v690 = vld [vmem:[%s4 + $0x8] sm:$0xff]
        %v691 = vld [vmem:[%s4 + $0x10] sm:$0xff]
        %v692 = vld [vmem:[%s4 + $0x18] sm:$0xff]
        %v693 = vadd.f32 %v639, %v640
        %v694 = vadd.f32 %v693, %v641
        %v695 = vadd.f32 %v694, %v642
        %v696 = vadd.f32 %v695, %v643
        %v697 = vadd.f32 %v696, %v644
        %v698 = vadd.f32 %v697, %v645
        %v699 = vadd.f32 %v698, %v646
        %v700 = vadd.f32 %v699, %v647
        %v701 = vadd.f32 %v700, %v648
        %v702 = vadd.f32 %v701, %v649
        %v703 = vadd.f32 %v702, %v650
        %v704 = vadd.f32 %v703, %v651
        %v705 = vadd.f32 %v704, %v652
        %v706 = vadd.f32 %v705, %v653
        %v707 = vadd.f32 %v706, %v654
        %v708 = vadd.f32 %v707, %v655
        %v709 = vadd.f32 %v708, %v656
        %v710 = vadd.f32 %v709, %v657
        %v711 = vadd.f32 %v710, %v658
        %v712 = vadd.f32 %v711, %v659
        %v713 = vadd.f32 %v712, %v660
        %v714 = vadd.f32 %v713, %v661
        %v715 = vadd.f32 %v714, %v662
        %v716 = vadd.f32 %v715, %v663
        %v717 = vadd.f32 %v716, %v664
        %v718 = vadd.f32 %v717, %v665
        %v719 = vadd.f32 %v718, %v666
        %v720 = vadd.f32 %v719, %v667
        %v721 = vadd.f32 %v720, %v668
        %v722 = vadd.f32 %v721, %v669
        %v723 = vadd.f32 %v722, %v670
        %v724 = vrot.slane %v723, 4
        %v725 = vadd.f32 %v723, %v724
        %v726 = vrot.slane %v725, 2
        %v727 = vadd.f32 %v725, %v726
        %v728 = vrot.slane %v727, 1
        %v729 = vadd.f32 %v727, %v728
        %730 = vmatpush.msra.mxu0 %v688
        %731 = vmatpush.msra.mxu0 %v687
        %732 = vmatpush.msra.mxu0 %v686
        %733 = vmatpush.msra.mxu0 %v685
        %734 = vmatpush.msra.mxu0 %v684
        %735 = vmatpush.msra.mxu0 %v683
        %736 = vmatpush.msra.mxu0 %v682
        %737 = vmatpush.msra.mxu0 %v681
        %738 = vmatpush.msra.mxu0 %v680
        %739 = vmatpush.msra.mxu0 %v679
        %740 = vmatpush.msra.mxu0 %v678
        %741 = vmatpush.msra.mxu0 %v677
        %742 = vmatpush.msra.mxu0 %v676
        %743 = vmatpush.msra.mxu0 %v675
        %744 = vmatpush.msra.mxu0 %v674
        %745 = vmatpush.msra.mxu0 %v673
        %746 = vmatmul.f32.gmra.mxu0 %v729
        %v747 = vpop.f32.mrf.mxu0
        %v748 = vadd.f32 0.0, %v747
        %749 = vdwg.mxu0
        %v750 = vmul.f32 %v748, 0.0009765625
        %vm751 = vcmask 261120
        %v753 = vsel %vm751, %v750, 0
        %755 = vmatpush.msra.mxu0 0.0
        %756 = vmatpush.msra.mxu0 0.0
        %757 = vmatpush.msra.mxu0 0.0
        %758 = vmatpush.msra.mxu0 0.0
        %759 = vmatpush.msra.mxu0 0.0
        %760 = vmatpush.msra.mxu0 0.0
        %761 = vmatpush.msra.mxu0 0.0
        %762 = vmatpush.msra.mxu0 0.0
        %763 = vmatpush.msra.mxu0 0.0
        %764 = vmatpush.msra.mxu0 0.0
        %765 = vmatpush.msra.mxu0 0.0
        %766 = vmatpush.msra.mxu0 0.0
        %767 = vmatpush.msra.mxu0 %v692
        %768 = vmatpush.msra.mxu0 %v691
        %769 = vmatpush.msra.mxu0 %v690
        %770 = vmatpush.msra.mxu0 %v689
        %771 = vmatmul.f32.gmra.mxu0 %v753
        %v772 = vpop.f32.mrf.mxu0
        %v773 = vadd.f32 0.0, %v772
        %774 = vdwg.mxu0
        %v775 = vperm.slane %v773, 0
        %v776 = vsub.f32 %v639, %v775
        %v777 = vsub.f32 %v640, %v775
        %v778 = vsub.f32 %v641, %v775
        %v779 = vsub.f32 %v642, %v775
        %v780 = vsub.f32 %v643, %v775
        %v781 = vsub.f32 %v644, %v775
        %v782 = vsub.f32 %v645, %v775
        %v783 = vsub.f32 %v646, %v775
        %v784 = vsub.f32 %v647, %v775
        %v785 = vsub.f32 %v648, %v775
        %v786 = vsub.f32 %v649, %v775
        %v787 = vsub.f32 %v650, %v775
        %v788 = vsub.f32 %v651, %v775
        %v789 = vsub.f32 %v652, %v775
        %v790 = vsub.f32 %v653, %v775
        %v791 = vsub.f32 %v654, %v775
        %v792 = vsub.f32 %v655, %v775
        %v793 = vsub.f32 %v656, %v775
        %v794 = vsub.f32 %v657, %v775
        %v795 = vsub.f32 %v658, %v775
        %v796 = vsub.f32 %v659, %v775
        %v797 = vsub.f32 %v660, %v775
        %v798 = vsub.f32 %v661, %v775
        %v799 = vsub.f32 %v662, %v775
        %v800 = vsub.f32 %v663, %v775
        %v801 = vsub.f32 %v664, %v775
        %v802 = vsub.f32 %v665, %v775
        %v803 = vsub.f32 %v666, %v775
        %v804 = vsub.f32 %v667, %v775
        %v805 = vsub.f32 %v668, %v775
        %v806 = vsub.f32 %v669, %v775
        %v807 = vsub.f32 %v670, %v775
        %v808 = vmul.f32 %v776, %v776
        %v809 = vmul.f32 %v777, %v777
        %v810 = vmul.f32 %v778, %v778
        %v811 = vmul.f32 %v779, %v779
        %v812 = vmul.f32 %v780, %v780
        %v813 = vmul.f32 %v781, %v781
        %v814 = vmul.f32 %v782, %v782
        %v815 = vmul.f32 %v783, %v783
        %v816 = vmul.f32 %v784, %v784
        %v817 = vmul.f32 %v785, %v785
        %v818 = vmul.f32 %v786, %v786
        %v819 = vmul.f32 %v787, %v787
        %v820 = vmul.f32 %v788, %v788
        %v821 = vmul.f32 %v789, %v789
        %v822 = vmul.f32 %v790, %v790
        %v823 = vmul.f32 %v791, %v791
        %v824 = vmul.f32 %v792, %v792
        %v825 = vmul.f32 %v793, %v793
        %v826 = vmul.f32 %v794, %v794
        %v827 = vmul.f32 %v795, %v795
        %v828 = vmul.f32 %v796, %v796
        %v829 = vmul.f32 %v797, %v797
        %v830 = vmul.f32 %v798, %v798
        %v831 = vmul.f32 %v799, %v799
        %v832 = vmul.f32 %v800, %v800
        %v833 = vmul.f32 %v801, %v801
        %v834 = vmul.f32 %v802, %v802
        %v835 = vmul.f32 %v803, %v803
        %v836 = vmul.f32 %v804, %v804
        %v837 = vmul.f32 %v805, %v805
        %v838 = vmul.f32 %v806, %v806
        %v839 = vmul.f32 %v807, %v807
        %v840 = vadd.f32 %v808, %v809
        %v841 = vadd.f32 %v840, %v810
        %v842 = vadd.f32 %v841, %v811
        %v843 = vadd.f32 %v842, %v812
        %v844 = vadd.f32 %v843, %v813
        %v845 = vadd.f32 %v844, %v814
        %v846 = vadd.f32 %v845, %v815
        %v847 = vadd.f32 %v846, %v816
        %v848 = vadd.f32 %v847, %v817
        %v849 = vadd.f32 %v848, %v818
        %v850 = vadd.f32 %v849, %v819
        %v851 = vadd.f32 %v850, %v820
        %v852 = vadd.f32 %v851, %v821
        %v853 = vadd.f32 %v852, %v822
        %v854 = vadd.f32 %v853, %v823
        %v855 = vadd.f32 %v854, %v824
        %v856 = vadd.f32 %v855, %v825
        %v857 = vadd.f32 %v856, %v826
        %v858 = vadd.f32 %v857, %v827
        %v859 = vadd.f32 %v858, %v828
        %v860 = vadd.f32 %v859, %v829
        %v861 = vadd.f32 %v860, %v830
        %v862 = vadd.f32 %v861, %v831
        %v863 = vadd.f32 %v862, %v832
        %v864 = vadd.f32 %v863, %v833
        %v865 = vadd.f32 %v864, %v834
        %v866 = vadd.f32 %v865, %v835
        %v867 = vadd.f32 %v866, %v836
        %v868 = vadd.f32 %v867, %v837
        %v869 = vadd.f32 %v868, %v838
        %v870 = vadd.f32 %v869, %v839
        %v871 = vrot.slane %v870, 4
        %v872 = vadd.f32 %v870, %v871
        %v873 = vrot.slane %v872, 2
        %v874 = vadd.f32 %v872, %v873
        %v875 = vrot.slane %v874, 1
        %v876 = vadd.f32 %v874, %v875
        %877 = vmatpush.msra.mxu0 %v688
        %878 = vmatpush.msra.mxu0 %v687
        %879 = vmatpush.msra.mxu0 %v686
        %880 = vmatpush.msra.mxu0 %v685
        %881 = vmatpush.msra.mxu0 %v684
        %882 = vmatpush.msra.mxu0 %v683
        %883 = vmatpush.msra.mxu0 %v682
        %884 = vmatpush.msra.mxu0 %v681
        %885 = vmatpush.msra.mxu0 %v680
        %886 = vmatpush.msra.mxu0 %v679
        %887 = vmatpush.msra.mxu0 %v678
        %888 = vmatpush.msra.mxu0 %v677
        %889 = vmatpush.msra.mxu0 %v676
        %890 = vmatpush.msra.mxu0 %v675
        %891 = vmatpush.msra.mxu0 %v674
        %892 = vmatpush.msra.mxu0 %v673
        %893 = vmatmul.f32.gmra.mxu0 %v876
        %v894 = vpop.f32.mrf.mxu0
        %v895 = vadd.f32 0.0, %v894
        %896 = vdwg.mxu0
        %v897 = vmul.f32 %v895, 0.0009765625
        %v898 = vadd.f32 %v897, 1e-05
        %v899 = vrsqrt.pop %v898
        %v900 = vmul.f32 %v899, %v898
        %v901 = vmul.f32 %v900, %v899
        %v902 = vmul.f32 0.5, %v901
        %v903 = vsub.f32 1.5, %v902
        %v904 = vmul.f32 %v899, %v903
        %vm905 = vweird.f32 %v898
        %vm906 = vweird.f32 %v899
        %vm907 = vmor %vm905, %vm906
        %v908 = vsel %vm907, %v899, %v904
        %v910 = vsel %vm751, %v908, 0
        %912 = vmatpush.msra.mxu0 0.0
        %913 = vmatpush.msra.mxu0 0.0
        %914 = vmatpush.msra.mxu0 0.0
        %915 = vmatpush.msra.mxu0 0.0
        %916 = vmatpush.msra.mxu0 0.0
        %917 = vmatpush.msra.mxu0 0.0
        %918 = vmatpush.msra.mxu0 0.0
        %919 = vmatpush.msra.mxu0 0.0
        %920 = vmatpush.msra.mxu0 0.0
        %921 = vmatpush.msra.mxu0 0.0
        %922 = vmatpush.msra.mxu0 0.0
        %923 = vmatpush.msra.mxu0 0.0
        %924 = vmatpush.msra.mxu0 %v692
        %925 = vmatpush.msra.mxu0 %v691
        %926 = vmatpush.msra.mxu0 %v690
        %927 = vmatpush.msra.mxu0 %v689
        %928 = vmatmul.f32.gmra.mxu0 %v910
        %v929 = vpop.f32.mrf.mxu0
        %v930 = vadd.f32 0.0, %v929
        %931 = vdwg.mxu0
        %v932 = vmul.f32 %v930, %v671
        %v933 = vperm.slane %v932, 0
        %v934 = vmul.f32 %v776, %v933
        %v935 = vmul.f32 %v777, %v933
        %v936 = vmul.f32 %v778, %v933
        %v937 = vmul.f32 %v779, %v933
        %v938 = vmul.f32 %v780, %v933
        %v939 = vmul.f32 %v781, %v933
        %v940 = vmul.f32 %v782, %v933
        %v941 = vmul.f32 %v783, %v933
        %v942 = vmul.f32 %v784, %v933
        %v943 = vmul.f32 %v785, %v933
        %v944 = vmul.f32 %v786, %v933
        %v945 = vmul.f32 %v787, %v933
        %v946 = vmul.f32 %v788, %v933
        %v947 = vmul.f32 %v789, %v933
        %v948 = vmul.f32 %v790, %v933
        %v949 = vmul.f32 %v791, %v933
        %v950 = vmul.f32 %v792, %v933
        %v951 = vmul.f32 %v793, %v933
        %v952 = vmul.f32 %v794, %v933
        %v953 = vmul.f32 %v795, %v933
        %v954 = vmul.f32 %v796, %v933
        %v955 = vmul.f32 %v797, %v933
        %v956 = vmul.f32 %v798, %v933
        %v957 = vmul.f32 %v799, %v933
        %v958 = vmul.f32 %v800, %v933
        %v959 = vmul.f32 %v801, %v933
        %v960 = vmul.f32 %v802, %v933
        %v961 = vmul.f32 %v803, %v933
        %v962 = vmul.f32 %v804, %v933
        %v963 = vmul.f32 %v805, %v933
        %v964 = vmul.f32 %v806, %v933
        %v965 = vmul.f32 %v807, %v933
        %v967 = vperm.slane %v672, 0
        %v969 = vadd.f32 %v934, %v967
        %v970 = vadd.f32 %v935, %v967
        %v971 = vadd.f32 %v936, %v967
        %v972 = vadd.f32 %v937, %v967
        %v973 = vadd.f32 %v938, %v967
        %v974 = vadd.f32 %v939, %v967
        %v975 = vadd.f32 %v940, %v967
        %v976 = vadd.f32 %v941, %v967
        %v977 = vadd.f32 %v942, %v967
        %v978 = vadd.f32 %v943, %v967
        %v979 = vadd.f32 %v944, %v967
        %v980 = vadd.f32 %v945, %v967
        %v981 = vadd.f32 %v946, %v967
        %v982 = vadd.f32 %v947, %v967
        %v983 = vadd.f32 %v948, %v967
        %v984 = vadd.f32 %v949, %v967
        %v985 = vadd.f32 %v950, %v967
        %v986 = vadd.f32 %v951, %v967
        %v987 = vadd.f32 %v952, %v967
        %v988 = vadd.f32 %v953, %v967
        %v989 = vadd.f32 %v954, %v967
        %v990 = vadd.f32 %v955, %v967
        %v991 = vadd.f32 %v956, %v967
        %v992 = vadd.f32 %v957, %v967
        %v993 = vadd.f32 %v958, %v967
        %v994 = vadd.f32 %v959, %v967
        %v995 = vadd.f32 %v960, %v967
        %v996 = vadd.f32 %v961, %v967
        %v997 = vadd.f32 %v962, %v967
        %v998 = vadd.f32 %v963, %v967
        %v999 = vadd.f32 %v964, %v967
        %v1000 = vadd.f32 %v965, %v967
        %v1001 = vsub.f32 0.0, %v969
        %v1002 = vsub.f32 0.0, %v970
        %v1003 = vsub.f32 0.0, %v971
        %v1004 = vsub.f32 0.0, %v972
        %v1005 = vsub.f32 0.0, %v973
        %v1006 = vsub.f32 0.0, %v974
        %v1007 = vsub.f32 0.0, %v975
        %v1008 = vsub.f32 0.0, %v976
        %v1009 = vsub.f32 0.0, %v977
        %v1010 = vsub.f32 0.0, %v978
        %v1011 = vsub.f32 0.0, %v979
        %v1012 = vsub.f32 0.0, %v980
        %v1013 = vsub.f32 0.0, %v981
        %v1014 = vsub.f32 0.0, %v982
        %v1015 = vsub.f32 0.0, %v983
        %v1016 = vsub.f32 0.0, %v984
        %v1017 = vsub.f32 0.0, %v985
        %v1018 = vsub.f32 0.0, %v986
        %v1019 = vsub.f32 0.0, %v987
        %v1020 = vsub.f32 0.0, %v988
        %v1021 = vsub.f32 0.0, %v989
        %v1022 = vsub.f32 0.0, %v990
        %v1023 = vsub.f32 0.0, %v991
        %v1024 = vsub.f32 0.0, %v992
        %v1025 = vsub.f32 0.0, %v993
        %v1026 = vsub.f32 0.0, %v994
        %v1027 = vsub.f32 0.0, %v995
        %v1028 = vsub.f32 0.0, %v996
        %v1029 = vsub.f32 0.0, %v997
        %v1030 = vsub.f32 0.0, %v998
        %v1031 = vsub.f32 0.0, %v999
        %v1032 = vsub.f32 0.0, %v1000
        %v1033 = vmul.f32 %v1001, 1.442695
        %v1034 = vpow.pop %v1033
        %v1035 = vmul.f32 %v1002, 1.442695
        %v1036 = vpow.pop %v1035
        %v1037 = vmul.f32 %v1003, 1.442695
        %v1038 = vpow.pop %v1037
        %v1039 = vmul.f32 %v1004, 1.442695
        %v1040 = vpow.pop %v1039
        %v1041 = vmul.f32 %v1005, 1.442695
        %v1042 = vpow.pop %v1041
        %v1043 = vmul.f32 %v1006, 1.442695
        %v1044 = vpow.pop %v1043
        %v1045 = vmul.f32 %v1007, 1.442695
        %v1046 = vpow.pop %v1045
        %v1047 = vmul.f32 %v1008, 1.442695
        %v1048 = vpow.pop %v1047
        %v1049 = vmul.f32 %v1009, 1.442695
        %v1050 = vpow.pop %v1049
        %v1051 = vmul.f32 %v1010, 1.442695
        %v1052 = vpow.pop %v1051
        %v1053 = vmul.f32 %v1011, 1.442695
        %v1054 = vpow.pop %v1053
        %v1055 = vmul.f32 %v1012, 1.442695
        %v1056 = vpow.pop %v1055
        %v1057 = vmul.f32 %v1013, 1.442695
        %v1058 = vpow.pop %v1057
        %v1059 = vmul.f32 %v1014, 1.442695
        %v1060 = vpow.pop %v1059
        %v1061 = vmul.f32 %v1015, 1.442695
        %v1062 = vpow.pop %v1061
        %v1063 = vmul.f32 %v1016, 1.442695
        %v1064 = vpow.pop %v1063
        %v1065 = vmul.f32 %v1017, 1.442695
        %v1066 = vpow.pop %v1065
        %v1067 = vmul.f32 %v1018, 1.442695
        %v1068 = vpow.pop %v1067
        %v1069 = vmul.f32 %v1019, 1.442695
        %v1070 = vpow.pop %v1069
        %v1071 = vmul.f32 %v1020, 1.442695
        %v1072 = vpow.pop %v1071
        %v1073 = vmul.f32 %v1021, 1.442695
        %v1074 = vpow.pop %v1073
        %v1075 = vmul.f32 %v1022, 1.442695
        %v1076 = vpow.pop %v1075
        %v1077 = vmul.f32 %v1023, 1.442695
        %v1078 = vpow.pop %v1077
        %v1079 = vmul.f32 %v1024, 1.442695
        %v1080 = vpow.pop %v1079
        %v1081 = vmul.f32 %v1025, 1.442695
        %v1082 = vpow.pop %v1081
        %v1083 = vmul.f32 %v1026, 1.442695
        %v1084 = vpow.pop %v1083
        %v1085 = vmul.f32 %v1027, 1.442695
        %v1086 = vpow.pop %v1085
        %v1087 = vmul.f32 %v1028, 1.442695
        %v1088 = vpow.pop %v1087
        %v1089 = vmul.f32 %v1029, 1.442695
        %v1090 = vpow.pop %v1089
        %v1091 = vmul.f32 %v1030, 1.442695
        %v1092 = vpow.pop %v1091
        %v1093 = vmul.f32 %v1031, 1.442695
        %v1094 = vpow.pop %v1093
        %v1095 = vmul.f32 %v1032, 1.442695
        %v1096 = vpow.pop %v1095
        %v1097 = vadd.f32 %v1034, 1.0
        %v1098 = vadd.f32 %v1036, 1.0
        %v1099 = vadd.f32 %v1038, 1.0
        %v1100 = vadd.f32 %v1040, 1.0
        %v1101 = vadd.f32 %v1042, 1.0
        %v1102 = vadd.f32 %v1044, 1.0
        %v1103 = vadd.f32 %v1046, 1.0
        %v1104 = vadd.f32 %v1048, 1.0
        %v1105 = vadd.f32 %v1050, 1.0
        %v1106 = vadd.f32 %v1052, 1.0
        %v1107 = vadd.f32 %v1054, 1.0
        %v1108 = vadd.f32 %v1056, 1.0
        %v1109 = vadd.f32 %v1058, 1.0
        %v1110 = vadd.f32 %v1060, 1.0
        %v1111 = vadd.f32 %v1062, 1.0
        %v1112 = vadd.f32 %v1064, 1.0
        %v1113 = vadd.f32 %v1066, 1.0
        %v1114 = vadd.f32 %v1068, 1.0
        %v1115 = vadd.f32 %v1070, 1.0
        %v1116 = vadd.f32 %v1072, 1.0
        %v1117 = vadd.f32 %v1074, 1.0
        %v1118 = vadd.f32 %v1076, 1.0
        %v1119 = vadd.f32 %v1078, 1.0
        %v1120 = vadd.f32 %v1080, 1.0
        %v1121 = vadd.f32 %v1082, 1.0
        %v1122 = vadd.f32 %v1084, 1.0
        %v1123 = vadd.f32 %v1086, 1.0
        %v1124 = vadd.f32 %v1088, 1.0
        %v1125 = vadd.f32 %v1090, 1.0
        %v1126 = vadd.f32 %v1092, 1.0
        %v1127 = vadd.f32 %v1094, 1.0
        %v1128 = vadd.f32 %v1096, 1.0
        %v1129 = vrcp.pop %v1097
        %v1130 = vmul.f32 %v1097, %v1129
        %v1131 = vsub.f32 1.0, %v1130
        %v1132 = vmul.f32 %v1129, %v1131
        %v1133 = vadd.f32 %v1129, %v1132
        %vm1134 = vweird.f32 %v1097
        %vm1135 = vweird.f32 %v1129
        %vm1136 = vmor %vm1134, %vm1135
        %v1137 = vsel %vm1136, %v1129, %v1133
        %v1138 = vand.u32 2147483647, %v1097
        %vm1139 = vcmp.eq.f32.partialorder %v1138, 8.507059e+37
        %v1140 = vand.u32 %v1097, 2147483648
        %v1141 = vor.u32 1.1754944e-38, %v1140
        %v1142 = vsel %vm1139, %v1141, %v1137
        %v1143 = vmul.f32 1.0, %v1142
        %v1144 = vrcp.pop %v1098
        %v1145 = vmul.f32 %v1098, %v1144
        %v1146 = vsub.f32 1.0, %v1145
        %v1147 = vmul.f32 %v1144, %v1146
        %v1148 = vadd.f32 %v1144, %v1147
        %vm1149 = vweird.f32 %v1098
        %vm1150 = vweird.f32 %v1144
        %vm1151 = vmor %vm1149, %vm1150
        %v1152 = vsel %vm1151, %v1144, %v1148
        %v1153 = vand.u32 2147483647, %v1098
        %vm1154 = vcmp.eq.f32.partialorder %v1153, 8.507059e+37
        %v1155 = vand.u32 %v1098, 2147483648
        %v1156 = vor.u32 1.1754944e-38, %v1155
        %v1157 = vsel %vm1154, %v1156, %v1152
        %v1158 = vmul.f32 1.0, %v1157
        %v1159 = vrcp.pop %v1099
        %v1160 = vmul.f32 %v1099, %v1159
        %v1161 = vsub.f32 1.0, %v1160
        %v1162 = vmul.f32 %v1159, %v1161
        %v1163 = vadd.f32 %v1159, %v1162
        %vm1164 = vweird.f32 %v1099
        %vm1165 = vweird.f32 %v1159
        %vm1166 = vmor %vm1164, %vm1165
        %v1167 = vsel %vm1166, %v1159, %v1163
        %v1168 = vand.u32 2147483647, %v1099
        %vm1169 = vcmp.eq.f32.partialorder %v1168, 8.507059e+37
        %v1170 = vand.u32 %v1099, 2147483648
        %v1171 = vor.u32 1.1754944e-38, %v1170
        %v1172 = vsel %vm1169, %v1171, %v1167
        %v1173 = vmul.f32 1.0, %v1172
        %v1174 = vrcp.pop %v1100
        %v1175 = vmul.f32 %v1100, %v1174
        %v1176 = vsub.f32 1.0, %v1175
        %v1177 = vmul.f32 %v1174, %v1176
        %v1178 = vadd.f32 %v1174, %v1177
        %vm1179 = vweird.f32 %v1100
        %vm1180 = vweird.f32 %v1174
        %vm1181 = vmor %vm1179, %vm1180
        %v1182 = vsel %vm1181, %v1174, %v1178
        %v1183 = vand.u32 2147483647, %v1100
        %vm1184 = vcmp.eq.f32.partialorder %v1183, 8.507059e+37
        %v1185 = vand.u32 %v1100, 2147483648
        %v1186 = vor.u32 1.1754944e-38, %v1185
        %v1187 = vsel %vm1184, %v1186, %v1182
        %v1188 = vmul.f32 1.0, %v1187
        %v1189 = vrcp.pop %v1101
        %v1190 = vmul.f32 %v1101, %v1189
        %v1191 = vsub.f32 1.0, %v1190
        %v1192 = vmul.f32 %v1189, %v1191
        %v1193 = vadd.f32 %v1189, %v1192
        %vm1194 = vweird.f32 %v1101
        %vm1195 = vweird.f32 %v1189
        %vm1196 = vmor %vm1194, %vm1195
        %v1197 = vsel %vm1196, %v1189, %v1193
        %v1198 = vand.u32 2147483647, %v1101
        %vm1199 = vcmp.eq.f32.partialorder %v1198, 8.507059e+37
        %v1200 = vand.u32 %v1101, 2147483648
        %v1201 = vor.u32 1.1754944e-38, %v1200
        %v1202 = vsel %vm1199, %v1201, %v1197
        %v1203 = vmul.f32 1.0, %v1202
        %v1204 = vrcp.pop %v1102
        %v1205 = vmul.f32 %v1102, %v1204
        %v1206 = vsub.f32 1.0, %v1205
        %v1207 = vmul.f32 %v1204, %v1206
        %v1208 = vadd.f32 %v1204, %v1207
        %vm1209 = vweird.f32 %v1102
        %vm1210 = vweird.f32 %v1204
        %vm1211 = vmor %vm1209, %vm1210
        %v1212 = vsel %vm1211, %v1204, %v1208
        %v1213 = vand.u32 2147483647, %v1102
        %vm1214 = vcmp.eq.f32.partialorder %v1213, 8.507059e+37
        %v1215 = vand.u32 %v1102, 2147483648
        %v1216 = vor.u32 1.1754944e-38, %v1215
        %v1217 = vsel %vm1214, %v1216, %v1212
        %v1218 = vmul.f32 1.0, %v1217
        %v1219 = vrcp.pop %v1103
        %v1220 = vmul.f32 %v1103, %v1219
        %v1221 = vsub.f32 1.0, %v1220
        %v1222 = vmul.f32 %v1219, %v1221
        %v1223 = vadd.f32 %v1219, %v1222
        %vm1224 = vweird.f32 %v1103
        %vm1225 = vweird.f32 %v1219
        %vm1226 = vmor %vm1224, %vm1225
        %v1227 = vsel %vm1226, %v1219, %v1223
        %v1228 = vand.u32 2147483647, %v1103
        %vm1229 = vcmp.eq.f32.partialorder %v1228, 8.507059e+37
        %v1230 = vand.u32 %v1103, 2147483648
        %v1231 = vor.u32 1.1754944e-38, %v1230
        %v1232 = vsel %vm1229, %v1231, %v1227
        %v1233 = vmul.f32 1.0, %v1232
        %v1234 = vrcp.pop %v1104
        %v1235 = vmul.f32 %v1104, %v1234
        %v1236 = vsub.f32 1.0, %v1235
        %v1237 = vmul.f32 %v1234, %v1236
        %v1238 = vadd.f32 %v1234, %v1237
        %vm1239 = vweird.f32 %v1104
        %vm1240 = vweird.f32 %v1234
        %vm1241 = vmor %vm1239, %vm1240
        %v1242 = vsel %vm1241, %v1234, %v1238
        %v1243 = vand.u32 2147483647, %v1104
        %vm1244 = vcmp.eq.f32.partialorder %v1243, 8.507059e+37
        %v1245 = vand.u32 %v1104, 2147483648
        %v1246 = vor.u32 1.1754944e-38, %v1245
        %v1247 = vsel %vm1244, %v1246, %v1242
        %v1248 = vmul.f32 1.0, %v1247
        %v1249 = vrcp.pop %v1105
        %v1250 = vmul.f32 %v1105, %v1249
        %v1251 = vsub.f32 1.0, %v1250
        %v1252 = vmul.f32 %v1249, %v1251
        %v1253 = vadd.f32 %v1249, %v1252
        %vm1254 = vweird.f32 %v1105
        %vm1255 = vweird.f32 %v1249
        %vm1256 = vmor %vm1254, %vm1255
        %v1257 = vsel %vm1256, %v1249, %v1253
        %v1258 = vand.u32 2147483647, %v1105
        %vm1259 = vcmp.eq.f32.partialorder %v1258, 8.507059e+37
        %v1260 = vand.u32 %v1105, 2147483648
        %v1261 = vor.u32 1.1754944e-38, %v1260
        %v1262 = vsel %vm1259, %v1261, %v1257
        %v1263 = vmul.f32 1.0, %v1262
        %v1264 = vrcp.pop %v1106
        %v1265 = vmul.f32 %v1106, %v1264
        %v1266 = vsub.f32 1.0, %v1265
        %v1267 = vmul.f32 %v1264, %v1266
        %v1268 = vadd.f32 %v1264, %v1267
        %vm1269 = vweird.f32 %v1106
        %vm1270 = vweird.f32 %v1264
        %vm1271 = vmor %vm1269, %vm1270
        %v1272 = vsel %vm1271, %v1264, %v1268
        %v1273 = vand.u32 2147483647, %v1106
        %vm1274 = vcmp.eq.f32.partialorder %v1273, 8.507059e+37
        %v1275 = vand.u32 %v1106, 2147483648
        %v1276 = vor.u32 1.1754944e-38, %v1275
        %v1277 = vsel %vm1274, %v1276, %v1272
        %v1278 = vmul.f32 1.0, %v1277
        %v1279 = vrcp.pop %v1107
        %v1280 = vmul.f32 %v1107, %v1279
        %v1281 = vsub.f32 1.0, %v1280
        %v1282 = vmul.f32 %v1279, %v1281
        %v1283 = vadd.f32 %v1279, %v1282
        %vm1284 = vweird.f32 %v1107
        %vm1285 = vweird.f32 %v1279
        %vm1286 = vmor %vm1284, %vm1285
        %v1287 = vsel %vm1286, %v1279, %v1283
        %v1288 = vand.u32 2147483647, %v1107
        %vm1289 = vcmp.eq.f32.partialorder %v1288, 8.507059e+37
        %v1290 = vand.u32 %v1107, 2147483648
        %v1291 = vor.u32 1.1754944e-38, %v1290
        %v1292 = vsel %vm1289, %v1291, %v1287
        %v1293 = vmul.f32 1.0, %v1292
        %v1294 = vrcp.pop %v1108
        %v1295 = vmul.f32 %v1108, %v1294
        %v1296 = vsub.f32 1.0, %v1295
        %v1297 = vmul.f32 %v1294, %v1296
        %v1298 = vadd.f32 %v1294, %v1297
        %vm1299 = vweird.f32 %v1108
        %vm1300 = vweird.f32 %v1294
        %vm1301 = vmor %vm1299, %vm1300
        %v1302 = vsel %vm1301, %v1294, %v1298
        %v1303 = vand.u32 2147483647, %v1108
        %vm1304 = vcmp.eq.f32.partialorder %v1303, 8.507059e+37
        %v1305 = vand.u32 %v1108, 2147483648
        %v1306 = vor.u32 1.1754944e-38, %v1305
        %v1307 = vsel %vm1304, %v1306, %v1302
        %v1308 = vmul.f32 1.0, %v1307
        %v1309 = vrcp.pop %v1109
        %v1310 = vmul.f32 %v1109, %v1309
        %v1311 = vsub.f32 1.0, %v1310
        %v1312 = vmul.f32 %v1309, %v1311
        %v1313 = vadd.f32 %v1309, %v1312
        %vm1314 = vweird.f32 %v1109
        %vm1315 = vweird.f32 %v1309
        %vm1316 = vmor %vm1314, %vm1315
        %v1317 = vsel %vm1316, %v1309, %v1313
        %v1318 = vand.u32 2147483647, %v1109
        %vm1319 = vcmp.eq.f32.partialorder %v1318, 8.507059e+37
        %v1320 = vand.u32 %v1109, 2147483648
        %v1321 = vor.u32 1.1754944e-38, %v1320
        %v1322 = vsel %vm1319, %v1321, %v1317
        %v1323 = vmul.f32 1.0, %v1322
        %v1324 = vrcp.pop %v1110
        %v1325 = vmul.f32 %v1110, %v1324
        %v1326 = vsub.f32 1.0, %v1325
        %v1327 = vmul.f32 %v1324, %v1326
        %v1328 = vadd.f32 %v1324, %v1327
        %vm1329 = vweird.f32 %v1110
        %vm1330 = vweird.f32 %v1324
        %vm1331 = vmor %vm1329, %vm1330
        %v1332 = vsel %vm1331, %v1324, %v1328
        %v1333 = vand.u32 2147483647, %v1110
        %vm1334 = vcmp.eq.f32.partialorder %v1333, 8.507059e+37
        %v1335 = vand.u32 %v1110, 2147483648
        %v1336 = vor.u32 1.1754944e-38, %v1335
        %v1337 = vsel %vm1334, %v1336, %v1332
        %v1338 = vmul.f32 1.0, %v1337
        %v1339 = vrcp.pop %v1111
        %v1340 = vmul.f32 %v1111, %v1339
        %v1341 = vsub.f32 1.0, %v1340
        %v1342 = vmul.f32 %v1339, %v1341
        %v1343 = vadd.f32 %v1339, %v1342
        %vm1344 = vweird.f32 %v1111
        %vm1345 = vweird.f32 %v1339
        %vm1346 = vmor %vm1344, %vm1345
        %v1347 = vsel %vm1346, %v1339, %v1343
        %v1348 = vand.u32 2147483647, %v1111
        %vm1349 = vcmp.eq.f32.partialorder %v1348, 8.507059e+37
        %v1350 = vand.u32 %v1111, 2147483648
        %v1351 = vor.u32 1.1754944e-38, %v1350
        %v1352 = vsel %vm1349, %v1351, %v1347
        %v1353 = vmul.f32 1.0, %v1352
        %v1354 = vrcp.pop %v1112
        %v1355 = vmul.f32 %v1112, %v1354
        %v1356 = vsub.f32 1.0, %v1355
        %v1357 = vmul.f32 %v1354, %v1356
        %v1358 = vadd.f32 %v1354, %v1357
        %vm1359 = vweird.f32 %v1112
        %vm1360 = vweird.f32 %v1354
        %vm1361 = vmor %vm1359, %vm1360
        %v1362 = vsel %vm1361, %v1354, %v1358
        %v1363 = vand.u32 2147483647, %v1112
        %vm1364 = vcmp.eq.f32.partialorder %v1363, 8.507059e+37
        %v1365 = vand.u32 %v1112, 2147483648
        %v1366 = vor.u32 1.1754944e-38, %v1365
        %v1367 = vsel %vm1364, %v1366, %v1362
        %v1368 = vmul.f32 1.0, %v1367
        %v1369 = vrcp.pop %v1113
        %v1370 = vmul.f32 %v1113, %v1369
        %v1371 = vsub.f32 1.0, %v1370
        %v1372 = vmul.f32 %v1369, %v1371
        %v1373 = vadd.f32 %v1369, %v1372
        %vm1374 = vweird.f32 %v1113
        %vm1375 = vweird.f32 %v1369
        %vm1376 = vmor %vm1374, %vm1375
        %v1377 = vsel %vm1376, %v1369, %v1373
        %v1378 = vand.u32 2147483647, %v1113
        %vm1379 = vcmp.eq.f32.partialorder %v1378, 8.507059e+37
        %v1380 = vand.u32 %v1113, 2147483648
        %v1381 = vor.u32 1.1754944e-38, %v1380
        %v1382 = vsel %vm1379, %v1381, %v1377
        %v1383 = vmul.f32 1.0, %v1382
        %v1384 = vrcp.pop %v1114
        %v1385 = vmul.f32 %v1114, %v1384
        %v1386 = vsub.f32 1.0, %v1385
        %v1387 = vmul.f32 %v1384, %v1386
        %v1388 = vadd.f32 %v1384, %v1387
        %vm1389 = vweird.f32 %v1114
        %vm1390 = vweird.f32 %v1384
        %vm1391 = vmor %vm1389, %vm1390
        %v1392 = vsel %vm1391, %v1384, %v1388
        %v1393 = vand.u32 2147483647, %v1114
        %vm1394 = vcmp.eq.f32.partialorder %v1393, 8.507059e+37
        %v1395 = vand.u32 %v1114, 2147483648
        %v1396 = vor.u32 1.1754944e-38, %v1395
        %v1397 = vsel %vm1394, %v1396, %v1392
        %v1398 = vmul.f32 1.0, %v1397
        %v1399 = vrcp.pop %v1115
        %v1400 = vmul.f32 %v1115, %v1399
        %v1401 = vsub.f32 1.0, %v1400
        %v1402 = vmul.f32 %v1399, %v1401
        %v1403 = vadd.f32 %v1399, %v1402
        %vm1404 = vweird.f32 %v1115
        %vm1405 = vweird.f32 %v1399
        %vm1406 = vmor %vm1404, %vm1405
        %v1407 = vsel %vm1406, %v1399, %v1403
        %v1408 = vand.u32 2147483647, %v1115
        %vm1409 = vcmp.eq.f32.partialorder %v1408, 8.507059e+37
        %v1410 = vand.u32 %v1115, 2147483648
        %v1411 = vor.u32 1.1754944e-38, %v1410
        %v1412 = vsel %vm1409, %v1411, %v1407
        %v1413 = vmul.f32 1.0, %v1412
        %v1414 = vrcp.pop %v1116
        %v1415 = vmul.f32 %v1116, %v1414
        %v1416 = vsub.f32 1.0, %v1415
        %v1417 = vmul.f32 %v1414, %v1416
        %v1418 = vadd.f32 %v1414, %v1417
        %vm1419 = vweird.f32 %v1116
        %vm1420 = vweird.f32 %v1414
        %vm1421 = vmor %vm1419, %vm1420
        %v1422 = vsel %vm1421, %v1414, %v1418
        %v1423 = vand.u32 2147483647, %v1116
        %vm1424 = vcmp.eq.f32.partialorder %v1423, 8.507059e+37
        %v1425 = vand.u32 %v1116, 2147483648
        %v1426 = vor.u32 1.1754944e-38, %v1425
        %v1427 = vsel %vm1424, %v1426, %v1422
        %v1428 = vmul.f32 1.0, %v1427
        %v1429 = vrcp.pop %v1117
        %v1430 = vmul.f32 %v1117, %v1429
        %v1431 = vsub.f32 1.0, %v1430
        %v1432 = vmul.f32 %v1429, %v1431
        %v1433 = vadd.f32 %v1429, %v1432
        %vm1434 = vweird.f32 %v1117
        %vm1435 = vweird.f32 %v1429
        %vm1436 = vmor %vm1434, %vm1435
        %v1437 = vsel %vm1436, %v1429, %v1433
        %v1438 = vand.u32 2147483647, %v1117
        %vm1439 = vcmp.eq.f32.partialorder %v1438, 8.507059e+37
        %v1440 = vand.u32 %v1117, 2147483648
        %v1441 = vor.u32 1.1754944e-38, %v1440
        %v1442 = vsel %vm1439, %v1441, %v1437
        %v1443 = vmul.f32 1.0, %v1442
        %v1444 = vrcp.pop %v1118
        %v1445 = vmul.f32 %v1118, %v1444
        %v1446 = vsub.f32 1.0, %v1445
        %v1447 = vmul.f32 %v1444, %v1446
        %v1448 = vadd.f32 %v1444, %v1447
        %vm1449 = vweird.f32 %v1118
        %vm1450 = vweird.f32 %v1444
        %vm1451 = vmor %vm1449, %vm1450
        %v1452 = vsel %vm1451, %v1444, %v1448
        %v1453 = vand.u32 2147483647, %v1118
        %vm1454 = vcmp.eq.f32.partialorder %v1453, 8.507059e+37
        %v1455 = vand.u32 %v1118, 2147483648
        %v1456 = vor.u32 1.1754944e-38, %v1455
        %v1457 = vsel %vm1454, %v1456, %v1452
        %v1458 = vmul.f32 1.0, %v1457
        %v1459 = vrcp.pop %v1119
        %v1460 = vmul.f32 %v1119, %v1459
        %v1461 = vsub.f32 1.0, %v1460
        %v1462 = vmul.f32 %v1459, %v1461
        %v1463 = vadd.f32 %v1459, %v1462
        %vm1464 = vweird.f32 %v1119
        %vm1465 = vweird.f32 %v1459
        %vm1466 = vmor %vm1464, %vm1465
        %v1467 = vsel %vm1466, %v1459, %v1463
        %v1468 = vand.u32 2147483647, %v1119
        %vm1469 = vcmp.eq.f32.partialorder %v1468, 8.507059e+37
        %v1470 = vand.u32 %v1119, 2147483648
        %v1471 = vor.u32 1.1754944e-38, %v1470
        %v1472 = vsel %vm1469, %v1471, %v1467
        %v1473 = vmul.f32 1.0, %v1472
        %v1474 = vrcp.pop %v1120
        %v1475 = vmul.f32 %v1120, %v1474
        %v1476 = vsub.f32 1.0, %v1475
        %v1477 = vmul.f32 %v1474, %v1476
        %v1478 = vadd.f32 %v1474, %v1477
        %vm1479 = vweird.f32 %v1120
        %vm1480 = vweird.f32 %v1474
        %vm1481 = vmor %vm1479, %vm1480
        %v1482 = vsel %vm1481, %v1474, %v1478
        %v1483 = vand.u32 2147483647, %v1120
        %vm1484 = vcmp.eq.f32.partialorder %v1483, 8.507059e+37
        %v1485 = vand.u32 %v1120, 2147483648
        %v1486 = vor.u32 1.1754944e-38, %v1485
        %v1487 = vsel %vm1484, %v1486, %v1482
        %v1488 = vmul.f32 1.0, %v1487
        %v1489 = vrcp.pop %v1121
        %v1490 = vmul.f32 %v1121, %v1489
        %v1491 = vsub.f32 1.0, %v1490
        %v1492 = vmul.f32 %v1489, %v1491
        %v1493 = vadd.f32 %v1489, %v1492
        %vm1494 = vweird.f32 %v1121
        %vm1495 = vweird.f32 %v1489
        %vm1496 = vmor %vm1494, %vm1495
        %v1497 = vsel %vm1496, %v1489, %v1493
        %v1498 = vand.u32 2147483647, %v1121
        %vm1499 = vcmp.eq.f32.partialorder %v1498, 8.507059e+37
        %v1500 = vand.u32 %v1121, 2147483648
        %v1501 = vor.u32 1.1754944e-38, %v1500
        %v1502 = vsel %vm1499, %v1501, %v1497
        %v1503 = vmul.f32 1.0, %v1502
        %v1504 = vrcp.pop %v1122
        %v1505 = vmul.f32 %v1122, %v1504
        %v1506 = vsub.f32 1.0, %v1505
        %v1507 = vmul.f32 %v1504, %v1506
        %v1508 = vadd.f32 %v1504, %v1507
        %vm1509 = vweird.f32 %v1122
        %vm1510 = vweird.f32 %v1504
        %vm1511 = vmor %vm1509, %vm1510
        %v1512 = vsel %vm1511, %v1504, %v1508
        %v1513 = vand.u32 2147483647, %v1122
        %vm1514 = vcmp.eq.f32.partialorder %v1513, 8.507059e+37
        %v1515 = vand.u32 %v1122, 2147483648
        %v1516 = vor.u32 1.1754944e-38, %v1515
        %v1517 = vsel %vm1514, %v1516, %v1512
        %v1518 = vmul.f32 1.0, %v1517
        %v1519 = vrcp.pop %v1123
        %v1520 = vmul.f32 %v1123, %v1519
        %v1521 = vsub.f32 1.0, %v1520
        %v1522 = vmul.f32 %v1519, %v1521
        %v1523 = vadd.f32 %v1519, %v1522
        %vm1524 = vweird.f32 %v1123
        %vm1525 = vweird.f32 %v1519
        %vm1526 = vmor %vm1524, %vm1525
        %v1527 = vsel %vm1526, %v1519, %v1523
        %v1528 = vand.u32 2147483647, %v1123
        %vm1529 = vcmp.eq.f32.partialorder %v1528, 8.507059e+37
        %v1530 = vand.u32 %v1123, 2147483648
        %v1531 = vor.u32 1.1754944e-38, %v1530
        %v1532 = vsel %vm1529, %v1531, %v1527
        %v1533 = vmul.f32 1.0, %v1532
        %v1534 = vrcp.pop %v1124
        %v1535 = vmul.f32 %v1124, %v1534
        %v1536 = vsub.f32 1.0, %v1535
        %v1537 = vmul.f32 %v1534, %v1536
        %v1538 = vadd.f32 %v1534, %v1537
        %vm1539 = vweird.f32 %v1124
        %vm1540 = vweird.f32 %v1534
        %vm1541 = vmor %vm1539, %vm1540
        %v1542 = vsel %vm1541, %v1534, %v1538
        %v1543 = vand.u32 2147483647, %v1124
        %vm1544 = vcmp.eq.f32.partialorder %v1543, 8.507059e+37
        %v1545 = vand.u32 %v1124, 2147483648
        %v1546 = vor.u32 1.1754944e-38, %v1545
        %v1547 = vsel %vm1544, %v1546, %v1542
        %v1548 = vmul.f32 1.0, %v1547
        %v1549 = vrcp.pop %v1125
        %v1550 = vmul.f32 %v1125, %v1549
        %v1551 = vsub.f32 1.0, %v1550
        %v1552 = vmul.f32 %v1549, %v1551
        %v1553 = vadd.f32 %v1549, %v1552
        %vm1554 = vweird.f32 %v1125
        %vm1555 = vweird.f32 %v1549
        %vm1556 = vmor %vm1554, %vm1555
        %v1557 = vsel %vm1556, %v1549, %v1553
        %v1558 = vand.u32 2147483647, %v1125
        %vm1559 = vcmp.eq.f32.partialorder %v1558, 8.507059e+37
        %v1560 = vand.u32 %v1125, 2147483648
        %v1561 = vor.u32 1.1754944e-38, %v1560
        %v1562 = vsel %vm1559, %v1561, %v1557
        %v1563 = vmul.f32 1.0, %v1562
        %v1564 = vrcp.pop %v1126
        %v1565 = vmul.f32 %v1126, %v1564
        %v1566 = vsub.f32 1.0, %v1565
        %v1567 = vmul.f32 %v1564, %v1566
        %v1568 = vadd.f32 %v1564, %v1567
        %vm1569 = vweird.f32 %v1126
        %vm1570 = vweird.f32 %v1564
        %vm1571 = vmor %vm1569, %vm1570
        %v1572 = vsel %vm1571, %v1564, %v1568
        %v1573 = vand.u32 2147483647, %v1126
        %vm1574 = vcmp.eq.f32.partialorder %v1573, 8.507059e+37
        %v1575 = vand.u32 %v1126, 2147483648
        %v1576 = vor.u32 1.1754944e-38, %v1575
        %v1577 = vsel %vm1574, %v1576, %v1572
        %v1578 = vmul.f32 1.0, %v1577
        %v1579 = vrcp.pop %v1127
        %v1580 = vmul.f32 %v1127, %v1579
        %v1581 = vsub.f32 1.0, %v1580
        %v1582 = vmul.f32 %v1579, %v1581
        %v1583 = vadd.f32 %v1579, %v1582
        %vm1584 = vweird.f32 %v1127
        %vm1585 = vweird.f32 %v1579
        %vm1586 = vmor %vm1584, %vm1585
        %v1587 = vsel %vm1586, %v1579, %v1583
        %v1588 = vand.u32 2147483647, %v1127
        %vm1589 = vcmp.eq.f32.partialorder %v1588, 8.507059e+37
        %v1590 = vand.u32 %v1127, 2147483648
        %v1591 = vor.u32 1.1754944e-38, %v1590
        %v1592 = vsel %vm1589, %v1591, %v1587
        %v1593 = vmul.f32 1.0, %v1592
        %v1594 = vrcp.pop %v1128
        %v1595 = vmul.f32 %v1128, %v1594
        %v1596 = vsub.f32 1.0, %v1595
        %v1597 = vmul.f32 %v1594, %v1596
        %v1598 = vadd.f32 %v1594, %v1597
        %vm1599 = vweird.f32 %v1128
        %vm1600 = vweird.f32 %v1594
        %vm1601 = vmor %vm1599, %vm1600
        %v1602 = vsel %vm1601, %v1594, %v1598
        %v1603 = vand.u32 2147483647, %v1128
        %vm1604 = vcmp.eq.f32.partialorder %v1603, 8.507059e+37
        %v1605 = vand.u32 %v1128, 2147483648
        %v1606 = vor.u32 1.1754944e-38, %v1605
        %v1607 = vsel %vm1604, %v1606, %v1602
        %v1608 = vmul.f32 1.0, %v1607
        %v1609 = vmul.f32 %v969, %v1143
        %v1610 = vmul.f32 %v970, %v1158
        %v1611 = vmul.f32 %v971, %v1173
        %v1612 = vmul.f32 %v972, %v1188
        %v1613 = vmul.f32 %v973, %v1203
        %v1614 = vmul.f32 %v974, %v1218
        %v1615 = vmul.f32 %v975, %v1233
        %v1616 = vmul.f32 %v976, %v1248
        %v1617 = vmul.f32 %v977, %v1263
        %v1618 = vmul.f32 %v978, %v1278
        %v1619 = vmul.f32 %v979, %v1293
        %v1620 = vmul.f32 %v980, %v1308
        %v1621 = vmul.f32 %v981, %v1323
        %v1622 = vmul.f32 %v982, %v1338
        %v1623 = vmul.f32 %v983, %v1353
        %v1624 = vmul.f32 %v984, %v1368
        %v1625 = vmul.f32 %v985, %v1383
        %v1626 = vmul.f32 %v986, %v1398
        %v1627 = vmul.f32 %v987, %v1413
        %v1628 = vmul.f32 %v988, %v1428
        %v1629 = vmul.f32 %v989, %v1443
        %v1630 = vmul.f32 %v990, %v1458
        %v1631 = vmul.f32 %v991, %v1473
        %v1632 = vmul.f32 %v992, %v1488
        %v1633 = vmul.f32 %v993, %v1503
        %v1634 = vmul.f32 %v994, %v1518
        %v1635 = vmul.f32 %v995, %v1533
        %v1636 = vmul.f32 %v996, %v1548
        %v1637 = vmul.f32 %v997, %v1563
        %v1638 = vmul.f32 %v998, %v1578
        %v1639 = vmul.f32 %v999, %v1593
        %v1640 = vmul.f32 %v1000, %v1608
        %v1641 = vpack.c.bf16 %v1609, %v1609
        %v1642 = vpack.c.bf16 %v1610, %v1610
        %v1643 = vpack.c.bf16 %v1611, %v1611
        %v1644 = vpack.c.bf16 %v1612, %v1612
        %v1645 = vpack.c.bf16 %v1613, %v1613
        %v1646 = vpack.c.bf16 %v1614, %v1614
        %v1647 = vpack.c.bf16 %v1615, %v1615
        %v1648 = vpack.c.bf16 %v1616, %v1616
        %v1649 = vpack.c.bf16 %v1617, %v1617
        %v1650 = vpack.c.bf16 %v1618, %v1618
        %v1651 = vpack.c.bf16 %v1619, %v1619
        %v1652 = vpack.c.bf16 %v1620, %v1620
        %v1653 = vpack.c.bf16 %v1621, %v1621
        %v1654 = vpack.c.bf16 %v1622, %v1622
        %v1655 = vpack.c.bf16 %v1623, %v1623
        %v1656 = vpack.c.bf16 %v1624, %v1624
        %v1657 = vpack.c.bf16 %v1625, %v1625
        %v1658 = vpack.c.bf16 %v1626, %v1626
        %v1659 = vpack.c.bf16 %v1627, %v1627
        %v1660 = vpack.c.bf16 %v1628, %v1628
        %v1661 = vpack.c.bf16 %v1629, %v1629
        %v1662 = vpack.c.bf16 %v1630, %v1630
        %v1663 = vpack.c.bf16 %v1631, %v1631
        %v1664 = vpack.c.bf16 %v1632, %v1632
        %v1665 = vpack.c.bf16 %v1633, %v1633
        %v1666 = vpack.c.bf16 %v1634, %v1634
        %v1667 = vpack.c.bf16 %v1635, %v1635
        %v1668 = vpack.c.bf16 %v1636, %v1636
        %v1669 = vpack.c.bf16 %v1637, %v1637
        %v1670 = vpack.c.bf16 %v1638, %v1638
        %v1671 = vpack.c.bf16 %v1639, %v1639
        %v1672 = vpack.c.bf16 %v1640, %v1640
        %vm1673 = vsmask.f32 5392
        %vm1674 = vmor %vm616, %vm1673
        %v1676 = vshrl.u32 %v1641, 16
        %v1678 = vrot.slane %v1676, 6
        %v1679 = vshll.u32 %v1641, 16
        %v1681 = vrot.slane %v1679, 7
        %v1682 = vor.u32 %v1678, %v1681
        %v1683 = vrot.slane %v1682, 4
        %v1685 = vshrl.u32 %v1642, 16
        %v1687 = vrot.slane %v1685, 6
        %v1688 = vshll.u32 %v1642, 16
        %v1690 = vrot.slane %v1688, 7
        %v1691 = vor.u32 %v1687, %v1690
        %v1692 = vsel %vm1674, %v1683, %v1691
        %v1693 = vrot.slane %v1691, 4
        %v1697 = vld [vmem:[#allocation2 + $0x8] sm:$0xe]
        %v1698 = vsel %vm623, %v1682, %v1697
        %1699 = vst [vmem:[#allocation2 + $0x8] sm:$0xe] %v1698
        %1700 = vst [vmem:[#allocation2 + $0xc] sm:$0xf] %v1692
        %v1701 = vld [vmem:[#allocation2 + $0x10] sm:$0x3]
        %v1702 = vsel %vm617, %v1693, %v1701
        %1703 = vst [vmem:[#allocation2 + $0x10] sm:$0x3] %v1702
        %vm1704 = vcmask 1042433
        %vm1705 = vsmask.f32 2310
        %vm1706 = vmand %vm1704, %vm1705
        %v1707 = vld [vmem:[#allocation2 + $0x10] sm:$0x6]
        %v1708 = vsel %vm1706, 0, %v1707
        %1709 = vst [vmem:[#allocation2 + $0x10] sm:$0x6] %v1708
        %vm1710 = vsmask.f32 2304
        %vm1711 = vsmask.f32 6416
        %vm1712 = vmor %vm1710, %vm1711
        %v1714 = vshrl.u32 %v1643, 16
        %v1716 = vrot.slane %v1714, 5
        %v1717 = vshll.u32 %v1643, 16
        %v1719 = vrot.slane %v1717, 6
        %v1720 = vor.u32 %v1716, %v1719
        %v1721 = vrot.slane %v1720, 4
        %v1723 = vshrl.u32 %v1644, 16
        %v1725 = vrot.slane %v1723, 5
        %v1726 = vshll.u32 %v1644, 16
        %v1728 = vrot.slane %v1726, 6
        %v1729 = vor.u32 %v1725, %v1728
        %v1730 = vsel %vm1712, %v1721, %v1729
        %v1731 = vrot.slane %v1729, 4
        %vm1735 = vcmask 1043458
        %vm1736 = vsmask.f32 7946
        %vm1737 = vmand %vm1735, %vm1736
        %v1738 = vld [vmem:[#allocation2 + $0x10] sm:$0xc]
        %v1739 = vsel %vm1737, %v1720, %v1738
        %1740 = vst [vmem:[#allocation2 + $0x10] sm:$0xc] %v1739
        %1741 = vst [vmem:[#allocation2 + $0x14] sm:$0xf] %v1730
        %vm1742 = vcmask 1042432
        %vm1743 = vmand %vm1742, %vm1710
        %v1744 = vld [vmem:[#allocation2 + $0x18] sm:$0x7]
        %v1745 = vsel %vm1743, %v1731, %v1744
        %1746 = vst [vmem:[#allocation2 + $0x18] sm:$0x7] %v1745
        %vm1747 = vsmask.f32 3338
        %vm1748 = vmand %vm1735, %vm1747
        %v1749 = vld [vmem:[#allocation2 + $0x18] sm:$0xc]
        %v1750 = vsel %vm1748, 0, %v1749
        %1751 = vst [vmem:[#allocation2 + $0x18] sm:$0xc] %v1750
        %vm1752 = vsmask.f32 3328
        %vm1753 = vsmask.f32 7440
        %vm1754 = vmor %vm1752, %vm1753
        %v1756 = vshll.u32 %v1645, 16
        %v1758 = vrot.slane %v1756, 5
        %v1759 = vshrl.u32 %v1645, 16
        %v1761 = vrot.slane %v1759, 4
        %v1762 = vor.u32 %v1761, %v1758
        %v1763 = vrot.slane %v1762, 4
        %v1765 = vshll.u32 %v1646, 16
        %v1767 = vrot.slane %v1765, 5
        %v1768 = vsel %vm1754, %v1763, %v1767
        %v1769 = vshrl.u32 %v1646, 16
        %v1771 = vrot.slane %v1769, 4
        %v1772 = vor.u32 %v1771, %v1767
        %v1773 = vrot.slane %v1772, 4
        %vm1777 = vcmask 1043459
        %vm1778 = vsmask.f32 7950
        %vm1779 = vmand %vm1777, %vm1778
        %v1780 = vld [vmem:[#allocation2 + $0x18] sm:$0x8]
        %v1781 = vsel %vm1779, %v1758, %v1780
        %1782 = vst [vmem:[#allocation2 + $0x18] sm:$0x8] %v1781
        %1783 = vst [vmem:[#allocation2 + $0x1c] sm:$0xf] %v1768
        %vm1784 = vcmask 1043456
        %vm1785 = vmand %vm1784, %vm1752
        %v1786 = vld [vmem:[#allocation2 + $0x20] sm:$0xf]
        %v1787 = vsel %vm1785, %v1773, %v1786
        %1788 = vst [vmem:[#allocation2 + $0x20] sm:$0xf] %v1787
        %v1789 = vld [vmem:[#allocation2 + $0x20] sm:$0x8]
        %v1790 = vsel %vm1779, 0, %v1789
        %1791 = vst [vmem:[#allocation2 + $0x20] sm:$0x8] %v1790
        %vm1792 = vcmask 1040384
        %vm1793 = vsmask.f32 256
        %vm1794 = vmand %vm1792, %vm1793
        %v1795 = vld [vmem:[#allocation2 + $0x24] sm:$0x1]
        %v1796 = vsel %vm1794, 0, %v1795
        %1797 = vst [vmem:[#allocation2 + $0x24] sm:$0x1] %v1796
        %vm1798 = vsmask.f32 4368
        %vm1799 = vmor %vm1793, %vm1798
        %v1801 = vshrl.u32 %v1647, 16
        %v1803 = vrot.slane %v1801, 7
        %v1804 = vshll.u32 %v1647, 16
        %v1806 = vor.u32 %v1803, %v1804
        %v1807 = vrot.slane %v1803, 4
        %v1809 = vshrl.u32 %v1648, 16
        %v1811 = vrot.slane %v1809, 7
        %v1812 = vshll.u32 %v1648, 16
        %v1814 = vor.u32 %v1811, %v1812
        %v1815 = vsel %vm1799, %v1807, %v1814
        %v1816 = vrot.slane %v1811, 4
        %vm1820 = vsmask.f32 7938
        %vm1821 = vmand %vm1784, %vm1820
        %v1822 = vld [vmem:[#allocation2 + $0x24] sm:$0xf]
        %v1823 = vsel %vm1821, %v1806, %v1822
        %1824 = vst [vmem:[#allocation2 + $0x24] sm:$0xf] %v1823
        %1825 = vst [vmem:[#allocation2 + $0x28] sm:$0xf] %v1815
        %v1826 = vld [vmem:[#allocation2 + $0x2c] sm:$0x1]
        %v1827 = vsel %vm1794, %v1816, %v1826
        %1828 = vst [vmem:[#allocation2 + $0x2c] sm:$0x1] %v1827
        %vm1829 = vsmask.f32 1282
        %vm1830 = vmand %vm615, %vm1829
        %v1831 = vld [vmem:[#allocation2 + $0x2c] sm:$0x3]
        %v1832 = vsel %vm1830, 0, %v1831
        %1833 = vst [vmem:[#allocation2 + $0x2c] sm:$0x3] %v1832
        %v1835 = vshrl.u32 %v1649, 16
        %v1837 = vrot.slane %v1835, 6
        %v1838 = vshll.u32 %v1649, 16
        %v1840 = vrot.slane %v1838, 7
        %v1841 = vor.u32 %v1837, %v1840
        %v1842 = vrot.slane %v1841, 4
        %v1844 = vshrl.u32 %v1650, 16
        %v1846 = vrot.slane %v1844, 6
        %v1847 = vshll.u32 %v1650, 16
        %v1849 = vrot.slane %v1847, 7
        %v1850 = vor.u32 %v1846, %v1849
        %v1851 = vsel %vm1674, %v1842, %v1850
        %v1852 = vrot.slane %v1850, 4
        %v1856 = vld [vmem:[#allocation2 + $0x2c] sm:$0xe]
        %v1857 = vsel %vm623, %v1841, %v1856
        %1858 = vst [vmem:[#allocation2 + $0x2c] sm:$0xe] %v1857
        %1859 = vst [vmem:[#allocation2 + $0x30] sm:$0xf] %v1851
        %v1860 = vld [vmem:[#allocation2 + $0x34] sm:$0x3]
        %v1861 = vsel %vm617, %v1852, %v1860
        %1862 = vst [vmem:[#allocation2 + $0x34] sm:$0x3] %v1861
        %v1863 = vld [vmem:[#allocation2 + $0x34] sm:$0x6]
        %v1864 = vsel %vm1706, 0, %v1863
        %1865 = vst [vmem:[#allocation2 + $0x34] sm:$0x6] %v1864
        %v1867 = vshrl.u32 %v1651, 16
        %v1869 = vrot.slane %v1867, 5
        %v1870 = vshll.u32 %v1651, 16
        %v1872 = vrot.slane %v1870, 6
        %v1873 = vor.u32 %v1869, %v1872
        %v1874 = vrot.slane %v1873, 4
        %v1876 = vshrl.u32 %v1652, 16
        %v1878 = vrot.slane %v1876, 5
        %v1879 = vshll.u32 %v1652, 16
        %v1881 = vrot.slane %v1879, 6
        %v1882 = vor.u32 %v1878, %v1881
        %v1883 = vsel %vm1712, %v1874, %v1882
        %v1884 = vrot.slane %v1882, 4
        %v1888 = vld [vmem:[#allocation2 + $0x34] sm:$0xc]
        %v1889 = vsel %vm1737, %v1873, %v1888
        %1890 = vst [vmem:[#allocation2 + $0x34] sm:$0xc] %v1889
        %1891 = vst [vmem:[#allocation2 + $0x38] sm:$0xf] %v1883
        %v1892 = vld [vmem:[#allocation2 + $0x3c] sm:$0x7]
        %v1893 = vsel %vm1743, %v1884, %v1892
        %1894 = vst [vmem:[#allocation2 + $0x3c] sm:$0x7] %v1893
        %v1895 = vld [vmem:[#allocation2 + $0x3c] sm:$0xc]
        %v1896 = vsel %vm1748, 0, %v1895
        %1897 = vst [vmem:[#allocation2 + $0x3c] sm:$0xc] %v1896
        %v1899 = vshll.u32 %v1653, 16
        %v1901 = vrot.slane %v1899, 5
        %v1902 = vshrl.u32 %v1653, 16
        %v1904 = vrot.slane %v1902, 4
        %v1905 = vor.u32 %v1904, %v1901
        %v1906 = vrot.slane %v1905, 4
        %v1908 = vshll.u32 %v1654, 16
        %v1910 = vrot.slane %v1908, 5
        %v1911 = vsel %vm1754, %v1906, %v1910
        %v1912 = vshrl.u32 %v1654, 16
        %v1914 = vrot.slane %v1912, 4
        %v1915 = vor.u32 %v1914, %v1910
        %v1916 = vrot.slane %v1915, 4
        %v1920 = vld [vmem:[#allocation2 + $0x3c] sm:$0x8]
        %v1921 = vsel %vm1779, %v1901, %v1920
        %1922 = vst [vmem:[#allocation2 + $0x3c] sm:$0x8] %v1921
        %1923 = vst [vmem:[#allocation2 + $0x40] sm:$0xf] %v1911
        %v1924 = vld [vmem:[#allocation2 + $0x44] sm:$0xf]
        %v1925 = vsel %vm1785, %v1916, %v1924
        %1926 = vst [vmem:[#allocation2 + $0x44] sm:$0xf] %v1925
        %v1927 = vld [vmem:[#allocation2 + $0x44] sm:$0x8]
        %v1928 = vsel %vm1779, 0, %v1927
        %1929 = vst [vmem:[#allocation2 + $0x44] sm:$0x8] %v1928
        %v1930 = vld [vmem:[#allocation2 + $0x48] sm:$0x1]
        %v1931 = vsel %vm1794, 0, %v1930
        %1932 = vst [vmem:[#allocation2 + $0x48] sm:$0x1] %v1931
        %v1934 = vshrl.u32 %v1655, 16
        %v1936 = vrot.slane %v1934, 7
        %v1937 = vshll.u32 %v1655, 16
        %v1939 = vor.u32 %v1936, %v1937
        %v1940 = vrot.slane %v1936, 4
        %v1942 = vshrl.u32 %v1656, 16
        %v1944 = vrot.slane %v1942, 7
        %v1945 = vshll.u32 %v1656, 16
        %v1947 = vor.u32 %v1944, %v1945
        %v1948 = vsel %vm1799, %v1940, %v1947
        %v1949 = vrot.slane %v1944, 4
        %v1953 = vld [vmem:[#allocation2 + $0x48] sm:$0xf]
        %v1954 = vsel %vm1821, %v1939, %v1953
        %1955 = vst [vmem:[#allocation2 + $0x48] sm:$0xf] %v1954
        %1956 = vst [vmem:[#allocation2 + $0x4c] sm:$0xf] %v1948
        %v1957 = vld [vmem:[#allocation2 + $0x50] sm:$0x1]
        %v1958 = vsel %vm1794, %v1949, %v1957
        %1959 = vst [vmem:[#allocation2 + $0x50] sm:$0x1] %v1958
        %v1960 = vld [vmem:[#allocation2 + $0x50] sm:$0x3]
        %v1961 = vsel %vm1830, 0, %v1960
        %1962 = vst [vmem:[#allocation2 + $0x50] sm:$0x3] %v1961
        %v1964 = vshrl.u32 %v1657, 16
        %v1966 = vrot.slane %v1964, 6
        %v1967 = vshll.u32 %v1657, 16
        %v1969 = vrot.slane %v1967, 7
        %v1970 = vor.u32 %v1966, %v1969
        %v1971 = vrot.slane %v1970, 4
        %v1973 = vshrl.u32 %v1658, 16
        %v1975 = vrot.slane %v1973, 6
        %v1976 = vshll.u32 %v1658, 16
        %v1978 = vrot.slane %v1976, 7
        %v1979 = vor.u32 %v1975, %v1978
        %v1980 = vsel %vm1674, %v1971, %v1979
        %v1981 = vrot.slane %v1979, 4
        %v1985 = vld [vmem:[#allocation2 + $0x50] sm:$0xe]
        %v1986 = vsel %vm623, %v1970, %v1985
        %1987 = vst [vmem:[#allocation2 + $0x50] sm:$0xe] %v1986
        %1988 = vst [vmem:[#allocation2 + $0x54] sm:$0xf] %v1980
        %v1989 = vld [vmem:[#allocation2 + $0x58] sm:$0x3]
        %v1990 = vsel %vm617, %v1981, %v1989
        %1991 = vst [vmem:[#allocation2 + $0x58] sm:$0x3] %v1990
        %v1992 = vld [vmem:[#allocation2 + $0x58] sm:$0x6]
        %v1993 = vsel %vm1706, 0, %v1992
        %1994 = vst [vmem:[#allocation2 + $0x58] sm:$0x6] %v1993
        %v1996 = vshrl.u32 %v1659, 16
        %v1998 = vrot.slane %v1996, 5
        %v1999 = vshll.u32 %v1659, 16
        %v2001 = vrot.slane %v1999, 6
        %v2002 = vor.u32 %v1998, %v2001
        %v2003 = vrot.slane %v2002, 4
        %v2005 = vshrl.u32 %v1660, 16
        %v2007 = vrot.slane %v2005, 5
        %v2008 = vshll.u32 %v1660, 16
        %v2010 = vrot.slane %v2008, 6
        %v2011 = vor.u32 %v2007, %v2010
        %v2012 = vsel %vm1712, %v2003, %v2011
        %v2013 = vrot.slane %v2011, 4
        %v2017 = vld [vmem:[#allocation2 + $0x58] sm:$0xc]
        %v2018 = vsel %vm1737, %v2002, %v2017
        %2019 = vst [vmem:[#allocation2 + $0x58] sm:$0xc] %v2018
        %2020 = vst [vmem:[#allocation2 + $0x5c] sm:$0xf] %v2012
        %v2021 = vld [vmem:[#allocation2 + $0x60] sm:$0x7]
        %v2022 = vsel %vm1743, %v2013, %v2021
        %2023 = vst [vmem:[#allocation2 + $0x60] sm:$0x7] %v2022
        %v2024 = vld [vmem:[#allocation2 + $0x60] sm:$0xc]
        %v2025 = vsel %vm1748, 0, %v2024
        %2026 = vst [vmem:[#allocation2 + $0x60] sm:$0xc] %v2025
        %v2028 = vshll.u32 %v1661, 16
        %v2030 = vrot.slane %v2028, 5
        %v2031 = vshrl.u32 %v1661, 16
        %v2033 = vrot.slane %v2031, 4
        %v2034 = vor.u32 %v2033, %v2030
        %v2035 = vrot.slane %v2034, 4
        %v2037 = vshll.u32 %v1662, 16
        %v2039 = vrot.slane %v2037, 5
        %v2040 = vsel %vm1754, %v2035, %v2039
        %v2041 = vshrl.u32 %v1662, 16
        %v2043 = vrot.slane %v2041, 4
        %v2044 = vor.u32 %v2043, %v2039
        %v2045 = vrot.slane %v2044, 4
        %v2049 = vld [vmem:[#allocation2 + $0x60] sm:$0x8]
        %v2050 = vsel %vm1779, %v2030, %v2049
        %2051 = vst [vmem:[#allocation2 + $0x60] sm:$0x8] %v2050
        %2052 = vst [vmem:[#allocation2 + $0x64] sm:$0xf] %v2040
        %v2053 = vld [vmem:[#allocation2 + $0x68] sm:$0xf]
        %v2054 = vsel %vm1785, %v2045, %v2053
        %2055 = vst [vmem:[#allocation2 + $0x68] sm:$0xf] %v2054
        %v2056 = vld [vmem:[#allocation2 + $0x68] sm:$0x8]
        %v2057 = vsel %vm1779, 0, %v2056
        %2058 = vst [vmem:[#allocation2 + $0x68] sm:$0x8] %v2057
        %v2059 = vld [vmem:[#allocation2 + $0x6c] sm:$0x1]
        %v2060 = vsel %vm1794, 0, %v2059
        %2061 = vst [vmem:[#allocation2 + $0x6c] sm:$0x1] %v2060
        %v2063 = vshrl.u32 %v1663, 16
        %v2065 = vrot.slane %v2063, 7
        %v2066 = vshll.u32 %v1663, 16
        %v2068 = vor.u32 %v2065, %v2066
        %v2069 = vrot.slane %v2065, 4
        %v2071 = vshrl.u32 %v1664, 16
        %v2073 = vrot.slane %v2071, 7
        %v2074 = vshll.u32 %v1664, 16
        %v2076 = vor.u32 %v2073, %v2074
        %v2077 = vsel %vm1799, %v2069, %v2076
        %v2078 = vrot.slane %v2073, 4
        %v2082 = vld [vmem:[#allocation2 + $0x6c] sm:$0xf]
        %v2083 = vsel %vm1821, %v2068, %v2082
        %2084 = vst [vmem:[#allocation2 + $0x6c] sm:$0xf] %v2083
        %2085 = vst [vmem:[#allocation2 + $0x70] sm:$0xf] %v2077
        %v2086 = vld [vmem:[#allocation2 + $0x74] sm:$0x1]
        %v2087 = vsel %vm1794, %v2078, %v2086
        %2088 = vst [vmem:[#allocation2 + $0x74] sm:$0x1] %v2087
        %v2089 = vld [vmem:[#allocation2 + $0x74] sm:$0x3]
        %v2090 = vsel %vm1830, 0, %v2089
        %2091 = vst [vmem:[#allocation2 + $0x74] sm:$0x3] %v2090
        %v2093 = vshrl.u32 %v1665, 16
        %v2095 = vrot.slane %v2093, 6
        %v2096 = vshll.u32 %v1665, 16
        %v2098 = vrot.slane %v2096, 7
        %v2099 = vor.u32 %v2095, %v2098
        %v2100 = vrot.slane %v2099, 4
        %v2102 = vshrl.u32 %v1666, 16
        %v2104 = vrot.slane %v2102, 6
        %v2105 = vshll.u32 %v1666, 16
        %v2107 = vrot.slane %v2105, 7
        %v2108 = vor.u32 %v2104, %v2107
        %v2109 = vsel %vm1674, %v2100, %v2108
        %v2110 = vrot.slane %v2108, 4
        %v2114 = vld [vmem:[#allocation2 + $0x74] sm:$0xe]
        %v2115 = vsel %vm623, %v2099, %v2114
        %2116 = vst [vmem:[#allocation2 + $0x74] sm:$0xe] %v2115
        %2117 = vst [vmem:[#allocation2 + $0x78] sm:$0xf] %v2109
        %v2118 = vld [vmem:[#allocation2 + $0x7c] sm:$0x3]
        %v2119 = vsel %vm617, %v2110, %v2118
        %2120 = vst [vmem:[#allocation2 + $0x7c] sm:$0x3] %v2119
        %v2121 = vld [vmem:[#allocation2 + $0x7c] sm:$0x6]
        %v2122 = vsel %vm1706, 0, %v2121
        %2123 = vst [vmem:[#allocation2 + $0x7c] sm:$0x6] %v2122
        %v2125 = vshrl.u32 %v1667, 16
        %v2127 = vrot.slane %v2125, 5
        %v2128 = vshll.u32 %v1667, 16
        %v2130 = vrot.slane %v2128, 6
        %v2131 = vor.u32 %v2127, %v2130
        %v2132 = vrot.slane %v2131, 4
        %v2134 = vshrl.u32 %v1668, 16
        %v2136 = vrot.slane %v2134, 5
        %v2137 = vshll.u32 %v1668, 16
        %v2139 = vrot.slane %v2137, 6
        %v2140 = vor.u32 %v2136, %v2139
        %v2141 = vsel %vm1712, %v2132, %v2140
        %v2142 = vrot.slane %v2140, 4
        %v2146 = vld [vmem:[#allocation2 + $0x7c] sm:$0xc]
        %v2147 = vsel %vm1737, %v2131, %v2146
        %2148 = vst [vmem:[#allocation2 + $0x7c] sm:$0xc] %v2147
        %2149 = vst [vmem:[#allocation2 + $0x80] sm:$0xf] %v2141
        %v2150 = vld [vmem:[#allocation2 + $0x84] sm:$0x7]
        %v2151 = vsel %vm1743, %v2142, %v2150
        %2152 = vst [vmem:[#allocation2 + $0x84] sm:$0x7] %v2151
        %v2153 = vld [vmem:[#allocation2 + $0x84] sm:$0xc]
        %v2154 = vsel %vm1748, 0, %v2153
        %2155 = vst [vmem:[#allocation2 + $0x84] sm:$0xc] %v2154
        %v2157 = vshll.u32 %v1669, 16
        %v2159 = vrot.slane %v2157, 5
        %v2160 = vshrl.u32 %v1669, 16
        %v2162 = vrot.slane %v2160, 4
        %v2163 = vor.u32 %v2162, %v2159
        %v2164 = vrot.slane %v2163, 4
        %v2166 = vshll.u32 %v1670, 16
        %v2168 = vrot.slane %v2166, 5
        %v2169 = vsel %vm1754, %v2164, %v2168
        %v2170 = vshrl.u32 %v1670, 16
        %v2172 = vrot.slane %v2170, 4
        %v2173 = vor.u32 %v2172, %v2168
        %v2174 = vrot.slane %v2173, 4
        %v2178 = vld [vmem:[#allocation2 + $0x84] sm:$0x8]
        %v2179 = vsel %vm1779, %v2159, %v2178
        %2180 = vst [vmem:[#allocation2 + $0x84] sm:$0x8] %v2179
        %2181 = vst [vmem:[#allocation2 + $0x88] sm:$0xf] %v2169
        %v2182 = vld [vmem:[#allocation2 + $0x8c] sm:$0xf]
        %v2183 = vsel %vm1785, %v2174, %v2182
        %2184 = vst [vmem:[#allocation2 + $0x8c] sm:$0xf] %v2183
        %v2185 = vld [vmem:[#allocation2 + $0x8c] sm:$0x8]
        %v2186 = vsel %vm1779, 0, %v2185
        %2187 = vst [vmem:[#allocation2 + $0x8c] sm:$0x8] %v2186
        %v2188 = vld [vmem:[#allocation2 + $0x90] sm:$0x1]
        %v2189 = vsel %vm1794, 0, %v2188
        %2190 = vst [vmem:[#allocation2 + $0x90] sm:$0x1] %v2189
        %v2192 = vshrl.u32 %v1671, 16
        %v2194 = vrot.slane %v2192, 7
        %v2195 = vshll.u32 %v1671, 16
        %v2197 = vor.u32 %v2194, %v2195
        %v2198 = vrot.slane %v2194, 4
        %v2200 = vshrl.u32 %v1672, 16
        %v2202 = vrot.slane %v2200, 7
        %v2203 = vshll.u32 %v1672, 16
        %v2205 = vor.u32 %v2202, %v2203
        %v2206 = vsel %vm1799, %v2198, %v2205
        %v2207 = vrot.slane %v2202, 4
        %v2211 = vld [vmem:[#allocation2 + $0x90] sm:$0xf]
        %v2212 = vsel %vm1821, %v2197, %v2211
        %2213 = vst [vmem:[#allocation2 + $0x90] sm:$0xf] %v2212
        %2214 = vst [vmem:[#allocation2 + $0x94] sm:$0xf] %v2206
        %v2215 = vld [vmem:[#allocation2 + $0x98] sm:$0x1]
        %v2216 = vsel %vm1794, %v2207, %v2215
        %2217 = vst [vmem:[#allocation2 + $0x98] sm:$0x1] %v2216
        %v2218 = vld [vmem:[#allocation2 + $0x98] sm:$0x3]
        %v2219 = vsel %vm1830, 0, %v2218
        %2220 = vst [vmem:[#allocation2 + $0x98] sm:$0x3] %v2219
        %v2221 = vld [vmem:[#allocation2] sm:$0xf]
        %v2222 = vld [vmem:[#allocation2 + $0x4] sm:$0xf]
        %v2223 = vld [vmem:[#allocation2 + $0x8] sm:$0xf]
        %v2224 = vld [vmem:[#allocation2 + $0xc] sm:$0xf]
        %v2225 = vld [vmem:[#allocation2 + $0x10] sm:$0xf]
        %v2226 = vld [vmem:[#allocation2 + $0x14] sm:$0xf]
        %v2227 = vld [vmem:[#allocation2 + $0x18] sm:$0xf]
        %v2228 = vld [vmem:[#allocation2 + $0x1c] sm:$0xf]
        %v2229 = vld [vmem:[#allocation2 + $0x20] sm:$0xf]
        %v2230 = vld [vmem:[#allocation2 + $0x24] sm:$0xf]
        %v2231 = vld [vmem:[#allocation2 + $0x28] sm:$0xf]
        %v2232 = vld [vmem:[#allocation2 + $0x2c] sm:$0xf]
        %v2233 = vld [vmem:[#allocation2 + $0x30] sm:$0xf]
        %v2234 = vld [vmem:[#allocation2 + $0x34] sm:$0xf]
        %v2235 = vld [vmem:[#allocation2 + $0x38] sm:$0xf]
        %v2236 = vld [vmem:[#allocation2 + $0x3c] sm:$0xf]
        %v2237 = vld [vmem:[#allocation2 + $0x40] sm:$0xf]
        %v2238 = vld [vmem:[#allocation2 + $0x44] sm:$0xf]
        %v2239 = vld [vmem:[#allocation2 + $0x48] sm:$0xf]
        %v2240 = vld [vmem:[#allocation2 + $0x4c] sm:$0xf]
        %v2241 = vld [vmem:[#allocation2 + $0x50] sm:$0xf]
        %v2242 = vld [vmem:[#allocation2 + $0x54] sm:$0xf]
        %v2243 = vld [vmem:[#allocation2 + $0x58] sm:$0xf]
        %v2244 = vld [vmem:[#allocation2 + $0x5c] sm:$0xf]
        %v2245 = vld [vmem:[#allocation2 + $0x60] sm:$0xf]
        %v2246 = vld [vmem:[#allocation2 + $0x64] sm:$0xf]
        %v2247 = vld [vmem:[#allocation2 + $0x68] sm:$0xf]
        %v2248 = vld [vmem:[#allocation2 + $0x6c] sm:$0xf]
        %v2249 = vld [vmem:[#allocation2 + $0x70] sm:$0xf]
        %v2250 = vld [vmem:[#allocation2 + $0x74] sm:$0xf]
        %v2251 = vld [vmem:[#allocation2 + $0x78] sm:$0xf]
        %v2252 = vld [vmem:[#allocation2 + $0x7c] sm:$0xf]
        %v2253 = vld [vmem:[#allocation2 + $0x80] sm:$0xf]
        %v2254 = vld [vmem:[#allocation2 + $0x84] sm:$0xf]
        %v2255 = vld [vmem:[#allocation2 + $0x88] sm:$0xf]
        %v2256 = vld [vmem:[#allocation2 + $0x8c] sm:$0xf]
        %v2257 = vld [vmem:[#allocation7] sm:$0xf]
        %v2258 = vld [vmem:[#allocation7 + $0x4] sm:$0xf]
        %v2259 = vld [vmem:[#allocation7 + $0x8] sm:$0xf]
        %v2260 = vld [vmem:[#allocation7 + $0xc] sm:$0xf]
        %v2261 = vld [vmem:[#allocation7 + $0x10] sm:$0xf]
        %v2262 = vld [vmem:[#allocation7 + $0x14] sm:$0xf]
        %v2263 = vld [vmem:[#allocation7 + $0x18] sm:$0xf]
        %v2264 = vld [vmem:[#allocation7 + $0x1c] sm:$0xf]
        %v2265 = vld [vmem:[#allocation7 + $0x20] sm:$0xf]
        %v2266 = vld [vmem:[#allocation7 + $0x24] sm:$0xf]
        %v2267 = vld [vmem:[#allocation7 + $0x28] sm:$0xf]
        %v2268 = vld [vmem:[#allocation7 + $0x2c] sm:$0xf]
        %v2269 = vld [vmem:[#allocation7 + $0x30] sm:$0xf]
        %v2270 = vld [vmem:[#allocation7 + $0x34] sm:$0xf]
        %v2271 = vld [vmem:[#allocation7 + $0x38] sm:$0xf]
        %v2272 = vld [vmem:[#allocation7 + $0x3c] sm:$0xf]
        %v2273 = vld [vmem:[#allocation2 + $0x90] sm:$0x1]
        %s2274 = scalar_lea.vmem [#allocation7], 64
        %v2275 = vld [vmem:[%s2274] sm:$0xf]
        %v2276 = vld [vmem:[%s2274 + $0x4] sm:$0xf]
        %v2277 = vld [vmem:[%s2274 + $0x8] sm:$0xf]
        %v2278 = vld [vmem:[%s2274 + $0xc] sm:$0xf]
        %v2279 = vld [vmem:[%s2274 + $0x10] sm:$0xf]
        %v2280 = vld [vmem:[%s2274 + $0x14] sm:$0xf]
        %v2281 = vld [vmem:[%s2274 + $0x18] sm:$0xf]
        %v2282 = vld [vmem:[%s2274 + $0x1c] sm:$0xf]
        %v2283 = vld [vmem:[%s2274 + $0x20] sm:$0xf]
        %v2284 = vld [vmem:[%s2274 + $0x24] sm:$0xf]
        %v2285 = vld [vmem:[%s2274 + $0x28] sm:$0xf]
        %v2286 = vld [vmem:[%s2274 + $0x2c] sm:$0xf]
        %v2287 = vld [vmem:[%s2274 + $0x30] sm:$0xf]
        %v2288 = vld [vmem:[%s2274 + $0x34] sm:$0xf]
        %v2289 = vld [vmem:[%s2274 + $0x38] sm:$0xf]
        %v2290 = vld [vmem:[%s2274 + $0x3c] sm:$0xf]
        %v2328 = vunpack.c.l.b16 %v2221
        %v2329 = vunpack.c.l.b16 %v2222
        %v2330 = vunpack.c.l.b16 %v2223
        %v2331 = vunpack.c.l.b16 %v2224
        %v2332 = vunpack.c.l.b16 %v2225
        %v2333 = vunpack.c.l.b16 %v2226
        %v2334 = vunpack.c.l.b16 %v2227
        %v2335 = vunpack.c.l.b16 %v2228
        %v2336 = vunpack.c.l.b16 %v2229
        %v2337 = vunpack.c.l.b16 %v2230
        %v2338 = vunpack.c.l.b16 %v2231
        %v2339 = vunpack.c.l.b16 %v2232
        %v2340 = vunpack.c.l.b16 %v2233
        %v2341 = vunpack.c.l.b16 %v2234
        %v2342 = vunpack.c.l.b16 %v2235
        %v2343 = vunpack.c.l.b16 %v2236
        %v2344 = vunpack.c.l.b16 %v2237
        %v2345 = vunpack.c.l.b16 %v2238
        %v2346 = vunpack.c.l.b16 %v2239
        %v2347 = vunpack.c.l.b16 %v2240
        %v2348 = vunpack.c.l.b16 %v2241
        %v2349 = vunpack.c.l.b16 %v2242
        %v2350 = vunpack.c.l.b16 %v2243
        %v2351 = vunpack.c.l.b16 %v2244
        %v2352 = vunpack.c.l.b16 %v2245
        %v2353 = vunpack.c.l.b16 %v2246
        %v2354 = vunpack.c.l.b16 %v2247
        %v2355 = vunpack.c.l.b16 %v2248
        %v2356 = vunpack.c.l.b16 %v2249
        %v2357 = vunpack.c.l.b16 %v2250
        %v2358 = vunpack.c.l.b16 %v2251
        %v2359 = vunpack.c.l.b16 %v2252
        %v2360 = vunpack.c.l.b16 %v2253
        %v2361 = vunpack.c.l.b16 %v2254
        %v2362 = vunpack.c.l.b16 %v2255
        %v2363 = vunpack.c.l.b16 %v2256
        %v2364 = vunpack.c.l.b16 %v2273
        %v2365 = vpack.c.b16 %v2329, %v2328
        %v2366 = vpack.c.b16 %v2331, %v2330
        %v2367 = vpack.c.b16 %v2333, %v2332
        %v2368 = vpack.c.b16 %v2335, %v2334
        %v2369 = vpack.c.b16 %v2337, %v2336
        %v2370 = vpack.c.b16 %v2339, %v2338
        %v2371 = vpack.c.b16 %v2341, %v2340
        %v2372 = vpack.c.b16 %v2343, %v2342
        %v2373 = vpack.c.b16 %v2345, %v2344
        %v2374 = vpack.c.b16 %v2347, %v2346
        %v2375 = vpack.c.b16 %v2349, %v2348
        %v2376 = vpack.c.b16 %v2351, %v2350
        %v2377 = vpack.c.b16 %v2353, %v2352
        %v2378 = vpack.c.b16 %v2355, %v2354
        %v2379 = vpack.c.b16 %v2357, %v2356
        %v2380 = vpack.c.b16 %v2359, %v2358
        %v2381 = vpack.c.b16 %v2361, %v2360
        %v2382 = vpack.c.b16 %v2363, %v2362
        %v2383 = vpack.c.b16 %v2364, %v2364
        %vm2384 = vsmask.f32 7424
        %v2386 = vshrl.u32 %v2365, 16
        %v2388 = vshll.u32 %v2365, 16
        %v2390 = vrot.slane %v2388, 1
        %v2391 = vor.u32 %v2386, %v2390
        %v2393 = vshll.u32 %v2366, 16
        %v2395 = vrot.slane %v2393, 1
        %v2396 = vsel %vm2384, %v2391, %v2395
        %v2397 = vshrl.u32 %v2366, 16
        %v2399 = vor.u32 %v2397, %v2395
        %v2401 = vshll.u32 %v2367, 16
        %v2403 = vrot.slane %v2401, 1
        %v2404 = vsel %vm2384, %v2399, %v2403
        %v2405 = vshrl.u32 %v2367, 16
        %v2407 = vor.u32 %v2405, %v2403
        %v2409 = vshll.u32 %v2368, 16
        %v2411 = vrot.slane %v2409, 1
        %v2412 = vsel %vm2384, %v2407, %v2411
        %v2413 = vshrl.u32 %v2368, 16
        %v2415 = vor.u32 %v2413, %v2411
        %v2417 = vshll.u32 %v2369, 16
        %v2419 = vrot.slane %v2417, 1
        %v2420 = vsel %vm2384, %v2415, %v2419
        %v2421 = vshrl.u32 %v2369, 16
        %v2423 = vor.u32 %v2421, %v2419
        %v2425 = vshll.u32 %v2370, 16
        %v2427 = vrot.slane %v2425, 1
        %v2428 = vsel %vm2384, %v2423, %v2427
        %v2429 = vshrl.u32 %v2370, 16
        %v2431 = vor.u32 %v2429, %v2427
        %v2433 = vshll.u32 %v2371, 16
        %v2435 = vrot.slane %v2433, 1
        %v2436 = vsel %vm2384, %v2431, %v2435
        %v2437 = vshrl.u32 %v2371, 16
        %v2439 = vor.u32 %v2437, %v2435
        %v2441 = vshll.u32 %v2372, 16
        %v2443 = vrot.slane %v2441, 1
        %v2444 = vsel %vm2384, %v2439, %v2443
        %v2445 = vshrl.u32 %v2372, 16
        %v2447 = vor.u32 %v2445, %v2443
        %v2449 = vshll.u32 %v2373, 16
        %v2451 = vrot.slane %v2449, 1
        %v2452 = vsel %vm2384, %v2447, %v2451
        %v2453 = vshrl.u32 %v2373, 16
        %v2455 = vor.u32 %v2453, %v2451
        %v2457 = vshll.u32 %v2374, 16
        %v2459 = vrot.slane %v2457, 1
        %v2460 = vsel %vm2384, %v2455, %v2459
        %v2461 = vshrl.u32 %v2374, 16
        %v2463 = vor.u32 %v2461, %v2459
        %v2465 = vshll.u32 %v2375, 16
        %v2467 = vrot.slane %v2465, 1
        %v2468 = vsel %vm2384, %v2463, %v2467
        %v2469 = vshrl.u32 %v2375, 16
        %v2471 = vor.u32 %v2469, %v2467
        %v2473 = vshll.u32 %v2376, 16
        %v2475 = vrot.slane %v2473, 1
        %v2476 = vsel %vm2384, %v2471, %v2475
        %v2477 = vshrl.u32 %v2376, 16
        %v2479 = vor.u32 %v2477, %v2475
        %v2481 = vshll.u32 %v2377, 16
        %v2483 = vrot.slane %v2481, 1
        %v2484 = vsel %vm2384, %v2479, %v2483
        %v2485 = vshrl.u32 %v2377, 16
        %v2487 = vor.u32 %v2485, %v2483
        %v2489 = vshll.u32 %v2378, 16
        %v2491 = vrot.slane %v2489, 1
        %v2492 = vsel %vm2384, %v2487, %v2491
        %v2493 = vshrl.u32 %v2378, 16
        %v2495 = vor.u32 %v2493, %v2491
        %v2497 = vshll.u32 %v2379, 16
        %v2499 = vrot.slane %v2497, 1
        %v2500 = vsel %vm2384, %v2495, %v2499
        %v2501 = vshrl.u32 %v2379, 16
        %v2503 = vor.u32 %v2501, %v2499
        %v2505 = vshll.u32 %v2380, 16
        %v2507 = vrot.slane %v2505, 1
        %v2508 = vsel %vm2384, %v2503, %v2507
        %v2509 = vshrl.u32 %v2380, 16
        %v2511 = vor.u32 %v2509, %v2507
        %v2513 = vshll.u32 %v2381, 16
        %v2515 = vrot.slane %v2513, 1
        %v2516 = vsel %vm2384, %v2511, %v2515
        %v2517 = vshrl.u32 %v2381, 16
        %v2519 = vor.u32 %v2517, %v2515
        %v2521 = vshll.u32 %v2382, 16
        %v2523 = vrot.slane %v2521, 1
        %v2524 = vsel %vm2384, %v2519, %v2523
        %v2525 = vshrl.u32 %v2382, 16
        %v2527 = vor.u32 %v2525, %v2523
        %v2529 = vshll.u32 %v2383, 16
        %v2531 = vrot.slane %v2529, 1
        %v2532 = vsel %vm2384, %v2527, %v2531
        %v2567 = vunpack.c.l.b16 %v2275
        %v2568 = vunpack.c.l.b16 %v2276
        %v2569 = vunpack.c.l.b16 %v2277
        %v2570 = vunpack.c.l.b16 %v2278
        %v2571 = vunpack.c.l.b16 %v2279
        %v2572 = vunpack.c.l.b16 %v2280
        %v2573 = vunpack.c.l.b16 %v2281
        %v2574 = vunpack.c.l.b16 %v2282
        %v2575 = vunpack.c.l.b16 %v2283
        %v2576 = vunpack.c.l.b16 %v2284
        %v2577 = vunpack.c.l.b16 %v2285
        %v2578 = vunpack.c.l.b16 %v2286
        %v2579 = vunpack.c.l.b16 %v2287
        %v2580 = vunpack.c.l.b16 %v2288
        %v2581 = vunpack.c.l.b16 %v2289
        %v2582 = vunpack.c.l.b16 %v2290
        %v2583 = vpack.c.b16 %v2568, %v2567
        %v2584 = vpack.c.b16 %v2570, %v2569
        %v2585 = vpack.c.b16 %v2572, %v2571
        %v2586 = vpack.c.b16 %v2574, %v2573
        %v2587 = vpack.c.b16 %v2576, %v2575
        %v2588 = vpack.c.b16 %v2578, %v2577
        %v2589 = vpack.c.b16 %v2580, %v2579
        %v2590 = vpack.c.b16 %v2582, %v2581
        %2599 = vmatpush.bf16.msra.mxu0 %v2590
        %2600 = vmatpush.bf16.msra.mxu0 %v2589
        %2601 = vmatpush.bf16.msra.mxu0 %v2588
        %2602 = vmatpush.bf16.msra.mxu0 %v2587
        %2603 = vmatpush.bf16.msra.mxu0 %v2586
        %2604 = vmatpush.bf16.msra.mxu0 %v2585
        %2605 = vmatpush.bf16.msra.mxu0 %v2584
        %2606 = vmatpush.bf16.msra.mxu0 %v2583
        %2607 = vmatmul.bf16.gmra.mxu0 %v2396
        %v2608 = vpop.f32.mrf.mxu0
        %v2609 = vadd.f32 0.0, %v2608
        %v2610 = vpop.f32.mrf.mxu0
        %v2611 = vadd.f32 0.0, %v2610
        %2612 = vmatmul.bf16.gmra.mxu0 %v2404
        %v2613 = vpop.f32.mrf.mxu0
        %v2614 = vadd.f32 0.0, %v2613
        %v2615 = vpop.f32.mrf.mxu0
        %v2616 = vadd.f32 0.0, %v2615
        %2617 = vmatmul.bf16.gmra.mxu0 %v2412
        %v2618 = vpop.f32.mrf.mxu0
        %v2619 = vadd.f32 0.0, %v2618
        %v2620 = vpop.f32.mrf.mxu0
        %v2621 = vadd.f32 0.0, %v2620
        %2622 = vmatmul.bf16.gmra.mxu0 %v2420
        %v2623 = vpop.f32.mrf.mxu0
        %v2624 = vadd.f32 0.0, %v2623
        %v2625 = vpop.f32.mrf.mxu0
        %v2626 = vadd.f32 0.0, %v2625
        %2627 = vmatmul.bf16.gmra.mxu0 %v2428
        %v2628 = vpop.f32.mrf.mxu0
        %v2629 = vadd.f32 0.0, %v2628
        %v2630 = vpop.f32.mrf.mxu0
        %v2631 = vadd.f32 0.0, %v2630
        %2632 = vmatmul.bf16.gmra.mxu0 %v2436
        %v2633 = vpop.f32.mrf.mxu0
        %v2634 = vadd.f32 0.0, %v2633
        %v2635 = vpop.f32.mrf.mxu0
        %v2636 = vadd.f32 0.0, %v2635
        %2637 = vmatmul.bf16.gmra.mxu0 %v2444
        %v2638 = vpop.f32.mrf.mxu0
        %v2639 = vadd.f32 0.0, %v2638
        %v2640 = vpop.f32.mrf.mxu0
        %v2641 = vadd.f32 0.0, %v2640
        %2642 = vmatmul.bf16.gmra.mxu0 %v2452
        %v2643 = vpop.f32.mrf.mxu0
        %v2644 = vadd.f32 0.0, %v2643
        %v2645 = vpop.f32.mrf.mxu0
        %v2646 = vadd.f32 0.0, %v2645
        %2647 = vmatmul.bf16.gmra.mxu0 %v2460
        %v2648 = vpop.f32.mrf.mxu0
        %v2649 = vadd.f32 0.0, %v2648
        %v2650 = vpop.f32.mrf.mxu0
        %v2651 = vadd.f32 0.0, %v2650
        %2652 = vmatmul.bf16.gmra.mxu0 %v2468
        %v2653 = vpop.f32.mrf.mxu0
        %v2654 = vadd.f32 0.0, %v2653
        %v2655 = vpop.f32.mrf.mxu0
        %v2656 = vadd.f32 0.0, %v2655
        %2657 = vmatmul.bf16.gmra.mxu0 %v2476
        %v2658 = vpop.f32.mrf.mxu0
        %v2659 = vadd.f32 0.0, %v2658
        %v2660 = vpop.f32.mrf.mxu0
        %v2661 = vadd.f32 0.0, %v2660
        %2662 = vmatmul.bf16.gmra.mxu0 %v2484
        %v2663 = vpop.f32.mrf.mxu0
        %v2664 = vadd.f32 0.0, %v2663
        %v2665 = vpop.f32.mrf.mxu0
        %v2666 = vadd.f32 0.0, %v2665
        %2667 = vmatmul.bf16.gmra.mxu0 %v2492
        %v2668 = vpop.f32.mrf.mxu0
        %v2669 = vadd.f32 0.0, %v2668
        %v2670 = vpop.f32.mrf.mxu0
        %v2671 = vadd.f32 0.0, %v2670
        %2672 = vmatmul.bf16.gmra.mxu0 %v2500
        %v2673 = vpop.f32.mrf.mxu0
        %v2674 = vadd.f32 0.0, %v2673
        %v2675 = vpop.f32.mrf.mxu0
        %v2676 = vadd.f32 0.0, %v2675
        %2677 = vmatmul.bf16.gmra.mxu0 %v2508
        %v2678 = vpop.f32.mrf.mxu0
        %v2679 = vadd.f32 0.0, %v2678
        %v2680 = vpop.f32.mrf.mxu0
        %v2681 = vadd.f32 0.0, %v2680
        %2682 = vmatmul.bf16.gmra.mxu0 %v2516
        %v2683 = vpop.f32.mrf.mxu0
        %v2684 = vadd.f32 0.0, %v2683
        %v2685 = vpop.f32.mrf.mxu0
        %v2686 = vadd.f32 0.0, %v2685
        %2687 = vmatmul.bf16.gmra.mxu0 %v2524
        %v2688 = vpop.f32.mrf.mxu0
        %v2689 = vadd.f32 0.0, %v2688
        %v2690 = vpop.f32.mrf.mxu0
        %v2691 = vadd.f32 0.0, %v2690
        %2692 = vmatmul.bf16.gmra.mxu0 %v2532
        %v2693 = vpop.f32.mrf.mxu0
        %v2694 = vadd.f32 0.0, %v2693
        %v2695 = vpop.f32.mrf.mxu0
        %v2696 = vadd.f32 0.0, %v2695
        %2697 = vdwg.mxu0
        %v2732 = vunpack.c.l.b16 %v2257
        %v2733 = vunpack.c.l.b16 %v2258
        %v2734 = vunpack.c.l.b16 %v2259
        %v2735 = vunpack.c.l.b16 %v2260
        %v2736 = vunpack.c.l.b16 %v2261
        %v2737 = vunpack.c.l.b16 %v2262
        %v2738 = vunpack.c.l.b16 %v2263
        %v2739 = vunpack.c.l.b16 %v2264
        %v2740 = vunpack.c.l.b16 %v2265
        %v2741 = vunpack.c.l.b16 %v2266
        %v2742 = vunpack.c.l.b16 %v2267
        %v2743 = vunpack.c.l.b16 %v2268
        %v2744 = vunpack.c.l.b16 %v2269
        %v2745 = vunpack.c.l.b16 %v2270
        %v2746 = vunpack.c.l.b16 %v2271
        %v2747 = vunpack.c.l.b16 %v2272
        %v2748 = vpack.c.b16 %v2733, %v2732
        %v2749 = vpack.c.b16 %v2735, %v2734
        %v2750 = vpack.c.b16 %v2737, %v2736
        %v2751 = vpack.c.b16 %v2739, %v2738
        %v2752 = vpack.c.b16 %v2741, %v2740
        %v2753 = vpack.c.b16 %v2743, %v2742
        %v2754 = vpack.c.b16 %v2745, %v2744
        %v2755 = vpack.c.b16 %v2747, %v2746
        %2764 = vmatpush.bf16.msra.mxu0 %v2755
        %2765 = vmatpush.bf16.msra.mxu0 %v2754
        %2766 = vmatpush.bf16.msra.mxu0 %v2753
        %2767 = vmatpush.bf16.msra.mxu0 %v2752
        %2768 = vmatpush.bf16.msra.mxu0 %v2751
        %2769 = vmatpush.bf16.msra.mxu0 %v2750
        %2770 = vmatpush.bf16.msra.mxu0 %v2749
        %2771 = vmatpush.bf16.msra.mxu0 %v2748
        %2772 = vmatmul.bf16.gmra.mxu0 %v2365
        %v2773 = vpop.f32.mrf.mxu0
        %v2774 = vadd.f32 %v2609, %v2773
        %v2775 = vpop.f32.mrf.mxu0
        %v2776 = vadd.f32 %v2611, %v2775
        %2777 = vmatmul.bf16.gmra.mxu0 %v2366
        %v2778 = vpop.f32.mrf.mxu0
        %v2779 = vadd.f32 %v2614, %v2778
        %v2780 = vpop.f32.mrf.mxu0
        %v2781 = vadd.f32 %v2616, %v2780
        %2782 = vmatmul.bf16.gmra.mxu0 %v2367
        %v2783 = vpop.f32.mrf.mxu0
        %v2784 = vadd.f32 %v2619, %v2783
        %v2785 = vpop.f32.mrf.mxu0
        %v2786 = vadd.f32 %v2621, %v2785
        %2787 = vmatmul.bf16.gmra.mxu0 %v2368
        %v2788 = vpop.f32.mrf.mxu0
        %v2789 = vadd.f32 %v2624, %v2788
        %v2790 = vpop.f32.mrf.mxu0
        %v2791 = vadd.f32 %v2626, %v2790
        %2792 = vmatmul.bf16.gmra.mxu0 %v2369
        %v2793 = vpop.f32.mrf.mxu0
        %v2794 = vadd.f32 %v2629, %v2793
        %v2795 = vpop.f32.mrf.mxu0
        %v2796 = vadd.f32 %v2631, %v2795
        %2797 = vmatmul.bf16.gmra.mxu0 %v2370
        %v2798 = vpop.f32.mrf.mxu0
        %v2799 = vadd.f32 %v2634, %v2798
        %v2800 = vpop.f32.mrf.mxu0
        %v2801 = vadd.f32 %v2636, %v2800
        %2802 = vmatmul.bf16.gmra.mxu0 %v2371
        %v2803 = vpop.f32.mrf.mxu0
        %v2804 = vadd.f32 %v2639, %v2803
        %v2805 = vpop.f32.mrf.mxu0
        %v2806 = vadd.f32 %v2641, %v2805
        %2807 = vmatmul.bf16.gmra.mxu0 %v2372
        %v2808 = vpop.f32.mrf.mxu0
        %v2809 = vadd.f32 %v2644, %v2808
        %v2810 = vpop.f32.mrf.mxu0
        %v2811 = vadd.f32 %v2646, %v2810
        %2812 = vmatmul.bf16.gmra.mxu0 %v2373
        %v2813 = vpop.f32.mrf.mxu0
        %v2814 = vadd.f32 %v2649, %v2813
        %v2815 = vpop.f32.mrf.mxu0
        %v2816 = vadd.f32 %v2651, %v2815
        %2817 = vmatmul.bf16.gmra.mxu0 %v2374
        %v2818 = vpop.f32.mrf.mxu0
        %v2819 = vadd.f32 %v2654, %v2818
        %v2820 = vpop.f32.mrf.mxu0
        %v2821 = vadd.f32 %v2656, %v2820
        %2822 = vmatmul.bf16.gmra.mxu0 %v2375
        %v2823 = vpop.f32.mrf.mxu0
        %v2824 = vadd.f32 %v2659, %v2823
        %v2825 = vpop.f32.mrf.mxu0
        %v2826 = vadd.f32 %v2661, %v2825
        %2827 = vmatmul.bf16.gmra.mxu0 %v2376
        %v2828 = vpop.f32.mrf.mxu0
        %v2829 = vadd.f32 %v2664, %v2828
        %v2830 = vpop.f32.mrf.mxu0
        %v2831 = vadd.f32 %v2666, %v2830
        %2832 = vmatmul.bf16.gmra.mxu0 %v2377
        %v2833 = vpop.f32.mrf.mxu0
        %v2834 = vadd.f32 %v2669, %v2833
        %v2835 = vpop.f32.mrf.mxu0
        %v2836 = vadd.f32 %v2671, %v2835
        %2837 = vmatmul.bf16.gmra.mxu0 %v2378
        %v2838 = vpop.f32.mrf.mxu0
        %v2839 = vadd.f32 %v2674, %v2838
        %v2840 = vpop.f32.mrf.mxu0
        %v2841 = vadd.f32 %v2676, %v2840
        %2842 = vmatmul.bf16.gmra.mxu0 %v2379
        %v2843 = vpop.f32.mrf.mxu0
        %v2844 = vadd.f32 %v2679, %v2843
        %v2845 = vpop.f32.mrf.mxu0
        %v2846 = vadd.f32 %v2681, %v2845
        %2847 = vmatmul.bf16.gmra.mxu0 %v2380
        %v2848 = vpop.f32.mrf.mxu0
        %v2849 = vadd.f32 %v2684, %v2848
        %v2850 = vpop.f32.mrf.mxu0
        %v2851 = vadd.f32 %v2686, %v2850
        %2852 = vmatmul.bf16.gmra.mxu0 %v2381
        %v2853 = vpop.f32.mrf.mxu0
        %v2854 = vadd.f32 %v2689, %v2853
        %v2855 = vpop.f32.mrf.mxu0
        %v2856 = vadd.f32 %v2691, %v2855
        %2857 = vmatmul.bf16.gmra.mxu0 %v2382
        %v2858 = vpop.f32.mrf.mxu0
        %v2859 = vadd.f32 %v2694, %v2858
        %v2860 = vpop.f32.mrf.mxu0
        %v2861 = vadd.f32 %v2696, %v2860
        %2862 = vdwg.mxu0
        %v2863 = vld [vmem:[#allocation2] sm:$0xe]
        %s2864 = scalar_lea.vmem [#allocation7], 128
        %v2865 = vld [vmem:[%s2864] sm:$0xf]
        %v2866 = vld [vmem:[%s2864 + $0x4] sm:$0xf]
        %v2867 = vld [vmem:[%s2864 + $0x8] sm:$0xf]
        %v2868 = vld [vmem:[%s2864 + $0xc] sm:$0xf]
        %v2869 = vld [vmem:[%s2864 + $0x10] sm:$0xf]
        %v2870 = vld [vmem:[%s2864 + $0x14] sm:$0xf]
        %v2871 = vld [vmem:[%s2864 + $0x18] sm:$0xf]
        %v2872 = vld [vmem:[%s2864 + $0x1c] sm:$0xf]
        %v2873 = vld [vmem:[%s2864 + $0x20] sm:$0xf]
        %v2874 = vld [vmem:[%s2864 + $0x24] sm:$0xf]
        %v2875 = vld [vmem:[%s2864 + $0x28] sm:$0xf]
        %v2876 = vld [vmem:[%s2864 + $0x2c] sm:$0xf]
        %v2877 = vld [vmem:[%s2864 + $0x30] sm:$0xf]
        %v2878 = vld [vmem:[%s2864 + $0x34] sm:$0xf]
        %v2879 = vld [vmem:[%s2864 + $0x38] sm:$0xf]
        %v2880 = vld [vmem:[%s2864 + $0x3c] sm:$0xf]
        %v2882 = vunpack.c.l.b16 %v2863
        %v2883 = vpack.c.b16 %v2329, %v2882
        %vm2884 = vcmask 1046528
        %v2885 = vrot.slane %v2883, 1
        %v2886 = vrot.slane %v2366, 1
        %v2887 = vsel %vm2884, %v2885, %v2886
        %v2888 = vrot.slane %v2367, 1
        %v2889 = vsel %vm2884, %v2886, %v2888
        %v2890 = vrot.slane %v2368, 1
        %v2891 = vsel %vm2884, %v2888, %v2890
        %v2892 = vrot.slane %v2369, 1
        %v2893 = vsel %vm2884, %v2890, %v2892
        %v2894 = vrot.slane %v2370, 1
        %v2895 = vsel %vm2884, %v2892, %v2894
        %v2896 = vrot.slane %v2371, 1
        %v2897 = vsel %vm2884, %v2894, %v2896
        %v2898 = vrot.slane %v2372, 1
        %v2899 = vsel %vm2884, %v2896, %v2898
        %v2900 = vrot.slane %v2373, 1
        %v2901 = vsel %vm2884, %v2898, %v2900
        %v2902 = vrot.slane %v2374, 1
        %v2903 = vsel %vm2884, %v2900, %v2902
        %v2904 = vrot.slane %v2375, 1
        %v2905 = vsel %vm2884, %v2902, %v2904
        %v2906 = vrot.slane %v2376, 1
        %v2907 = vsel %vm2884, %v2904, %v2906
        %v2908 = vrot.slane %v2377, 1
        %v2909 = vsel %vm2884, %v2906, %v2908
        %v2910 = vrot.slane %v2378, 1
        %v2911 = vsel %vm2884, %v2908, %v2910
        %v2912 = vrot.slane %v2379, 1
        %v2913 = vsel %vm2884, %v2910, %v2912
        %v2914 = vrot.slane %v2380, 1
        %v2915 = vsel %vm2884, %v2912, %v2914
        %v2916 = vrot.slane %v2381, 1
        %v2917 = vsel %vm2884, %v2914, %v2916
        %v2918 = vrot.slane %v2382, 1
        %v2919 = vsel %vm2884, %v2916, %v2918
        %v2920 = vrot.slane %v2383, 1
        %v2921 = vsel %vm2884, %v2918, %v2920
        %v2956 = vunpack.c.l.b16 %v2865
        %v2957 = vunpack.c.l.b16 %v2866
        %v2958 = vunpack.c.l.b16 %v2867
        %v2959 = vunpack.c.l.b16 %v2868
        %v2960 = vunpack.c.l.b16 %v2869
        %v2961 = vunpack.c.l.b16 %v2870
        %v2962 = vunpack.c.l.b16 %v2871
        %v2963 = vunpack.c.l.b16 %v2872
        %v2964 = vunpack.c.l.b16 %v2873
        %v2965 = vunpack.c.l.b16 %v2874
        %v2966 = vunpack.c.l.b16 %v2875
        %v2967 = vunpack.c.l.b16 %v2876
        %v2968 = vunpack.c.l.b16 %v2877
        %v2969 = vunpack.c.l.b16 %v2878
        %v2970 = vunpack.c.l.b16 %v2879
        %v2971 = vunpack.c.l.b16 %v2880
        %v2972 = vpack.c.b16 %v2957, %v2956
        %v2973 = vpack.c.b16 %v2959, %v2958
        %v2974 = vpack.c.b16 %v2961, %v2960
        %v2975 = vpack.c.b16 %v2963, %v2962
        %v2976 = vpack.c.b16 %v2965, %v2964
        %v2977 = vpack.c.b16 %v2967, %v2966
        %v2978 = vpack.c.b16 %v2969, %v2968
        %v2979 = vpack.c.b16 %v2971, %v2970
        %2988 = vmatpush.bf16.msra.mxu0 %v2979
        %2989 = vmatpush.bf16.msra.mxu0 %v2978
        %2990 = vmatpush.bf16.msra.mxu0 %v2977
        %2991 = vmatpush.bf16.msra.mxu0 %v2976
        %2992 = vmatpush.bf16.msra.mxu0 %v2975
        %2993 = vmatpush.bf16.msra.mxu0 %v2974
        %2994 = vmatpush.bf16.msra.mxu0 %v2973
        %2995 = vmatpush.bf16.msra.mxu0 %v2972
        %2996 = vmatmul.bf16.gmra.mxu0 %v2887
        %v2997 = vpop.f32.mrf.mxu0
        %v2998 = vadd.f32 0.0, %v2997
        %v2999 = vpop.f32.mrf.mxu0
        %v3000 = vadd.f32 0.0, %v2999
        %3001 = vmatmul.bf16.gmra.mxu0 %v2889
        %v3002 = vpop.f32.mrf.mxu0
        %v3003 = vadd.f32 0.0, %v3002
        %v3004 = vpop.f32.mrf.mxu0
        %v3005 = vadd.f32 0.0, %v3004
        %3006 = vmatmul.bf16.gmra.mxu0 %v2891
        %v3007 = vpop.f32.mrf.mxu0
        %v3008 = vadd.f32 0.0, %v3007
        %v3009 = vpop.f32.mrf.mxu0
        %v3010 = vadd.f32 0.0, %v3009
        %3011 = vmatmul.bf16.gmra.mxu0 %v2893
        %v3012 = vpop.f32.mrf.mxu0
        %v3013 = vadd.f32 0.0, %v3012
        %v3014 = vpop.f32.mrf.mxu0
        %v3015 = vadd.f32 0.0, %v3014
        %3016 = vmatmul.bf16.gmra.mxu0 %v2895
        %v3017 = vpop.f32.mrf.mxu0
        %v3018 = vadd.f32 0.0, %v3017
        %v3019 = vpop.f32.mrf.mxu0
        %v3020 = vadd.f32 0.0, %v3019
        %3021 = vmatmul.bf16.gmra.mxu0 %v2897
        %v3022 = vpop.f32.mrf.mxu0
        %v3023 = vadd.f32 0.0, %v3022
        %v3024 = vpop.f32.mrf.mxu0
        %v3025 = vadd.f32 0.0, %v3024
        %3026 = vmatmul.bf16.gmra.mxu0 %v2899
        %v3027 = vpop.f32.mrf.mxu0
        %v3028 = vadd.f32 0.0, %v3027
        %v3029 = vpop.f32.mrf.mxu0
        %v3030 = vadd.f32 0.0, %v3029
        %3031 = vmatmul.bf16.gmra.mxu0 %v2901
        %v3032 = vpop.f32.mrf.mxu0
        %v3033 = vadd.f32 0.0, %v3032
        %v3034 = vpop.f32.mrf.mxu0
        %v3035 = vadd.f32 0.0, %v3034
        %3036 = vmatmul.bf16.gmra.mxu0 %v2903
        %v3037 = vpop.f32.mrf.mxu0
        %v3038 = vadd.f32 0.0, %v3037
        %v3039 = vpop.f32.mrf.mxu0
        %v3040 = vadd.f32 0.0, %v3039
        %3041 = vmatmul.bf16.gmra.mxu0 %v2905
        %v3042 = vpop.f32.mrf.mxu0
        %v3043 = vadd.f32 0.0, %v3042
        %v3044 = vpop.f32.mrf.mxu0
        %v3045 = vadd.f32 0.0, %v3044
        %3046 = vmatmul.bf16.gmra.mxu0 %v2907
        %v3047 = vpop.f32.mrf.mxu0
        %v3048 = vadd.f32 0.0, %v3047
        %v3049 = vpop.f32.mrf.mxu0
        %v3050 = vadd.f32 0.0, %v3049
        %3051 = vmatmul.bf16.gmra.mxu0 %v2909
        %v3052 = vpop.f32.mrf.mxu0
        %v3053 = vadd.f32 0.0, %v3052
        %v3054 = vpop.f32.mrf.mxu0
        %v3055 = vadd.f32 0.0, %v3054
        %3056 = vmatmul.bf16.gmra.mxu0 %v2911
        %v3057 = vpop.f32.mrf.mxu0
        %v3058 = vadd.f32 0.0, %v3057
        %v3059 = vpop.f32.mrf.mxu0
        %v3060 = vadd.f32 0.0, %v3059
        %3061 = vmatmul.bf16.gmra.mxu0 %v2913
        %v3062 = vpop.f32.mrf.mxu0
        %v3063 = vadd.f32 0.0, %v3062
        %v3064 = vpop.f32.mrf.mxu0
        %v3065 = vadd.f32 0.0, %v3064
        %3066 = vmatmul.bf16.gmra.mxu0 %v2915
        %v3067 = vpop.f32.mrf.mxu0
        %v3068 = vadd.f32 0.0, %v3067
        %v3069 = vpop.f32.mrf.mxu0
        %v3070 = vadd.f32 0.0, %v3069
        %3071 = vmatmul.bf16.gmra.mxu0 %v2917
        %v3072 = vpop.f32.mrf.mxu0
        %v3073 = vadd.f32 0.0, %v3072
        %v3074 = vpop.f32.mrf.mxu0
        %v3075 = vadd.f32 0.0, %v3074
        %3076 = vmatmul.bf16.gmra.mxu0 %v2919
        %v3077 = vpop.f32.mrf.mxu0
        %v3078 = vadd.f32 0.0, %v3077
        %v3079 = vpop.f32.mrf.mxu0
        %v3080 = vadd.f32 0.0, %v3079
        %3081 = vmatmul.bf16.gmra.mxu0 %v2921
        %v3082 = vpop.f32.mrf.mxu0
        %v3083 = vadd.f32 0.0, %v3082
        %v3084 = vpop.f32.mrf.mxu0
        %v3085 = vadd.f32 0.0, %v3084
        %3086 = vdwg.mxu0
        %v3087 = vadd.f32 %v2774, %v2998
        %v3088 = vadd.f32 %v2776, %v3000
        %v3089 = vadd.f32 %v2779, %v3003
        %v3090 = vadd.f32 %v2781, %v3005
        %v3091 = vadd.f32 %v2784, %v3008
        %v3092 = vadd.f32 %v2786, %v3010
        %v3093 = vadd.f32 %v2789, %v3013
        %v3094 = vadd.f32 %v2791, %v3015
        %v3095 = vadd.f32 %v2794, %v3018
        %v3096 = vadd.f32 %v2796, %v3020
        %v3097 = vadd.f32 %v2799, %v3023
        %v3098 = vadd.f32 %v2801, %v3025
        %v3099 = vadd.f32 %v2804, %v3028
        %v3100 = vadd.f32 %v2806, %v3030
        %v3101 = vadd.f32 %v2809, %v3033
        %v3102 = vadd.f32 %v2811, %v3035
        %v3103 = vadd.f32 %v2814, %v3038
        %v3104 = vadd.f32 %v2816, %v3040
        %v3105 = vadd.f32 %v2819, %v3043
        %v3106 = vadd.f32 %v2821, %v3045
        %v3107 = vadd.f32 %v2824, %v3048
        %v3108 = vadd.f32 %v2826, %v3050
        %v3109 = vadd.f32 %v2829, %v3053
        %v3110 = vadd.f32 %v2831, %v3055
        %v3111 = vadd.f32 %v2834, %v3058
        %v3112 = vadd.f32 %v2836, %v3060
        %v3113 = vadd.f32 %v2839, %v3063
        %v3114 = vadd.f32 %v2841, %v3065
        %v3115 = vadd.f32 %v2844, %v3068
        %v3116 = vadd.f32 %v2846, %v3070
        %v3117 = vadd.f32 %v2849, %v3073
        %v3118 = vadd.f32 %v2851, %v3075
        %v3119 = vadd.f32 %v2854, %v3078
        %v3120 = vadd.f32 %v2856, %v3080
        %v3121 = vadd.f32 %v2859, %v3083
        %v3122 = vadd.f32 %v2861, %v3085
        %v3123 = vld [vmem:[#allocation2 + $0x8] sm:$0xe]
        %v3124 = vld [vmem:[#allocation2 + $0xc] sm:$0xf]
        %v3125 = vld [vmem:[#allocation2 + $0x10] sm:$0xf]
        %v3126 = vld [vmem:[#allocation2 + $0x14] sm:$0xf]
        %v3127 = vld [vmem:[#allocation2 + $0x18] sm:$0xf]
        %v3128 = vld [vmem:[#allocation2 + $0x1c] sm:$0xf]
        %v3129 = vld [vmem:[#allocation2 + $0x20] sm:$0xf]
        %v3130 = vld [vmem:[#allocation2 + $0x24] sm:$0xf]
        %v3131 = vld [vmem:[#allocation2 + $0x28] sm:$0xf]
        %v3132 = vld [vmem:[#allocation2 + $0x2c] sm:$0xf]
        %v3133 = vld [vmem:[#allocation2 + $0x30] sm:$0xf]
        %v3134 = vld [vmem:[#allocation2 + $0x34] sm:$0xf]
        %v3135 = vld [vmem:[#allocation2 + $0x38] sm:$0xf]
        %v3136 = vld [vmem:[#allocation2 + $0x3c] sm:$0xf]
        %v3137 = vld [vmem:[#allocation2 + $0x40] sm:$0xf]
        %v3138 = vld [vmem:[#allocation2 + $0x44] sm:$0xf]
        %v3139 = vld [vmem:[#allocation2 + $0x48] sm:$0xf]
        %v3140 = vld [vmem:[#allocation2 + $0x4c] sm:$0xf]
        %v3141 = vld [vmem:[#allocation2 + $0x50] sm:$0xf]
        %v3142 = vld [vmem:[#allocation2 + $0x54] sm:$0xf]
        %v3143 = vld [vmem:[#allocation2 + $0x58] sm:$0xf]
        %v3144 = vld [vmem:[#allocation2 + $0x5c] sm:$0xf]
        %v3145 = vld [vmem:[#allocation2 + $0x60] sm:$0xf]
        %v3146 = vld [vmem:[#allocation2 + $0x64] sm:$0xf]
        %v3147 = vld [vmem:[#allocation2 + $0x68] sm:$0xf]
        %v3148 = vld [vmem:[#allocation2 + $0x6c] sm:$0xf]
        %v3149 = vld [vmem:[#allocation2 + $0x70] sm:$0xf]
        %v3150 = vld [vmem:[#allocation2 + $0x74] sm:$0xf]
        %v3151 = vld [vmem:[#allocation2 + $0x78] sm:$0xf]
        %v3152 = vld [vmem:[#allocation2 + $0x7c] sm:$0xf]
        %v3153 = vld [vmem:[#allocation2 + $0x80] sm:$0xf]
        %v3154 = vld [vmem:[#allocation2 + $0x84] sm:$0xf]
        %v3155 = vld [vmem:[#allocation2 + $0x88] sm:$0xf]
        %v3156 = vld [vmem:[#allocation2 + $0x8c] sm:$0xf]
        %v3157 = vld [vmem:[#allocation2 + $0x90] sm:$0xf]
        %v3158 = vld [vmem:[#allocation2 + $0x94] sm:$0xf]
        %v3159 = vld [vmem:[#allocation2 + $0x98] sm:$0x1]
        %s3160 = scalar_lea.vmem [#allocation7], 192
        %v3161 = vld [vmem:[%s3160] sm:$0xf]
        %v3162 = vld [vmem:[%s3160 + $0x4] sm:$0xf]
        %v3163 = vld [vmem:[%s3160 + $0x8] sm:$0xf]
        %v3164 = vld [vmem:[%s3160 + $0xc] sm:$0xf]
        %v3165 = vld [vmem:[%s3160 + $0x10] sm:$0xf]
        %v3166 = vld [vmem:[%s3160 + $0x14] sm:$0xf]
        %v3167 = vld [vmem:[%s3160 + $0x18] sm:$0xf]
        %v3168 = vld [vmem:[%s3160 + $0x1c] sm:$0xf]
        %v3169 = vld [vmem:[%s3160 + $0x20] sm:$0xf]
        %v3170 = vld [vmem:[%s3160 + $0x24] sm:$0xf]
        %v3171 = vld [vmem:[%s3160 + $0x28] sm:$0xf]
        %v3172 = vld [vmem:[%s3160 + $0x2c] sm:$0xf]
        %v3173 = vld [vmem:[%s3160 + $0x30] sm:$0xf]
        %v3174 = vld [vmem:[%s3160 + $0x34] sm:$0xf]
        %v3175 = vld [vmem:[%s3160 + $0x38] sm:$0xf]
        %v3176 = vld [vmem:[%s3160 + $0x3c] sm:$0xf]
        %v3214 = vunpack.c.l.b16 %v3123
        %v3215 = vunpack.c.l.b16 %v3124
        %v3216 = vunpack.c.l.b16 %v3125
        %v3217 = vunpack.c.l.b16 %v3126
        %v3218 = vunpack.c.l.b16 %v3127
        %v3219 = vunpack.c.l.b16 %v3128
        %v3220 = vunpack.c.l.b16 %v3129
        %v3221 = vunpack.c.l.b16 %v3130
        %v3222 = vunpack.c.l.b16 %v3131
        %v3223 = vunpack.c.l.b16 %v3132
        %v3224 = vunpack.c.l.b16 %v3133
        %v3225 = vunpack.c.l.b16 %v3134
        %v3226 = vunpack.c.l.b16 %v3135
        %v3227 = vunpack.c.l.b16 %v3136
        %v3228 = vunpack.c.l.b16 %v3137
        %v3229 = vunpack.c.l.b16 %v3138
        %v3230 = vunpack.c.l.b16 %v3139
        %v3231 = vunpack.c.l.b16 %v3140
        %v3232 = vunpack.c.l.b16 %v3141
        %v3233 = vunpack.c.l.b16 %v3142
        %v3234 = vunpack.c.l.b16 %v3143
        %v3235 = vunpack.c.l.b16 %v3144
        %v3236 = vunpack.c.l.b16 %v3145
        %v3237 = vunpack.c.l.b16 %v3146
        %v3238 = vunpack.c.l.b16 %v3147
        %v3239 = vunpack.c.l.b16 %v3148
        %v3240 = vunpack.c.l.b16 %v3149
        %v3241 = vunpack.c.l.b16 %v3150
        %v3242 = vunpack.c.l.b16 %v3151
        %v3243 = vunpack.c.l.b16 %v3152
        %v3244 = vunpack.c.l.b16 %v3153
        %v3245 = vunpack.c.l.b16 %v3154
        %v3246 = vunpack.c.l.b16 %v3155
        %v3247 = vunpack.c.l.b16 %v3156
        %v3248 = vunpack.c.l.b16 %v3157
        %v3249 = vunpack.c.l.b16 %v3158
        %v3250 = vunpack.c.l.b16 %v3159
        %v3251 = vpack.c.b16 %v3215, %v3214
        %v3252 = vpack.c.b16 %v3217, %v3216
        %v3253 = vpack.c.b16 %v3219, %v3218
        %v3254 = vpack.c.b16 %v3221, %v3220
        %v3255 = vpack.c.b16 %v3223, %v3222
        %v3256 = vpack.c.b16 %v3225, %v3224
        %v3257 = vpack.c.b16 %v3227, %v3226
        %v3258 = vpack.c.b16 %v3229, %v3228
        %v3259 = vpack.c.b16 %v3231, %v3230
        %v3260 = vpack.c.b16 %v3233, %v3232
        %v3261 = vpack.c.b16 %v3235, %v3234
        %v3262 = vpack.c.b16 %v3237, %v3236
        %v3263 = vpack.c.b16 %v3239, %v3238
        %v3264 = vpack.c.b16 %v3241, %v3240
        %v3265 = vpack.c.b16 %v3243, %v3242
        %v3266 = vpack.c.b16 %v3245, %v3244
        %v3267 = vpack.c.b16 %v3247, %v3246
        %v3268 = vpack.c.b16 %v3249, %v3248
        %v3269 = vpack.c.b16 %v3250, %v3250
        %v3270 = vrot.slane %v3251, 1
        %v3271 = vrot.slane %v3252, 1
        %v3272 = vsel %vm2884, %v3270, %v3271
        %v3273 = vrot.slane %v3253, 1
        %v3274 = vsel %vm2884, %v3271, %v3273
        %v3275 = vrot.slane %v3254, 1
        %v3276 = vsel %vm2884, %v3273, %v3275
        %v3277 = vrot.slane %v3255, 1
        %v3278 = vsel %vm2884, %v3275, %v3277
        %v3279 = vrot.slane %v3256, 1
        %v3280 = vsel %vm2884, %v3277, %v3279
        %v3281 = vrot.slane %v3257, 1
        %v3282 = vsel %vm2884, %v3279, %v3281
        %v3283 = vrot.slane %v3258, 1
        %v3284 = vsel %vm2884, %v3281, %v3283
        %v3285 = vrot.slane %v3259, 1
        %v3286 = vsel %vm2884, %v3283, %v3285
        %v3287 = vrot.slane %v3260, 1
        %v3288 = vsel %vm2884, %v3285, %v3287
        %v3289 = vrot.slane %v3261, 1
        %v3290 = vsel %vm2884, %v3287, %v3289
        %v3291 = vrot.slane %v3262, 1
        %v3292 = vsel %vm2884, %v3289, %v3291
        %v3293 = vrot.slane %v3263, 1
        %v3294 = vsel %vm2884, %v3291, %v3293
        %v3295 = vrot.slane %v3264, 1
        %v3296 = vsel %vm2884, %v3293, %v3295
        %v3297 = vrot.slane %v3265, 1
        %v3298 = vsel %vm2884, %v3295, %v3297
        %v3299 = vrot.slane %v3266, 1
        %v3300 = vsel %vm2884, %v3297, %v3299
        %v3301 = vrot.slane %v3267, 1
        %v3302 = vsel %vm2884, %v3299, %v3301
        %v3303 = vrot.slane %v3268, 1
        %v3304 = vsel %vm2884, %v3301, %v3303
        %v3305 = vrot.slane %v3269, 1
        %v3306 = vsel %vm2884, %v3303, %v3305
        %v3341 = vunpack.c.l.b16 %v3161
        %v3342 = vunpack.c.l.b16 %v3162
        %v3343 = vunpack.c.l.b16 %v3163
        %v3344 = vunpack.c.l.b16 %v3164
        %v3345 = vunpack.c.l.b16 %v3165
        %v3346 = vunpack.c.l.b16 %v3166
        %v3347 = vunpack.c.l.b16 %v3167
        %v3348 = vunpack.c.l.b16 %v3168
        %v3349 = vunpack.c.l.b16 %v3169
        %v3350 = vunpack.c.l.b16 %v3170
        %v3351 = vunpack.c.l.b16 %v3171
        %v3352 = vunpack.c.l.b16 %v3172
        %v3353 = vunpack.c.l.b16 %v3173
        %v3354 = vunpack.c.l.b16 %v3174
        %v3355 = vunpack.c.l.b16 %v3175
        %v3356 = vunpack.c.l.b16 %v3176
        %v3357 = vpack.c.b16 %v3342, %v3341
        %v3358 = vpack.c.b16 %v3344, %v3343
        %v3359 = vpack.c.b16 %v3346, %v3345
        %v3360 = vpack.c.b16 %v3348, %v3347
        %v3361 = vpack.c.b16 %v3350, %v3349
        %v3362 = vpack.c.b16 %v3352, %v3351
        %v3363 = vpack.c.b16 %v3354, %v3353
        %v3364 = vpack.c.b16 %v3356, %v3355
        %3373 = vmatpush.bf16.msra.mxu0 %v3364
        %3374 = vmatpush.bf16.msra.mxu0 %v3363
        %3375 = vmatpush.bf16.msra.mxu0 %v3362
        %3376 = vmatpush.bf16.msra.mxu0 %v3361
        %3377 = vmatpush.bf16.msra.mxu0 %v3360
        %3378 = vmatpush.bf16.msra.mxu0 %v3359
        %3379 = vmatpush.bf16.msra.mxu0 %v3358
        %3380 = vmatpush.bf16.msra.mxu0 %v3357
        %3381 = vmatmul.bf16.gmra.mxu0 %v3272
        %v3382 = vpop.f32.mrf.mxu0
        %v3383 = vadd.f32 0.0, %v3382
        %v3384 = vpop.f32.mrf.mxu0
        %v3385 = vadd.f32 0.0, %v3384
        %3386 = vmatmul.bf16.gmra.mxu0 %v3274
        %v3387 = vpop.f32.mrf.mxu0
        %v3388 = vadd.f32 0.0, %v3387
        %v3389 = vpop.f32.mrf.mxu0
        %v3390 = vadd.f32 0.0, %v3389
        %3391 = vmatmul.bf16.gmra.mxu0 %v3276
        %v3392 = vpop.f32.mrf.mxu0
        %v3393 = vadd.f32 0.0, %v3392
        %v3394 = vpop.f32.mrf.mxu0
        %v3395 = vadd.f32 0.0, %v3394
        %3396 = vmatmul.bf16.gmra.mxu0 %v3278
        %v3397 = vpop.f32.mrf.mxu0
        %v3398 = vadd.f32 0.0, %v3397
        %v3399 = vpop.f32.mrf.mxu0
        %v3400 = vadd.f32 0.0, %v3399
        %3401 = vmatmul.bf16.gmra.mxu0 %v3280
        %v3402 = vpop.f32.mrf.mxu0
        %v3403 = vadd.f32 0.0, %v3402
        %v3404 = vpop.f32.mrf.mxu0
        %v3405 = vadd.f32 0.0, %v3404
        %3406 = vmatmul.bf16.gmra.mxu0 %v3282
        %v3407 = vpop.f32.mrf.mxu0
        %v3408 = vadd.f32 0.0, %v3407
        %v3409 = vpop.f32.mrf.mxu0
        %v3410 = vadd.f32 0.0, %v3409
        %3411 = vmatmul.bf16.gmra.mxu0 %v3284
        %v3412 = vpop.f32.mrf.mxu0
        %v3413 = vadd.f32 0.0, %v3412
        %v3414 = vpop.f32.mrf.mxu0
        %v3415 = vadd.f32 0.0, %v3414
        %3416 = vmatmul.bf16.gmra.mxu0 %v3286
        %v3417 = vpop.f32.mrf.mxu0
        %v3418 = vadd.f32 0.0, %v3417
        %v3419 = vpop.f32.mrf.mxu0
        %v3420 = vadd.f32 0.0, %v3419
        %3421 = vmatmul.bf16.gmra.mxu0 %v3288
        %v3422 = vpop.f32.mrf.mxu0
        %v3423 = vadd.f32 0.0, %v3422
        %v3424 = vpop.f32.mrf.mxu0
        %v3425 = vadd.f32 0.0, %v3424
        %3426 = vmatmul.bf16.gmra.mxu0 %v3290
        %v3427 = vpop.f32.mrf.mxu0
        %v3428 = vadd.f32 0.0, %v3427
        %v3429 = vpop.f32.mrf.mxu0
        %v3430 = vadd.f32 0.0, %v3429
        %3431 = vmatmul.bf16.gmra.mxu0 %v3292
        %v3432 = vpop.f32.mrf.mxu0
        %v3433 = vadd.f32 0.0, %v3432
        %v3434 = vpop.f32.mrf.mxu0
        %v3435 = vadd.f32 0.0, %v3434
        %3436 = vmatmul.bf16.gmra.mxu0 %v3294
        %v3437 = vpop.f32.mrf.mxu0
        %v3438 = vadd.f32 0.0, %v3437
        %v3439 = vpop.f32.mrf.mxu0
        %v3440 = vadd.f32 0.0, %v3439
        %3441 = vmatmul.bf16.gmra.mxu0 %v3296
        %v3442 = vpop.f32.mrf.mxu0
        %v3443 = vadd.f32 0.0, %v3442
        %v3444 = vpop.f32.mrf.mxu0
        %v3445 = vadd.f32 0.0, %v3444
        %3446 = vmatmul.bf16.gmra.mxu0 %v3298
        %v3447 = vpop.f32.mrf.mxu0
        %v3448 = vadd.f32 0.0, %v3447
        %v3449 = vpop.f32.mrf.mxu0
        %v3450 = vadd.f32 0.0, %v3449
        %3451 = vmatmul.bf16.gmra.mxu0 %v3300
        %v3452 = vpop.f32.mrf.mxu0
        %v3453 = vadd.f32 0.0, %v3452
        %v3454 = vpop.f32.mrf.mxu0
        %v3455 = vadd.f32 0.0, %v3454
        %3456 = vmatmul.bf16.gmra.mxu0 %v3302
        %v3457 = vpop.f32.mrf.mxu0
        %v3458 = vadd.f32 0.0, %v3457
        %v3459 = vpop.f32.mrf.mxu0
        %v3460 = vadd.f32 0.0, %v3459
        %3461 = vmatmul.bf16.gmra.mxu0 %v3304
        %v3462 = vpop.f32.mrf.mxu0
        %v3463 = vadd.f32 0.0, %v3462
        %v3464 = vpop.f32.mrf.mxu0
        %v3465 = vadd.f32 0.0, %v3464
        %3466 = vmatmul.bf16.gmra.mxu0 %v3306
        %v3467 = vpop.f32.mrf.mxu0
        %v3468 = vadd.f32 0.0, %v3467
        %v3469 = vpop.f32.mrf.mxu0
        %v3470 = vadd.f32 0.0, %v3469
        %3471 = vdwg.mxu0
        %v3472 = vadd.f32 %v3087, %v3383
        %v3473 = vadd.f32 %v3088, %v3385
        %v3474 = vadd.f32 %v3089, %v3388
        %v3475 = vadd.f32 %v3090, %v3390
        %v3476 = vadd.f32 %v3091, %v3393
        %v3477 = vadd.f32 %v3092, %v3395
        %v3478 = vadd.f32 %v3093, %v3398
        %v3479 = vadd.f32 %v3094, %v3400
        %v3480 = vadd.f32 %v3095, %v3403
        %v3481 = vadd.f32 %v3096, %v3405
        %v3482 = vadd.f32 %v3097, %v3408
        %v3483 = vadd.f32 %v3098, %v3410
        %v3484 = vadd.f32 %v3099, %v3413
        %v3485 = vadd.f32 %v3100, %v3415
        %v3486 = vadd.f32 %v3101, %v3418
        %v3487 = vadd.f32 %v3102, %v3420
        %v3488 = vadd.f32 %v3103, %v3423
        %v3489 = vadd.f32 %v3104, %v3425
        %v3490 = vadd.f32 %v3105, %v3428
        %v3491 = vadd.f32 %v3106, %v3430
        %v3492 = vadd.f32 %v3107, %v3433
        %v3493 = vadd.f32 %v3108, %v3435
        %v3494 = vadd.f32 %v3109, %v3438
        %v3495 = vadd.f32 %v3110, %v3440
        %v3496 = vadd.f32 %v3111, %v3443
        %v3497 = vadd.f32 %v3112, %v3445
        %v3498 = vadd.f32 %v3113, %v3448
        %v3499 = vadd.f32 %v3114, %v3450
        %v3500 = vadd.f32 %v3115, %v3453
        %v3501 = vadd.f32 %v3116, %v3455
        %v3502 = vadd.f32 %v3117, %v3458
        %v3503 = vadd.f32 %v3118, %v3460
        %v3504 = vadd.f32 %v3119, %v3463
        %v3505 = vadd.f32 %v3120, %v3465
        %v3506 = vadd.f32 %v3121, %v3468
        %v3507 = vadd.f32 %v3122, %v3470
        %v3508 = vld [vmem:[#allocation2 + $0x98] sm:$0x3]
        %s3509 = scalar_lea.vmem [#allocation7], 256
        %v3510 = vld [vmem:[%s3509] sm:$0xf]
        %v3511 = vld [vmem:[%s3509 + $0x4] sm:$0xf]
        %v3512 = vld [vmem:[%s3509 + $0x8] sm:$0xf]
        %v3513 = vld [vmem:[%s3509 + $0xc] sm:$0xf]
        %v3514 = vld [vmem:[%s3509 + $0x10] sm:$0xf]
        %v3515 = vld [vmem:[%s3509 + $0x14] sm:$0xf]
        %v3516 = vld [vmem:[%s3509 + $0x18] sm:$0xf]
        %v3517 = vld [vmem:[%s3509 + $0x1c] sm:$0xf]
        %v3518 = vld [vmem:[%s3509 + $0x20] sm:$0xf]
        %v3519 = vld [vmem:[%s3509 + $0x24] sm:$0xf]
        %v3520 = vld [vmem:[%s3509 + $0x28] sm:$0xf]
        %v3521 = vld [vmem:[%s3509 + $0x2c] sm:$0xf]
        %v3522 = vld [vmem:[%s3509 + $0x30] sm:$0xf]
        %v3523 = vld [vmem:[%s3509 + $0x34] sm:$0xf]
        %v3524 = vld [vmem:[%s3509 + $0x38] sm:$0xf]
        %v3525 = vld [vmem:[%s3509 + $0x3c] sm:$0xf]
        %v3527 = vunpack.c.l.b16 %v3508
        %v3528 = vpack.c.b16 %v3527, %v3527
        %vm3529 = vsmask.f32 6400
        %v3531 = vshrl.u32 %v3251, 16
        %v3533 = vrot.slane %v3531, 1
        %v3534 = vshll.u32 %v3251, 16
        %v3536 = vrot.slane %v3534, 2
        %v3537 = vor.u32 %v3533, %v3536
        %v3539 = vshrl.u32 %v3252, 16
        %v3541 = vrot.slane %v3539, 1
        %v3542 = vshll.u32 %v3252, 16
        %v3544 = vrot.slane %v3542, 2
        %v3545 = vor.u32 %v3541, %v3544
        %v3546 = vsel %vm3529, %v3537, %v3545
        %v3548 = vshrl.u32 %v3253, 16
        %v3550 = vrot.slane %v3548, 1
        %v3551 = vshll.u32 %v3253, 16
        %v3553 = vrot.slane %v3551, 2
        %v3554 = vor.u32 %v3550, %v3553
        %v3555 = vsel %vm3529, %v3545, %v3554
        %v3557 = vshrl.u32 %v3254, 16
        %v3559 = vrot.slane %v3557, 1
        %v3560 = vshll.u32 %v3254, 16
        %v3562 = vrot.slane %v3560, 2
        %v3563 = vor.u32 %v3559, %v3562
        %v3564 = vsel %vm3529, %v3554, %v3563
        %v3566 = vshrl.u32 %v3255, 16
        %v3568 = vrot.slane %v3566, 1
        %v3569 = vshll.u32 %v3255, 16
        %v3571 = vrot.slane %v3569, 2
        %v3572 = vor.u32 %v3568, %v3571
        %v3573 = vsel %vm3529, %v3563, %v3572
        %v3575 = vshrl.u32 %v3256, 16
        %v3577 = vrot.slane %v3575, 1
        %v3578 = vshll.u32 %v3256, 16
        %v3580 = vrot.slane %v3578, 2
        %v3581 = vor.u32 %v3577, %v3580
        %v3582 = vsel %vm3529, %v3572, %v3581
        %v3584 = vshrl.u32 %v3257, 16
        %v3586 = vrot.slane %v3584, 1
        %v3587 = vshll.u32 %v3257, 16
        %v3589 = vrot.slane %v3587, 2
        %v3590 = vor.u32 %v3586, %v3589
        %v3591 = vsel %vm3529, %v3581, %v3590
        %v3593 = vshrl.u32 %v3258, 16
        %v3595 = vrot.slane %v3593, 1
        %v3596 = vshll.u32 %v3258, 16
        %v3598 = vrot.slane %v3596, 2
        %v3599 = vor.u32 %v3595, %v3598
        %v3600 = vsel %vm3529, %v3590, %v3599
        %v3602 = vshrl.u32 %v3259, 16
        %v3604 = vrot.slane %v3602, 1
        %v3605 = vshll.u32 %v3259, 16
        %v3607 = vrot.slane %v3605, 2
        %v3608 = vor.u32 %v3604, %v3607
        %v3609 = vsel %vm3529, %v3599, %v3608
        %v3611 = vshrl.u32 %v3260, 16
        %v3613 = vrot.slane %v3611, 1
        %v3614 = vshll.u32 %v3260, 16
        %v3616 = vrot.slane %v3614, 2
        %v3617 = vor.u32 %v3613, %v3616
        %v3618 = vsel %vm3529, %v3608, %v3617
        %v3620 = vshrl.u32 %v3261, 16
        %v3622 = vrot.slane %v3620, 1
        %v3623 = vshll.u32 %v3261, 16
        %v3625 = vrot.slane %v3623, 2
        %v3626 = vor.u32 %v3622, %v3625
        %v3627 = vsel %vm3529, %v3617, %v3626
        %v3629 = vshrl.u32 %v3262, 16
        %v3631 = vrot.slane %v3629, 1
        %v3632 = vshll.u32 %v3262, 16
        %v3634 = vrot.slane %v3632, 2
        %v3635 = vor.u32 %v3631, %v3634
        %v3636 = vsel %vm3529, %v3626, %v3635
        %v3638 = vshrl.u32 %v3263, 16
        %v3640 = vrot.slane %v3638, 1
        %v3641 = vshll.u32 %v3263, 16
        %v3643 = vrot.slane %v3641, 2
        %v3644 = vor.u32 %v3640, %v3643
        %v3645 = vsel %vm3529, %v3635, %v3644
        %v3647 = vshrl.u32 %v3264, 16
        %v3649 = vrot.slane %v3647, 1
        %v3650 = vshll.u32 %v3264, 16
        %v3652 = vrot.slane %v3650, 2
        %v3653 = vor.u32 %v3649, %v3652
        %v3654 = vsel %vm3529, %v3644, %v3653
        %v3656 = vshrl.u32 %v3265, 16
        %v3658 = vrot.slane %v3656, 1
        %v3659 = vshll.u32 %v3265, 16
        %v3661 = vrot.slane %v3659, 2
        %v3662 = vor.u32 %v3658, %v3661
        %v3663 = vsel %vm3529, %v3653, %v3662
        %v3665 = vshrl.u32 %v3266, 16
        %v3667 = vrot.slane %v3665, 1
        %v3668 = vshll.u32 %v3266, 16
        %v3670 = vrot.slane %v3668, 2
        %v3671 = vor.u32 %v3667, %v3670
        %v3672 = vsel %vm3529, %v3662, %v3671
        %v3674 = vshrl.u32 %v3267, 16
        %v3676 = vrot.slane %v3674, 1
        %v3677 = vshll.u32 %v3267, 16
        %v3679 = vrot.slane %v3677, 2
        %v3680 = vor.u32 %v3676, %v3679
        %v3681 = vsel %vm3529, %v3671, %v3680
        %v3683 = vshrl.u32 %v3268, 16
        %v3685 = vrot.slane %v3683, 1
        %v3686 = vshll.u32 %v3268, 16
        %v3688 = vrot.slane %v3686, 2
        %v3689 = vor.u32 %v3685, %v3688
        %v3690 = vsel %vm3529, %v3680, %v3689
        %v3692 = vshrl.u32 %v3528, 16
        %v3694 = vrot.slane %v3692, 1
        %v3695 = vshll.u32 %v3528, 16
        %v3697 = vrot.slane %v3695, 2
        %v3698 = vor.u32 %v3694, %v3697
        %v3699 = vsel %vm3529, %v3689, %v3698
        %v3734 = vunpack.c.l.b16 %v3510
        %v3735 = vunpack.c.l.b16 %v3511
        %v3736 = vunpack.c.l.b16 %v3512
        %v3737 = vunpack.c.l.b16 %v3513
        %v3738 = vunpack.c.l.b16 %v3514
        %v3739 = vunpack.c.l.b16 %v3515
        %v3740 = vunpack.c.l.b16 %v3516
        %v3741 = vunpack.c.l.b16 %v3517
        %v3742 = vunpack.c.l.b16 %v3518
        %v3743 = vunpack.c.l.b16 %v3519
        %v3744 = vunpack.c.l.b16 %v3520
        %v3745 = vunpack.c.l.b16 %v3521
        %v3746 = vunpack.c.l.b16 %v3522
        %v3747 = vunpack.c.l.b16 %v3523
        %v3748 = vunpack.c.l.b16 %v3524
        %v3749 = vunpack.c.l.b16 %v3525
        %v3750 = vpack.c.b16 %v3735, %v3734
        %v3751 = vpack.c.b16 %v3737, %v3736
        %v3752 = vpack.c.b16 %v3739, %v3738
        %v3753 = vpack.c.b16 %v3741, %v3740
        %v3754 = vpack.c.b16 %v3743, %v3742
        %v3755 = vpack.c.b16 %v3745, %v3744
        %v3756 = vpack.c.b16 %v3747, %v3746
        %v3757 = vpack.c.b16 %v3749, %v3748
        %3766 = vmatpush.bf16.msra.mxu0 %v3757
        %3767 = vmatpush.bf16.msra.mxu0 %v3756
        %3768 = vmatpush.bf16.msra.mxu0 %v3755
        %3769 = vmatpush.bf16.msra.mxu0 %v3754
        %3770 = vmatpush.bf16.msra.mxu0 %v3753
        %3771 = vmatpush.bf16.msra.mxu0 %v3752
        %3772 = vmatpush.bf16.msra.mxu0 %v3751
        %3773 = vmatpush.bf16.msra.mxu0 %v3750
        %3774 = vmatmul.bf16.gmra.mxu0 %v3546
        %v3775 = vpop.f32.mrf.mxu0
        %v3776 = vadd.f32 0.0, %v3775
        %v3777 = vpop.f32.mrf.mxu0
        %v3778 = vadd.f32 0.0, %v3777
        %3779 = vmatmul.bf16.gmra.mxu0 %v3555
        %v3780 = vpop.f32.mrf.mxu0
        %v3781 = vadd.f32 0.0, %v3780
        %v3782 = vpop.f32.mrf.mxu0
        %v3783 = vadd.f32 0.0, %v3782
        %3784 = vmatmul.bf16.gmra.mxu0 %v3564
        %v3785 = vpop.f32.mrf.mxu0
        %v3786 = vadd.f32 0.0, %v3785
        %v3787 = vpop.f32.mrf.mxu0
        %v3788 = vadd.f32 0.0, %v3787
        %3789 = vmatmul.bf16.gmra.mxu0 %v3573
        %v3790 = vpop.f32.mrf.mxu0
        %v3791 = vadd.f32 0.0, %v3790
        %v3792 = vpop.f32.mrf.mxu0
        %v3793 = vadd.f32 0.0, %v3792
        %3794 = vmatmul.bf16.gmra.mxu0 %v3582
        %v3795 = vpop.f32.mrf.mxu0
        %v3796 = vadd.f32 0.0, %v3795
        %v3797 = vpop.f32.mrf.mxu0
        %v3798 = vadd.f32 0.0, %v3797
        %3799 = vmatmul.bf16.gmra.mxu0 %v3591
        %v3800 = vpop.f32.mrf.mxu0
        %v3801 = vadd.f32 0.0, %v3800
        %v3802 = vpop.f32.mrf.mxu0
        %v3803 = vadd.f32 0.0, %v3802
        %3804 = vmatmul.bf16.gmra.mxu0 %v3600
        %v3805 = vpop.f32.mrf.mxu0
        %v3806 = vadd.f32 0.0, %v3805
        %v3807 = vpop.f32.mrf.mxu0
        %v3808 = vadd.f32 0.0, %v3807
        %3809 = vmatmul.bf16.gmra.mxu0 %v3609
        %v3810 = vpop.f32.mrf.mxu0
        %v3811 = vadd.f32 0.0, %v3810
        %v3812 = vpop.f32.mrf.mxu0
        %v3813 = vadd.f32 0.0, %v3812
        %3814 = vmatmul.bf16.gmra.mxu0 %v3618
        %v3815 = vpop.f32.mrf.mxu0
        %v3816 = vadd.f32 0.0, %v3815
        %v3817 = vpop.f32.mrf.mxu0
        %v3818 = vadd.f32 0.0, %v3817
        %3819 = vmatmul.bf16.gmra.mxu0 %v3627
        %v3820 = vpop.f32.mrf.mxu0
        %v3821 = vadd.f32 0.0, %v3820
        %v3822 = vpop.f32.mrf.mxu0
        %v3823 = vadd.f32 0.0, %v3822
        %3824 = vmatmul.bf16.gmra.mxu0 %v3636
        %v3825 = vpop.f32.mrf.mxu0
        %v3826 = vadd.f32 0.0, %v3825
        %v3827 = vpop.f32.mrf.mxu0
        %v3828 = vadd.f32 0.0, %v3827
        %3829 = vmatmul.bf16.gmra.mxu0 %v3645
        %v3830 = vpop.f32.mrf.mxu0
        %v3831 = vadd.f32 0.0, %v3830
        %v3832 = vpop.f32.mrf.mxu0
        %v3833 = vadd.f32 0.0, %v3832
        %3834 = vmatmul.bf16.gmra.mxu0 %v3654
        %v3835 = vpop.f32.mrf.mxu0
        %v3836 = vadd.f32 0.0, %v3835
        %v3837 = vpop.f32.mrf.mxu0
        %v3838 = vadd.f32 0.0, %v3837
        %3839 = vmatmul.bf16.gmra.mxu0 %v3663
        %v3840 = vpop.f32.mrf.mxu0
        %v3841 = vadd.f32 0.0, %v3840
        %v3842 = vpop.f32.mrf.mxu0
        %v3843 = vadd.f32 0.0, %v3842
        %3844 = vmatmul.bf16.gmra.mxu0 %v3672
        %v3845 = vpop.f32.mrf.mxu0
        %v3846 = vadd.f32 0.0, %v3845
        %v3847 = vpop.f32.mrf.mxu0
        %v3848 = vadd.f32 0.0, %v3847
        %3849 = vmatmul.bf16.gmra.mxu0 %v3681
        %v3850 = vpop.f32.mrf.mxu0
        %v3851 = vadd.f32 0.0, %v3850
        %v3852 = vpop.f32.mrf.mxu0
        %v3853 = vadd.f32 0.0, %v3852
        %3854 = vmatmul.bf16.gmra.mxu0 %v3690
        %v3855 = vpop.f32.mrf.mxu0
        %v3856 = vadd.f32 0.0, %v3855
        %v3857 = vpop.f32.mrf.mxu0
        %v3858 = vadd.f32 0.0, %v3857
        %3859 = vmatmul.bf16.gmra.mxu0 %v3699
        %v3860 = vpop.f32.mrf.mxu0
        %v3861 = vadd.f32 0.0, %v3860
        %v3862 = vpop.f32.mrf.mxu0
        %v3863 = vadd.f32 0.0, %v3862
        %3864 = vdwg.mxu0
        %v3865 = vadd.f32 %v3472, %v3776
        %v3866 = vadd.f32 %v3473, %v3778
        %v3867 = vadd.f32 %v3474, %v3781
        %v3868 = vadd.f32 %v3475, %v3783
        %v3869 = vadd.f32 %v3476, %v3786
        %v3870 = vadd.f32 %v3477, %v3788
        %v3871 = vadd.f32 %v3478, %v3791
        %v3872 = vadd.f32 %v3479, %v3793
        %v3873 = vadd.f32 %v3480, %v3796
        %v3874 = vadd.f32 %v3481, %v3798
        %v3875 = vadd.f32 %v3482, %v3801
        %v3876 = vadd.f32 %v3483, %v3803
        %v3877 = vadd.f32 %v3484, %v3806
        %v3878 = vadd.f32 %v3485, %v3808
        %v3879 = vadd.f32 %v3486, %v3811
        %v3880 = vadd.f32 %v3487, %v3813
        %v3881 = vadd.f32 %v3488, %v3816
        %v3882 = vadd.f32 %v3489, %v3818
        %v3883 = vadd.f32 %v3490, %v3821
        %v3884 = vadd.f32 %v3491, %v3823
        %v3885 = vadd.f32 %v3492, %v3826
        %v3886 = vadd.f32 %v3493, %v3828
        %v3887 = vadd.f32 %v3494, %v3831
        %v3888 = vadd.f32 %v3495, %v3833
        %v3889 = vadd.f32 %v3496, %v3836
        %v3890 = vadd.f32 %v3497, %v3838
        %v3891 = vadd.f32 %v3498, %v3841
        %v3892 = vadd.f32 %v3499, %v3843
        %v3893 = vadd.f32 %v3500, %v3846
        %v3894 = vadd.f32 %v3501, %v3848
        %v3895 = vadd.f32 %v3502, %v3851
        %v3896 = vadd.f32 %v3503, %v3853
        %v3897 = vadd.f32 %v3504, %v3856
        %v3898 = vadd.f32 %v3505, %v3858
        %v3899 = vadd.f32 %v3506, %v3861
        %v3900 = vadd.f32 %v3507, %v3863
        %v3901 = vld [vmem:[#allocation2 + $0x8] sm:$0xc]
        %s3902 = scalar_lea.vmem [#allocation7], 320
        %v3903 = vld [vmem:[%s3902] sm:$0xf]
        %v3904 = vld [vmem:[%s3902 + $0x4] sm:$0xf]
        %v3905 = vld [vmem:[%s3902 + $0x8] sm:$0xf]
        %v3906 = vld [vmem:[%s3902 + $0xc] sm:$0xf]
        %v3907 = vld [vmem:[%s3902 + $0x10] sm:$0xf]
        %v3908 = vld [vmem:[%s3902 + $0x14] sm:$0xf]
        %v3909 = vld [vmem:[%s3902 + $0x18] sm:$0xf]
        %v3910 = vld [vmem:[%s3902 + $0x1c] sm:$0xf]
        %v3911 = vld [vmem:[%s3902 + $0x20] sm:$0xf]
        %v3912 = vld [vmem:[%s3902 + $0x24] sm:$0xf]
        %v3913 = vld [vmem:[%s3902 + $0x28] sm:$0xf]
        %v3914 = vld [vmem:[%s3902 + $0x2c] sm:$0xf]
        %v3915 = vld [vmem:[%s3902 + $0x30] sm:$0xf]
        %v3916 = vld [vmem:[%s3902 + $0x34] sm:$0xf]
        %v3917 = vld [vmem:[%s3902 + $0x38] sm:$0xf]
        %v3918 = vld [vmem:[%s3902 + $0x3c] sm:$0xf]
        %v3920 = vunpack.c.l.b16 %v3901
        %v3921 = vpack.c.b16 %v3215, %v3920
        %vm3922 = vcmask 1045504
        %v3923 = vrot.slane %v3921, 2
        %v3924 = vrot.slane %v3252, 2
        %v3925 = vsel %vm3922, %v3923, %v3924
        %v3926 = vrot.slane %v3253, 2
        %v3927 = vsel %vm3922, %v3924, %v3926
        %v3928 = vrot.slane %v3254, 2
        %v3929 = vsel %vm3922, %v3926, %v3928
        %v3930 = vrot.slane %v3255, 2
        %v3931 = vsel %vm3922, %v3928, %v3930
        %v3932 = vrot.slane %v3256, 2
        %v3933 = vsel %vm3922, %v3930, %v3932
        %v3934 = vrot.slane %v3257, 2
        %v3935 = vsel %vm3922, %v3932, %v3934
        %v3936 = vrot.slane %v3258, 2
        %v3937 = vsel %vm3922, %v3934, %v3936
        %v3938 = vrot.slane %v3259, 2
        %v3939 = vsel %vm3922, %v3936, %v3938
        %v3940 = vrot.slane %v3260, 2
        %v3941 = vsel %vm3922, %v3938, %v3940
        %v3942 = vrot.slane %v3261, 2
        %v3943 = vsel %vm3922, %v3940, %v3942
        %v3944 = vrot.slane %v3262, 2
        %v3945 = vsel %vm3922, %v3942, %v3944
        %v3946 = vrot.slane %v3263, 2
        %v3947 = vsel %vm3922, %v3944, %v3946
        %v3948 = vrot.slane %v3264, 2
        %v3949 = vsel %vm3922, %v3946, %v3948
        %v3950 = vrot.slane %v3265, 2
        %v3951 = vsel %vm3922, %v3948, %v3950
        %v3952 = vrot.slane %v3266, 2
        %v3953 = vsel %vm3922, %v3950, %v3952
        %v3954 = vrot.slane %v3267, 2
        %v3955 = vsel %vm3922, %v3952, %v3954
        %v3956 = vrot.slane %v3268, 2
        %v3957 = vsel %vm3922, %v3954, %v3956
        %v3958 = vrot.slane %v3528, 2
        %v3959 = vsel %vm3922, %v3956, %v3958
        %v3994 = vunpack.c.l.b16 %v3903
        %v3995 = vunpack.c.l.b16 %v3904
        %v3996 = vunpack.c.l.b16 %v3905
        %v3997 = vunpack.c.l.b16 %v3906
        %v3998 = vunpack.c.l.b16 %v3907
        %v3999 = vunpack.c.l.b16 %v3908
        %v4000 = vunpack.c.l.b16 %v3909
        %v4001 = vunpack.c.l.b16 %v3910
        %v4002 = vunpack.c.l.b16 %v3911
        %v4003 = vunpack.c.l.b16 %v3912
        %v4004 = vunpack.c.l.b16 %v3913
        %v4005 = vunpack.c.l.b16 %v3914
        %v4006 = vunpack.c.l.b16 %v3915
        %v4007 = vunpack.c.l.b16 %v3916
        %v4008 = vunpack.c.l.b16 %v3917
        %v4009 = vunpack.c.l.b16 %v3918
        %v4010 = vpack.c.b16 %v3995, %v3994
        %v4011 = vpack.c.b16 %v3997, %v3996
        %v4012 = vpack.c.b16 %v3999, %v3998
        %v4013 = vpack.c.b16 %v4001, %v4000
        %v4014 = vpack.c.b16 %v4003, %v4002
        %v4015 = vpack.c.b16 %v4005, %v4004
        %v4016 = vpack.c.b16 %v4007, %v4006
        %v4017 = vpack.c.b16 %v4009, %v4008
        %4026 = vmatpush.bf16.msra.mxu0 %v4017
        %4027 = vmatpush.bf16.msra.mxu0 %v4016
        %4028 = vmatpush.bf16.msra.mxu0 %v4015
        %4029 = vmatpush.bf16.msra.mxu0 %v4014
        %4030 = vmatpush.bf16.msra.mxu0 %v4013
        %4031 = vmatpush.bf16.msra.mxu0 %v4012
        %4032 = vmatpush.bf16.msra.mxu0 %v4011
        %4033 = vmatpush.bf16.msra.mxu0 %v4010
        %4034 = vmatmul.bf16.gmra.mxu0 %v3925
        %v4035 = vpop.f32.mrf.mxu0
        %v4036 = vadd.f32 0.0, %v4035
        %v4037 = vpop.f32.mrf.mxu0
        %v4038 = vadd.f32 0.0, %v4037
        %4039 = vmatmul.bf16.gmra.mxu0 %v3927
        %v4040 = vpop.f32.mrf.mxu0
        %v4041 = vadd.f32 0.0, %v4040
        %v4042 = vpop.f32.mrf.mxu0
        %v4043 = vadd.f32 0.0, %v4042
        %4044 = vmatmul.bf16.gmra.mxu0 %v3929
        %v4045 = vpop.f32.mrf.mxu0
        %v4046 = vadd.f32 0.0, %v4045
        %v4047 = vpop.f32.mrf.mxu0
        %v4048 = vadd.f32 0.0, %v4047
        %4049 = vmatmul.bf16.gmra.mxu0 %v3931
        %v4050 = vpop.f32.mrf.mxu0
        %v4051 = vadd.f32 0.0, %v4050
        %v4052 = vpop.f32.mrf.mxu0
        %v4053 = vadd.f32 0.0, %v4052
        %4054 = vmatmul.bf16.gmra.mxu0 %v3933
        %v4055 = vpop.f32.mrf.mxu0
        %v4056 = vadd.f32 0.0, %v4055
        %v4057 = vpop.f32.mrf.mxu0
        %v4058 = vadd.f32 0.0, %v4057
        %4059 = vmatmul.bf16.gmra.mxu0 %v3935
        %v4060 = vpop.f32.mrf.mxu0
        %v4061 = vadd.f32 0.0, %v4060
        %v4062 = vpop.f32.mrf.mxu0
        %v4063 = vadd.f32 0.0, %v4062
        %4064 = vmatmul.bf16.gmra.mxu0 %v3937
        %v4065 = vpop.f32.mrf.mxu0
        %v4066 = vadd.f32 0.0, %v4065
        %v4067 = vpop.f32.mrf.mxu0
        %v4068 = vadd.f32 0.0, %v4067
        %4069 = vmatmul.bf16.gmra.mxu0 %v3939
        %v4070 = vpop.f32.mrf.mxu0
        %v4071 = vadd.f32 0.0, %v4070
        %v4072 = vpop.f32.mrf.mxu0
        %v4073 = vadd.f32 0.0, %v4072
        %4074 = vmatmul.bf16.gmra.mxu0 %v3941
        %v4075 = vpop.f32.mrf.mxu0
        %v4076 = vadd.f32 0.0, %v4075
        %v4077 = vpop.f32.mrf.mxu0
        %v4078 = vadd.f32 0.0, %v4077
        %4079 = vmatmul.bf16.gmra.mxu0 %v3943
        %v4080 = vpop.f32.mrf.mxu0
        %v4081 = vadd.f32 0.0, %v4080
        %v4082 = vpop.f32.mrf.mxu0
        %v4083 = vadd.f32 0.0, %v4082
        %4084 = vmatmul.bf16.gmra.mxu0 %v3945
        %v4085 = vpop.f32.mrf.mxu0
        %v4086 = vadd.f32 0.0, %v4085
        %v4087 = vpop.f32.mrf.mxu0
        %v4088 = vadd.f32 0.0, %v4087
        %4089 = vmatmul.bf16.gmra.mxu0 %v3947
        %v4090 = vpop.f32.mrf.mxu0
        %v4091 = vadd.f32 0.0, %v4090
        %v4092 = vpop.f32.mrf.mxu0
        %v4093 = vadd.f32 0.0, %v4092
        %4094 = vmatmul.bf16.gmra.mxu0 %v3949
        %v4095 = vpop.f32.mrf.mxu0
        %v4096 = vadd.f32 0.0, %v4095
        %v4097 = vpop.f32.mrf.mxu0
        %v4098 = vadd.f32 0.0, %v4097
        %4099 = vmatmul.bf16.gmra.mxu0 %v3951
        %v4100 = vpop.f32.mrf.mxu0
        %v4101 = vadd.f32 0.0, %v4100
        %v4102 = vpop.f32.mrf.mxu0
        %v4103 = vadd.f32 0.0, %v4102
        %4104 = vmatmul.bf16.gmra.mxu0 %v3953
        %v4105 = vpop.f32.mrf.mxu0
        %v4106 = vadd.f32 0.0, %v4105
        %v4107 = vpop.f32.mrf.mxu0
        %v4108 = vadd.f32 0.0, %v4107
        %4109 = vmatmul.bf16.gmra.mxu0 %v3955
        %v4110 = vpop.f32.mrf.mxu0
        %v4111 = vadd.f32 0.0, %v4110
        %v4112 = vpop.f32.mrf.mxu0
        %v4113 = vadd.f32 0.0, %v4112
        %4114 = vmatmul.bf16.gmra.mxu0 %v3957
        %v4115 = vpop.f32.mrf.mxu0
        %v4116 = vadd.f32 0.0, %v4115
        %v4117 = vpop.f32.mrf.mxu0
        %v4118 = vadd.f32 0.0, %v4117
        %4119 = vmatmul.bf16.gmra.mxu0 %v3959
        %v4120 = vpop.f32.mrf.mxu0
        %v4121 = vadd.f32 0.0, %v4120
        %v4122 = vpop.f32.mrf.mxu0
        %v4123 = vadd.f32 0.0, %v4122
        %4124 = vdwg.mxu0
        %v4125 = vadd.f32 %v3865, %v4036
        %v4126 = vadd.f32 %v3866, %v4038
        %v4127 = vadd.f32 %v3867, %v4041
        %v4128 = vadd.f32 %v3868, %v4043
        %v4129 = vadd.f32 %v3869, %v4046
        %v4130 = vadd.f32 %v3870, %v4048
        %v4131 = vadd.f32 %v3871, %v4051
        %v4132 = vadd.f32 %v3872, %v4053
        %v4133 = vadd.f32 %v3873, %v4056
        %v4134 = vadd.f32 %v3874, %v4058
        %v4135 = vadd.f32 %v3875, %v4061
        %v4136 = vadd.f32 %v3876, %v4063
        %v4137 = vadd.f32 %v3877, %v4066
        %v4138 = vadd.f32 %v3878, %v4068
        %v4139 = vadd.f32 %v3879, %v4071
        %v4140 = vadd.f32 %v3880, %v4073
        %v4141 = vadd.f32 %v3881, %v4076
        %v4142 = vadd.f32 %v3882, %v4078
        %v4143 = vadd.f32 %v3883, %v4081
        %v4144 = vadd.f32 %v3884, %v4083
        %v4145 = vadd.f32 %v3885, %v4086
        %v4146 = vadd.f32 %v3886, %v4088
        %v4147 = vadd.f32 %v3887, %v4091
        %v4148 = vadd.f32 %v3888, %v4093
        %v4149 = vadd.f32 %v3889, %v4096
        %v4150 = vadd.f32 %v3890, %v4098
        %v4151 = vadd.f32 %v3891, %v4101
        %v4152 = vadd.f32 %v3892, %v4103
        %v4153 = vadd.f32 %v3893, %v4106
        %v4154 = vadd.f32 %v3894, %v4108
        %v4155 = vadd.f32 %v3895, %v4111
        %v4156 = vadd.f32 %v3896, %v4113
        %v4157 = vadd.f32 %v3897, %v4116
        %v4158 = vadd.f32 %v3898, %v4118
        %v4159 = vadd.f32 %v3899, %v4121
        %v4160 = vadd.f32 %v3900, %v4123
        %v4161 = vld [vmem:[#allocation2 + $0x10] sm:$0xc]
        %v4162 = vld [vmem:[#allocation2 + $0x14] sm:$0xf]
        %v4163 = vld [vmem:[#allocation2 + $0x18] sm:$0xf]
        %v4164 = vld [vmem:[#allocation2 + $0x1c] sm:$0xf]
        %v4165 = vld [vmem:[#allocation2 + $0x20] sm:$0xf]
        %v4166 = vld [vmem:[#allocation2 + $0x24] sm:$0xf]
        %v4167 = vld [vmem:[#allocation2 + $0x28] sm:$0xf]
        %v4168 = vld [vmem:[#allocation2 + $0x2c] sm:$0xf]
        %v4169 = vld [vmem:[#allocation2 + $0x30] sm:$0xf]
        %v4170 = vld [vmem:[#allocation2 + $0x34] sm:$0xf]
        %v4171 = vld [vmem:[#allocation2 + $0x38] sm:$0xf]
        %v4172 = vld [vmem:[#allocation2 + $0x3c] sm:$0xf]
        %v4173 = vld [vmem:[#allocation2 + $0x40] sm:$0xf]
        %v4174 = vld [vmem:[#allocation2 + $0x44] sm:$0xf]
        %v4175 = vld [vmem:[#allocation2 + $0x48] sm:$0xf]
        %v4176 = vld [vmem:[#allocation2 + $0x4c] sm:$0xf]
        %v4177 = vld [vmem:[#allocation2 + $0x50] sm:$0xf]
        %v4178 = vld [vmem:[#allocation2 + $0x54] sm:$0xf]
        %v4179 = vld [vmem:[#allocation2 + $0x58] sm:$0xf]
        %v4180 = vld [vmem:[#allocation2 + $0x5c] sm:$0xf]
        %v4181 = vld [vmem:[#allocation2 + $0x60] sm:$0xf]
        %v4182 = vld [vmem:[#allocation2 + $0x64] sm:$0xf]
        %v4183 = vld [vmem:[#allocation2 + $0x68] sm:$0xf]
        %v4184 = vld [vmem:[#allocation2 + $0x6c] sm:$0xf]
        %v4185 = vld [vmem:[#allocation2 + $0x70] sm:$0xf]
        %v4186 = vld [vmem:[#allocation2 + $0x74] sm:$0xf]
        %v4187 = vld [vmem:[#allocation2 + $0x78] sm:$0xf]
        %v4188 = vld [vmem:[#allocation2 + $0x7c] sm:$0xf]
        %v4189 = vld [vmem:[#allocation2 + $0x80] sm:$0xf]
        %v4190 = vld [vmem:[#allocation2 + $0x84] sm:$0xf]
        %v4191 = vld [vmem:[#allocation2 + $0x88] sm:$0xf]
        %v4192 = vld [vmem:[#allocation2 + $0x8c] sm:$0xf]
        %v4193 = vld [vmem:[#allocation2 + $0x90] sm:$0xf]
        %v4194 = vld [vmem:[#allocation2 + $0x94] sm:$0xf]
        %v4195 = vld [vmem:[#allocation2 + $0x98] sm:$0xf]
        %v4196 = vld [vmem:[#allocation2 + $0x9c] sm:$0xf]
        %v4197 = vld [vmem:[#allocation2 + $0xa0] sm:$0x3]
        %s4198 = scalar_lea.vmem [#allocation7], 384
        %v4199 = vld [vmem:[%s4198] sm:$0xf]
        %v4200 = vld [vmem:[%s4198 + $0x4] sm:$0xf]
        %v4201 = vld [vmem:[%s4198 + $0x8] sm:$0xf]
        %v4202 = vld [vmem:[%s4198 + $0xc] sm:$0xf]
        %v4203 = vld [vmem:[%s4198 + $0x10] sm:$0xf]
        %v4204 = vld [vmem:[%s4198 + $0x14] sm:$0xf]
        %v4205 = vld [vmem:[%s4198 + $0x18] sm:$0xf]
        %v4206 = vld [vmem:[%s4198 + $0x1c] sm:$0xf]
        %v4207 = vld [vmem:[%s4198 + $0x20] sm:$0xf]
        %v4208 = vld [vmem:[%s4198 + $0x24] sm:$0xf]
        %v4209 = vld [vmem:[%s4198 + $0x28] sm:$0xf]
        %v4210 = vld [vmem:[%s4198 + $0x2c] sm:$0xf]
        %v4211 = vld [vmem:[%s4198 + $0x30] sm:$0xf]
        %v4212 = vld [vmem:[%s4198 + $0x34] sm:$0xf]
        %v4213 = vld [vmem:[%s4198 + $0x38] sm:$0xf]
        %v4214 = vld [vmem:[%s4198 + $0x3c] sm:$0xf]
        %v4252 = vunpack.c.l.b16 %v4161
        %v4253 = vunpack.c.l.b16 %v4162
        %v4254 = vunpack.c.l.b16 %v4163
        %v4255 = vunpack.c.l.b16 %v4164
        %v4256 = vunpack.c.l.b16 %v4165
        %v4257 = vunpack.c.l.b16 %v4166
        %v4258 = vunpack.c.l.b16 %v4167
        %v4259 = vunpack.c.l.b16 %v4168
        %v4260 = vunpack.c.l.b16 %v4169
        %v4261 = vunpack.c.l.b16 %v4170
        %v4262 = vunpack.c.l.b16 %v4171
        %v4263 = vunpack.c.l.b16 %v4172
        %v4264 = vunpack.c.l.b16 %v4173
        %v4265 = vunpack.c.l.b16 %v4174
        %v4266 = vunpack.c.l.b16 %v4175
        %v4267 = vunpack.c.l.b16 %v4176
        %v4268 = vunpack.c.l.b16 %v4177
        %v4269 = vunpack.c.l.b16 %v4178
        %v4270 = vunpack.c.l.b16 %v4179
        %v4271 = vunpack.c.l.b16 %v4180
        %v4272 = vunpack.c.l.b16 %v4181
        %v4273 = vunpack.c.l.b16 %v4182
        %v4274 = vunpack.c.l.b16 %v4183
        %v4275 = vunpack.c.l.b16 %v4184
        %v4276 = vunpack.c.l.b16 %v4185
        %v4277 = vunpack.c.l.b16 %v4186
        %v4278 = vunpack.c.l.b16 %v4187
        %v4279 = vunpack.c.l.b16 %v4188
        %v4280 = vunpack.c.l.b16 %v4189
        %v4281 = vunpack.c.l.b16 %v4190
        %v4282 = vunpack.c.l.b16 %v4191
        %v4283 = vunpack.c.l.b16 %v4192
        %v4284 = vunpack.c.l.b16 %v4193
        %v4285 = vunpack.c.l.b16 %v4194
        %v4286 = vunpack.c.l.b16 %v4195
        %v4287 = vunpack.c.l.b16 %v4196
        %v4288 = vunpack.c.l.b16 %v4197
        %v4289 = vpack.c.b16 %v4253, %v4252
        %v4290 = vpack.c.b16 %v4255, %v4254
        %v4291 = vpack.c.b16 %v4257, %v4256
        %v4292 = vpack.c.b16 %v4259, %v4258
        %v4293 = vpack.c.b16 %v4261, %v4260
        %v4294 = vpack.c.b16 %v4263, %v4262
        %v4295 = vpack.c.b16 %v4265, %v4264
        %v4296 = vpack.c.b16 %v4267, %v4266
        %v4297 = vpack.c.b16 %v4269, %v4268
        %v4298 = vpack.c.b16 %v4271, %v4270
        %v4299 = vpack.c.b16 %v4273, %v4272
        %v4300 = vpack.c.b16 %v4275, %v4274
        %v4301 = vpack.c.b16 %v4277, %v4276
        %v4302 = vpack.c.b16 %v4279, %v4278
        %v4303 = vpack.c.b16 %v4281, %v4280
        %v4304 = vpack.c.b16 %v4283, %v4282
        %v4305 = vpack.c.b16 %v4285, %v4284
        %v4306 = vpack.c.b16 %v4287, %v4286
        %v4307 = vpack.c.b16 %v4288, %v4288
        %v4308 = vrot.slane %v4289, 2
        %v4309 = vrot.slane %v4290, 2
        %v4310 = vsel %vm3922, %v4308, %v4309
        %v4311 = vrot.slane %v4291, 2
        %v4312 = vsel %vm3922, %v4309, %v4311
        %v4313 = vrot.slane %v4292, 2
        %v4314 = vsel %vm3922, %v4311, %v4313
        %v4315 = vrot.slane %v4293, 2
        %v4316 = vsel %vm3922, %v4313, %v4315
        %v4317 = vrot.slane %v4294, 2
        %v4318 = vsel %vm3922, %v4315, %v4317
        %v4319 = vrot.slane %v4295, 2
        %v4320 = vsel %vm3922, %v4317, %v4319
        %v4321 = vrot.slane %v4296, 2
        %v4322 = vsel %vm3922, %v4319, %v4321
        %v4323 = vrot.slane %v4297, 2
        %v4324 = vsel %vm3922, %v4321, %v4323
        %v4325 = vrot.slane %v4298, 2
        %v4326 = vsel %vm3922, %v4323, %v4325
        %v4327 = vrot.slane %v4299, 2
        %v4328 = vsel %vm3922, %v4325, %v4327
        %v4329 = vrot.slane %v4300, 2
        %v4330 = vsel %vm3922, %v4327, %v4329
        %v4331 = vrot.slane %v4301, 2
        %v4332 = vsel %vm3922, %v4329, %v4331
        %v4333 = vrot.slane %v4302, 2
        %v4334 = vsel %vm3922, %v4331, %v4333
        %v4335 = vrot.slane %v4303, 2
        %v4336 = vsel %vm3922, %v4333, %v4335
        %v4337 = vrot.slane %v4304, 2
        %v4338 = vsel %vm3922, %v4335, %v4337
        %v4339 = vrot.slane %v4305, 2
        %v4340 = vsel %vm3922, %v4337, %v4339
        %v4341 = vrot.slane %v4306, 2
        %v4342 = vsel %vm3922, %v4339, %v4341
        %v4343 = vrot.slane %v4307, 2
        %v4344 = vsel %vm3922, %v4341, %v4343
        %v4379 = vunpack.c.l.b16 %v4199
        %v4380 = vunpack.c.l.b16 %v4200
        %v4381 = vunpack.c.l.b16 %v4201
        %v4382 = vunpack.c.l.b16 %v4202
        %v4383 = vunpack.c.l.b16 %v4203
        %v4384 = vunpack.c.l.b16 %v4204
        %v4385 = vunpack.c.l.b16 %v4205
        %v4386 = vunpack.c.l.b16 %v4206
        %v4387 = vunpack.c.l.b16 %v4207
        %v4388 = vunpack.c.l.b16 %v4208
        %v4389 = vunpack.c.l.b16 %v4209
        %v4390 = vunpack.c.l.b16 %v4210
        %v4391 = vunpack.c.l.b16 %v4211
        %v4392 = vunpack.c.l.b16 %v4212
        %v4393 = vunpack.c.l.b16 %v4213
        %v4394 = vunpack.c.l.b16 %v4214
        %v4395 = vpack.c.b16 %v4380, %v4379
        %v4396 = vpack.c.b16 %v4382, %v4381
        %v4397 = vpack.c.b16 %v4384, %v4383
        %v4398 = vpack.c.b16 %v4386, %v4385
        %v4399 = vpack.c.b16 %v4388, %v4387
        %v4400 = vpack.c.b16 %v4390, %v4389
        %v4401 = vpack.c.b16 %v4392, %v4391
        %v4402 = vpack.c.b16 %v4394, %v4393
        %4411 = vmatpush.bf16.msra.mxu0 %v4402
        %4412 = vmatpush.bf16.msra.mxu0 %v4401
        %4413 = vmatpush.bf16.msra.mxu0 %v4400
        %4414 = vmatpush.bf16.msra.mxu0 %v4399
        %4415 = vmatpush.bf16.msra.mxu0 %v4398
        %4416 = vmatpush.bf16.msra.mxu0 %v4397
        %4417 = vmatpush.bf16.msra.mxu0 %v4396
        %4418 = vmatpush.bf16.msra.mxu0 %v4395
        %4419 = vmatmul.bf16.gmra.mxu0 %v4310
        %v4420 = vpop.f32.mrf.mxu0
        %v4421 = vadd.f32 0.0, %v4420
        %v4422 = vpop.f32.mrf.mxu0
        %v4423 = vadd.f32 0.0, %v4422
        %4424 = vmatmul.bf16.gmra.mxu0 %v4312
        %v4425 = vpop.f32.mrf.mxu0
        %v4426 = vadd.f32 0.0, %v4425
        %v4427 = vpop.f32.mrf.mxu0
        %v4428 = vadd.f32 0.0, %v4427
        %4429 = vmatmul.bf16.gmra.mxu0 %v4314
        %v4430 = vpop.f32.mrf.mxu0
        %v4431 = vadd.f32 0.0, %v4430
        %v4432 = vpop.f32.mrf.mxu0
        %v4433 = vadd.f32 0.0, %v4432
        %4434 = vmatmul.bf16.gmra.mxu0 %v4316
        %v4435 = vpop.f32.mrf.mxu0
        %v4436 = vadd.f32 0.0, %v4435
        %v4437 = vpop.f32.mrf.mxu0
        %v4438 = vadd.f32 0.0, %v4437
        %4439 = vmatmul.bf16.gmra.mxu0 %v4318
        %v4440 = vpop.f32.mrf.mxu0
        %v4441 = vadd.f32 0.0, %v4440
        %v4442 = vpop.f32.mrf.mxu0
        %v4443 = vadd.f32 0.0, %v4442
        %4444 = vmatmul.bf16.gmra.mxu0 %v4320
        %v4445 = vpop.f32.mrf.mxu0
        %v4446 = vadd.f32 0.0, %v4445
        %v4447 = vpop.f32.mrf.mxu0
        %v4448 = vadd.f32 0.0, %v4447
        %4449 = vmatmul.bf16.gmra.mxu0 %v4322
        %v4450 = vpop.f32.mrf.mxu0
        %v4451 = vadd.f32 0.0, %v4450
        %v4452 = vpop.f32.mrf.mxu0
        %v4453 = vadd.f32 0.0, %v4452
        %4454 = vmatmul.bf16.gmra.mxu0 %v4324
        %v4455 = vpop.f32.mrf.mxu0
        %v4456 = vadd.f32 0.0, %v4455
        %v4457 = vpop.f32.mrf.mxu0
        %v4458 = vadd.f32 0.0, %v4457
        %4459 = vmatmul.bf16.gmra.mxu0 %v4326
        %v4460 = vpop.f32.mrf.mxu0
        %v4461 = vadd.f32 0.0, %v4460
        %v4462 = vpop.f32.mrf.mxu0
        %v4463 = vadd.f32 0.0, %v4462
        %4464 = vmatmul.bf16.gmra.mxu0 %v4328
        %v4465 = vpop.f32.mrf.mxu0
        %v4466 = vadd.f32 0.0, %v4465
        %v4467 = vpop.f32.mrf.mxu0
        %v4468 = vadd.f32 0.0, %v4467
        %4469 = vmatmul.bf16.gmra.mxu0 %v4330
        %v4470 = vpop.f32.mrf.mxu0
        %v4471 = vadd.f32 0.0, %v4470
        %v4472 = vpop.f32.mrf.mxu0
        %v4473 = vadd.f32 0.0, %v4472
        %4474 = vmatmul.bf16.gmra.mxu0 %v4332
        %v4475 = vpop.f32.mrf.mxu0
        %v4476 = vadd.f32 0.0, %v4475
        %v4477 = vpop.f32.mrf.mxu0
        %v4478 = vadd.f32 0.0, %v4477
        %4479 = vmatmul.bf16.gmra.mxu0 %v4334
        %v4480 = vpop.f32.mrf.mxu0
        %v4481 = vadd.f32 0.0, %v4480
        %v4482 = vpop.f32.mrf.mxu0
        %v4483 = vadd.f32 0.0, %v4482
        %4484 = vmatmul.bf16.gmra.mxu0 %v4336
        %v4485 = vpop.f32.mrf.mxu0
        %v4486 = vadd.f32 0.0, %v4485
        %v4487 = vpop.f32.mrf.mxu0
        %v4488 = vadd.f32 0.0, %v4487
        %4489 = vmatmul.bf16.gmra.mxu0 %v4338
        %v4490 = vpop.f32.mrf.mxu0
        %v4491 = vadd.f32 0.0, %v4490
        %v4492 = vpop.f32.mrf.mxu0
        %v4493 = vadd.f32 0.0, %v4492
        %4494 = vmatmul.bf16.gmra.mxu0 %v4340
        %v4495 = vpop.f32.mrf.mxu0
        %v4496 = vadd.f32 0.0, %v4495
        %v4497 = vpop.f32.mrf.mxu0
        %v4498 = vadd.f32 0.0, %v4497
        %4499 = vmatmul.bf16.gmra.mxu0 %v4342
        %v4500 = vpop.f32.mrf.mxu0
        %v4501 = vadd.f32 0.0, %v4500
        %v4502 = vpop.f32.mrf.mxu0
        %v4503 = vadd.f32 0.0, %v4502
        %4504 = vmatmul.bf16.gmra.mxu0 %v4344
        %v4505 = vpop.f32.mrf.mxu0
        %v4506 = vadd.f32 0.0, %v4505
        %v4507 = vpop.f32.mrf.mxu0
        %v4508 = vadd.f32 0.0, %v4507
        %4509 = vdwg.mxu0
        %v4510 = vadd.f32 %v4125, %v4421
        %v4511 = vadd.f32 %v4126, %v4423
        %v4512 = vadd.f32 %v4127, %v4426
        %v4513 = vadd.f32 %v4128, %v4428
        %v4514 = vadd.f32 %v4129, %v4431
        %v4515 = vadd.f32 %v4130, %v4433
        %v4516 = vadd.f32 %v4131, %v4436
        %v4517 = vadd.f32 %v4132, %v4438
        %v4518 = vadd.f32 %v4133, %v4441
        %v4519 = vadd.f32 %v4134, %v4443
        %v4520 = vadd.f32 %v4135, %v4446
        %v4521 = vadd.f32 %v4136, %v4448
        %v4522 = vadd.f32 %v4137, %v4451
        %v4523 = vadd.f32 %v4138, %v4453
        %v4524 = vadd.f32 %v4139, %v4456
        %v4525 = vadd.f32 %v4140, %v4458
        %v4526 = vadd.f32 %v4141, %v4461
        %v4527 = vadd.f32 %v4142, %v4463
        %v4528 = vadd.f32 %v4143, %v4466
        %v4529 = vadd.f32 %v4144, %v4468
        %v4530 = vadd.f32 %v4145, %v4471
        %v4531 = vadd.f32 %v4146, %v4473
        %v4532 = vadd.f32 %v4147, %v4476
        %v4533 = vadd.f32 %v4148, %v4478
        %v4534 = vadd.f32 %v4149, %v4481
        %v4535 = vadd.f32 %v4150, %v4483
        %v4536 = vadd.f32 %v4151, %v4486
        %v4537 = vadd.f32 %v4152, %v4488
        %v4538 = vadd.f32 %v4153, %v4491
        %v4539 = vadd.f32 %v4154, %v4493
        %v4540 = vadd.f32 %v4155, %v4496
        %v4541 = vadd.f32 %v4156, %v4498
        %v4542 = vadd.f32 %v4157, %v4501
        %v4543 = vadd.f32 %v4158, %v4503
        %v4544 = vadd.f32 %v4159, %v4506
        %v4545 = vadd.f32 %v4160, %v4508
        %v4546 = vld [vmem:[#allocation2 + $0xa0] sm:$0x7]
        %s4547 = scalar_lea.vmem [#allocation7], 448
        %v4548 = vld [vmem:[%s4547] sm:$0xf]
        %v4549 = vld [vmem:[%s4547 + $0x4] sm:$0xf]
        %v4550 = vld [vmem:[%s4547 + $0x8] sm:$0xf]
        %v4551 = vld [vmem:[%s4547 + $0xc] sm:$0xf]
        %v4552 = vld [vmem:[%s4547 + $0x10] sm:$0xf]
        %v4553 = vld [vmem:[%s4547 + $0x14] sm:$0xf]
        %v4554 = vld [vmem:[%s4547 + $0x18] sm:$0xf]
        %v4555 = vld [vmem:[%s4547 + $0x1c] sm:$0xf]
        %v4556 = vld [vmem:[%s4547 + $0x20] sm:$0xf]
        %v4557 = vld [vmem:[%s4547 + $0x24] sm:$0xf]
        %v4558 = vld [vmem:[%s4547 + $0x28] sm:$0xf]
        %v4559 = vld [vmem:[%s4547 + $0x2c] sm:$0xf]
        %v4560 = vld [vmem:[%s4547 + $0x30] sm:$0xf]
        %v4561 = vld [vmem:[%s4547 + $0x34] sm:$0xf]
        %v4562 = vld [vmem:[%s4547 + $0x38] sm:$0xf]
        %v4563 = vld [vmem:[%s4547 + $0x3c] sm:$0xf]
        %v4565 = vunpack.c.l.b16 %v4546
        %v4566 = vpack.c.b16 %v4565, %v4565
        %vm4567 = vsmask.f32 5376
        %v4569 = vshrl.u32 %v4289, 16
        %v4571 = vrot.slane %v4569, 2
        %v4572 = vshll.u32 %v4289, 16
        %v4574 = vrot.slane %v4572, 3
        %v4575 = vor.u32 %v4571, %v4574
        %v4577 = vshrl.u32 %v4290, 16
        %v4579 = vrot.slane %v4577, 2
        %v4580 = vshll.u32 %v4290, 16
        %v4582 = vrot.slane %v4580, 3
        %v4583 = vor.u32 %v4579, %v4582
        %v4584 = vsel %vm4567, %v4575, %v4583
        %v4586 = vshrl.u32 %v4291, 16
        %v4588 = vrot.slane %v4586, 2
        %v4589 = vshll.u32 %v4291, 16
        %v4591 = vrot.slane %v4589, 3
        %v4592 = vor.u32 %v4588, %v4591
        %v4593 = vsel %vm4567, %v4583, %v4592
        %v4595 = vshrl.u32 %v4292, 16
        %v4597 = vrot.slane %v4595, 2
        %v4598 = vshll.u32 %v4292, 16
        %v4600 = vrot.slane %v4598, 3
        %v4601 = vor.u32 %v4597, %v4600
        %v4602 = vsel %vm4567, %v4592, %v4601
        %v4604 = vshrl.u32 %v4293, 16
        %v4606 = vrot.slane %v4604, 2
        %v4607 = vshll.u32 %v4293, 16
        %v4609 = vrot.slane %v4607, 3
        %v4610 = vor.u32 %v4606, %v4609
        %v4611 = vsel %vm4567, %v4601, %v4610
        %v4613 = vshrl.u32 %v4294, 16
        %v4615 = vrot.slane %v4613, 2
        %v4616 = vshll.u32 %v4294, 16
        %v4618 = vrot.slane %v4616, 3
        %v4619 = vor.u32 %v4615, %v4618
        %v4620 = vsel %vm4567, %v4610, %v4619
        %v4622 = vshrl.u32 %v4295, 16
        %v4624 = vrot.slane %v4622, 2
        %v4625 = vshll.u32 %v4295, 16
        %v4627 = vrot.slane %v4625, 3
        %v4628 = vor.u32 %v4624, %v4627
        %v4629 = vsel %vm4567, %v4619, %v4628
        %v4631 = vshrl.u32 %v4296, 16
        %v4633 = vrot.slane %v4631, 2
        %v4634 = vshll.u32 %v4296, 16
        %v4636 = vrot.slane %v4634, 3
        %v4637 = vor.u32 %v4633, %v4636
        %v4638 = vsel %vm4567, %v4628, %v4637
        %v4640 = vshrl.u32 %v4297, 16
        %v4642 = vrot.slane %v4640, 2
        %v4643 = vshll.u32 %v4297, 16
        %v4645 = vrot.slane %v4643, 3
        %v4646 = vor.u32 %v4642, %v4645
        %v4647 = vsel %vm4567, %v4637, %v4646
        %v4649 = vshrl.u32 %v4298, 16
        %v4651 = vrot.slane %v4649, 2
        %v4652 = vshll.u32 %v4298, 16
        %v4654 = vrot.slane %v4652, 3
        %v4655 = vor.u32 %v4651, %v4654
        %v4656 = vsel %vm4567, %v4646, %v4655
        %v4658 = vshrl.u32 %v4299, 16
        %v4660 = vrot.slane %v4658, 2
        %v4661 = vshll.u32 %v4299, 16
        %v4663 = vrot.slane %v4661, 3
        %v4664 = vor.u32 %v4660, %v4663
        %v4665 = vsel %vm4567, %v4655, %v4664
        %v4667 = vshrl.u32 %v4300, 16
        %v4669 = vrot.slane %v4667, 2
        %v4670 = vshll.u32 %v4300, 16
        %v4672 = vrot.slane %v4670, 3
        %v4673 = vor.u32 %v4669, %v4672
        %v4674 = vsel %vm4567, %v4664, %v4673
        %v4676 = vshrl.u32 %v4301, 16
        %v4678 = vrot.slane %v4676, 2
        %v4679 = vshll.u32 %v4301, 16
        %v4681 = vrot.slane %v4679, 3
        %v4682 = vor.u32 %v4678, %v4681
        %v4683 = vsel %vm4567, %v4673, %v4682
        %v4685 = vshrl.u32 %v4302, 16
        %v4687 = vrot.slane %v4685, 2
        %v4688 = vshll.u32 %v4302, 16
        %v4690 = vrot.slane %v4688, 3
        %v4691 = vor.u32 %v4687, %v4690
        %v4692 = vsel %vm4567, %v4682, %v4691
        %v4694 = vshrl.u32 %v4303, 16
        %v4696 = vrot.slane %v4694, 2
        %v4697 = vshll.u32 %v4303, 16
        %v4699 = vrot.slane %v4697, 3
        %v4700 = vor.u32 %v4696, %v4699
        %v4701 = vsel %vm4567, %v4691, %v4700
        %v4703 = vshrl.u32 %v4304, 16
        %v4705 = vrot.slane %v4703, 2
        %v4706 = vshll.u32 %v4304, 16
        %v4708 = vrot.slane %v4706, 3
        %v4709 = vor.u32 %v4705, %v4708
        %v4710 = vsel %vm4567, %v4700, %v4709
        %v4712 = vshrl.u32 %v4305, 16
        %v4714 = vrot.slane %v4712, 2
        %v4715 = vshll.u32 %v4305, 16
        %v4717 = vrot.slane %v4715, 3
        %v4718 = vor.u32 %v4714, %v4717
        %v4719 = vsel %vm4567, %v4709, %v4718
        %v4721 = vshrl.u32 %v4306, 16
        %v4723 = vrot.slane %v4721, 2
        %v4724 = vshll.u32 %v4306, 16
        %v4726 = vrot.slane %v4724, 3
        %v4727 = vor.u32 %v4723, %v4726
        %v4728 = vsel %vm4567, %v4718, %v4727
        %v4730 = vshrl.u32 %v4566, 16
        %v4732 = vrot.slane %v4730, 2
        %v4733 = vshll.u32 %v4566, 16
        %v4735 = vrot.slane %v4733, 3
        %v4736 = vor.u32 %v4732, %v4735
        %v4737 = vsel %vm4567, %v4727, %v4736
        %v4772 = vunpack.c.l.b16 %v4548
        %v4773 = vunpack.c.l.b16 %v4549
        %v4774 = vunpack.c.l.b16 %v4550
        %v4775 = vunpack.c.l.b16 %v4551
        %v4776 = vunpack.c.l.b16 %v4552
        %v4777 = vunpack.c.l.b16 %v4553
        %v4778 = vunpack.c.l.b16 %v4554
        %v4779 = vunpack.c.l.b16 %v4555
        %v4780 = vunpack.c.l.b16 %v4556
        %v4781 = vunpack.c.l.b16 %v4557
        %v4782 = vunpack.c.l.b16 %v4558
        %v4783 = vunpack.c.l.b16 %v4559
        %v4784 = vunpack.c.l.b16 %v4560
        %v4785 = vunpack.c.l.b16 %v4561
        %v4786 = vunpack.c.l.b16 %v4562
        %v4787 = vunpack.c.l.b16 %v4563
        %v4788 = vpack.c.b16 %v4773, %v4772
        %v4789 = vpack.c.b16 %v4775, %v4774
        %v4790 = vpack.c.b16 %v4777, %v4776
        %v4791 = vpack.c.b16 %v4779, %v4778
        %v4792 = vpack.c.b16 %v4781, %v4780
        %v4793 = vpack.c.b16 %v4783, %v4782
        %v4794 = vpack.c.b16 %v4785, %v4784
        %v4795 = vpack.c.b16 %v4787, %v4786
        %4804 = vmatpush.bf16.msra.mxu0 %v4795
        %4805 = vmatpush.bf16.msra.mxu0 %v4794
        %4806 = vmatpush.bf16.msra.mxu0 %v4793
        %4807 = vmatpush.bf16.msra.mxu0 %v4792
        %4808 = vmatpush.bf16.msra.mxu0 %v4791
        %4809 = vmatpush.bf16.msra.mxu0 %v4790
        %4810 = vmatpush.bf16.msra.mxu0 %v4789
        %4811 = vmatpush.bf16.msra.mxu0 %v4788
        %4812 = vmatmul.bf16.gmra.mxu0 %v4584
        %v4813 = vpop.f32.mrf.mxu0
        %v4814 = vadd.f32 0.0, %v4813
        %v4815 = vpop.f32.mrf.mxu0
        %v4816 = vadd.f32 0.0, %v4815
        %4817 = vmatmul.bf16.gmra.mxu0 %v4593
        %v4818 = vpop.f32.mrf.mxu0
        %v4819 = vadd.f32 0.0, %v4818
        %v4820 = vpop.f32.mrf.mxu0
        %v4821 = vadd.f32 0.0, %v4820
        %4822 = vmatmul.bf16.gmra.mxu0 %v4602
        %v4823 = vpop.f32.mrf.mxu0
        %v4824 = vadd.f32 0.0, %v4823
        %v4825 = vpop.f32.mrf.mxu0
        %v4826 = vadd.f32 0.0, %v4825
        %4827 = vmatmul.bf16.gmra.mxu0 %v4611
        %v4828 = vpop.f32.mrf.mxu0
        %v4829 = vadd.f32 0.0, %v4828
        %v4830 = vpop.f32.mrf.mxu0
        %v4831 = vadd.f32 0.0, %v4830
        %4832 = vmatmul.bf16.gmra.mxu0 %v4620
        %v4833 = vpop.f32.mrf.mxu0
        %v4834 = vadd.f32 0.0, %v4833
        %v4835 = vpop.f32.mrf.mxu0
        %v4836 = vadd.f32 0.0, %v4835
        %4837 = vmatmul.bf16.gmra.mxu0 %v4629
        %v4838 = vpop.f32.mrf.mxu0
        %v4839 = vadd.f32 0.0, %v4838
        %v4840 = vpop.f32.mrf.mxu0
        %v4841 = vadd.f32 0.0, %v4840
        %4842 = vmatmul.bf16.gmra.mxu0 %v4638
        %v4843 = vpop.f32.mrf.mxu0
        %v4844 = vadd.f32 0.0, %v4843
        %v4845 = vpop.f32.mrf.mxu0
        %v4846 = vadd.f32 0.0, %v4845
        %4847 = vmatmul.bf16.gmra.mxu0 %v4647
        %v4848 = vpop.f32.mrf.mxu0
        %v4849 = vadd.f32 0.0, %v4848
        %v4850 = vpop.f32.mrf.mxu0
        %v4851 = vadd.f32 0.0, %v4850
        %4852 = vmatmul.bf16.gmra.mxu0 %v4656
        %v4853 = vpop.f32.mrf.mxu0
        %v4854 = vadd.f32 0.0, %v4853
        %v4855 = vpop.f32.mrf.mxu0
        %v4856 = vadd.f32 0.0, %v4855
        %4857 = vmatmul.bf16.gmra.mxu0 %v4665
        %v4858 = vpop.f32.mrf.mxu0
        %v4859 = vadd.f32 0.0, %v4858
        %v4860 = vpop.f32.mrf.mxu0
        %v4861 = vadd.f32 0.0, %v4860
        %4862 = vmatmul.bf16.gmra.mxu0 %v4674
        %v4863 = vpop.f32.mrf.mxu0
        %v4864 = vadd.f32 0.0, %v4863
        %v4865 = vpop.f32.mrf.mxu0
        %v4866 = vadd.f32 0.0, %v4865
        %4867 = vmatmul.bf16.gmra.mxu0 %v4683
        %v4868 = vpop.f32.mrf.mxu0
        %v4869 = vadd.f32 0.0, %v4868
        %v4870 = vpop.f32.mrf.mxu0
        %v4871 = vadd.f32 0.0, %v4870
        %4872 = vmatmul.bf16.gmra.mxu0 %v4692
        %v4873 = vpop.f32.mrf.mxu0
        %v4874 = vadd.f32 0.0, %v4873
        %v4875 = vpop.f32.mrf.mxu0
        %v4876 = vadd.f32 0.0, %v4875
        %4877 = vmatmul.bf16.gmra.mxu0 %v4701
        %v4878 = vpop.f32.mrf.mxu0
        %v4879 = vadd.f32 0.0, %v4878
        %v4880 = vpop.f32.mrf.mxu0
        %v4881 = vadd.f32 0.0, %v4880
        %4882 = vmatmul.bf16.gmra.mxu0 %v4710
        %v4883 = vpop.f32.mrf.mxu0
        %v4884 = vadd.f32 0.0, %v4883
        %v4885 = vpop.f32.mrf.mxu0
        %v4886 = vadd.f32 0.0, %v4885
        %4887 = vmatmul.bf16.gmra.mxu0 %v4719
        %v4888 = vpop.f32.mrf.mxu0
        %v4889 = vadd.f32 0.0, %v4888
        %v4890 = vpop.f32.mrf.mxu0
        %v4891 = vadd.f32 0.0, %v4890
        %4892 = vmatmul.bf16.gmra.mxu0 %v4728
        %v4893 = vpop.f32.mrf.mxu0
        %v4894 = vadd.f32 0.0, %v4893
        %v4895 = vpop.f32.mrf.mxu0
        %v4896 = vadd.f32 0.0, %v4895
        %4897 = vmatmul.bf16.gmra.mxu0 %v4737
        %v4898 = vpop.f32.mrf.mxu0
        %v4899 = vadd.f32 0.0, %v4898
        %v4900 = vpop.f32.mrf.mxu0
        %v4901 = vadd.f32 0.0, %v4900
        %4902 = vdwg.mxu0
        %v4903 = vadd.f32 %v4510, %v4814
        %v4904 = vadd.f32 %v4511, %v4816
        %v4905 = vadd.f32 %v4512, %v4819
        %v4906 = vadd.f32 %v4513, %v4821
        %v4907 = vadd.f32 %v4514, %v4824
        %v4908 = vadd.f32 %v4515, %v4826
        %v4909 = vadd.f32 %v4516, %v4829
        %v4910 = vadd.f32 %v4517, %v4831
        %v4911 = vadd.f32 %v4518, %v4834
        %v4912 = vadd.f32 %v4519, %v4836
        %v4913 = vadd.f32 %v4520, %v4839
        %v4914 = vadd.f32 %v4521, %v4841
        %v4915 = vadd.f32 %v4522, %v4844
        %v4916 = vadd.f32 %v4523, %v4846
        %v4917 = vadd.f32 %v4524, %v4849
        %v4918 = vadd.f32 %v4525, %v4851
        %v4919 = vadd.f32 %v4526, %v4854
        %v4920 = vadd.f32 %v4527, %v4856
        %v4921 = vadd.f32 %v4528, %v4859
        %v4922 = vadd.f32 %v4529, %v4861
        %v4923 = vadd.f32 %v4530, %v4864
        %v4924 = vadd.f32 %v4531, %v4866
        %v4925 = vadd.f32 %v4532, %v4869
        %v4926 = vadd.f32 %v4533, %v4871
        %v4927 = vadd.f32 %v4534, %v4874
        %v4928 = vadd.f32 %v4535, %v4876
        %v4929 = vadd.f32 %v4536, %v4879
        %v4930 = vadd.f32 %v4537, %v4881
        %v4931 = vadd.f32 %v4538, %v4884
        %v4932 = vadd.f32 %v4539, %v4886
        %v4933 = vadd.f32 %v4540, %v4889
        %v4934 = vadd.f32 %v4541, %v4891
        %v4935 = vadd.f32 %v4542, %v4894
        %v4936 = vadd.f32 %v4543, %v4896
        %v4937 = vadd.f32 %v4544, %v4899
        %v4938 = vadd.f32 %v4545, %v4901
        %v4939 = vld [vmem:[#allocation2 + $0x10] sm:$0x8]
        %s4940 = scalar_lea.vmem [#allocation7], 512
        %v4941 = vld [vmem:[%s4940] sm:$0xf]
        %v4942 = vld [vmem:[%s4940 + $0x4] sm:$0xf]
        %v4943 = vld [vmem:[%s4940 + $0x8] sm:$0xf]
        %v4944 = vld [vmem:[%s4940 + $0xc] sm:$0xf]
        %v4945 = vld [vmem:[%s4940 + $0x10] sm:$0xf]
        %v4946 = vld [vmem:[%s4940 + $0x14] sm:$0xf]
        %v4947 = vld [vmem:[%s4940 + $0x18] sm:$0xf]
        %v4948 = vld [vmem:[%s4940 + $0x1c] sm:$0xf]
        %v4949 = vld [vmem:[%s4940 + $0x20] sm:$0xf]
        %v4950 = vld [vmem:[%s4940 + $0x24] sm:$0xf]
        %v4951 = vld [vmem:[%s4940 + $0x28] sm:$0xf]
        %v4952 = vld [vmem:[%s4940 + $0x2c] sm:$0xf]
        %v4953 = vld [vmem:[%s4940 + $0x30] sm:$0xf]
        %v4954 = vld [vmem:[%s4940 + $0x34] sm:$0xf]
        %v4955 = vld [vmem:[%s4940 + $0x38] sm:$0xf]
        %v4956 = vld [vmem:[%s4940 + $0x3c] sm:$0xf]
        %v4958 = vunpack.c.l.b16 %v4939
        %v4959 = vpack.c.b16 %v4253, %v4958
        %vm4960 = vcmask 1044480
        %v4961 = vrot.slane %v4959, 3
        %v4962 = vrot.slane %v4290, 3
        %v4963 = vsel %vm4960, %v4961, %v4962
        %v4964 = vrot.slane %v4291, 3
        %v4965 = vsel %vm4960, %v4962, %v4964
        %v4966 = vrot.slane %v4292, 3
        %v4967 = vsel %vm4960, %v4964, %v4966
        %v4968 = vrot.slane %v4293, 3
        %v4969 = vsel %vm4960, %v4966, %v4968
        %v4970 = vrot.slane %v4294, 3
        %v4971 = vsel %vm4960, %v4968, %v4970
        %v4972 = vrot.slane %v4295, 3
        %v4973 = vsel %vm4960, %v4970, %v4972
        %v4974 = vrot.slane %v4296, 3
        %v4975 = vsel %vm4960, %v4972, %v4974
        %v4976 = vrot.slane %v4297, 3
        %v4977 = vsel %vm4960, %v4974, %v4976
        %v4978 = vrot.slane %v4298, 3
        %v4979 = vsel %vm4960, %v4976, %v4978
        %v4980 = vrot.slane %v4299, 3
        %v4981 = vsel %vm4960, %v4978, %v4980
        %v4982 = vrot.slane %v4300, 3
        %v4983 = vsel %vm4960, %v4980, %v4982
        %v4984 = vrot.slane %v4301, 3
        %v4985 = vsel %vm4960, %v4982, %v4984
        %v4986 = vrot.slane %v4302, 3
        %v4987 = vsel %vm4960, %v4984, %v4986
        %v4988 = vrot.slane %v4303, 3
        %v4989 = vsel %vm4960, %v4986, %v4988
        %v4990 = vrot.slane %v4304, 3
        %v4991 = vsel %vm4960, %v4988, %v4990
        %v4992 = vrot.slane %v4305, 3
        %v4993 = vsel %vm4960, %v4990, %v4992
        %v4994 = vrot.slane %v4306, 3
        %v4995 = vsel %vm4960, %v4992, %v4994
        %v4996 = vrot.slane %v4566, 3
        %v4997 = vsel %vm4960, %v4994, %v4996
        %v5032 = vunpack.c.l.b16 %v4941
        %v5033 = vunpack.c.l.b16 %v4942
        %v5034 = vunpack.c.l.b16 %v4943
        %v5035 = vunpack.c.l.b16 %v4944
        %v5036 = vunpack.c.l.b16 %v4945
        %v5037 = vunpack.c.l.b16 %v4946
        %v5038 = vunpack.c.l.b16 %v4947
        %v5039 = vunpack.c.l.b16 %v4948
        %v5040 = vunpack.c.l.b16 %v4949
        %v5041 = vunpack.c.l.b16 %v4950
        %v5042 = vunpack.c.l.b16 %v4951
        %v5043 = vunpack.c.l.b16 %v4952
        %v5044 = vunpack.c.l.b16 %v4953
        %v5045 = vunpack.c.l.b16 %v4954
        %v5046 = vunpack.c.l.b16 %v4955
        %v5047 = vunpack.c.l.b16 %v4956
        %v5048 = vpack.c.b16 %v5033, %v5032
        %v5049 = vpack.c.b16 %v5035, %v5034
        %v5050 = vpack.c.b16 %v5037, %v5036
        %v5051 = vpack.c.b16 %v5039, %v5038
        %v5052 = vpack.c.b16 %v5041, %v5040
        %v5053 = vpack.c.b16 %v5043, %v5042
        %v5054 = vpack.c.b16 %v5045, %v5044
        %v5055 = vpack.c.b16 %v5047, %v5046
        %5064 = vmatpush.bf16.msra.mxu0 %v5055
        %5065 = vmatpush.bf16.msra.mxu0 %v5054
        %5066 = vmatpush.bf16.msra.mxu0 %v5053
        %5067 = vmatpush.bf16.msra.mxu0 %v5052
        %5068 = vmatpush.bf16.msra.mxu0 %v5051
        %5069 = vmatpush.bf16.msra.mxu0 %v5050
        %5070 = vmatpush.bf16.msra.mxu0 %v5049
        %5071 = vmatpush.bf16.msra.mxu0 %v5048
        %5072 = vmatmul.bf16.gmra.mxu0 %v4963
        %v5073 = vpop.f32.mrf.mxu0
        %v5074 = vadd.f32 0.0, %v5073
        %v5075 = vpop.f32.mrf.mxu0
        %v5076 = vadd.f32 0.0, %v5075
        %5077 = vmatmul.bf16.gmra.mxu0 %v4965
        %v5078 = vpop.f32.mrf.mxu0
        %v5079 = vadd.f32 0.0, %v5078
        %v5080 = vpop.f32.mrf.mxu0
        %v5081 = vadd.f32 0.0, %v5080
        %5082 = vmatmul.bf16.gmra.mxu0 %v4967
        %v5083 = vpop.f32.mrf.mxu0
        %v5084 = vadd.f32 0.0, %v5083
        %v5085 = vpop.f32.mrf.mxu0
        %v5086 = vadd.f32 0.0, %v5085
        %5087 = vmatmul.bf16.gmra.mxu0 %v4969
        %v5088 = vpop.f32.mrf.mxu0
        %v5089 = vadd.f32 0.0, %v5088
        %v5090 = vpop.f32.mrf.mxu0
        %v5091 = vadd.f32 0.0, %v5090
        %5092 = vmatmul.bf16.gmra.mxu0 %v4971
        %v5093 = vpop.f32.mrf.mxu0
        %v5094 = vadd.f32 0.0, %v5093
        %v5095 = vpop.f32.mrf.mxu0
        %v5096 = vadd.f32 0.0, %v5095
        %5097 = vmatmul.bf16.gmra.mxu0 %v4973
        %v5098 = vpop.f32.mrf.mxu0
        %v5099 = vadd.f32 0.0, %v5098
        %v5100 = vpop.f32.mrf.mxu0
        %v5101 = vadd.f32 0.0, %v5100
        %5102 = vmatmul.bf16.gmra.mxu0 %v4975
        %v5103 = vpop.f32.mrf.mxu0
        %v5104 = vadd.f32 0.0, %v5103
        %v5105 = vpop.f32.mrf.mxu0
        %v5106 = vadd.f32 0.0, %v5105
        %5107 = vmatmul.bf16.gmra.mxu0 %v4977
        %v5108 = vpop.f32.mrf.mxu0
        %v5109 = vadd.f32 0.0, %v5108
        %v5110 = vpop.f32.mrf.mxu0
        %v5111 = vadd.f32 0.0, %v5110
        %5112 = vmatmul.bf16.gmra.mxu0 %v4979
        %v5113 = vpop.f32.mrf.mxu0
        %v5114 = vadd.f32 0.0, %v5113
        %v5115 = vpop.f32.mrf.mxu0
        %v5116 = vadd.f32 0.0, %v5115
        %5117 = vmatmul.bf16.gmra.mxu0 %v4981
        %v5118 = vpop.f32.mrf.mxu0
        %v5119 = vadd.f32 0.0, %v5118
        %v5120 = vpop.f32.mrf.mxu0
        %v5121 = vadd.f32 0.0, %v5120
        %5122 = vmatmul.bf16.gmra.mxu0 %v4983
        %v5123 = vpop.f32.mrf.mxu0
        %v5124 = vadd.f32 0.0, %v5123
        %v5125 = vpop.f32.mrf.mxu0
        %v5126 = vadd.f32 0.0, %v5125
        %5127 = vmatmul.bf16.gmra.mxu0 %v4985
        %v5128 = vpop.f32.mrf.mxu0
        %v5129 = vadd.f32 0.0, %v5128
        %v5130 = vpop.f32.mrf.mxu0
        %v5131 = vadd.f32 0.0, %v5130
        %5132 = vmatmul.bf16.gmra.mxu0 %v4987
        %v5133 = vpop.f32.mrf.mxu0
        %v5134 = vadd.f32 0.0, %v5133
        %v5135 = vpop.f32.mrf.mxu0
        %v5136 = vadd.f32 0.0, %v5135
        %5137 = vmatmul.bf16.gmra.mxu0 %v4989
        %v5138 = vpop.f32.mrf.mxu0
        %v5139 = vadd.f32 0.0, %v5138
        %v5140 = vpop.f32.mrf.mxu0
        %v5141 = vadd.f32 0.0, %v5140
        %5142 = vmatmul.bf16.gmra.mxu0 %v4991
        %v5143 = vpop.f32.mrf.mxu0
        %v5144 = vadd.f32 0.0, %v5143
        %v5145 = vpop.f32.mrf.mxu0
        %v5146 = vadd.f32 0.0, %v5145
        %5147 = vmatmul.bf16.gmra.mxu0 %v4993
        %v5148 = vpop.f32.mrf.mxu0
        %v5149 = vadd.f32 0.0, %v5148
        %v5150 = vpop.f32.mrf.mxu0
        %v5151 = vadd.f32 0.0, %v5150
        %5152 = vmatmul.bf16.gmra.mxu0 %v4995
        %v5153 = vpop.f32.mrf.mxu0
        %v5154 = vadd.f32 0.0, %v5153
        %v5155 = vpop.f32.mrf.mxu0
        %v5156 = vadd.f32 0.0, %v5155
        %5157 = vmatmul.bf16.gmra.mxu0 %v4997
        %v5158 = vpop.f32.mrf.mxu0
        %v5159 = vadd.f32 0.0, %v5158
        %v5160 = vpop.f32.mrf.mxu0
        %v5161 = vadd.f32 0.0, %v5160
        %5162 = vdwg.mxu0
        %v5163 = vadd.f32 %v4903, %v5074
        %v5164 = vadd.f32 %v4904, %v5076
        %v5165 = vadd.f32 %v4905, %v5079
        %v5166 = vadd.f32 %v4906, %v5081
        %v5167 = vadd.f32 %v4907, %v5084
        %v5168 = vadd.f32 %v4908, %v5086
        %v5169 = vadd.f32 %v4909, %v5089
        %v5170 = vadd.f32 %v4910, %v5091
        %v5171 = vadd.f32 %v4911, %v5094
        %v5172 = vadd.f32 %v4912, %v5096
        %v5173 = vadd.f32 %v4913, %v5099
        %v5174 = vadd.f32 %v4914, %v5101
        %v5175 = vadd.f32 %v4915, %v5104
        %v5176 = vadd.f32 %v4916, %v5106
        %v5177 = vadd.f32 %v4917, %v5109
        %v5178 = vadd.f32 %v4918, %v5111
        %v5179 = vadd.f32 %v4919, %v5114
        %v5180 = vadd.f32 %v4920, %v5116
        %v5181 = vadd.f32 %v4921, %v5119
        %v5182 = vadd.f32 %v4922, %v5121
        %v5183 = vadd.f32 %v4923, %v5124
        %v5184 = vadd.f32 %v4924, %v5126
        %v5185 = vadd.f32 %v4925, %v5129
        %v5186 = vadd.f32 %v4926, %v5131
        %v5187 = vadd.f32 %v4927, %v5134
        %v5188 = vadd.f32 %v4928, %v5136
        %v5189 = vadd.f32 %v4929, %v5139
        %v5190 = vadd.f32 %v4930, %v5141
        %v5191 = vadd.f32 %v4931, %v5144
        %v5192 = vadd.f32 %v4932, %v5146
        %v5193 = vadd.f32 %v4933, %v5149
        %v5194 = vadd.f32 %v4934, %v5151
        %v5195 = vadd.f32 %v4935, %v5154
        %v5196 = vadd.f32 %v4936, %v5156
        %v5197 = vadd.f32 %v4937, %v5159
        %v5198 = vadd.f32 %v4938, %v5161
        %v5199 = vld [vmem:[%s572] sm:$0x1]
        %v5201 = vperm.slane %v5199, 0
        %v5203 = vmul.f32 %v5163, %v5201
        %v5204 = vmul.f32 %v5164, %v5201
        %v5205 = vmul.f32 %v5165, %v5201
        %v5206 = vmul.f32 %v5166, %v5201
        %v5207 = vmul.f32 %v5167, %v5201
        %v5208 = vmul.f32 %v5168, %v5201
        %v5209 = vmul.f32 %v5169, %v5201
        %v5210 = vmul.f32 %v5170, %v5201
        %v5211 = vmul.f32 %v5171, %v5201
        %v5212 = vmul.f32 %v5172, %v5201
        %v5213 = vmul.f32 %v5173, %v5201
        %v5214 = vmul.f32 %v5174, %v5201
        %v5215 = vmul.f32 %v5175, %v5201
        %v5216 = vmul.f32 %v5176, %v5201
        %v5217 = vmul.f32 %v5177, %v5201
        %v5218 = vmul.f32 %v5178, %v5201
        %v5219 = vmul.f32 %v5179, %v5201
        %v5220 = vmul.f32 %v5180, %v5201
        %v5221 = vmul.f32 %v5181, %v5201
        %v5222 = vmul.f32 %v5182, %v5201
        %v5223 = vmul.f32 %v5183, %v5201
        %v5224 = vmul.f32 %v5184, %v5201
        %v5225 = vmul.f32 %v5185, %v5201
        %v5226 = vmul.f32 %v5186, %v5201
        %v5227 = vmul.f32 %v5187, %v5201
        %v5228 = vmul.f32 %v5188, %v5201
        %v5229 = vmul.f32 %v5189, %v5201
        %v5230 = vmul.f32 %v5190, %v5201
        %v5231 = vmul.f32 %v5191, %v5201
        %v5232 = vmul.f32 %v5192, %v5201
        %v5233 = vmul.f32 %v5193, %v5201
        %v5234 = vmul.f32 %v5194, %v5201
        %v5235 = vmul.f32 %v5195, %v5201
        %v5236 = vmul.f32 %v5196, %v5201
        %v5237 = vmul.f32 %v5197, %v5201
        %v5238 = vmul.f32 %v5198, %v5201
        %v5239 = vld [vmem:[%s575] sm:$0x1]
        %v5241 = vperm.slane %v5239, 0
        %v5243 = vadd.f32 %v5203, %v5241
        %v5244 = vadd.f32 %v5204, %v5241
        %v5245 = vadd.f32 %v5205, %v5241
        %v5246 = vadd.f32 %v5206, %v5241
        %v5247 = vadd.f32 %v5207, %v5241
        %v5248 = vadd.f32 %v5208, %v5241
        %v5249 = vadd.f32 %v5209, %v5241
        %v5250 = vadd.f32 %v5210, %v5241
        %v5251 = vadd.f32 %v5211, %v5241
        %v5252 = vadd.f32 %v5212, %v5241
        %v5253 = vadd.f32 %v5213, %v5241
        %v5254 = vadd.f32 %v5214, %v5241
        %v5255 = vadd.f32 %v5215, %v5241
        %v5256 = vadd.f32 %v5216, %v5241
        %v5257 = vadd.f32 %v5217, %v5241
        %v5258 = vadd.f32 %v5218, %v5241
        %v5259 = vadd.f32 %v5219, %v5241
        %v5260 = vadd.f32 %v5220, %v5241
        %v5261 = vadd.f32 %v5221, %v5241
        %v5262 = vadd.f32 %v5222, %v5241
        %v5263 = vadd.f32 %v5223, %v5241
        %v5264 = vadd.f32 %v5224, %v5241
        %v5265 = vadd.f32 %v5225, %v5241
        %v5266 = vadd.f32 %v5226, %v5241
        %v5267 = vadd.f32 %v5227, %v5241
        %v5268 = vadd.f32 %v5228, %v5241
        %v5269 = vadd.f32 %v5229, %v5241
        %v5270 = vadd.f32 %v5230, %v5241
        %v5271 = vadd.f32 %v5231, %v5241
        %v5272 = vadd.f32 %v5232, %v5241
        %v5273 = vadd.f32 %v5233, %v5241
        %v5274 = vadd.f32 %v5234, %v5241
        %v5275 = vadd.f32 %v5235, %v5241
        %v5276 = vadd.f32 %v5236, %v5241
        %v5277 = vadd.f32 %v5237, %v5241
        %v5278 = vadd.f32 %v5238, %v5241
        %5280 = vset.pattern.permute.xlu0 0
        %5281 = vperm.xlu0 %5280, %v577
        %v5282 = vpop.permute.xlu0 %5281
        %5285 = vset.pattern.permute.xlu0 0
        %5286 = vperm.xlu0 %5285, %v578
        %v5287 = vpop.permute.xlu0 %5286
        %5290 = vset.pattern.permute.xlu0 0
        %5291 = vperm.xlu0 %5290, %v579
        %v5292 = vpop.permute.xlu0 %5291
        %5295 = vset.pattern.permute.xlu0 0
        %5296 = vperm.xlu0 %5295, %v580
        %v5297 = vpop.permute.xlu0 %5296
        %5300 = vset.pattern.permute.xlu0 0
        %5301 = vperm.xlu0 %5300, %v581
        %v5302 = vpop.permute.xlu0 %5301
        %5305 = vset.pattern.permute.xlu0 0
        %5306 = vperm.xlu0 %5305, %v582
        %v5307 = vpop.permute.xlu0 %5306
        %5310 = vset.pattern.permute.xlu0 0
        %5311 = vperm.xlu0 %5310, %v583
        %v5312 = vpop.permute.xlu0 %5311
        %5315 = vset.pattern.permute.xlu0 0
        %5316 = vperm.xlu0 %5315, %v584
        %v5317 = vpop.permute.xlu0 %5316
        %5320 = vset.pattern.permute.xlu0 0
        %5321 = vperm.xlu0 %5320, %v585
        %v5322 = vpop.permute.xlu0 %5321
        %5325 = vset.pattern.permute.xlu0 0
        %5326 = vperm.xlu0 %5325, %v586
        %v5327 = vpop.permute.xlu0 %5326
        %5330 = vset.pattern.permute.xlu0 0
        %5331 = vperm.xlu0 %5330, %v587
        %v5332 = vpop.permute.xlu0 %5331
        %5335 = vset.pattern.permute.xlu0 0
        %5336 = vperm.xlu0 %5335, %v588
        %v5337 = vpop.permute.xlu0 %5336
        %5340 = vset.pattern.permute.xlu0 0
        %5341 = vperm.xlu0 %5340, %v589
        %v5342 = vpop.permute.xlu0 %5341
        %5345 = vset.pattern.permute.xlu0 0
        %5346 = vperm.xlu0 %5345, %v590
        %v5347 = vpop.permute.xlu0 %5346
        %5350 = vset.pattern.permute.xlu0 0
        %5351 = vperm.xlu0 %5350, %v591
        %v5352 = vpop.permute.xlu0 %5351
        %5355 = vset.pattern.permute.xlu0 0
        %5356 = vperm.xlu0 %5355, %v592
        %v5357 = vpop.permute.xlu0 %5356
        %5360 = vset.pattern.permute.xlu0 0
        %5361 = vperm.xlu0 %5360, %v593
        %v5362 = vpop.permute.xlu0 %5361
        %5365 = vset.pattern.permute.xlu0 0
        %5366 = vperm.xlu0 %5365, %v594
        %v5367 = vpop.permute.xlu0 %5366
        %5370 = vset.pattern.permute.xlu0 0
        %5371 = vperm.xlu0 %5370, %v595
        %v5372 = vpop.permute.xlu0 %5371
        %5375 = vset.pattern.permute.xlu0 0
        %5376 = vperm.xlu0 %5375, %v596
        %v5377 = vpop.permute.xlu0 %5376
        %5380 = vset.pattern.permute.xlu0 0
        %5381 = vperm.xlu0 %5380, %v597
        %v5382 = vpop.permute.xlu0 %5381
        %5385 = vset.pattern.permute.xlu0 0
        %5386 = vperm.xlu0 %5385, %v598
        %v5387 = vpop.permute.xlu0 %5386
        %5390 = vset.pattern.permute.xlu0 0
        %5391 = vperm.xlu0 %5390, %v599
        %v5392 = vpop.permute.xlu0 %5391
        %5395 = vset.pattern.permute.xlu0 0
        %5396 = vperm.xlu0 %5395, %v600
        %v5397 = vpop.permute.xlu0 %5396
        %5400 = vset.pattern.permute.xlu0 0
        %5401 = vperm.xlu0 %5400, %v601
        %v5402 = vpop.permute.xlu0 %5401
        %5405 = vset.pattern.permute.xlu0 0
        %5406 = vperm.xlu0 %5405, %v602
        %v5407 = vpop.permute.xlu0 %5406
        %5410 = vset.pattern.permute.xlu0 0
        %5411 = vperm.xlu0 %5410, %v603
        %v5412 = vpop.permute.xlu0 %5411
        %5415 = vset.pattern.permute.xlu0 0
        %5416 = vperm.xlu0 %5415, %v604
        %v5417 = vpop.permute.xlu0 %5416
        %5420 = vset.pattern.permute.xlu0 0
        %5421 = vperm.xlu0 %5420, %v605
        %v5422 = vpop.permute.xlu0 %5421
        %5425 = vset.pattern.permute.xlu0 0
        %5426 = vperm.xlu0 %5425, %v606
        %v5427 = vpop.permute.xlu0 %5426
        %5430 = vset.pattern.permute.xlu0 0
        %5431 = vperm.xlu0 %5430, %v607
        %v5432 = vpop.permute.xlu0 %5431
        %5435 = vset.pattern.permute.xlu0 0
        %5436 = vperm.xlu0 %5435, %v608
        %v5437 = vpop.permute.xlu0 %5436
        %5440 = vset.pattern.permute.xlu0 0
        %5441 = vperm.xlu0 %5440, %v609
        %v5442 = vpop.permute.xlu0 %5441
        %5445 = vset.pattern.permute.xlu0 0
        %5446 = vperm.xlu0 %5445, %v610
        %v5447 = vpop.permute.xlu0 %5446
        %5450 = vset.pattern.permute.xlu0 0
        %5451 = vperm.xlu0 %5450, %v611
        %v5452 = vpop.permute.xlu0 %5451
        %5455 = vset.pattern.permute.xlu0 0
        %5456 = vperm.xlu0 %5455, %v612
        %v5457 = vpop.permute.xlu0 %5456
        %v5459 = vmul.f32 %v5243, %v5282
        %v5460 = vmul.f32 %v5244, %v5287
        %v5461 = vmul.f32 %v5245, %v5292
        %v5462 = vmul.f32 %v5246, %v5297
        %v5463 = vmul.f32 %v5247, %v5302
        %v5464 = vmul.f32 %v5248, %v5307
        %v5465 = vmul.f32 %v5249, %v5312
        %v5466 = vmul.f32 %v5250, %v5317
        %v5467 = vmul.f32 %v5251, %v5322
        %v5468 = vmul.f32 %v5252, %v5327
        %v5469 = vmul.f32 %v5253, %v5332
        %v5470 = vmul.f32 %v5254, %v5337
        %v5471 = vmul.f32 %v5255, %v5342
        %v5472 = vmul.f32 %v5256, %v5347
        %v5473 = vmul.f32 %v5257, %v5352
        %v5474 = vmul.f32 %v5258, %v5357
        %v5475 = vmul.f32 %v5259, %v5362
        %v5476 = vmul.f32 %v5260, %v5367
        %v5477 = vmul.f32 %v5261, %v5372
        %v5478 = vmul.f32 %v5262, %v5377
        %v5479 = vmul.f32 %v5263, %v5382
        %v5480 = vmul.f32 %v5264, %v5387
        %v5481 = vmul.f32 %v5265, %v5392
        %v5482 = vmul.f32 %v5266, %v5397
        %v5483 = vmul.f32 %v5267, %v5402
        %v5484 = vmul.f32 %v5268, %v5407
        %v5485 = vmul.f32 %v5269, %v5412
        %v5486 = vmul.f32 %v5270, %v5417
        %v5487 = vmul.f32 %v5271, %v5422
        %v5488 = vmul.f32 %v5272, %v5427
        %v5489 = vmul.f32 %v5273, %v5432
        %v5490 = vmul.f32 %v5274, %v5437
        %v5491 = vmul.f32 %v5275, %v5442
        %v5492 = vmul.f32 %v5276, %v5447
        %v5493 = vmul.f32 %v5277, %v5452
        %v5494 = vmul.f32 %v5278, %v5457
        %v5495 = vld [vmem:[%s8] sm:$0x1]
        %v5496 = vld [vmem:[%s9] sm:$0x1]
        %v5497 = vld [vmem:[%s10] sm:$0xff]
        %v5498 = vld [vmem:[%s10 + $0x8] sm:$0xff]
        %v5499 = vld [vmem:[%s10 + $0x10] sm:$0xff]
        %v5500 = vld [vmem:[%s10 + $0x18] sm:$0xff]
        %v5501 = vld [vmem:[%s10 + $0x20] sm:$0xff]
        %v5502 = vld [vmem:[%s10 + $0x28] sm:$0xff]
        %v5503 = vld [vmem:[%s10 + $0x30] sm:$0xff]
        %v5504 = vld [vmem:[%s10 + $0x38] sm:$0xff]
        %v5505 = vld [vmem:[%s10 + $0x40] sm:$0xff]
        %v5506 = vld [vmem:[%s10 + $0x48] sm:$0xff]
        %v5507 = vld [vmem:[%s10 + $0x50] sm:$0xff]
        %v5508 = vld [vmem:[%s10 + $0x58] sm:$0xff]
        %v5509 = vld [vmem:[%s10 + $0x60] sm:$0xff]
        %v5510 = vld [vmem:[%s10 + $0x68] sm:$0xff]
        %v5511 = vld [vmem:[%s10 + $0x70] sm:$0xff]
        %v5512 = vld [vmem:[%s10 + $0x78] sm:$0xff]
        %v5513 = vld [vmem:[%s11] sm:$0xff]
        %v5514 = vld [vmem:[%s11 + $0x8] sm:$0xff]
        %v5515 = vld [vmem:[%s11 + $0x10] sm:$0xff]
        %v5516 = vld [vmem:[%s11 + $0x18] sm:$0xff]
        %v5517 = vadd.f32 %v5459, %v5460
        %v5518 = vadd.f32 %v5517, %v5461
        %v5519 = vadd.f32 %v5518, %v5462
        %v5520 = vadd.f32 %v5519, %v5463
        %v5521 = vadd.f32 %v5520, %v5464
        %v5522 = vadd.f32 %v5521, %v5465
        %v5523 = vadd.f32 %v5522, %v5466
        %v5524 = vadd.f32 %v5523, %v5467
        %v5525 = vadd.f32 %v5524, %v5468
        %v5526 = vadd.f32 %v5525, %v5469
        %v5527 = vadd.f32 %v5526, %v5470
        %v5528 = vadd.f32 %v5527, %v5471
        %v5529 = vadd.f32 %v5528, %v5472
        %v5530 = vadd.f32 %v5529, %v5473
        %v5531 = vadd.f32 %v5530, %v5474
        %v5532 = vadd.f32 %v5531, %v5475
        %v5533 = vadd.f32 %v5532, %v5476
        %v5534 = vadd.f32 %v5533, %v5477
        %v5535 = vadd.f32 %v5534, %v5478
        %v5536 = vadd.f32 %v5535, %v5479
        %v5537 = vadd.f32 %v5536, %v5480
        %v5538 = vadd.f32 %v5537, %v5481
        %v5539 = vadd.f32 %v5538, %v5482
        %v5540 = vadd.f32 %v5539, %v5483
        %v5541 = vadd.f32 %v5540, %v5484
        %v5542 = vadd.f32 %v5541, %v5485
        %v5543 = vadd.f32 %v5542, %v5486
        %v5544 = vadd.f32 %v5543, %v5487
        %v5545 = vadd.f32 %v5544, %v5488
        %v5546 = vadd.f32 %v5545, %v5489
        %v5547 = vadd.f32 %v5546, %v5490
        %v5548 = vadd.f32 %v5547, %v5491
        %v5549 = vadd.f32 %v5548, %v5492
        %v5550 = vadd.f32 %v5549, %v5493
        %v5551 = vadd.f32 %v5550, %v5494
        %v5552 = vrot.slane %v5551, 4
        %v5553 = vadd.f32 %v5551, %v5552
        %v5554 = vrot.slane %v5553, 2
        %v5555 = vadd.f32 %v5553, %v5554
        %v5556 = vrot.slane %v5555, 1
        %v5557 = vadd.f32 %v5555, %v5556
        %5558 = vmatpush.msra.mxu0 %v5512
        %5559 = vmatpush.msra.mxu0 %v5511
        %5560 = vmatpush.msra.mxu0 %v5510
        %5561 = vmatpush.msra.mxu0 %v5509
        %5562 = vmatpush.msra.mxu0 %v5508
        %5563 = vmatpush.msra.mxu0 %v5507
        %5564 = vmatpush.msra.mxu0 %v5506
        %5565 = vmatpush.msra.mxu0 %v5505
        %5566 = vmatpush.msra.mxu0 %v5504
        %5567 = vmatpush.msra.mxu0 %v5503
        %5568 = vmatpush.msra.mxu0 %v5502
        %5569 = vmatpush.msra.mxu0 %v5501
        %5570 = vmatpush.msra.mxu0 %v5500
        %5571 = vmatpush.msra.mxu0 %v5499
        %5572 = vmatpush.msra.mxu0 %v5498
        %5573 = vmatpush.msra.mxu0 %v5497
        %5574 = vmatmul.f32.gmra.mxu0 %v5557
        %v5575 = vpop.f32.mrf.mxu0
        %v5576 = vadd.f32 0.0, %v5575
        %5577 = vdwg.mxu0
        %v5578 = vmul.f32 %v5576, 0.0009765625
        %v5580 = vsel %vm751, %v5578, 0
        %5582 = vmatpush.msra.mxu0 0.0
        %5583 = vmatpush.msra.mxu0 0.0
        %5584 = vmatpush.msra.mxu0 0.0
        %5585 = vmatpush.msra.mxu0 0.0
        %5586 = vmatpush.msra.mxu0 0.0
        %5587 = vmatpush.msra.mxu0 0.0
        %5588 = vmatpush.msra.mxu0 0.0
        %5589 = vmatpush.msra.mxu0 0.0
        %5590 = vmatpush.msra.mxu0 0.0
        %5591 = vmatpush.msra.mxu0 0.0
        %5592 = vmatpush.msra.mxu0 0.0
        %5593 = vmatpush.msra.mxu0 0.0
        %5594 = vmatpush.msra.mxu0 %v5516
        %5595 = vmatpush.msra.mxu0 %v5515
        %5596 = vmatpush.msra.mxu0 %v5514
        %5597 = vmatpush.msra.mxu0 %v5513
        %5598 = vmatmul.f32.gmra.mxu0 %v5580
        %v5599 = vpop.f32.mrf.mxu0
        %v5600 = vadd.f32 0.0, %v5599
        %5601 = vdwg.mxu0
        %v5602 = vperm.slane %v5600, 0
        %v5603 = vsub.f32 %v5459, %v5602
        %v5604 = vsub.f32 %v5460, %v5602
        %v5605 = vsub.f32 %v5461, %v5602
        %v5606 = vsub.f32 %v5462, %v5602
        %v5607 = vsub.f32 %v5463, %v5602
        %v5608 = vsub.f32 %v5464, %v5602
        %v5609 = vsub.f32 %v5465, %v5602
        %v5610 = vsub.f32 %v5466, %v5602
        %v5611 = vsub.f32 %v5467, %v5602
        %v5612 = vsub.f32 %v5468, %v5602
        %v5613 = vsub.f32 %v5469, %v5602
        %v5614 = vsub.f32 %v5470, %v5602
        %v5615 = vsub.f32 %v5471, %v5602
        %v5616 = vsub.f32 %v5472, %v5602
        %v5617 = vsub.f32 %v5473, %v5602
        %v5618 = vsub.f32 %v5474, %v5602
        %v5619 = vsub.f32 %v5475, %v5602
        %v5620 = vsub.f32 %v5476, %v5602
        %v5621 = vsub.f32 %v5477, %v5602
        %v5622 = vsub.f32 %v5478, %v5602
        %v5623 = vsub.f32 %v5479, %v5602
        %v5624 = vsub.f32 %v5480, %v5602
        %v5625 = vsub.f32 %v5481, %v5602
        %v5626 = vsub.f32 %v5482, %v5602
        %v5627 = vsub.f32 %v5483, %v5602
        %v5628 = vsub.f32 %v5484, %v5602
        %v5629 = vsub.f32 %v5485, %v5602
        %v5630 = vsub.f32 %v5486, %v5602
        %v5631 = vsub.f32 %v5487, %v5602
        %v5632 = vsub.f32 %v5488, %v5602
        %v5633 = vsub.f32 %v5489, %v5602
        %v5634 = vsub.f32 %v5490, %v5602
        %v5635 = vsub.f32 %v5491, %v5602
        %v5636 = vsub.f32 %v5492, %v5602
        %v5637 = vsub.f32 %v5493, %v5602
        %v5638 = vsub.f32 %v5494, %v5602
        %v5639 = vmul.f32 %v5603, %v5282
        %v5640 = vmul.f32 %v5604, %v5287
        %v5641 = vmul.f32 %v5605, %v5292
        %v5642 = vmul.f32 %v5606, %v5297
        %v5643 = vmul.f32 %v5607, %v5302
        %v5644 = vmul.f32 %v5608, %v5307
        %v5645 = vmul.f32 %v5609, %v5312
        %v5646 = vmul.f32 %v5610, %v5317
        %v5647 = vmul.f32 %v5611, %v5322
        %v5648 = vmul.f32 %v5612, %v5327
        %v5649 = vmul.f32 %v5613, %v5332
        %v5650 = vmul.f32 %v5614, %v5337
        %v5651 = vmul.f32 %v5615, %v5342
        %v5652 = vmul.f32 %v5616, %v5347
        %v5653 = vmul.f32 %v5617, %v5352
        %v5654 = vmul.f32 %v5618, %v5357
        %v5655 = vmul.f32 %v5619, %v5362
        %v5656 = vmul.f32 %v5620, %v5367
        %v5657 = vmul.f32 %v5621, %v5372
        %v5658 = vmul.f32 %v5622, %v5377
        %v5659 = vmul.f32 %v5623, %v5382
        %v5660 = vmul.f32 %v5624, %v5387
        %v5661 = vmul.f32 %v5625, %v5392
        %v5662 = vmul.f32 %v5626, %v5397
        %v5663 = vmul.f32 %v5627, %v5402
        %v5664 = vmul.f32 %v5628, %v5407
        %v5665 = vmul.f32 %v5629, %v5412
        %v5666 = vmul.f32 %v5630, %v5417
        %v5667 = vmul.f32 %v5631, %v5422
        %v5668 = vmul.f32 %v5632, %v5427
        %v5669 = vmul.f32 %v5633, %v5432
        %v5670 = vmul.f32 %v5634, %v5437
        %v5671 = vmul.f32 %v5635, %v5442
        %v5672 = vmul.f32 %v5636, %v5447
        %v5673 = vmul.f32 %v5637, %v5452
        %v5674 = vmul.f32 %v5638, %v5457
        %v5675 = vmul.f32 %v5639, %v5639
        %v5676 = vmul.f32 %v5640, %v5640
        %v5677 = vmul.f32 %v5641, %v5641
        %v5678 = vmul.f32 %v5642, %v5642
        %v5679 = vmul.f32 %v5643, %v5643
        %v5680 = vmul.f32 %v5644, %v5644
        %v5681 = vmul.f32 %v5645, %v5645
        %v5682 = vmul.f32 %v5646, %v5646
        %v5683 = vmul.f32 %v5647, %v5647
        %v5684 = vmul.f32 %v5648, %v5648
        %v5685 = vmul.f32 %v5649, %v5649
        %v5686 = vmul.f32 %v5650, %v5650
        %v5687 = vmul.f32 %v5651, %v5651
        %v5688 = vmul.f32 %v5652, %v5652
        %v5689 = vmul.f32 %v5653, %v5653
        %v5690 = vmul.f32 %v5654, %v5654
        %v5691 = vmul.f32 %v5655, %v5655
        %v5692 = vmul.f32 %v5656, %v5656
        %v5693 = vmul.f32 %v5657, %v5657
        %v5694 = vmul.f32 %v5658, %v5658
        %v5695 = vmul.f32 %v5659, %v5659
        %v5696 = vmul.f32 %v5660, %v5660
        %v5697 = vmul.f32 %v5661, %v5661
        %v5698 = vmul.f32 %v5662, %v5662
        %v5699 = vmul.f32 %v5663, %v5663
        %v5700 = vmul.f32 %v5664, %v5664
        %v5701 = vmul.f32 %v5665, %v5665
        %v5702 = vmul.f32 %v5666, %v5666
        %v5703 = vmul.f32 %v5667, %v5667
        %v5704 = vmul.f32 %v5668, %v5668
        %v5705 = vmul.f32 %v5669, %v5669
        %v5706 = vmul.f32 %v5670, %v5670
        %v5707 = vmul.f32 %v5671, %v5671
        %v5708 = vmul.f32 %v5672, %v5672
        %v5709 = vmul.f32 %v5673, %v5673
        %v5710 = vmul.f32 %v5674, %v5674
        %v5711 = vadd.f32 %v5675, %v5676
        %v5712 = vadd.f32 %v5711, %v5677
        %v5713 = vadd.f32 %v5712, %v5678
        %v5714 = vadd.f32 %v5713, %v5679
        %v5715 = vadd.f32 %v5714, %v5680
        %v5716 = vadd.f32 %v5715, %v5681
        %v5717 = vadd.f32 %v5716, %v5682
        %v5718 = vadd.f32 %v5717, %v5683
        %v5719 = vadd.f32 %v5718, %v5684
        %v5720 = vadd.f32 %v5719, %v5685
        %v5721 = vadd.f32 %v5720, %v5686
        %v5722 = vadd.f32 %v5721, %v5687
        %v5723 = vadd.f32 %v5722, %v5688
        %v5724 = vadd.f32 %v5723, %v5689
        %v5725 = vadd.f32 %v5724, %v5690
        %v5726 = vadd.f32 %v5725, %v5691
        %v5727 = vadd.f32 %v5726, %v5692
        %v5728 = vadd.f32 %v5727, %v5693
        %v5729 = vadd.f32 %v5728, %v5694
        %v5730 = vadd.f32 %v5729, %v5695
        %v5731 = vadd.f32 %v5730, %v5696
        %v5732 = vadd.f32 %v5731, %v5697
        %v5733 = vadd.f32 %v5732, %v5698
        %v5734 = vadd.f32 %v5733, %v5699
        %v5735 = vadd.f32 %v5734, %v5700
        %v5736 = vadd.f32 %v5735, %v5701
        %v5737 = vadd.f32 %v5736, %v5702
        %v5738 = vadd.f32 %v5737, %v5703
        %v5739 = vadd.f32 %v5738, %v5704
        %v5740 = vadd.f32 %v5739, %v5705
        %v5741 = vadd.f32 %v5740, %v5706
        %v5742 = vadd.f32 %v5741, %v5707
        %v5743 = vadd.f32 %v5742, %v5708
        %v5744 = vadd.f32 %v5743, %v5709
        %v5745 = vadd.f32 %v5744, %v5710
        %v5746 = vrot.slane %v5745, 4
        %v5747 = vadd.f32 %v5745, %v5746
        %v5748 = vrot.slane %v5747, 2
        %v5749 = vadd.f32 %v5747, %v5748
        %v5750 = vrot.slane %v5749, 1
        %v5751 = vadd.f32 %v5749, %v5750
        %5752 = vmatpush.msra.mxu0 %v5512
        %5753 = vmatpush.msra.mxu0 %v5511
        %5754 = vmatpush.msra.mxu0 %v5510
        %5755 = vmatpush.msra.mxu0 %v5509
        %5756 = vmatpush.msra.mxu0 %v5508
        %5757 = vmatpush.msra.mxu0 %v5507
        %5758 = vmatpush.msra.mxu0 %v5506
        %5759 = vmatpush.msra.mxu0 %v5505
        %5760 = vmatpush.msra.mxu0 %v5504
        %5761 = vmatpush.msra.mxu0 %v5503
        %5762 = vmatpush.msra.mxu0 %v5502
        %5763 = vmatpush.msra.mxu0 %v5501
        %5764 = vmatpush.msra.mxu0 %v5500
        %5765 = vmatpush.msra.mxu0 %v5499
        %5766 = vmatpush.msra.mxu0 %v5498
        %5767 = vmatpush.msra.mxu0 %v5497
        %5768 = vmatmul.f32.gmra.mxu0 %v5751
        %v5769 = vpop.f32.mrf.mxu0
        %v5770 = vadd.f32 0.0, %v5769
        %5771 = vdwg.mxu0
        %v5772 = vmul.f32 %v5770, 0.0009765625
        %v5773 = vadd.f32 %v5772, 1e-05
        %v5774 = vrsqrt.pop %v5773
        %v5775 = vmul.f32 %v5774, %v5773
        %v5776 = vmul.f32 %v5775, %v5774
        %v5777 = vmul.f32 0.5, %v5776
        %v5778 = vsub.f32 1.5, %v5777
        %v5779 = vmul.f32 %v5774, %v5778
        %vm5780 = vweird.f32 %v5773
        %vm5781 = vweird.f32 %v5774
        %vm5782 = vmor %vm5780, %vm5781
        %v5783 = vsel %vm5782, %v5774, %v5779
        %v5785 = vsel %vm751, %v5783, 0
        %5787 = vmatpush.msra.mxu0 0.0
        %5788 = vmatpush.msra.mxu0 0.0
        %5789 = vmatpush.msra.mxu0 0.0
        %5790 = vmatpush.msra.mxu0 0.0
        %5791 = vmatpush.msra.mxu0 0.0
        %5792 = vmatpush.msra.mxu0 0.0
        %5793 = vmatpush.msra.mxu0 0.0
        %5794 = vmatpush.msra.mxu0 0.0
        %5795 = vmatpush.msra.mxu0 0.0
        %5796 = vmatpush.msra.mxu0 0.0
        %5797 = vmatpush.msra.mxu0 0.0
        %5798 = vmatpush.msra.mxu0 0.0
        %5799 = vmatpush.msra.mxu0 %v5516
        %5800 = vmatpush.msra.mxu0 %v5515
        %5801 = vmatpush.msra.mxu0 %v5514
        %5802 = vmatpush.msra.mxu0 %v5513
        %5803 = vmatmul.f32.gmra.mxu0 %v5785
        %v5804 = vpop.f32.mrf.mxu0
        %v5805 = vadd.f32 0.0, %v5804
        %5806 = vdwg.mxu0
        %v5807 = vmul.f32 %v5805, %v5495
        %v5808 = vperm.slane %v5807, 0
        %v5809 = vmul.f32 %v5639, %v5808
        %v5810 = vmul.f32 %v5640, %v5808
        %v5811 = vmul.f32 %v5641, %v5808
        %v5812 = vmul.f32 %v5642, %v5808
        %v5813 = vmul.f32 %v5643, %v5808
        %v5814 = vmul.f32 %v5644, %v5808
        %v5815 = vmul.f32 %v5645, %v5808
        %v5816 = vmul.f32 %v5646, %v5808
        %v5817 = vmul.f32 %v5647, %v5808
        %v5818 = vmul.f32 %v5648, %v5808
        %v5819 = vmul.f32 %v5649, %v5808
        %v5820 = vmul.f32 %v5650, %v5808
        %v5821 = vmul.f32 %v5651, %v5808
        %v5822 = vmul.f32 %v5652, %v5808
        %v5823 = vmul.f32 %v5653, %v5808
        %v5824 = vmul.f32 %v5654, %v5808
        %v5825 = vmul.f32 %v5655, %v5808
        %v5826 = vmul.f32 %v5656, %v5808
        %v5827 = vmul.f32 %v5657, %v5808
        %v5828 = vmul.f32 %v5658, %v5808
        %v5829 = vmul.f32 %v5659, %v5808
        %v5830 = vmul.f32 %v5660, %v5808
        %v5831 = vmul.f32 %v5661, %v5808
        %v5832 = vmul.f32 %v5662, %v5808
        %v5833 = vmul.f32 %v5663, %v5808
        %v5834 = vmul.f32 %v5664, %v5808
        %v5835 = vmul.f32 %v5665, %v5808
        %v5836 = vmul.f32 %v5666, %v5808
        %v5837 = vmul.f32 %v5667, %v5808
        %v5838 = vmul.f32 %v5668, %v5808
        %v5839 = vmul.f32 %v5669, %v5808
        %v5840 = vmul.f32 %v5670, %v5808
        %v5841 = vmul.f32 %v5671, %v5808
        %v5842 = vmul.f32 %v5672, %v5808
        %v5843 = vmul.f32 %v5673, %v5808
        %v5844 = vmul.f32 %v5674, %v5808
        %v5846 = vperm.slane %v5496, 0
        %v5848 = vadd.f32 %v5809, %v5846
        %v5849 = vadd.f32 %v5810, %v5846
        %v5850 = vadd.f32 %v5811, %v5846
        %v5851 = vadd.f32 %v5812, %v5846
        %v5852 = vadd.f32 %v5813, %v5846
        %v5853 = vadd.f32 %v5814, %v5846
        %v5854 = vadd.f32 %v5815, %v5846
        %v5855 = vadd.f32 %v5816, %v5846
        %v5856 = vadd.f32 %v5817, %v5846
        %v5857 = vadd.f32 %v5818, %v5846
        %v5858 = vadd.f32 %v5819, %v5846
        %v5859 = vadd.f32 %v5820, %v5846
        %v5860 = vadd.f32 %v5821, %v5846
        %v5861 = vadd.f32 %v5822, %v5846
        %v5862 = vadd.f32 %v5823, %v5846
        %v5863 = vadd.f32 %v5824, %v5846
        %v5864 = vadd.f32 %v5825, %v5846
        %v5865 = vadd.f32 %v5826, %v5846
        %v5866 = vadd.f32 %v5827, %v5846
        %v5867 = vadd.f32 %v5828, %v5846
        %v5868 = vadd.f32 %v5829, %v5846
        %v5869 = vadd.f32 %v5830, %v5846
        %v5870 = vadd.f32 %v5831, %v5846
        %v5871 = vadd.f32 %v5832, %v5846
        %v5872 = vadd.f32 %v5833, %v5846
        %v5873 = vadd.f32 %v5834, %v5846
        %v5874 = vadd.f32 %v5835, %v5846
        %v5875 = vadd.f32 %v5836, %v5846
        %v5876 = vadd.f32 %v5837, %v5846
        %v5877 = vadd.f32 %v5838, %v5846
        %v5878 = vadd.f32 %v5839, %v5846
        %v5879 = vadd.f32 %v5840, %v5846
        %v5880 = vadd.f32 %v5841, %v5846
        %v5881 = vadd.f32 %v5842, %v5846
        %v5882 = vadd.f32 %v5843, %v5846
        %v5883 = vadd.f32 %v5844, %v5846
        %v5884 = vsub.f32 0.0, %v5848
        %v5885 = vsub.f32 0.0, %v5849
        %v5886 = vsub.f32 0.0, %v5850
        %v5887 = vsub.f32 0.0, %v5851
        %v5888 = vsub.f32 0.0, %v5852
        %v5889 = vsub.f32 0.0, %v5853
        %v5890 = vsub.f32 0.0, %v5854
        %v5891 = vsub.f32 0.0, %v5855
        %v5892 = vsub.f32 0.0, %v5856
        %v5893 = vsub.f32 0.0, %v5857
        %v5894 = vsub.f32 0.0, %v5858
        %v5895 = vsub.f32 0.0, %v5859
        %v5896 = vsub.f32 0.0, %v5860
        %v5897 = vsub.f32 0.0, %v5861
        %v5898 = vsub.f32 0.0, %v5862
        %v5899 = vsub.f32 0.0, %v5863
        %v5900 = vsub.f32 0.0, %v5864
        %v5901 = vsub.f32 0.0, %v5865
        %v5902 = vsub.f32 0.0, %v5866
        %v5903 = vsub.f32 0.0, %v5867
        %v5904 = vsub.f32 0.0, %v5868
        %v5905 = vsub.f32 0.0, %v5869
        %v5906 = vsub.f32 0.0, %v5870
        %v5907 = vsub.f32 0.0, %v5871
        %v5908 = vsub.f32 0.0, %v5872
        %v5909 = vsub.f32 0.0, %v5873
        %v5910 = vsub.f32 0.0, %v5874
        %v5911 = vsub.f32 0.0, %v5875
        %v5912 = vsub.f32 0.0, %v5876
        %v5913 = vsub.f32 0.0, %v5877
        %v5914 = vsub.f32 0.0, %v5878
        %v5915 = vsub.f32 0.0, %v5879
        %v5916 = vsub.f32 0.0, %v5880
        %v5917 = vsub.f32 0.0, %v5881
        %v5918 = vsub.f32 0.0, %v5882
        %v5919 = vsub.f32 0.0, %v5883
        %v5920 = vmul.f32 %v5884, 1.442695
        %v5921 = vpow.pop %v5920
        %v5922 = vmul.f32 %v5885, 1.442695
        %v5923 = vpow.pop %v5922
        %v5924 = vmul.f32 %v5886, 1.442695
        %v5925 = vpow.pop %v5924
        %v5926 = vmul.f32 %v5887, 1.442695
        %v5927 = vpow.pop %v5926
        %v5928 = vmul.f32 %v5888, 1.442695
        %v5929 = vpow.pop %v5928
        %v5930 = vmul.f32 %v5889, 1.442695
        %v5931 = vpow.pop %v5930
        %v5932 = vmul.f32 %v5890, 1.442695
        %v5933 = vpow.pop %v5932
        %v5934 = vmul.f32 %v5891, 1.442695
        %v5935 = vpow.pop %v5934
        %v5936 = vmul.f32 %v5892, 1.442695
        %v5937 = vpow.pop %v5936
        %v5938 = vmul.f32 %v5893, 1.442695
        %v5939 = vpow.pop %v5938
        %v5940 = vmul.f32 %v5894, 1.442695
        %v5941 = vpow.pop %v5940
        %v5942 = vmul.f32 %v5895, 1.442695
        %v5943 = vpow.pop %v5942
        %v5944 = vmul.f32 %v5896, 1.442695
        %v5945 = vpow.pop %v5944
        %v5946 = vmul.f32 %v5897, 1.442695
        %v5947 = vpow.pop %v5946
        %v5948 = vmul.f32 %v5898, 1.442695
        %v5949 = vpow.pop %v5948
        %v5950 = vmul.f32 %v5899, 1.442695
        %v5951 = vpow.pop %v5950
        %v5952 = vmul.f32 %v5900, 1.442695
        %v5953 = vpow.pop %v5952
        %v5954 = vmul.f32 %v5901, 1.442695
        %v5955 = vpow.pop %v5954
        %v5956 = vmul.f32 %v5902, 1.442695
        %v5957 = vpow.pop %v5956
        %v5958 = vmul.f32 %v5903, 1.442695
        %v5959 = vpow.pop %v5958
        %v5960 = vmul.f32 %v5904, 1.442695
        %v5961 = vpow.pop %v5960
        %v5962 = vmul.f32 %v5905, 1.442695
        %v5963 = vpow.pop %v5962
        %v5964 = vmul.f32 %v5906, 1.442695
        %v5965 = vpow.pop %v5964
        %v5966 = vmul.f32 %v5907, 1.442695
        %v5967 = vpow.pop %v5966
        %v5968 = vmul.f32 %v5908, 1.442695
        %v5969 = vpow.pop %v5968
        %v5970 = vmul.f32 %v5909, 1.442695
        %v5971 = vpow.pop %v5970
        %v5972 = vmul.f32 %v5910, 1.442695
        %v5973 = vpow.pop %v5972
        %v5974 = vmul.f32 %v5911, 1.442695
        %v5975 = vpow.pop %v5974
        %v5976 = vmul.f32 %v5912, 1.442695
        %v5977 = vpow.pop %v5976
        %v5978 = vmul.f32 %v5913, 1.442695
        %v5979 = vpow.pop %v5978
        %v5980 = vmul.f32 %v5914, 1.442695
        %v5981 = vpow.pop %v5980
        %v5982 = vmul.f32 %v5915, 1.442695
        %v5983 = vpow.pop %v5982
        %v5984 = vmul.f32 %v5916, 1.442695
        %v5985 = vpow.pop %v5984
        %v5986 = vmul.f32 %v5917, 1.442695
        %v5987 = vpow.pop %v5986
        %v5988 = vmul.f32 %v5918, 1.442695
        %v5989 = vpow.pop %v5988
        %v5990 = vmul.f32 %v5919, 1.442695
        %v5991 = vpow.pop %v5990
        %v5992 = vadd.f32 %v5921, 1.0
        %v5993 = vadd.f32 %v5923, 1.0
        %v5994 = vadd.f32 %v5925, 1.0
        %v5995 = vadd.f32 %v5927, 1.0
        %v5996 = vadd.f32 %v5929, 1.0
        %v5997 = vadd.f32 %v5931, 1.0
        %v5998 = vadd.f32 %v5933, 1.0
        %v5999 = vadd.f32 %v5935, 1.0
        %v6000 = vadd.f32 %v5937, 1.0
        %v6001 = vadd.f32 %v5939, 1.0
        %v6002 = vadd.f32 %v5941, 1.0
        %v6003 = vadd.f32 %v5943, 1.0
        %v6004 = vadd.f32 %v5945, 1.0
        %v6005 = vadd.f32 %v5947, 1.0
        %v6006 = vadd.f32 %v5949, 1.0
        %v6007 = vadd.f32 %v5951, 1.0
        %v6008 = vadd.f32 %v5953, 1.0
        %v6009 = vadd.f32 %v5955, 1.0
        %v6010 = vadd.f32 %v5957, 1.0
        %v6011 = vadd.f32 %v5959, 1.0
        %v6012 = vadd.f32 %v5961, 1.0
        %v6013 = vadd.f32 %v5963, 1.0
        %v6014 = vadd.f32 %v5965, 1.0
        %v6015 = vadd.f32 %v5967, 1.0
        %v6016 = vadd.f32 %v5969, 1.0
        %v6017 = vadd.f32 %v5971, 1.0
        %v6018 = vadd.f32 %v5973, 1.0
        %v6019 = vadd.f32 %v5975, 1.0
        %v6020 = vadd.f32 %v5977, 1.0
        %v6021 = vadd.f32 %v5979, 1.0
        %v6022 = vadd.f32 %v5981, 1.0
        %v6023 = vadd.f32 %v5983, 1.0
        %v6024 = vadd.f32 %v5985, 1.0
        %v6025 = vadd.f32 %v5987, 1.0
        %v6026 = vadd.f32 %v5989, 1.0
        %v6027 = vadd.f32 %v5991, 1.0
        %v6028 = vrcp.pop %v5992
        %v6029 = vmul.f32 %v5992, %v6028
        %v6030 = vsub.f32 1.0, %v6029
        %v6031 = vmul.f32 %v6028, %v6030
        %v6032 = vadd.f32 %v6028, %v6031
        %vm6033 = vweird.f32 %v5992
        %vm6034 = vweird.f32 %v6028
        %vm6035 = vmor %vm6033, %vm6034
        %v6036 = vsel %vm6035, %v6028, %v6032
        %v6037 = vand.u32 2147483647, %v5992
        %vm6038 = vcmp.eq.f32.partialorder %v6037, 8.507059e+37
        %v6039 = vand.u32 %v5992, 2147483648
        %v6040 = vor.u32 1.1754944e-38, %v6039
        %v6041 = vsel %vm6038, %v6040, %v6036
        %v6042 = vmul.f32 1.0, %v6041
        %v6043 = vrcp.pop %v5993
        %v6044 = vmul.f32 %v5993, %v6043
        %v6045 = vsub.f32 1.0, %v6044
        %v6046 = vmul.f32 %v6043, %v6045
        %v6047 = vadd.f32 %v6043, %v6046
        %vm6048 = vweird.f32 %v5993
        %vm6049 = vweird.f32 %v6043
        %vm6050 = vmor %vm6048, %vm6049
        %v6051 = vsel %vm6050, %v6043, %v6047
        %v6052 = vand.u32 2147483647, %v5993
        %vm6053 = vcmp.eq.f32.partialorder %v6052, 8.507059e+37
        %v6054 = vand.u32 %v5993, 2147483648
        %v6055 = vor.u32 1.1754944e-38, %v6054
        %v6056 = vsel %vm6053, %v6055, %v6051
        %v6057 = vmul.f32 1.0, %v6056
        %v6058 = vrcp.pop %v5994
        %v6059 = vmul.f32 %v5994, %v6058
        %v6060 = vsub.f32 1.0, %v6059
        %v6061 = vmul.f32 %v6058, %v6060
        %v6062 = vadd.f32 %v6058, %v6061
        %vm6063 = vweird.f32 %v5994
        %vm6064 = vweird.f32 %v6058
        %vm6065 = vmor %vm6063, %vm6064
        %v6066 = vsel %vm6065, %v6058, %v6062
        %v6067 = vand.u32 2147483647, %v5994
        %vm6068 = vcmp.eq.f32.partialorder %v6067, 8.507059e+37
        %v6069 = vand.u32 %v5994, 2147483648
        %v6070 = vor.u32 1.1754944e-38, %v6069
        %v6071 = vsel %vm6068, %v6070, %v6066
        %v6072 = vmul.f32 1.0, %v6071
        %v6073 = vrcp.pop %v5995
        %v6074 = vmul.f32 %v5995, %v6073
        %v6075 = vsub.f32 1.0, %v6074
        %v6076 = vmul.f32 %v6073, %v6075
        %v6077 = vadd.f32 %v6073, %v6076
        %vm6078 = vweird.f32 %v5995
        %vm6079 = vweird.f32 %v6073
        %vm6080 = vmor %vm6078, %vm6079
        %v6081 = vsel %vm6080, %v6073, %v6077
        %v6082 = vand.u32 2147483647, %v5995
        %vm6083 = vcmp.eq.f32.partialorder %v6082, 8.507059e+37
        %v6084 = vand.u32 %v5995, 2147483648
        %v6085 = vor.u32 1.1754944e-38, %v6084
        %v6086 = vsel %vm6083, %v6085, %v6081
        %v6087 = vmul.f32 1.0, %v6086
        %v6088 = vrcp.pop %v5996
        %v6089 = vmul.f32 %v5996, %v6088
        %v6090 = vsub.f32 1.0, %v6089
        %v6091 = vmul.f32 %v6088, %v6090
        %v6092 = vadd.f32 %v6088, %v6091
        %vm6093 = vweird.f32 %v5996
        %vm6094 = vweird.f32 %v6088
        %vm6095 = vmor %vm6093, %vm6094
        %v6096 = vsel %vm6095, %v6088, %v6092
        %v6097 = vand.u32 2147483647, %v5996
        %vm6098 = vcmp.eq.f32.partialorder %v6097, 8.507059e+37
        %v6099 = vand.u32 %v5996, 2147483648
        %v6100 = vor.u32 1.1754944e-38, %v6099
        %v6101 = vsel %vm6098, %v6100, %v6096
        %v6102 = vmul.f32 1.0, %v6101
        %v6103 = vrcp.pop %v5997
        %v6104 = vmul.f32 %v5997, %v6103
        %v6105 = vsub.f32 1.0, %v6104
        %v6106 = vmul.f32 %v6103, %v6105
        %v6107 = vadd.f32 %v6103, %v6106
        %vm6108 = vweird.f32 %v5997
        %vm6109 = vweird.f32 %v6103
        %vm6110 = vmor %vm6108, %vm6109
        %v6111 = vsel %vm6110, %v6103, %v6107
        %v6112 = vand.u32 2147483647, %v5997
        %vm6113 = vcmp.eq.f32.partialorder %v6112, 8.507059e+37
        %v6114 = vand.u32 %v5997, 2147483648
        %v6115 = vor.u32 1.1754944e-38, %v6114
        %v6116 = vsel %vm6113, %v6115, %v6111
        %v6117 = vmul.f32 1.0, %v6116
        %v6118 = vrcp.pop %v5998
        %v6119 = vmul.f32 %v5998, %v6118
        %v6120 = vsub.f32 1.0, %v6119
        %v6121 = vmul.f32 %v6118, %v6120
        %v6122 = vadd.f32 %v6118, %v6121
        %vm6123 = vweird.f32 %v5998
        %vm6124 = vweird.f32 %v6118
        %vm6125 = vmor %vm6123, %vm6124
        %v6126 = vsel %vm6125, %v6118, %v6122
        %v6127 = vand.u32 2147483647, %v5998
        %vm6128 = vcmp.eq.f32.partialorder %v6127, 8.507059e+37
        %v6129 = vand.u32 %v5998, 2147483648
        %v6130 = vor.u32 1.1754944e-38, %v6129
        %v6131 = vsel %vm6128, %v6130, %v6126
        %v6132 = vmul.f32 1.0, %v6131
        %v6133 = vrcp.pop %v5999
        %v6134 = vmul.f32 %v5999, %v6133
        %v6135 = vsub.f32 1.0, %v6134
        %v6136 = vmul.f32 %v6133, %v6135
        %v6137 = vadd.f32 %v6133, %v6136
        %vm6138 = vweird.f32 %v5999
        %vm6139 = vweird.f32 %v6133
        %vm6140 = vmor %vm6138, %vm6139
        %v6141 = vsel %vm6140, %v6133, %v6137
        %v6142 = vand.u32 2147483647, %v5999
        %vm6143 = vcmp.eq.f32.partialorder %v6142, 8.507059e+37
        %v6144 = vand.u32 %v5999, 2147483648
        %v6145 = vor.u32 1.1754944e-38, %v6144
        %v6146 = vsel %vm6143, %v6145, %v6141
        %v6147 = vmul.f32 1.0, %v6146
        %v6148 = vrcp.pop %v6000
        %v6149 = vmul.f32 %v6000, %v6148
        %v6150 = vsub.f32 1.0, %v6149
        %v6151 = vmul.f32 %v6148, %v6150
        %v6152 = vadd.f32 %v6148, %v6151
        %vm6153 = vweird.f32 %v6000
        %vm6154 = vweird.f32 %v6148
        %vm6155 = vmor %vm6153, %vm6154
        %v6156 = vsel %vm6155, %v6148, %v6152
        %v6157 = vand.u32 2147483647, %v6000
        %vm6158 = vcmp.eq.f32.partialorder %v6157, 8.507059e+37
        %v6159 = vand.u32 %v6000, 2147483648
        %v6160 = vor.u32 1.1754944e-38, %v6159
        %v6161 = vsel %vm6158, %v6160, %v6156
        %v6162 = vmul.f32 1.0, %v6161
        %v6163 = vrcp.pop %v6001
        %v6164 = vmul.f32 %v6001, %v6163
        %v6165 = vsub.f32 1.0, %v6164
        %v6166 = vmul.f32 %v6163, %v6165
        %v6167 = vadd.f32 %v6163, %v6166
        %vm6168 = vweird.f32 %v6001
        %vm6169 = vweird.f32 %v6163
        %vm6170 = vmor %vm6168, %vm6169
        %v6171 = vsel %vm6170, %v6163, %v6167
        %v6172 = vand.u32 2147483647, %v6001
        %vm6173 = vcmp.eq.f32.partialorder %v6172, 8.507059e+37
        %v6174 = vand.u32 %v6001, 2147483648
        %v6175 = vor.u32 1.1754944e-38, %v6174
        %v6176 = vsel %vm6173, %v6175, %v6171
        %v6177 = vmul.f32 1.0, %v6176
        %v6178 = vrcp.pop %v6002
        %v6179 = vmul.f32 %v6002, %v6178
        %v6180 = vsub.f32 1.0, %v6179
        %v6181 = vmul.f32 %v6178, %v6180
        %v6182 = vadd.f32 %v6178, %v6181
        %vm6183 = vweird.f32 %v6002
        %vm6184 = vweird.f32 %v6178
        %vm6185 = vmor %vm6183, %vm6184
        %v6186 = vsel %vm6185, %v6178, %v6182
        %v6187 = vand.u32 2147483647, %v6002
        %vm6188 = vcmp.eq.f32.partialorder %v6187, 8.507059e+37
        %v6189 = vand.u32 %v6002, 2147483648
        %v6190 = vor.u32 1.1754944e-38, %v6189
        %v6191 = vsel %vm6188, %v6190, %v6186
        %v6192 = vmul.f32 1.0, %v6191
        %v6193 = vrcp.pop %v6003
        %v6194 = vmul.f32 %v6003, %v6193
        %v6195 = vsub.f32 1.0, %v6194
        %v6196 = vmul.f32 %v6193, %v6195
        %v6197 = vadd.f32 %v6193, %v6196
        %vm6198 = vweird.f32 %v6003
        %vm6199 = vweird.f32 %v6193
        %vm6200 = vmor %vm6198, %vm6199
        %v6201 = vsel %vm6200, %v6193, %v6197
        %v6202 = vand.u32 2147483647, %v6003
        %vm6203 = vcmp.eq.f32.partialorder %v6202, 8.507059e+37
        %v6204 = vand.u32 %v6003, 2147483648
        %v6205 = vor.u32 1.1754944e-38, %v6204
        %v6206 = vsel %vm6203, %v6205, %v6201
        %v6207 = vmul.f32 1.0, %v6206
        %v6208 = vrcp.pop %v6004
        %v6209 = vmul.f32 %v6004, %v6208
        %v6210 = vsub.f32 1.0, %v6209
        %v6211 = vmul.f32 %v6208, %v6210
        %v6212 = vadd.f32 %v6208, %v6211
        %vm6213 = vweird.f32 %v6004
        %vm6214 = vweird.f32 %v6208
        %vm6215 = vmor %vm6213, %vm6214
        %v6216 = vsel %vm6215, %v6208, %v6212
        %v6217 = vand.u32 2147483647, %v6004
        %vm6218 = vcmp.eq.f32.partialorder %v6217, 8.507059e+37
        %v6219 = vand.u32 %v6004, 2147483648
        %v6220 = vor.u32 1.1754944e-38, %v6219
        %v6221 = vsel %vm6218, %v6220, %v6216
        %v6222 = vmul.f32 1.0, %v6221
        %v6223 = vrcp.pop %v6005
        %v6224 = vmul.f32 %v6005, %v6223
        %v6225 = vsub.f32 1.0, %v6224
        %v6226 = vmul.f32 %v6223, %v6225
        %v6227 = vadd.f32 %v6223, %v6226
        %vm6228 = vweird.f32 %v6005
        %vm6229 = vweird.f32 %v6223
        %vm6230 = vmor %vm6228, %vm6229
        %v6231 = vsel %vm6230, %v6223, %v6227
        %v6232 = vand.u32 2147483647, %v6005
        %vm6233 = vcmp.eq.f32.partialorder %v6232, 8.507059e+37
        %v6234 = vand.u32 %v6005, 2147483648
        %v6235 = vor.u32 1.1754944e-38, %v6234
        %v6236 = vsel %vm6233, %v6235, %v6231
        %v6237 = vmul.f32 1.0, %v6236
        %v6238 = vrcp.pop %v6006
        %v6239 = vmul.f32 %v6006, %v6238
        %v6240 = vsub.f32 1.0, %v6239
        %v6241 = vmul.f32 %v6238, %v6240
        %v6242 = vadd.f32 %v6238, %v6241
        %vm6243 = vweird.f32 %v6006
        %vm6244 = vweird.f32 %v6238
        %vm6245 = vmor %vm6243, %vm6244
        %v6246 = vsel %vm6245, %v6238, %v6242
        %v6247 = vand.u32 2147483647, %v6006
        %vm6248 = vcmp.eq.f32.partialorder %v6247, 8.507059e+37
        %v6249 = vand.u32 %v6006, 2147483648
        %v6250 = vor.u32 1.1754944e-38, %v6249
        %v6251 = vsel %vm6248, %v6250, %v6246
        %v6252 = vmul.f32 1.0, %v6251
        %v6253 = vrcp.pop %v6007
        %v6254 = vmul.f32 %v6007, %v6253
        %v6255 = vsub.f32 1.0, %v6254
        %v6256 = vmul.f32 %v6253, %v6255
        %v6257 = vadd.f32 %v6253, %v6256
        %vm6258 = vweird.f32 %v6007
        %vm6259 = vweird.f32 %v6253
        %vm6260 = vmor %vm6258, %vm6259
        %v6261 = vsel %vm6260, %v6253, %v6257
        %v6262 = vand.u32 2147483647, %v6007
        %vm6263 = vcmp.eq.f32.partialorder %v6262, 8.507059e+37
        %v6264 = vand.u32 %v6007, 2147483648
        %v6265 = vor.u32 1.1754944e-38, %v6264
        %v6266 = vsel %vm6263, %v6265, %v6261
        %v6267 = vmul.f32 1.0, %v6266
        %v6268 = vrcp.pop %v6008
        %v6269 = vmul.f32 %v6008, %v6268
        %v6270 = vsub.f32 1.0, %v6269
        %v6271 = vmul.f32 %v6268, %v6270
        %v6272 = vadd.f32 %v6268, %v6271
        %vm6273 = vweird.f32 %v6008
        %vm6274 = vweird.f32 %v6268
        %vm6275 = vmor %vm6273, %vm6274
        %v6276 = vsel %vm6275, %v6268, %v6272
        %v6277 = vand.u32 2147483647, %v6008
        %vm6278 = vcmp.eq.f32.partialorder %v6277, 8.507059e+37
        %v6279 = vand.u32 %v6008, 2147483648
        %v6280 = vor.u32 1.1754944e-38, %v6279
        %v6281 = vsel %vm6278, %v6280, %v6276
        %v6282 = vmul.f32 1.0, %v6281
        %v6283 = vrcp.pop %v6009
        %v6284 = vmul.f32 %v6009, %v6283
        %v6285 = vsub.f32 1.0, %v6284
        %v6286 = vmul.f32 %v6283, %v6285
        %v6287 = vadd.f32 %v6283, %v6286
        %vm6288 = vweird.f32 %v6009
        %vm6289 = vweird.f32 %v6283
        %vm6290 = vmor %vm6288, %vm6289
        %v6291 = vsel %vm6290, %v6283, %v6287
        %v6292 = vand.u32 2147483647, %v6009
        %vm6293 = vcmp.eq.f32.partialorder %v6292, 8.507059e+37
        %v6294 = vand.u32 %v6009, 2147483648
        %v6295 = vor.u32 1.1754944e-38, %v6294
        %v6296 = vsel %vm6293, %v6295, %v6291
        %v6297 = vmul.f32 1.0, %v6296
        %v6298 = vrcp.pop %v6010
        %v6299 = vmul.f32 %v6010, %v6298
        %v6300 = vsub.f32 1.0, %v6299
        %v6301 = vmul.f32 %v6298, %v6300
        %v6302 = vadd.f32 %v6298, %v6301
        %vm6303 = vweird.f32 %v6010
        %vm6304 = vweird.f32 %v6298
        %vm6305 = vmor %vm6303, %vm6304
        %v6306 = vsel %vm6305, %v6298, %v6302
        %v6307 = vand.u32 2147483647, %v6010
        %vm6308 = vcmp.eq.f32.partialorder %v6307, 8.507059e+37
        %v6309 = vand.u32 %v6010, 2147483648
        %v6310 = vor.u32 1.1754944e-38, %v6309
        %v6311 = vsel %vm6308, %v6310, %v6306
        %v6312 = vmul.f32 1.0, %v6311
        %v6313 = vrcp.pop %v6011
        %v6314 = vmul.f32 %v6011, %v6313
        %v6315 = vsub.f32 1.0, %v6314
        %v6316 = vmul.f32 %v6313, %v6315
        %v6317 = vadd.f32 %v6313, %v6316
        %vm6318 = vweird.f32 %v6011
        %vm6319 = vweird.f32 %v6313
        %vm6320 = vmor %vm6318, %vm6319
        %v6321 = vsel %vm6320, %v6313, %v6317
        %v6322 = vand.u32 2147483647, %v6011
        %vm6323 = vcmp.eq.f32.partialorder %v6322, 8.507059e+37
        %v6324 = vand.u32 %v6011, 2147483648
        %v6325 = vor.u32 1.1754944e-38, %v6324
        %v6326 = vsel %vm6323, %v6325, %v6321
        %v6327 = vmul.f32 1.0, %v6326
        %v6328 = vrcp.pop %v6012
        %v6329 = vmul.f32 %v6012, %v6328
        %v6330 = vsub.f32 1.0, %v6329
        %v6331 = vmul.f32 %v6328, %v6330
        %v6332 = vadd.f32 %v6328, %v6331
        %vm6333 = vweird.f32 %v6012
        %vm6334 = vweird.f32 %v6328
        %vm6335 = vmor %vm6333, %vm6334
        %v6336 = vsel %vm6335, %v6328, %v6332
        %v6337 = vand.u32 2147483647, %v6012
        %vm6338 = vcmp.eq.f32.partialorder %v6337, 8.507059e+37
        %v6339 = vand.u32 %v6012, 2147483648
        %v6340 = vor.u32 1.1754944e-38, %v6339
        %v6341 = vsel %vm6338, %v6340, %v6336
        %v6342 = vmul.f32 1.0, %v6341
        %v6343 = vrcp.pop %v6013
        %v6344 = vmul.f32 %v6013, %v6343
        %v6345 = vsub.f32 1.0, %v6344
        %v6346 = vmul.f32 %v6343, %v6345
        %v6347 = vadd.f32 %v6343, %v6346
        %vm6348 = vweird.f32 %v6013
        %vm6349 = vweird.f32 %v6343
        %vm6350 = vmor %vm6348, %vm6349
        %v6351 = vsel %vm6350, %v6343, %v6347
        %v6352 = vand.u32 2147483647, %v6013
        %vm6353 = vcmp.eq.f32.partialorder %v6352, 8.507059e+37
        %v6354 = vand.u32 %v6013, 2147483648
        %v6355 = vor.u32 1.1754944e-38, %v6354
        %v6356 = vsel %vm6353, %v6355, %v6351
        %v6357 = vmul.f32 1.0, %v6356
        %v6358 = vrcp.pop %v6014
        %v6359 = vmul.f32 %v6014, %v6358
        %v6360 = vsub.f32 1.0, %v6359
        %v6361 = vmul.f32 %v6358, %v6360
        %v6362 = vadd.f32 %v6358, %v6361
        %vm6363 = vweird.f32 %v6014
        %vm6364 = vweird.f32 %v6358
        %vm6365 = vmor %vm6363, %vm6364
        %v6366 = vsel %vm6365, %v6358, %v6362
        %v6367 = vand.u32 2147483647, %v6014
        %vm6368 = vcmp.eq.f32.partialorder %v6367, 8.507059e+37
        %v6369 = vand.u32 %v6014, 2147483648
        %v6370 = vor.u32 1.1754944e-38, %v6369
        %v6371 = vsel %vm6368, %v6370, %v6366
        %v6372 = vmul.f32 1.0, %v6371
        %v6373 = vrcp.pop %v6015
        %v6374 = vmul.f32 %v6015, %v6373
        %v6375 = vsub.f32 1.0, %v6374
        %v6376 = vmul.f32 %v6373, %v6375
        %v6377 = vadd.f32 %v6373, %v6376
        %vm6378 = vweird.f32 %v6015
        %vm6379 = vweird.f32 %v6373
        %vm6380 = vmor %vm6378, %vm6379
        %v6381 = vsel %vm6380, %v6373, %v6377
        %v6382 = vand.u32 2147483647, %v6015
        %vm6383 = vcmp.eq.f32.partialorder %v6382, 8.507059e+37
        %v6384 = vand.u32 %v6015, 2147483648
        %v6385 = vor.u32 1.1754944e-38, %v6384
        %v6386 = vsel %vm6383, %v6385, %v6381
        %v6387 = vmul.f32 1.0, %v6386
        %v6388 = vrcp.pop %v6016
        %v6389 = vmul.f32 %v6016, %v6388
        %v6390 = vsub.f32 1.0, %v6389
        %v6391 = vmul.f32 %v6388, %v6390
        %v6392 = vadd.f32 %v6388, %v6391
        %vm6393 = vweird.f32 %v6016
        %vm6394 = vweird.f32 %v6388
        %vm6395 = vmor %vm6393, %vm6394
        %v6396 = vsel %vm6395, %v6388, %v6392
        %v6397 = vand.u32 2147483647, %v6016
        %vm6398 = vcmp.eq.f32.partialorder %v6397, 8.507059e+37
        %v6399 = vand.u32 %v6016, 2147483648
        %v6400 = vor.u32 1.1754944e-38, %v6399
        %v6401 = vsel %vm6398, %v6400, %v6396
        %v6402 = vmul.f32 1.0, %v6401
        %v6403 = vrcp.pop %v6017
        %v6404 = vmul.f32 %v6017, %v6403
        %v6405 = vsub.f32 1.0, %v6404
        %v6406 = vmul.f32 %v6403, %v6405
        %v6407 = vadd.f32 %v6403, %v6406
        %vm6408 = vweird.f32 %v6017
        %vm6409 = vweird.f32 %v6403
        %vm6410 = vmor %vm6408, %vm6409
        %v6411 = vsel %vm6410, %v6403, %v6407
        %v6412 = vand.u32 2147483647, %v6017
        %vm6413 = vcmp.eq.f32.partialorder %v6412, 8.507059e+37
        %v6414 = vand.u32 %v6017, 2147483648
        %v6415 = vor.u32 1.1754944e-38, %v6414
        %v6416 = vsel %vm6413, %v6415, %v6411
        %v6417 = vmul.f32 1.0, %v6416
        %v6418 = vrcp.pop %v6018
        %v6419 = vmul.f32 %v6018, %v6418
        %v6420 = vsub.f32 1.0, %v6419
        %v6421 = vmul.f32 %v6418, %v6420
        %v6422 = vadd.f32 %v6418, %v6421
        %vm6423 = vweird.f32 %v6018
        %vm6424 = vweird.f32 %v6418
        %vm6425 = vmor %vm6423, %vm6424
        %v6426 = vsel %vm6425, %v6418, %v6422
        %v6427 = vand.u32 2147483647, %v6018
        %vm6428 = vcmp.eq.f32.partialorder %v6427, 8.507059e+37
        %v6429 = vand.u32 %v6018, 2147483648
        %v6430 = vor.u32 1.1754944e-38, %v6429
        %v6431 = vsel %vm6428, %v6430, %v6426
        %v6432 = vmul.f32 1.0, %v6431
        %v6433 = vrcp.pop %v6019
        %v6434 = vmul.f32 %v6019, %v6433
        %v6435 = vsub.f32 1.0, %v6434
        %v6436 = vmul.f32 %v6433, %v6435
        %v6437 = vadd.f32 %v6433, %v6436
        %vm6438 = vweird.f32 %v6019
        %vm6439 = vweird.f32 %v6433
        %vm6440 = vmor %vm6438, %vm6439
        %v6441 = vsel %vm6440, %v6433, %v6437
        %v6442 = vand.u32 2147483647, %v6019
        %vm6443 = vcmp.eq.f32.partialorder %v6442, 8.507059e+37
        %v6444 = vand.u32 %v6019, 2147483648
        %v6445 = vor.u32 1.1754944e-38, %v6444
        %v6446 = vsel %vm6443, %v6445, %v6441
        %v6447 = vmul.f32 1.0, %v6446
        %v6448 = vrcp.pop %v6020
        %v6449 = vmul.f32 %v6020, %v6448
        %v6450 = vsub.f32 1.0, %v6449
        %v6451 = vmul.f32 %v6448, %v6450
        %v6452 = vadd.f32 %v6448, %v6451
        %vm6453 = vweird.f32 %v6020
        %vm6454 = vweird.f32 %v6448
        %vm6455 = vmor %vm6453, %vm6454
        %v6456 = vsel %vm6455, %v6448, %v6452
        %v6457 = vand.u32 2147483647, %v6020
        %vm6458 = vcmp.eq.f32.partialorder %v6457, 8.507059e+37
        %v6459 = vand.u32 %v6020, 2147483648
        %v6460 = vor.u32 1.1754944e-38, %v6459
        %v6461 = vsel %vm6458, %v6460, %v6456
        %v6462 = vmul.f32 1.0, %v6461
        %v6463 = vrcp.pop %v6021
        %v6464 = vmul.f32 %v6021, %v6463
        %v6465 = vsub.f32 1.0, %v6464
        %v6466 = vmul.f32 %v6463, %v6465
        %v6467 = vadd.f32 %v6463, %v6466
        %vm6468 = vweird.f32 %v6021
        %vm6469 = vweird.f32 %v6463
        %vm6470 = vmor %vm6468, %vm6469
        %v6471 = vsel %vm6470, %v6463, %v6467
        %v6472 = vand.u32 2147483647, %v6021
        %vm6473 = vcmp.eq.f32.partialorder %v6472, 8.507059e+37
        %v6474 = vand.u32 %v6021, 2147483648
        %v6475 = vor.u32 1.1754944e-38, %v6474
        %v6476 = vsel %vm6473, %v6475, %v6471
        %v6477 = vmul.f32 1.0, %v6476
        %v6478 = vrcp.pop %v6022
        %v6479 = vmul.f32 %v6022, %v6478
        %v6480 = vsub.f32 1.0, %v6479
        %v6481 = vmul.f32 %v6478, %v6480
        %v6482 = vadd.f32 %v6478, %v6481
        %vm6483 = vweird.f32 %v6022
        %vm6484 = vweird.f32 %v6478
        %vm6485 = vmor %vm6483, %vm6484
        %v6486 = vsel %vm6485, %v6478, %v6482
        %v6487 = vand.u32 2147483647, %v6022
        %vm6488 = vcmp.eq.f32.partialorder %v6487, 8.507059e+37
        %v6489 = vand.u32 %v6022, 2147483648
        %v6490 = vor.u32 1.1754944e-38, %v6489
        %v6491 = vsel %vm6488, %v6490, %v6486
        %v6492 = vmul.f32 1.0, %v6491
        %v6493 = vrcp.pop %v6023
        %v6494 = vmul.f32 %v6023, %v6493
        %v6495 = vsub.f32 1.0, %v6494
        %v6496 = vmul.f32 %v6493, %v6495
        %v6497 = vadd.f32 %v6493, %v6496
        %vm6498 = vweird.f32 %v6023
        %vm6499 = vweird.f32 %v6493
        %vm6500 = vmor %vm6498, %vm6499
        %v6501 = vsel %vm6500, %v6493, %v6497
        %v6502 = vand.u32 2147483647, %v6023
        %vm6503 = vcmp.eq.f32.partialorder %v6502, 8.507059e+37
        %v6504 = vand.u32 %v6023, 2147483648
        %v6505 = vor.u32 1.1754944e-38, %v6504
        %v6506 = vsel %vm6503, %v6505, %v6501
        %v6507 = vmul.f32 1.0, %v6506
        %v6508 = vrcp.pop %v6024
        %v6509 = vmul.f32 %v6024, %v6508
        %v6510 = vsub.f32 1.0, %v6509
        %v6511 = vmul.f32 %v6508, %v6510
        %v6512 = vadd.f32 %v6508, %v6511
        %vm6513 = vweird.f32 %v6024
        %vm6514 = vweird.f32 %v6508
        %vm6515 = vmor %vm6513, %vm6514
        %v6516 = vsel %vm6515, %v6508, %v6512
        %v6517 = vand.u32 2147483647, %v6024
        %vm6518 = vcmp.eq.f32.partialorder %v6517, 8.507059e+37
        %v6519 = vand.u32 %v6024, 2147483648
        %v6520 = vor.u32 1.1754944e-38, %v6519
        %v6521 = vsel %vm6518, %v6520, %v6516
        %v6522 = vmul.f32 1.0, %v6521
        %v6523 = vrcp.pop %v6025
        %v6524 = vmul.f32 %v6025, %v6523
        %v6525 = vsub.f32 1.0, %v6524
        %v6526 = vmul.f32 %v6523, %v6525
        %v6527 = vadd.f32 %v6523, %v6526
        %vm6528 = vweird.f32 %v6025
        %vm6529 = vweird.f32 %v6523
        %vm6530 = vmor %vm6528, %vm6529
        %v6531 = vsel %vm6530, %v6523, %v6527
        %v6532 = vand.u32 2147483647, %v6025
        %vm6533 = vcmp.eq.f32.partialorder %v6532, 8.507059e+37
        %v6534 = vand.u32 %v6025, 2147483648
        %v6535 = vor.u32 1.1754944e-38, %v6534
        %v6536 = vsel %vm6533, %v6535, %v6531
        %v6537 = vmul.f32 1.0, %v6536
        %v6538 = vrcp.pop %v6026
        %v6539 = vmul.f32 %v6026, %v6538
        %v6540 = vsub.f32 1.0, %v6539
        %v6541 = vmul.f32 %v6538, %v6540
        %v6542 = vadd.f32 %v6538, %v6541
        %vm6543 = vweird.f32 %v6026
        %vm6544 = vweird.f32 %v6538
        %vm6545 = vmor %vm6543, %vm6544
        %v6546 = vsel %vm6545, %v6538, %v6542
        %v6547 = vand.u32 2147483647, %v6026
        %vm6548 = vcmp.eq.f32.partialorder %v6547, 8.507059e+37
        %v6549 = vand.u32 %v6026, 2147483648
        %v6550 = vor.u32 1.1754944e-38, %v6549
        %v6551 = vsel %vm6548, %v6550, %v6546
        %v6552 = vmul.f32 1.0, %v6551
        %v6553 = vrcp.pop %v6027
        %v6554 = vmul.f32 %v6027, %v6553
        %v6555 = vsub.f32 1.0, %v6554
        %v6556 = vmul.f32 %v6553, %v6555
        %v6557 = vadd.f32 %v6553, %v6556
        %vm6558 = vweird.f32 %v6027
        %vm6559 = vweird.f32 %v6553
        %vm6560 = vmor %vm6558, %vm6559
        %v6561 = vsel %vm6560, %v6553, %v6557
        %v6562 = vand.u32 2147483647, %v6027
        %vm6563 = vcmp.eq.f32.partialorder %v6562, 8.507059e+37
        %v6564 = vand.u32 %v6027, 2147483648
        %v6565 = vor.u32 1.1754944e-38, %v6564
        %v6566 = vsel %vm6563, %v6565, %v6561
        %v6567 = vmul.f32 1.0, %v6566
        %v6568 = vmul.f32 %v5848, %v6042
        %v6569 = vmul.f32 %v5849, %v6057
        %v6570 = vmul.f32 %v5850, %v6072
        %v6571 = vmul.f32 %v5851, %v6087
        %v6572 = vmul.f32 %v5852, %v6102
        %v6573 = vmul.f32 %v5853, %v6117
        %v6574 = vmul.f32 %v5854, %v6132
        %v6575 = vmul.f32 %v5855, %v6147
        %v6576 = vmul.f32 %v5856, %v6162
        %v6577 = vmul.f32 %v5857, %v6177
        %v6578 = vmul.f32 %v5858, %v6192
        %v6579 = vmul.f32 %v5859, %v6207
        %v6580 = vmul.f32 %v5860, %v6222
        %v6581 = vmul.f32 %v5861, %v6237
        %v6582 = vmul.f32 %v5862, %v6252
        %v6583 = vmul.f32 %v5863, %v6267
        %v6584 = vmul.f32 %v5864, %v6282
        %v6585 = vmul.f32 %v5865, %v6297
        %v6586 = vmul.f32 %v5866, %v6312
        %v6587 = vmul.f32 %v5867, %v6327
        %v6588 = vmul.f32 %v5868, %v6342
        %v6589 = vmul.f32 %v5869, %v6357
        %v6590 = vmul.f32 %v5870, %v6372
        %v6591 = vmul.f32 %v5871, %v6387
        %v6592 = vmul.f32 %v5872, %v6402
        %v6593 = vmul.f32 %v5873, %v6417
        %v6594 = vmul.f32 %v5874, %v6432
        %v6595 = vmul.f32 %v5875, %v6447
        %v6596 = vmul.f32 %v5876, %v6462
        %v6597 = vmul.f32 %v5877, %v6477
        %v6598 = vmul.f32 %v5878, %v6492
        %v6599 = vmul.f32 %v5879, %v6507
        %v6600 = vmul.f32 %v5880, %v6522
        %v6601 = vmul.f32 %v5881, %v6537
        %v6602 = vmul.f32 %v5882, %v6552
        %v6603 = vmul.f32 %v5883, %v6567
        %v6604 = vmul.f32 %v6568, %v5282
        %v6605 = vmul.f32 %v6569, %v5287
        %v6606 = vmul.f32 %v6570, %v5292
        %v6607 = vmul.f32 %v6571, %v5297
        %v6608 = vmul.f32 %v6572, %v5302
        %v6609 = vmul.f32 %v6573, %v5307
        %v6610 = vmul.f32 %v6574, %v5312
        %v6611 = vmul.f32 %v6575, %v5317
        %v6612 = vmul.f32 %v6576, %v5322
        %v6613 = vmul.f32 %v6577, %v5327
        %v6614 = vmul.f32 %v6578, %v5332
        %v6615 = vmul.f32 %v6579, %v5337
        %v6616 = vmul.f32 %v6580, %v5342
        %v6617 = vmul.f32 %v6581, %v5347
        %v6618 = vmul.f32 %v6582, %v5352
        %v6619 = vmul.f32 %v6583, %v5357
        %v6620 = vmul.f32 %v6584, %v5362
        %v6621 = vmul.f32 %v6585, %v5367
        %v6622 = vmul.f32 %v6586, %v5372
        %v6623 = vmul.f32 %v6587, %v5377
        %v6624 = vmul.f32 %v6588, %v5382
        %v6625 = vmul.f32 %v6589, %v5387
        %v6626 = vmul.f32 %v6590, %v5392
        %v6627 = vmul.f32 %v6591, %v5397
        %v6628 = vmul.f32 %v6592, %v5402
        %v6629 = vmul.f32 %v6593, %v5407
        %v6630 = vmul.f32 %v6594, %v5412
        %v6631 = vmul.f32 %v6595, %v5417
        %v6632 = vmul.f32 %v6596, %v5422
        %v6633 = vmul.f32 %v6597, %v5427
        %v6634 = vmul.f32 %v6598, %v5432
        %v6635 = vmul.f32 %v6599, %v5437
        %v6636 = vmul.f32 %v6600, %v5442
        %v6637 = vmul.f32 %v6601, %v5447
        %v6638 = vmul.f32 %v6602, %v5452
        %v6639 = vmul.f32 %v6603, %v5457
        %v6640 = vpack.c.bf16 %v6604, %v6604
        %v6641 = vpack.c.bf16 %v6605, %v6605
        %v6642 = vpack.c.bf16 %v6606, %v6606
        %v6643 = vpack.c.bf16 %v6607, %v6607
        %v6644 = vpack.c.bf16 %v6608, %v6608
        %v6645 = vpack.c.bf16 %v6609, %v6609
        %v6646 = vpack.c.bf16 %v6610, %v6610
        %v6647 = vpack.c.bf16 %v6611, %v6611
        %v6648 = vpack.c.bf16 %v6612, %v6612
        %v6649 = vpack.c.bf16 %v6613, %v6613
        %v6650 = vpack.c.bf16 %v6614, %v6614
        %v6651 = vpack.c.bf16 %v6615, %v6615
        %v6652 = vpack.c.bf16 %v6616, %v6616
        %v6653 = vpack.c.bf16 %v6617, %v6617
        %v6654 = vpack.c.bf16 %v6618, %v6618
        %v6655 = vpack.c.bf16 %v6619, %v6619
        %v6656 = vpack.c.bf16 %v6620, %v6620
        %v6657 = vpack.c.bf16 %v6621, %v6621
        %v6658 = vpack.c.bf16 %v6622, %v6622
        %v6659 = vpack.c.bf16 %v6623, %v6623
        %v6660 = vpack.c.bf16 %v6624, %v6624
        %v6661 = vpack.c.bf16 %v6625, %v6625
        %v6662 = vpack.c.bf16 %v6626, %v6626
        %v6663 = vpack.c.bf16 %v6627, %v6627
        %v6664 = vpack.c.bf16 %v6628, %v6628
        %v6665 = vpack.c.bf16 %v6629, %v6629
        %v6666 = vpack.c.bf16 %v6630, %v6630
        %v6667 = vpack.c.bf16 %v6631, %v6631
        %v6668 = vpack.c.bf16 %v6632, %v6632
        %v6669 = vpack.c.bf16 %v6633, %v6633
        %v6670 = vpack.c.bf16 %v6634, %v6634
        %v6671 = vpack.c.bf16 %v6635, %v6635
        %v6672 = vpack.c.bf16 %v6636, %v6636
        %v6673 = vpack.c.bf16 %v6637, %v6637
        %v6674 = vpack.c.bf16 %v6638, %v6638
        %v6675 = vpack.c.bf16 %v6639, %v6639
        %v6677 = vshrl.u32 %v6640, 16
        %v6679 = vrot.slane %v6677, 6
        %v6680 = vshll.u32 %v6640, 16
        %v6682 = vrot.slane %v6680, 7
        %v6683 = vor.u32 %v6679, %v6682
        %v6684 = vrot.slane %v6683, 4
        %v6686 = vshrl.u32 %v6641, 16
        %v6688 = vrot.slane %v6686, 6
        %v6689 = vshll.u32 %v6641, 16
        %v6691 = vrot.slane %v6689, 7
        %v6692 = vor.u32 %v6688, %v6691
        %v6693 = vsel %vm1674, %v6684, %v6692
        %v6694 = vrot.slane %v6692, 4
        %v6696 = vshrl.u32 %v6642, 16
        %v6698 = vrot.slane %v6696, 6
        %v6699 = vshll.u32 %v6642, 16
        %v6701 = vrot.slane %v6699, 7
        %v6702 = vor.u32 %v6698, %v6701
        %v6703 = vsel %vm1674, %v6694, %v6702
        %v6704 = vrot.slane %v6702, 4
        %v6706 = vshrl.u32 %v6643, 16
        %v6708 = vrot.slane %v6706, 6
        %v6709 = vshll.u32 %v6643, 16
        %v6711 = vrot.slane %v6709, 7
        %v6712 = vor.u32 %v6708, %v6711
        %v6713 = vsel %vm1674, %v6704, %v6712
        %v6714 = vrot.slane %v6712, 4
        %v6716 = vshrl.u32 %v6644, 16
        %v6718 = vrot.slane %v6716, 6
        %v6719 = vshll.u32 %v6644, 16
        %v6721 = vrot.slane %v6719, 7
        %v6722 = vor.u32 %v6718, %v6721
        %v6723 = vsel %vm1674, %v6714, %v6722
        %v6724 = vrot.slane %v6722, 4
        %v6726 = vshrl.u32 %v6645, 16
        %v6728 = vrot.slane %v6726, 6
        %v6729 = vshll.u32 %v6645, 16
        %v6731 = vrot.slane %v6729, 7
        %v6732 = vor.u32 %v6728, %v6731
        %v6733 = vsel %vm1674, %v6724, %v6732
        %v6734 = vrot.slane %v6732, 4
        %v6736 = vshrl.u32 %v6646, 16
        %v6738 = vrot.slane %v6736, 6
        %v6739 = vshll.u32 %v6646, 16
        %v6741 = vrot.slane %v6739, 7
        %v6742 = vor.u32 %v6738, %v6741
        %v6743 = vsel %vm1674, %v6734, %v6742
        %v6744 = vrot.slane %v6742, 4
        %v6746 = vshrl.u32 %v6647, 16
        %v6748 = vrot.slane %v6746, 6
        %v6749 = vshll.u32 %v6647, 16
        %v6751 = vrot.slane %v6749, 7
        %v6752 = vor.u32 %v6748, %v6751
        %v6753 = vsel %vm1674, %v6744, %v6752
        %v6754 = vrot.slane %v6752, 4
        %v6756 = vshrl.u32 %v6648, 16
        %v6758 = vrot.slane %v6756, 6
        %v6759 = vshll.u32 %v6648, 16
        %v6761 = vrot.slane %v6759, 7
        %v6762 = vor.u32 %v6758, %v6761
        %v6763 = vsel %vm1674, %v6754, %v6762
        %v6764 = vrot.slane %v6762, 4
        %v6766 = vshrl.u32 %v6649, 16
        %v6768 = vrot.slane %v6766, 6
        %v6769 = vshll.u32 %v6649, 16
        %v6771 = vrot.slane %v6769, 7
        %v6772 = vor.u32 %v6768, %v6771
        %v6773 = vsel %vm1674, %v6764, %v6772
        %v6774 = vrot.slane %v6772, 4
        %v6776 = vshrl.u32 %v6650, 16
        %v6778 = vrot.slane %v6776, 6
        %v6779 = vshll.u32 %v6650, 16
        %v6781 = vrot.slane %v6779, 7
        %v6782 = vor.u32 %v6778, %v6781
        %v6783 = vsel %vm1674, %v6774, %v6782
        %v6784 = vrot.slane %v6782, 4
        %v6786 = vshrl.u32 %v6651, 16
        %v6788 = vrot.slane %v6786, 6
        %v6789 = vshll.u32 %v6651, 16
        %v6791 = vrot.slane %v6789, 7
        %v6792 = vor.u32 %v6788, %v6791
        %v6793 = vsel %vm1674, %v6784, %v6792
        %v6794 = vrot.slane %v6792, 4
        %v6796 = vshrl.u32 %v6652, 16
        %v6798 = vrot.slane %v6796, 6
        %v6799 = vshll.u32 %v6652, 16
        %v6801 = vrot.slane %v6799, 7
        %v6802 = vor.u32 %v6798, %v6801
        %v6803 = vsel %vm1674, %v6794, %v6802
        %v6804 = vrot.slane %v6802, 4
        %v6806 = vshrl.u32 %v6653, 16
        %v6808 = vrot.slane %v6806, 6
        %v6809 = vshll.u32 %v6653, 16
        %v6811 = vrot.slane %v6809, 7
        %v6812 = vor.u32 %v6808, %v6811
        %v6813 = vsel %vm1674, %v6804, %v6812
        %v6814 = vrot.slane %v6812, 4
        %v6816 = vshrl.u32 %v6654, 16
        %v6818 = vrot.slane %v6816, 6
        %v6819 = vshll.u32 %v6654, 16
        %v6821 = vrot.slane %v6819, 7
        %v6822 = vor.u32 %v6818, %v6821
        %v6823 = vsel %vm1674, %v6814, %v6822
        %v6824 = vrot.slane %v6822, 4
        %v6826 = vshrl.u32 %v6655, 16
        %v6828 = vrot.slane %v6826, 6
        %v6829 = vshll.u32 %v6655, 16
        %v6831 = vrot.slane %v6829, 7
        %v6832 = vor.u32 %v6828, %v6831
        %v6833 = vsel %vm1674, %v6824, %v6832
        %v6834 = vrot.slane %v6832, 4
        %v6836 = vshrl.u32 %v6656, 16
        %v6838 = vrot.slane %v6836, 6
        %v6839 = vshll.u32 %v6656, 16
        %v6841 = vrot.slane %v6839, 7
        %v6842 = vor.u32 %v6838, %v6841
        %v6843 = vsel %vm1674, %v6834, %v6842
        %v6844 = vrot.slane %v6842, 4
        %v6846 = vshrl.u32 %v6657, 16
        %v6848 = vrot.slane %v6846, 6
        %v6849 = vshll.u32 %v6657, 16
        %v6851 = vrot.slane %v6849, 7
        %v6852 = vor.u32 %v6848, %v6851
        %v6853 = vsel %vm1674, %v6844, %v6852
        %v6854 = vrot.slane %v6852, 4
        %v6856 = vshrl.u32 %v6658, 16
        %v6858 = vrot.slane %v6856, 6
        %v6859 = vshll.u32 %v6658, 16
        %v6861 = vrot.slane %v6859, 7
        %v6862 = vor.u32 %v6858, %v6861
        %v6863 = vsel %vm1674, %v6854, %v6862
        %v6864 = vrot.slane %v6862, 4
        %v6866 = vshrl.u32 %v6659, 16
        %v6868 = vrot.slane %v6866, 6
        %v6869 = vshll.u32 %v6659, 16
        %v6871 = vrot.slane %v6869, 7
        %v6872 = vor.u32 %v6868, %v6871
        %v6873 = vsel %vm1674, %v6864, %v6872
        %v6874 = vrot.slane %v6872, 4
        %v6876 = vshrl.u32 %v6660, 16
        %v6878 = vrot.slane %v6876, 6
        %v6879 = vshll.u32 %v6660, 16
        %v6881 = vrot.slane %v6879, 7
        %v6882 = vor.u32 %v6878, %v6881
        %v6883 = vsel %vm1674, %v6874, %v6882
        %v6884 = vrot.slane %v6882, 4
        %v6886 = vshrl.u32 %v6661, 16
        %v6888 = vrot.slane %v6886, 6
        %v6889 = vshll.u32 %v6661, 16
        %v6891 = vrot.slane %v6889, 7
        %v6892 = vor.u32 %v6888, %v6891
        %v6893 = vsel %vm1674, %v6884, %v6892
        %v6894 = vrot.slane %v6892, 4
        %v6896 = vshrl.u32 %v6662, 16
        %v6898 = vrot.slane %v6896, 6
        %v6899 = vshll.u32 %v6662, 16
        %v6901 = vrot.slane %v6899, 7
        %v6902 = vor.u32 %v6898, %v6901
        %v6903 = vsel %vm1674, %v6894, %v6902
        %v6904 = vrot.slane %v6902, 4
        %v6906 = vshrl.u32 %v6663, 16
        %v6908 = vrot.slane %v6906, 6
        %v6909 = vshll.u32 %v6663, 16
        %v6911 = vrot.slane %v6909, 7
        %v6912 = vor.u32 %v6908, %v6911
        %v6913 = vsel %vm1674, %v6904, %v6912
        %v6914 = vrot.slane %v6912, 4
        %v6916 = vshrl.u32 %v6664, 16
        %v6918 = vrot.slane %v6916, 6
        %v6919 = vshll.u32 %v6664, 16
        %v6921 = vrot.slane %v6919, 7
        %v6922 = vor.u32 %v6918, %v6921
        %v6923 = vsel %vm1674, %v6914, %v6922
        %v6924 = vrot.slane %v6922, 4
        %v6926 = vshrl.u32 %v6665, 16
        %v6928 = vrot.slane %v6926, 6
        %v6929 = vshll.u32 %v6665, 16
        %v6931 = vrot.slane %v6929, 7
        %v6932 = vor.u32 %v6928, %v6931
        %v6933 = vsel %vm1674, %v6924, %v6932
        %v6934 = vrot.slane %v6932, 4
        %v6936 = vshrl.u32 %v6666, 16
        %v6938 = vrot.slane %v6936, 6
        %v6939 = vshll.u32 %v6666, 16
        %v6941 = vrot.slane %v6939, 7
        %v6942 = vor.u32 %v6938, %v6941
        %v6943 = vsel %vm1674, %v6934, %v6942
        %v6944 = vrot.slane %v6942, 4
        %v6946 = vshrl.u32 %v6667, 16
        %v6948 = vrot.slane %v6946, 6
        %v6949 = vshll.u32 %v6667, 16
        %v6951 = vrot.slane %v6949, 7
        %v6952 = vor.u32 %v6948, %v6951
        %v6953 = vsel %vm1674, %v6944, %v6952
        %v6954 = vrot.slane %v6952, 4
        %v6956 = vshrl.u32 %v6668, 16
        %v6958 = vrot.slane %v6956, 6
        %v6959 = vshll.u32 %v6668, 16
        %v6961 = vrot.slane %v6959, 7
        %v6962 = vor.u32 %v6958, %v6961
        %v6963 = vsel %vm1674, %v6954, %v6962
        %v6964 = vrot.slane %v6962, 4
        %v6966 = vshrl.u32 %v6669, 16
        %v6968 = vrot.slane %v6966, 6
        %v6969 = vshll.u32 %v6669, 16
        %v6971 = vrot.slane %v6969, 7
        %v6972 = vor.u32 %v6968, %v6971
        %v6973 = vsel %vm1674, %v6964, %v6972
        %v6974 = vrot.slane %v6972, 4
        %v6976 = vshrl.u32 %v6670, 16
        %v6978 = vrot.slane %v6976, 6
        %v6979 = vshll.u32 %v6670, 16
        %v6981 = vrot.slane %v6979, 7
        %v6982 = vor.u32 %v6978, %v6981
        %v6983 = vsel %vm1674, %v6974, %v6982
        %v6984 = vrot.slane %v6982, 4
        %v6986 = vshrl.u32 %v6671, 16
        %v6988 = vrot.slane %v6986, 6
        %v6989 = vshll.u32 %v6671, 16
        %v6991 = vrot.slane %v6989, 7
        %v6992 = vor.u32 %v6988, %v6991
        %v6993 = vsel %vm1674, %v6984, %v6992
        %v6994 = vrot.slane %v6992, 4
        %v6996 = vshrl.u32 %v6672, 16
        %v6998 = vrot.slane %v6996, 6
        %v6999 = vshll.u32 %v6672, 16
        %v7001 = vrot.slane %v6999, 7
        %v7002 = vor.u32 %v6998, %v7001
        %v7003 = vsel %vm1674, %v6994, %v7002
        %v7004 = vrot.slane %v7002, 4
        %v7006 = vshrl.u32 %v6673, 16
        %v7008 = vrot.slane %v7006, 6
        %v7009 = vshll.u32 %v6673, 16
        %v7011 = vrot.slane %v7009, 7
        %v7012 = vor.u32 %v7008, %v7011
        %v7013 = vsel %vm1674, %v7004, %v7012
        %v7014 = vrot.slane %v7012, 4
        %v7016 = vshrl.u32 %v6674, 16
        %v7018 = vrot.slane %v7016, 6
        %v7019 = vshll.u32 %v6674, 16
        %v7021 = vrot.slane %v7019, 7
        %v7022 = vor.u32 %v7018, %v7021
        %v7023 = vsel %vm1674, %v7014, %v7022
        %v7024 = vrot.slane %v7022, 4
        %v7026 = vshrl.u32 %v6675, 16
        %v7028 = vrot.slane %v7026, 6
        %v7029 = vshll.u32 %v6675, 16
        %v7031 = vrot.slane %v7029, 7
        %v7032 = vor.u32 %v7028, %v7031
        %v7033 = vsel %vm1674, %v7024, %v7032
        %v7034 = vrot.slane %v7032, 4
        %v7072 = vld [vmem:[#allocation3 + $0x8] sm:$0xe]
        %v7073 = vsel %vm623, %v6683, %v7072
        %7074 = vst [vmem:[#allocation3 + $0x8] sm:$0xe] %v7073
        %7075 = vst [vmem:[#allocation3 + $0xc] sm:$0xf] %v6693
        %7076 = vst [vmem:[#allocation3 + $0x10] sm:$0xf] %v6703
        %7077 = vst [vmem:[#allocation3 + $0x14] sm:$0xf] %v6713
        %7078 = vst [vmem:[#allocation3 + $0x18] sm:$0xf] %v6723
        %7079 = vst [vmem:[#allocation3 + $0x1c] sm:$0xf] %v6733
        %7080 = vst [vmem:[#allocation3 + $0x20] sm:$0xf] %v6743
        %7081 = vst [vmem:[#allocation3 + $0x24] sm:$0xf] %v6753
        %7082 = vst [vmem:[#allocation3 + $0x28] sm:$0xf] %v6763
        %7083 = vst [vmem:[#allocation3 + $0x2c] sm:$0xf] %v6773
        %7084 = vst [vmem:[#allocation3 + $0x30] sm:$0xf] %v6783
        %7085 = vst [vmem:[#allocation3 + $0x34] sm:$0xf] %v6793
        %7086 = vst [vmem:[#allocation3 + $0x38] sm:$0xf] %v6803
        %7087 = vst [vmem:[#allocation3 + $0x3c] sm:$0xf] %v6813
        %7088 = vst [vmem:[#allocation3 + $0x40] sm:$0xf] %v6823
        %7089 = vst [vmem:[#allocation3 + $0x44] sm:$0xf] %v6833
        %7090 = vst [vmem:[#allocation3 + $0x48] sm:$0xf] %v6843
        %7091 = vst [vmem:[#allocation3 + $0x4c] sm:$0xf] %v6853
        %7092 = vst [vmem:[#allocation3 + $0x50] sm:$0xf] %v6863
        %7093 = vst [vmem:[#allocation3 + $0x54] sm:$0xf] %v6873
        %7094 = vst [vmem:[#allocation3 + $0x58] sm:$0xf] %v6883
        %7095 = vst [vmem:[#allocation3 + $0x5c] sm:$0xf] %v6893
        %7096 = vst [vmem:[#allocation3 + $0x60] sm:$0xf] %v6903
        %7097 = vst [vmem:[#allocation3 + $0x64] sm:$0xf] %v6913
        %7098 = vst [vmem:[#allocation3 + $0x68] sm:$0xf] %v6923
        %7099 = vst [vmem:[#allocation3 + $0x6c] sm:$0xf] %v6933
        %7100 = vst [vmem:[#allocation3 + $0x70] sm:$0xf] %v6943
        %7101 = vst [vmem:[#allocation3 + $0x74] sm:$0xf] %v6953
        %7102 = vst [vmem:[#allocation3 + $0x78] sm:$0xf] %v6963
        %7103 = vst [vmem:[#allocation3 + $0x7c] sm:$0xf] %v6973
        %7104 = vst [vmem:[#allocation3 + $0x80] sm:$0xf] %v6983
        %7105 = vst [vmem:[#allocation3 + $0x84] sm:$0xf] %v6993
        %7106 = vst [vmem:[#allocation3 + $0x88] sm:$0xf] %v7003
        %7107 = vst [vmem:[#allocation3 + $0x8c] sm:$0xf] %v7013
        %7108 = vst [vmem:[#allocation3 + $0x90] sm:$0xf] %v7023
        %7109 = vst [vmem:[#allocation3 + $0x94] sm:$0xf] %v7033
        %v7110 = vld [vmem:[#allocation3 + $0x98] sm:$0x3]
        %v7111 = vsel %vm617, %v7034, %v7110
        %7112 = vst [vmem:[#allocation3 + $0x98] sm:$0x3] %v7111
        %v7113 = vld [vmem:[#allocation3] sm:$0xf]
        %v7114 = vld [vmem:[#allocation3 + $0x4] sm:$0xf]
        %v7115 = vld [vmem:[#allocation3 + $0x8] sm:$0xf]
        %v7116 = vld [vmem:[#allocation3 + $0xc] sm:$0xf]
        %v7117 = vld [vmem:[#allocation3 + $0x10] sm:$0xf]
        %v7118 = vld [vmem:[#allocation3 + $0x14] sm:$0xf]
        %v7119 = vld [vmem:[#allocation3 + $0x18] sm:$0xf]
        %v7120 = vld [vmem:[#allocation3 + $0x1c] sm:$0xf]
        %v7121 = vld [vmem:[#allocation3 + $0x20] sm:$0xf]
        %v7122 = vld [vmem:[#allocation3 + $0x24] sm:$0xf]
        %v7123 = vld [vmem:[#allocation3 + $0x28] sm:$0xf]
        %v7124 = vld [vmem:[#allocation3 + $0x2c] sm:$0xf]
        %v7125 = vld [vmem:[#allocation3 + $0x30] sm:$0xf]
        %v7126 = vld [vmem:[#allocation3 + $0x34] sm:$0xf]
        %v7127 = vld [vmem:[#allocation3 + $0x38] sm:$0xf]
        %v7128 = vld [vmem:[#allocation3 + $0x3c] sm:$0xf]
        %v7129 = vld [vmem:[#allocation3 + $0x40] sm:$0xf]
        %v7130 = vld [vmem:[#allocation3 + $0x44] sm:$0xf]
        %v7131 = vld [vmem:[#allocation3 + $0x48] sm:$0xf]
        %v7132 = vld [vmem:[#allocation3 + $0x4c] sm:$0xf]
        %v7133 = vld [vmem:[#allocation3 + $0x50] sm:$0xf]
        %v7134 = vld [vmem:[#allocation3 + $0x54] sm:$0xf]
        %v7135 = vld [vmem:[#allocation3 + $0x58] sm:$0xf]
        %v7136 = vld [vmem:[#allocation3 + $0x5c] sm:$0xf]
        %v7137 = vld [vmem:[#allocation3 + $0x60] sm:$0xf]
        %v7138 = vld [vmem:[#allocation3 + $0x64] sm:$0xf]
        %v7139 = vld [vmem:[#allocation3 + $0x68] sm:$0xf]
        %v7140 = vld [vmem:[#allocation3 + $0x6c] sm:$0xf]
        %v7141 = vld [vmem:[#allocation3 + $0x70] sm:$0xf]
        %v7142 = vld [vmem:[#allocation3 + $0x74] sm:$0xf]
        %v7143 = vld [vmem:[#allocation3 + $0x78] sm:$0xf]
        %v7144 = vld [vmem:[#allocation3 + $0x7c] sm:$0xf]
        %v7145 = vld [vmem:[#allocation3 + $0x80] sm:$0xf]
        %v7146 = vld [vmem:[#allocation3 + $0x84] sm:$0xf]
        %v7147 = vld [vmem:[#allocation3 + $0x88] sm:$0xf]
        %v7148 = vld [vmem:[#allocation3 + $0x8c] sm:$0xf]
        %v7149 = vld [vmem:[#allocation9] sm:$0xf]
        %v7150 = vld [vmem:[#allocation9 + $0x4] sm:$0xf]
        %v7151 = vld [vmem:[#allocation9 + $0x8] sm:$0xf]
        %v7152 = vld [vmem:[#allocation9 + $0xc] sm:$0xf]
        %v7153 = vld [vmem:[#allocation9 + $0x10] sm:$0xf]
        %v7154 = vld [vmem:[#allocation9 + $0x14] sm:$0xf]
        %v7155 = vld [vmem:[#allocation9 + $0x18] sm:$0xf]
        %v7156 = vld [vmem:[#allocation9 + $0x1c] sm:$0xf]
        %v7157 = vld [vmem:[#allocation9 + $0x20] sm:$0xf]
        %v7158 = vld [vmem:[#allocation9 + $0x24] sm:$0xf]
        %v7159 = vld [vmem:[#allocation9 + $0x28] sm:$0xf]
        %v7160 = vld [vmem:[#allocation9 + $0x2c] sm:$0xf]
        %v7161 = vld [vmem:[#allocation9 + $0x30] sm:$0xf]
        %v7162 = vld [vmem:[#allocation9 + $0x34] sm:$0xf]
        %v7163 = vld [vmem:[#allocation9 + $0x38] sm:$0xf]
        %v7164 = vld [vmem:[#allocation9 + $0x3c] sm:$0xf]
        %v7165 = vld [vmem:[#allocation3 + $0x90] sm:$0x1]
        %s7166 = scalar_lea.vmem [#allocation9], 64
        %v7167 = vld [vmem:[%s7166] sm:$0xf]
        %v7168 = vld [vmem:[%s7166 + $0x4] sm:$0xf]
        %v7169 = vld [vmem:[%s7166 + $0x8] sm:$0xf]
        %v7170 = vld [vmem:[%s7166 + $0xc] sm:$0xf]
        %v7171 = vld [vmem:[%s7166 + $0x10] sm:$0xf]
        %v7172 = vld [vmem:[%s7166 + $0x14] sm:$0xf]
        %v7173 = vld [vmem:[%s7166 + $0x18] sm:$0xf]
        %v7174 = vld [vmem:[%s7166 + $0x1c] sm:$0xf]
        %v7175 = vld [vmem:[%s7166 + $0x20] sm:$0xf]
        %v7176 = vld [vmem:[%s7166 + $0x24] sm:$0xf]
        %v7177 = vld [vmem:[%s7166 + $0x28] sm:$0xf]
        %v7178 = vld [vmem:[%s7166 + $0x2c] sm:$0xf]
        %v7179 = vld [vmem:[%s7166 + $0x30] sm:$0xf]
        %v7180 = vld [vmem:[%s7166 + $0x34] sm:$0xf]
        %v7181 = vld [vmem:[%s7166 + $0x38] sm:$0xf]
        %v7182 = vld [vmem:[%s7166 + $0x3c] sm:$0xf]
        %v7220 = vunpack.c.l.b16 %v7113
        %v7221 = vunpack.c.l.b16 %v7114
        %v7222 = vunpack.c.l.b16 %v7115
        %v7223 = vunpack.c.l.b16 %v7116
        %v7224 = vunpack.c.l.b16 %v7117
        %v7225 = vunpack.c.l.b16 %v7118
        %v7226 = vunpack.c.l.b16 %v7119
        %v7227 = vunpack.c.l.b16 %v7120
        %v7228 = vunpack.c.l.b16 %v7121
        %v7229 = vunpack.c.l.b16 %v7122
        %v7230 = vunpack.c.l.b16 %v7123
        %v7231 = vunpack.c.l.b16 %v7124
        %v7232 = vunpack.c.l.b16 %v7125
        %v7233 = vunpack.c.l.b16 %v7126
        %v7234 = vunpack.c.l.b16 %v7127
        %v7235 = vunpack.c.l.b16 %v7128
        %v7236 = vunpack.c.l.b16 %v7129
        %v7237 = vunpack.c.l.b16 %v7130
        %v7238 = vunpack.c.l.b16 %v7131
        %v7239 = vunpack.c.l.b16 %v7132
        %v7240 = vunpack.c.l.b16 %v7133
        %v7241 = vunpack.c.l.b16 %v7134
        %v7242 = vunpack.c.l.b16 %v7135
        %v7243 = vunpack.c.l.b16 %v7136
        %v7244 = vunpack.c.l.b16 %v7137
        %v7245 = vunpack.c.l.b16 %v7138
        %v7246 = vunpack.c.l.b16 %v7139
        %v7247 = vunpack.c.l.b16 %v7140
        %v7248 = vunpack.c.l.b16 %v7141
        %v7249 = vunpack.c.l.b16 %v7142
        %v7250 = vunpack.c.l.b16 %v7143
        %v7251 = vunpack.c.l.b16 %v7144
        %v7252 = vunpack.c.l.b16 %v7145
        %v7253 = vunpack.c.l.b16 %v7146
        %v7254 = vunpack.c.l.b16 %v7147
        %v7255 = vunpack.c.l.b16 %v7148
        %v7256 = vunpack.c.l.b16 %v7165
        %v7257 = vpack.c.b16 %v7221, %v7220
        %v7258 = vpack.c.b16 %v7223, %v7222
        %v7259 = vpack.c.b16 %v7225, %v7224
        %v7260 = vpack.c.b16 %v7227, %v7226
        %v7261 = vpack.c.b16 %v7229, %v7228
        %v7262 = vpack.c.b16 %v7231, %v7230
        %v7263 = vpack.c.b16 %v7233, %v7232
        %v7264 = vpack.c.b16 %v7235, %v7234
        %v7265 = vpack.c.b16 %v7237, %v7236
        %v7266 = vpack.c.b16 %v7239, %v7238
        %v7267 = vpack.c.b16 %v7241, %v7240
        %v7268 = vpack.c.b16 %v7243, %v7242
        %v7269 = vpack.c.b16 %v7245, %v7244
        %v7270 = vpack.c.b16 %v7247, %v7246
        %v7271 = vpack.c.b16 %v7249, %v7248
        %v7272 = vpack.c.b16 %v7251, %v7250
        %v7273 = vpack.c.b16 %v7253, %v7252
        %v7274 = vpack.c.b16 %v7255, %v7254
        %v7275 = vpack.c.b16 %v7256, %v7256
        %v7277 = vshrl.u32 %v7257, 16
        %v7279 = vshll.u32 %v7257, 16
        %v7281 = vrot.slane %v7279, 1
        %v7282 = vor.u32 %v7277, %v7281
        %v7284 = vshll.u32 %v7258, 16
        %v7286 = vrot.slane %v7284, 1
        %v7287 = vsel %vm2384, %v7282, %v7286
        %v7288 = vshrl.u32 %v7258, 16
        %v7290 = vor.u32 %v7288, %v7286
        %v7292 = vshll.u32 %v7259, 16
        %v7294 = vrot.slane %v7292, 1
        %v7295 = vsel %vm2384, %v7290, %v7294
        %v7296 = vshrl.u32 %v7259, 16
        %v7298 = vor.u32 %v7296, %v7294
        %v7300 = vshll.u32 %v7260, 16
        %v7302 = vrot.slane %v7300, 1
        %v7303 = vsel %vm2384, %v7298, %v7302
        %v7304 = vshrl.u32 %v7260, 16
        %v7306 = vor.u32 %v7304, %v7302
        %v7308 = vshll.u32 %v7261, 16
        %v7310 = vrot.slane %v7308, 1
        %v7311 = vsel %vm2384, %v7306, %v7310
        %v7312 = vshrl.u32 %v7261, 16
        %v7314 = vor.u32 %v7312, %v7310
        %v7316 = vshll.u32 %v7262, 16
        %v7318 = vrot.slane %v7316, 1
        %v7319 = vsel %vm2384, %v7314, %v7318
        %v7320 = vshrl.u32 %v7262, 16
        %v7322 = vor.u32 %v7320, %v7318
        %v7324 = vshll.u32 %v7263, 16
        %v7326 = vrot.slane %v7324, 1
        %v7327 = vsel %vm2384, %v7322, %v7326
        %v7328 = vshrl.u32 %v7263, 16
        %v7330 = vor.u32 %v7328, %v7326
        %v7332 = vshll.u32 %v7264, 16
        %v7334 = vrot.slane %v7332, 1
        %v7335 = vsel %vm2384, %v7330, %v7334
        %v7336 = vshrl.u32 %v7264, 16
        %v7338 = vor.u32 %v7336, %v7334
        %v7340 = vshll.u32 %v7265, 16
        %v7342 = vrot.slane %v7340, 1
        %v7343 = vsel %vm2384, %v7338, %v7342
        %v7344 = vshrl.u32 %v7265, 16
        %v7346 = vor.u32 %v7344, %v7342
        %v7348 = vshll.u32 %v7266, 16
        %v7350 = vrot.slane %v7348, 1
        %v7351 = vsel %vm2384, %v7346, %v7350
        %v7352 = vshrl.u32 %v7266, 16
        %v7354 = vor.u32 %v7352, %v7350
        %v7356 = vshll.u32 %v7267, 16
        %v7358 = vrot.slane %v7356, 1
        %v7359 = vsel %vm2384, %v7354, %v7358
        %v7360 = vshrl.u32 %v7267, 16
        %v7362 = vor.u32 %v7360, %v7358
        %v7364 = vshll.u32 %v7268, 16
        %v7366 = vrot.slane %v7364, 1
        %v7367 = vsel %vm2384, %v7362, %v7366
        %v7368 = vshrl.u32 %v7268, 16
        %v7370 = vor.u32 %v7368, %v7366
        %v7372 = vshll.u32 %v7269, 16
        %v7374 = vrot.slane %v7372, 1
        %v7375 = vsel %vm2384, %v7370, %v7374
        %v7376 = vshrl.u32 %v7269, 16
        %v7378 = vor.u32 %v7376, %v7374
        %v7380 = vshll.u32 %v7270, 16
        %v7382 = vrot.slane %v7380, 1
        %v7383 = vsel %vm2384, %v7378, %v7382
        %v7384 = vshrl.u32 %v7270, 16
        %v7386 = vor.u32 %v7384, %v7382
        %v7388 = vshll.u32 %v7271, 16
        %v7390 = vrot.slane %v7388, 1
        %v7391 = vsel %vm2384, %v7386, %v7390
        %v7392 = vshrl.u32 %v7271, 16
        %v7394 = vor.u32 %v7392, %v7390
        %v7396 = vshll.u32 %v7272, 16
        %v7398 = vrot.slane %v7396, 1
        %v7399 = vsel %vm2384, %v7394, %v7398
        %v7400 = vshrl.u32 %v7272, 16
        %v7402 = vor.u32 %v7400, %v7398
        %v7404 = vshll.u32 %v7273, 16
        %v7406 = vrot.slane %v7404, 1
        %v7407 = vsel %vm2384, %v7402, %v7406
        %v7408 = vshrl.u32 %v7273, 16
        %v7410 = vor.u32 %v7408, %v7406
        %v7412 = vshll.u32 %v7274, 16
        %v7414 = vrot.slane %v7412, 1
        %v7415 = vsel %vm2384, %v7410, %v7414
        %v7416 = vshrl.u32 %v7274, 16
        %v7418 = vor.u32 %v7416, %v7414
        %v7420 = vshll.u32 %v7275, 16
        %v7422 = vrot.slane %v7420, 1
        %v7423 = vsel %vm2384, %v7418, %v7422
        %v7458 = vunpack.c.l.b16 %v7167
        %v7459 = vunpack.c.l.b16 %v7168
        %v7460 = vunpack.c.l.b16 %v7169
        %v7461 = vunpack.c.l.b16 %v7170
        %v7462 = vunpack.c.l.b16 %v7171
        %v7463 = vunpack.c.l.b16 %v7172
        %v7464 = vunpack.c.l.b16 %v7173
        %v7465 = vunpack.c.l.b16 %v7174
        %v7466 = vunpack.c.l.b16 %v7175
        %v7467 = vunpack.c.l.b16 %v7176
        %v7468 = vunpack.c.l.b16 %v7177
        %v7469 = vunpack.c.l.b16 %v7178
        %v7470 = vunpack.c.l.b16 %v7179
        %v7471 = vunpack.c.l.b16 %v7180
        %v7472 = vunpack.c.l.b16 %v7181
        %v7473 = vunpack.c.l.b16 %v7182
        %v7474 = vpack.c.b16 %v7459, %v7458
        %v7475 = vpack.c.b16 %v7461, %v7460
        %v7476 = vpack.c.b16 %v7463, %v7462
        %v7477 = vpack.c.b16 %v7465, %v7464
        %v7478 = vpack.c.b16 %v7467, %v7466
        %v7479 = vpack.c.b16 %v7469, %v7468
        %v7480 = vpack.c.b16 %v7471, %v7470
        %v7481 = vpack.c.b16 %v7473, %v7472
        %7490 = vmatpush.bf16.msra.mxu0 %v7481
        %7491 = vmatpush.bf16.msra.mxu0 %v7480
        %7492 = vmatpush.bf16.msra.mxu0 %v7479
        %7493 = vmatpush.bf16.msra.mxu0 %v7478
        %7494 = vmatpush.bf16.msra.mxu0 %v7477
        %7495 = vmatpush.bf16.msra.mxu0 %v7476
        %7496 = vmatpush.bf16.msra.mxu0 %v7475
        %7497 = vmatpush.bf16.msra.mxu0 %v7474
        %7498 = vmatmul.bf16.gmra.mxu0 %v7287
        %v7499 = vpop.f32.mrf.mxu0
        %v7500 = vadd.f32 0.0, %v7499
        %v7501 = vpop.f32.mrf.mxu0
        %v7502 = vadd.f32 0.0, %v7501
        %7503 = vmatmul.bf16.gmra.mxu0 %v7295
        %v7504 = vpop.f32.mrf.mxu0
        %v7505 = vadd.f32 0.0, %v7504
        %v7506 = vpop.f32.mrf.mxu0
        %v7507 = vadd.f32 0.0, %v7506
        %7508 = vmatmul.bf16.gmra.mxu0 %v7303
        %v7509 = vpop.f32.mrf.mxu0
        %v7510 = vadd.f32 0.0, %v7509
        %v7511 = vpop.f32.mrf.mxu0
        %v7512 = vadd.f32 0.0, %v7511
        %7513 = vmatmul.bf16.gmra.mxu0 %v7311
        %v7514 = vpop.f32.mrf.mxu0
        %v7515 = vadd.f32 0.0, %v7514
        %v7516 = vpop.f32.mrf.mxu0
        %v7517 = vadd.f32 0.0, %v7516
        %7518 = vmatmul.bf16.gmra.mxu0 %v7319
        %v7519 = vpop.f32.mrf.mxu0
        %v7520 = vadd.f32 0.0, %v7519
        %v7521 = vpop.f32.mrf.mxu0
        %v7522 = vadd.f32 0.0, %v7521
        %7523 = vmatmul.bf16.gmra.mxu0 %v7327
        %v7524 = vpop.f32.mrf.mxu0
        %v7525 = vadd.f32 0.0, %v7524
        %v7526 = vpop.f32.mrf.mxu0
        %v7527 = vadd.f32 0.0, %v7526
        %7528 = vmatmul.bf16.gmra.mxu0 %v7335
        %v7529 = vpop.f32.mrf.mxu0
        %v7530 = vadd.f32 0.0, %v7529
        %v7531 = vpop.f32.mrf.mxu0
        %v7532 = vadd.f32 0.0, %v7531
        %7533 = vmatmul.bf16.gmra.mxu0 %v7343
        %v7534 = vpop.f32.mrf.mxu0
        %v7535 = vadd.f32 0.0, %v7534
        %v7536 = vpop.f32.mrf.mxu0
        %v7537 = vadd.f32 0.0, %v7536
        %7538 = vmatmul.bf16.gmra.mxu0 %v7351
        %v7539 = vpop.f32.mrf.mxu0
        %v7540 = vadd.f32 0.0, %v7539
        %v7541 = vpop.f32.mrf.mxu0
        %v7542 = vadd.f32 0.0, %v7541
        %7543 = vmatmul.bf16.gmra.mxu0 %v7359
        %v7544 = vpop.f32.mrf.mxu0
        %v7545 = vadd.f32 0.0, %v7544
        %v7546 = vpop.f32.mrf.mxu0
        %v7547 = vadd.f32 0.0, %v7546
        %7548 = vmatmul.bf16.gmra.mxu0 %v7367
        %v7549 = vpop.f32.mrf.mxu0
        %v7550 = vadd.f32 0.0, %v7549
        %v7551 = vpop.f32.mrf.mxu0
        %v7552 = vadd.f32 0.0, %v7551
        %7553 = vmatmul.bf16.gmra.mxu0 %v7375
        %v7554 = vpop.f32.mrf.mxu0
        %v7555 = vadd.f32 0.0, %v7554
        %v7556 = vpop.f32.mrf.mxu0
        %v7557 = vadd.f32 0.0, %v7556
        %7558 = vmatmul.bf16.gmra.mxu0 %v7383
        %v7559 = vpop.f32.mrf.mxu0
        %v7560 = vadd.f32 0.0, %v7559
        %v7561 = vpop.f32.mrf.mxu0
        %v7562 = vadd.f32 0.0, %v7561
        %7563 = vmatmul.bf16.gmra.mxu0 %v7391
        %v7564 = vpop.f32.mrf.mxu0
        %v7565 = vadd.f32 0.0, %v7564
        %v7566 = vpop.f32.mrf.mxu0
        %v7567 = vadd.f32 0.0, %v7566
        %7568 = vmatmul.bf16.gmra.mxu0 %v7399
        %v7569 = vpop.f32.mrf.mxu0
        %v7570 = vadd.f32 0.0, %v7569
        %v7571 = vpop.f32.mrf.mxu0
        %v7572 = vadd.f32 0.0, %v7571
        %7573 = vmatmul.bf16.gmra.mxu0 %v7407
        %v7574 = vpop.f32.mrf.mxu0
        %v7575 = vadd.f32 0.0, %v7574
        %v7576 = vpop.f32.mrf.mxu0
        %v7577 = vadd.f32 0.0, %v7576
        %7578 = vmatmul.bf16.gmra.mxu0 %v7415
        %v7579 = vpop.f32.mrf.mxu0
        %v7580 = vadd.f32 0.0, %v7579
        %v7581 = vpop.f32.mrf.mxu0
        %v7582 = vadd.f32 0.0, %v7581
        %7583 = vmatmul.bf16.gmra.mxu0 %v7423
        %v7584 = vpop.f32.mrf.mxu0
        %v7585 = vadd.f32 0.0, %v7584
        %v7586 = vpop.f32.mrf.mxu0
        %v7587 = vadd.f32 0.0, %v7586
        %7588 = vdwg.mxu0
        %v7623 = vunpack.c.l.b16 %v7149
        %v7624 = vunpack.c.l.b16 %v7150
        %v7625 = vunpack.c.l.b16 %v7151
        %v7626 = vunpack.c.l.b16 %v7152
        %v7627 = vunpack.c.l.b16 %v7153
        %v7628 = vunpack.c.l.b16 %v7154
        %v7629 = vunpack.c.l.b16 %v7155
        %v7630 = vunpack.c.l.b16 %v7156
        %v7631 = vunpack.c.l.b16 %v7157
        %v7632 = vunpack.c.l.b16 %v7158
        %v7633 = vunpack.c.l.b16 %v7159
        %v7634 = vunpack.c.l.b16 %v7160
        %v7635 = vunpack.c.l.b16 %v7161
        %v7636 = vunpack.c.l.b16 %v7162
        %v7637 = vunpack.c.l.b16 %v7163
        %v7638 = vunpack.c.l.b16 %v7164
        %v7639 = vpack.c.b16 %v7624, %v7623
        %v7640 = vpack.c.b16 %v7626, %v7625
        %v7641 = vpack.c.b16 %v7628, %v7627
        %v7642 = vpack.c.b16 %v7630, %v7629
        %v7643 = vpack.c.b16 %v7632, %v7631
        %v7644 = vpack.c.b16 %v7634, %v7633
        %v7645 = vpack.c.b16 %v7636, %v7635
        %v7646 = vpack.c.b16 %v7638, %v7637
        %7655 = vmatpush.bf16.msra.mxu0 %v7646
        %7656 = vmatpush.bf16.msra.mxu0 %v7645
        %7657 = vmatpush.bf16.msra.mxu0 %v7644
        %7658 = vmatpush.bf16.msra.mxu0 %v7643
        %7659 = vmatpush.bf16.msra.mxu0 %v7642
        %7660 = vmatpush.bf16.msra.mxu0 %v7641
        %7661 = vmatpush.bf16.msra.mxu0 %v7640
        %7662 = vmatpush.bf16.msra.mxu0 %v7639
        %7663 = vmatmul.bf16.gmra.mxu0 %v7257
        %v7664 = vpop.f32.mrf.mxu0
        %v7665 = vadd.f32 %v7500, %v7664
        %v7666 = vpop.f32.mrf.mxu0
        %v7667 = vadd.f32 %v7502, %v7666
        %7668 = vmatmul.bf16.gmra.mxu0 %v7258
        %v7669 = vpop.f32.mrf.mxu0
        %v7670 = vadd.f32 %v7505, %v7669
        %v7671 = vpop.f32.mrf.mxu0
        %v7672 = vadd.f32 %v7507, %v7671
        %7673 = vmatmul.bf16.gmra.mxu0 %v7259
        %v7674 = vpop.f32.mrf.mxu0
        %v7675 = vadd.f32 %v7510, %v7674
        %v7676 = vpop.f32.mrf.mxu0
        %v7677 = vadd.f32 %v7512, %v7676
        %7678 = vmatmul.bf16.gmra.mxu0 %v7260
        %v7679 = vpop.f32.mrf.mxu0
        %v7680 = vadd.f32 %v7515, %v7679
        %v7681 = vpop.f32.mrf.mxu0
        %v7682 = vadd.f32 %v7517, %v7681
        %7683 = vmatmul.bf16.gmra.mxu0 %v7261
        %v7684 = vpop.f32.mrf.mxu0
        %v7685 = vadd.f32 %v7520, %v7684
        %v7686 = vpop.f32.mrf.mxu0
        %v7687 = vadd.f32 %v7522, %v7686
        %7688 = vmatmul.bf16.gmra.mxu0 %v7262
        %v7689 = vpop.f32.mrf.mxu0
        %v7690 = vadd.f32 %v7525, %v7689
        %v7691 = vpop.f32.mrf.mxu0
        %v7692 = vadd.f32 %v7527, %v7691
        %7693 = vmatmul.bf16.gmra.mxu0 %v7263
        %v7694 = vpop.f32.mrf.mxu0
        %v7695 = vadd.f32 %v7530, %v7694
        %v7696 = vpop.f32.mrf.mxu0
        %v7697 = vadd.f32 %v7532, %v7696
        %7698 = vmatmul.bf16.gmra.mxu0 %v7264
        %v7699 = vpop.f32.mrf.mxu0
        %v7700 = vadd.f32 %v7535, %v7699
        %v7701 = vpop.f32.mrf.mxu0
        %v7702 = vadd.f32 %v7537, %v7701
        %7703 = vmatmul.bf16.gmra.mxu0 %v7265
        %v7704 = vpop.f32.mrf.mxu0
        %v7705 = vadd.f32 %v7540, %v7704
        %v7706 = vpop.f32.mrf.mxu0
        %v7707 = vadd.f32 %v7542, %v7706
        %7708 = vmatmul.bf16.gmra.mxu0 %v7266
        %v7709 = vpop.f32.mrf.mxu0
        %v7710 = vadd.f32 %v7545, %v7709
        %v7711 = vpop.f32.mrf.mxu0
        %v7712 = vadd.f32 %v7547, %v7711
        %7713 = vmatmul.bf16.gmra.mxu0 %v7267
        %v7714 = vpop.f32.mrf.mxu0
        %v7715 = vadd.f32 %v7550, %v7714
        %v7716 = vpop.f32.mrf.mxu0
        %v7717 = vadd.f32 %v7552, %v7716
        %7718 = vmatmul.bf16.gmra.mxu0 %v7268
        %v7719 = vpop.f32.mrf.mxu0
        %v7720 = vadd.f32 %v7555, %v7719
        %v7721 = vpop.f32.mrf.mxu0
        %v7722 = vadd.f32 %v7557, %v7721
        %7723 = vmatmul.bf16.gmra.mxu0 %v7269
        %v7724 = vpop.f32.mrf.mxu0
        %v7725 = vadd.f32 %v7560, %v7724
        %v7726 = vpop.f32.mrf.mxu0
        %v7727 = vadd.f32 %v7562, %v7726
        %7728 = vmatmul.bf16.gmra.mxu0 %v7270
        %v7729 = vpop.f32.mrf.mxu0
        %v7730 = vadd.f32 %v7565, %v7729
        %v7731 = vpop.f32.mrf.mxu0
        %v7732 = vadd.f32 %v7567, %v7731
        %7733 = vmatmul.bf16.gmra.mxu0 %v7271
        %v7734 = vpop.f32.mrf.mxu0
        %v7735 = vadd.f32 %v7570, %v7734
        %v7736 = vpop.f32.mrf.mxu0
        %v7737 = vadd.f32 %v7572, %v7736
        %7738 = vmatmul.bf16.gmra.mxu0 %v7272
        %v7739 = vpop.f32.mrf.mxu0
        %v7740 = vadd.f32 %v7575, %v7739
        %v7741 = vpop.f32.mrf.mxu0
        %v7742 = vadd.f32 %v7577, %v7741
        %7743 = vmatmul.bf16.gmra.mxu0 %v7273
        %v7744 = vpop.f32.mrf.mxu0
        %v7745 = vadd.f32 %v7580, %v7744
        %v7746 = vpop.f32.mrf.mxu0
        %v7747 = vadd.f32 %v7582, %v7746
        %7748 = vmatmul.bf16.gmra.mxu0 %v7274
        %v7749 = vpop.f32.mrf.mxu0
        %v7750 = vadd.f32 %v7585, %v7749
        %v7751 = vpop.f32.mrf.mxu0
        %v7752 = vadd.f32 %v7587, %v7751
        %7753 = vdwg.mxu0
        %v7754 = vld [vmem:[#allocation3] sm:$0xe]
        %s7755 = scalar_lea.vmem [#allocation9], 128
        %v7756 = vld [vmem:[%s7755] sm:$0xf]
        %v7757 = vld [vmem:[%s7755 + $0x4] sm:$0xf]
        %v7758 = vld [vmem:[%s7755 + $0x8] sm:$0xf]
        %v7759 = vld [vmem:[%s7755 + $0xc] sm:$0xf]
        %v7760 = vld [vmem:[%s7755 + $0x10] sm:$0xf]
        %v7761 = vld [vmem:[%s7755 + $0x14] sm:$0xf]
        %v7762 = vld [vmem:[%s7755 + $0x18] sm:$0xf]
        %v7763 = vld [vmem:[%s7755 + $0x1c] sm:$0xf]
        %v7764 = vld [vmem:[%s7755 + $0x20] sm:$0xf]
        %v7765 = vld [vmem:[%s7755 + $0x24] sm:$0xf]
        %v7766 = vld [vmem:[%s7755 + $0x28] sm:$0xf]
        %v7767 = vld [vmem:[%s7755 + $0x2c] sm:$0xf]
        %v7768 = vld [vmem:[%s7755 + $0x30] sm:$0xf]
        %v7769 = vld [vmem:[%s7755 + $0x34] sm:$0xf]
        %v7770 = vld [vmem:[%s7755 + $0x38] sm:$0xf]
        %v7771 = vld [vmem:[%s7755 + $0x3c] sm:$0xf]
        %v7773 = vunpack.c.l.b16 %v7754
        %v7774 = vpack.c.b16 %v7221, %v7773
        %v7775 = vrot.slane %v7774, 1
        %v7776 = vrot.slane %v7258, 1
        %v7777 = vsel %vm2884, %v7775, %v7776
        %v7778 = vrot.slane %v7259, 1
        %v7779 = vsel %vm2884, %v7776, %v7778
        %v7780 = vrot.slane %v7260, 1
        %v7781 = vsel %vm2884, %v7778, %v7780
        %v7782 = vrot.slane %v7261, 1
        %v7783 = vsel %vm2884, %v7780, %v7782
        %v7784 = vrot.slane %v7262, 1
        %v7785 = vsel %vm2884, %v7782, %v7784
        %v7786 = vrot.slane %v7263, 1
        %v7787 = vsel %vm2884, %v7784, %v7786
        %v7788 = vrot.slane %v7264, 1
        %v7789 = vsel %vm2884, %v7786, %v7788
        %v7790 = vrot.slane %v7265, 1
        %v7791 = vsel %vm2884, %v7788, %v7790
        %v7792 = vrot.slane %v7266, 1
        %v7793 = vsel %vm2884, %v7790, %v7792
        %v7794 = vrot.slane %v7267, 1
        %v7795 = vsel %vm2884, %v7792, %v7794
        %v7796 = vrot.slane %v7268, 1
        %v7797 = vsel %vm2884, %v7794, %v7796
        %v7798 = vrot.slane %v7269, 1
        %v7799 = vsel %vm2884, %v7796, %v7798
        %v7800 = vrot.slane %v7270, 1
        %v7801 = vsel %vm2884, %v7798, %v7800
        %v7802 = vrot.slane %v7271, 1
        %v7803 = vsel %vm2884, %v7800, %v7802
        %v7804 = vrot.slane %v7272, 1
        %v7805 = vsel %vm2884, %v7802, %v7804
        %v7806 = vrot.slane %v7273, 1
        %v7807 = vsel %vm2884, %v7804, %v7806
        %v7808 = vrot.slane %v7274, 1
        %v7809 = vsel %vm2884, %v7806, %v7808
        %v7810 = vrot.slane %v7275, 1
        %v7811 = vsel %vm2884, %v7808, %v7810
        %v7846 = vunpack.c.l.b16 %v7756
        %v7847 = vunpack.c.l.b16 %v7757
        %v7848 = vunpack.c.l.b16 %v7758
        %v7849 = vunpack.c.l.b16 %v7759
        %v7850 = vunpack.c.l.b16 %v7760
        %v7851 = vunpack.c.l.b16 %v7761
        %v7852 = vunpack.c.l.b16 %v7762
        %v7853 = vunpack.c.l.b16 %v7763
        %v7854 = vunpack.c.l.b16 %v7764
        %v7855 = vunpack.c.l.b16 %v7765
        %v7856 = vunpack.c.l.b16 %v7766
        %v7857 = vunpack.c.l.b16 %v7767
        %v7858 = vunpack.c.l.b16 %v7768
        %v7859 = vunpack.c.l.b16 %v7769
        %v7860 = vunpack.c.l.b16 %v7770
        %v7861 = vunpack.c.l.b16 %v7771
        %v7862 = vpack.c.b16 %v7847, %v7846
        %v7863 = vpack.c.b16 %v7849, %v7848
        %v7864 = vpack.c.b16 %v7851, %v7850
        %v7865 = vpack.c.b16 %v7853, %v7852
        %v7866 = vpack.c.b16 %v7855, %v7854
        %v7867 = vpack.c.b16 %v7857, %v7856
        %v7868 = vpack.c.b16 %v7859, %v7858
        %v7869 = vpack.c.b16 %v7861, %v7860
        %7878 = vmatpush.bf16.msra.mxu0 %v7869
        %7879 = vmatpush.bf16.msra.mxu0 %v7868
        %7880 = vmatpush.bf16.msra.mxu0 %v7867
        %7881 = vmatpush.bf16.msra.mxu0 %v7866
        %7882 = vmatpush.bf16.msra.mxu0 %v7865
        %7883 = vmatpush.bf16.msra.mxu0 %v7864
        %7884 = vmatpush.bf16.msra.mxu0 %v7863
        %7885 = vmatpush.bf16.msra.mxu0 %v7862
        %7886 = vmatmul.bf16.gmra.mxu0 %v7777
        %v7887 = vpop.f32.mrf.mxu0
        %v7888 = vadd.f32 0.0, %v7887
        %v7889 = vpop.f32.mrf.mxu0
        %v7890 = vadd.f32 0.0, %v7889
        %7891 = vmatmul.bf16.gmra.mxu0 %v7779
        %v7892 = vpop.f32.mrf.mxu0
        %v7893 = vadd.f32 0.0, %v7892
        %v7894 = vpop.f32.mrf.mxu0
        %v7895 = vadd.f32 0.0, %v7894
        %7896 = vmatmul.bf16.gmra.mxu0 %v7781
        %v7897 = vpop.f32.mrf.mxu0
        %v7898 = vadd.f32 0.0, %v7897
        %v7899 = vpop.f32.mrf.mxu0
        %v7900 = vadd.f32 0.0, %v7899
        %7901 = vmatmul.bf16.gmra.mxu0 %v7783
        %v7902 = vpop.f32.mrf.mxu0
        %v7903 = vadd.f32 0.0, %v7902
        %v7904 = vpop.f32.mrf.mxu0
        %v7905 = vadd.f32 0.0, %v7904
        %7906 = vmatmul.bf16.gmra.mxu0 %v7785
        %v7907 = vpop.f32.mrf.mxu0
        %v7908 = vadd.f32 0.0, %v7907
        %v7909 = vpop.f32.mrf.mxu0
        %v7910 = vadd.f32 0.0, %v7909
        %7911 = vmatmul.bf16.gmra.mxu0 %v7787
        %v7912 = vpop.f32.mrf.mxu0
        %v7913 = vadd.f32 0.0, %v7912
        %v7914 = vpop.f32.mrf.mxu0
        %v7915 = vadd.f32 0.0, %v7914
        %7916 = vmatmul.bf16.gmra.mxu0 %v7789
        %v7917 = vpop.f32.mrf.mxu0
        %v7918 = vadd.f32 0.0, %v7917
        %v7919 = vpop.f32.mrf.mxu0
        %v7920 = vadd.f32 0.0, %v7919
        %7921 = vmatmul.bf16.gmra.mxu0 %v7791
        %v7922 = vpop.f32.mrf.mxu0
        %v7923 = vadd.f32 0.0, %v7922
        %v7924 = vpop.f32.mrf.mxu0
        %v7925 = vadd.f32 0.0, %v7924
        %7926 = vmatmul.bf16.gmra.mxu0 %v7793
        %v7927 = vpop.f32.mrf.mxu0
        %v7928 = vadd.f32 0.0, %v7927
        %v7929 = vpop.f32.mrf.mxu0
        %v7930 = vadd.f32 0.0, %v7929
        %7931 = vmatmul.bf16.gmra.mxu0 %v7795
        %v7932 = vpop.f32.mrf.mxu0
        %v7933 = vadd.f32 0.0, %v7932
        %v7934 = vpop.f32.mrf.mxu0
        %v7935 = vadd.f32 0.0, %v7934
        %7936 = vmatmul.bf16.gmra.mxu0 %v7797
        %v7937 = vpop.f32.mrf.mxu0
        %v7938 = vadd.f32 0.0, %v7937
        %v7939 = vpop.f32.mrf.mxu0
        %v7940 = vadd.f32 0.0, %v7939
        %7941 = vmatmul.bf16.gmra.mxu0 %v7799
        %v7942 = vpop.f32.mrf.mxu0
        %v7943 = vadd.f32 0.0, %v7942
        %v7944 = vpop.f32.mrf.mxu0
        %v7945 = vadd.f32 0.0, %v7944
        %7946 = vmatmul.bf16.gmra.mxu0 %v7801
        %v7947 = vpop.f32.mrf.mxu0
        %v7948 = vadd.f32 0.0, %v7947
        %v7949 = vpop.f32.mrf.mxu0
        %v7950 = vadd.f32 0.0, %v7949
        %7951 = vmatmul.bf16.gmra.mxu0 %v7803
        %v7952 = vpop.f32.mrf.mxu0
        %v7953 = vadd.f32 0.0, %v7952
        %v7954 = vpop.f32.mrf.mxu0
        %v7955 = vadd.f32 0.0, %v7954
        %7956 = vmatmul.bf16.gmra.mxu0 %v7805
        %v7957 = vpop.f32.mrf.mxu0
        %v7958 = vadd.f32 0.0, %v7957
        %v7959 = vpop.f32.mrf.mxu0
        %v7960 = vadd.f32 0.0, %v7959
        %7961 = vmatmul.bf16.gmra.mxu0 %v7807
        %v7962 = vpop.f32.mrf.mxu0
        %v7963 = vadd.f32 0.0, %v7962
        %v7964 = vpop.f32.mrf.mxu0
        %v7965 = vadd.f32 0.0, %v7964
        %7966 = vmatmul.bf16.gmra.mxu0 %v7809
        %v7967 = vpop.f32.mrf.mxu0
        %v7968 = vadd.f32 0.0, %v7967
        %v7969 = vpop.f32.mrf.mxu0
        %v7970 = vadd.f32 0.0, %v7969
        %7971 = vmatmul.bf16.gmra.mxu0 %v7811
        %v7972 = vpop.f32.mrf.mxu0
        %v7973 = vadd.f32 0.0, %v7972
        %v7974 = vpop.f32.mrf.mxu0
        %v7975 = vadd.f32 0.0, %v7974
        %7976 = vdwg.mxu0
        %v7977 = vadd.f32 %v7665, %v7888
        %v7978 = vadd.f32 %v7667, %v7890
        %v7979 = vadd.f32 %v7670, %v7893
        %v7980 = vadd.f32 %v7672, %v7895
        %v7981 = vadd.f32 %v7675, %v7898
        %v7982 = vadd.f32 %v7677, %v7900
        %v7983 = vadd.f32 %v7680, %v7903
        %v7984 = vadd.f32 %v7682, %v7905
        %v7985 = vadd.f32 %v7685, %v7908
        %v7986 = vadd.f32 %v7687, %v7910
        %v7987 = vadd.f32 %v7690, %v7913
        %v7988 = vadd.f32 %v7692, %v7915
        %v7989 = vadd.f32 %v7695, %v7918
        %v7990 = vadd.f32 %v7697, %v7920
        %v7991 = vadd.f32 %v7700, %v7923
        %v7992 = vadd.f32 %v7702, %v7925
        %v7993 = vadd.f32 %v7705, %v7928
        %v7994 = vadd.f32 %v7707, %v7930
        %v7995 = vadd.f32 %v7710, %v7933
        %v7996 = vadd.f32 %v7712, %v7935
        %v7997 = vadd.f32 %v7715, %v7938
        %v7998 = vadd.f32 %v7717, %v7940
        %v7999 = vadd.f32 %v7720, %v7943
        %v8000 = vadd.f32 %v7722, %v7945
        %v8001 = vadd.f32 %v7725, %v7948
        %v8002 = vadd.f32 %v7727, %v7950
        %v8003 = vadd.f32 %v7730, %v7953
        %v8004 = vadd.f32 %v7732, %v7955
        %v8005 = vadd.f32 %v7735, %v7958
        %v8006 = vadd.f32 %v7737, %v7960
        %v8007 = vadd.f32 %v7740, %v7963
        %v8008 = vadd.f32 %v7742, %v7965
        %v8009 = vadd.f32 %v7745, %v7968
        %v8010 = vadd.f32 %v7747, %v7970
        %v8011 = vadd.f32 %v7750, %v7973
        %v8012 = vadd.f32 %v7752, %v7975
        %v8013 = vld [vmem:[#allocation3 + $0x8] sm:$0xe]
        %v8014 = vld [vmem:[#allocation3 + $0xc] sm:$0xf]
        %v8015 = vld [vmem:[#allocation3 + $0x10] sm:$0xf]
        %v8016 = vld [vmem:[#allocation3 + $0x14] sm:$0xf]
        %v8017 = vld [vmem:[#allocation3 + $0x18] sm:$0xf]
        %v8018 = vld [vmem:[#allocation3 + $0x1c] sm:$0xf]
        %v8019 = vld [vmem:[#allocation3 + $0x20] sm:$0xf]
        %v8020 = vld [vmem:[#allocation3 + $0x24] sm:$0xf]
        %v8021 = vld [vmem:[#allocation3 + $0x28] sm:$0xf]
        %v8022 = vld [vmem:[#allocation3 + $0x2c] sm:$0xf]
        %v8023 = vld [vmem:[#allocation3 + $0x30] sm:$0xf]
        %v8024 = vld [vmem:[#allocation3 + $0x34] sm:$0xf]
        %v8025 = vld [vmem:[#allocation3 + $0x38] sm:$0xf]
        %v8026 = vld [vmem:[#allocation3 + $0x3c] sm:$0xf]
        %v8027 = vld [vmem:[#allocation3 + $0x40] sm:$0xf]
        %v8028 = vld [vmem:[#allocation3 + $0x44] sm:$0xf]
        %v8029 = vld [vmem:[#allocation3 + $0x48] sm:$0xf]
        %v8030 = vld [vmem:[#allocation3 + $0x4c] sm:$0xf]
        %v8031 = vld [vmem:[#allocation3 + $0x50] sm:$0xf]
        %v8032 = vld [vmem:[#allocation3 + $0x54] sm:$0xf]
        %v8033 = vld [vmem:[#allocation3 + $0x58] sm:$0xf]
        %v8034 = vld [vmem:[#allocation3 + $0x5c] sm:$0xf]
        %v8035 = vld [vmem:[#allocation3 + $0x60] sm:$0xf]
        %v8036 = vld [vmem:[#allocation3 + $0x64] sm:$0xf]
        %v8037 = vld [vmem:[#allocation3 + $0x68] sm:$0xf]
        %v8038 = vld [vmem:[#allocation3 + $0x6c] sm:$0xf]
        %v8039 = vld [vmem:[#allocation3 + $0x70] sm:$0xf]
        %v8040 = vld [vmem:[#allocation3 + $0x74] sm:$0xf]
        %v8041 = vld [vmem:[#allocation3 + $0x78] sm:$0xf]
        %v8042 = vld [vmem:[#allocation3 + $0x7c] sm:$0xf]
        %v8043 = vld [vmem:[#allocation3 + $0x80] sm:$0xf]
        %v8044 = vld [vmem:[#allocation3 + $0x84] sm:$0xf]
        %v8045 = vld [vmem:[#allocation3 + $0x88] sm:$0xf]
        %v8046 = vld [vmem:[#allocation3 + $0x8c] sm:$0xf]
        %v8047 = vld [vmem:[#allocation3 + $0x90] sm:$0xf]
        %v8048 = vld [vmem:[#allocation3 + $0x94] sm:$0xf]
        %v8049 = vld [vmem:[#allocation3 + $0x98] sm:$0x1]
        %s8050 = scalar_lea.vmem [#allocation9], 192
        %v8051 = vld [vmem:[%s8050] sm:$0xf]
        %v8052 = vld [vmem:[%s8050 + $0x4] sm:$0xf]
        %v8053 = vld [vmem:[%s8050 + $0x8] sm:$0xf]
        %v8054 = vld [vmem:[%s8050 + $0xc] sm:$0xf]
        %v8055 = vld [vmem:[%s8050 + $0x10] sm:$0xf]
        %v8056 = vld [vmem:[%s8050 + $0x14] sm:$0xf]
        %v8057 = vld [vmem:[%s8050 + $0x18] sm:$0xf]
        %v8058 = vld [vmem:[%s8050 + $0x1c] sm:$0xf]
        %v8059 = vld [vmem:[%s8050 + $0x20] sm:$0xf]
        %v8060 = vld [vmem:[%s8050 + $0x24] sm:$0xf]
        %v8061 = vld [vmem:[%s8050 + $0x28] sm:$0xf]
        %v8062 = vld [vmem:[%s8050 + $0x2c] sm:$0xf]
        %v8063 = vld [vmem:[%s8050 + $0x30] sm:$0xf]
        %v8064 = vld [vmem:[%s8050 + $0x34] sm:$0xf]
        %v8065 = vld [vmem:[%s8050 + $0x38] sm:$0xf]
        %v8066 = vld [vmem:[%s8050 + $0x3c] sm:$0xf]
        %v8104 = vunpack.c.l.b16 %v8013
        %v8105 = vunpack.c.l.b16 %v8014
        %v8106 = vunpack.c.l.b16 %v8015
        %v8107 = vunpack.c.l.b16 %v8016
        %v8108 = vunpack.c.l.b16 %v8017
        %v8109 = vunpack.c.l.b16 %v8018
        %v8110 = vunpack.c.l.b16 %v8019
        %v8111 = vunpack.c.l.b16 %v8020
        %v8112 = vunpack.c.l.b16 %v8021
        %v8113 = vunpack.c.l.b16 %v8022
        %v8114 = vunpack.c.l.b16 %v8023
        %v8115 = vunpack.c.l.b16 %v8024
        %v8116 = vunpack.c.l.b16 %v8025
        %v8117 = vunpack.c.l.b16 %v8026
        %v8118 = vunpack.c.l.b16 %v8027
        %v8119 = vunpack.c.l.b16 %v8028
        %v8120 = vunpack.c.l.b16 %v8029
        %v8121 = vunpack.c.l.b16 %v8030
        %v8122 = vunpack.c.l.b16 %v8031
        %v8123 = vunpack.c.l.b16 %v8032
        %v8124 = vunpack.c.l.b16 %v8033
        %v8125 = vunpack.c.l.b16 %v8034
        %v8126 = vunpack.c.l.b16 %v8035
        %v8127 = vunpack.c.l.b16 %v8036
        %v8128 = vunpack.c.l.b16 %v8037
        %v8129 = vunpack.c.l.b16 %v8038
        %v8130 = vunpack.c.l.b16 %v8039
        %v8131 = vunpack.c.l.b16 %v8040
        %v8132 = vunpack.c.l.b16 %v8041
        %v8133 = vunpack.c.l.b16 %v8042
        %v8134 = vunpack.c.l.b16 %v8043
        %v8135 = vunpack.c.l.b16 %v8044
        %v8136 = vunpack.c.l.b16 %v8045
        %v8137 = vunpack.c.l.b16 %v8046
        %v8138 = vunpack.c.l.b16 %v8047
        %v8139 = vunpack.c.l.b16 %v8048
        %v8140 = vunpack.c.l.b16 %v8049
        %v8141 = vpack.c.b16 %v8105, %v8104
        %v8142 = vpack.c.b16 %v8107, %v8106
        %v8143 = vpack.c.b16 %v8109, %v8108
        %v8144 = vpack.c.b16 %v8111, %v8110
        %v8145 = vpack.c.b16 %v8113, %v8112
        %v8146 = vpack.c.b16 %v8115, %v8114
        %v8147 = vpack.c.b16 %v8117, %v8116
        %v8148 = vpack.c.b16 %v8119, %v8118
        %v8149 = vpack.c.b16 %v8121, %v8120
        %v8150 = vpack.c.b16 %v8123, %v8122
        %v8151 = vpack.c.b16 %v8125, %v8124
        %v8152 = vpack.c.b16 %v8127, %v8126
        %v8153 = vpack.c.b16 %v8129, %v8128
        %v8154 = vpack.c.b16 %v8131, %v8130
        %v8155 = vpack.c.b16 %v8133, %v8132
        %v8156 = vpack.c.b16 %v8135, %v8134
        %v8157 = vpack.c.b16 %v8137, %v8136
        %v8158 = vpack.c.b16 %v8139, %v8138
        %v8159 = vpack.c.b16 %v8140, %v8140
        %v8160 = vrot.slane %v8141, 1
        %v8161 = vrot.slane %v8142, 1
        %v8162 = vsel %vm2884, %v8160, %v8161
        %v8163 = vrot.slane %v8143, 1
        %v8164 = vsel %vm2884, %v8161, %v8163
        %v8165 = vrot.slane %v8144, 1
        %v8166 = vsel %vm2884, %v8163, %v8165
        %v8167 = vrot.slane %v8145, 1
        %v8168 = vsel %vm2884, %v8165, %v8167
        %v8169 = vrot.slane %v8146, 1
        %v8170 = vsel %vm2884, %v8167, %v8169
        %v8171 = vrot.slane %v8147, 1
        %v8172 = vsel %vm2884, %v8169, %v8171
        %v8173 = vrot.slane %v8148, 1
        %v8174 = vsel %vm2884, %v8171, %v8173
        %v8175 = vrot.slane %v8149, 1
        %v8176 = vsel %vm2884, %v8173, %v8175
        %v8177 = vrot.slane %v8150, 1
        %v8178 = vsel %vm2884, %v8175, %v8177
        %v8179 = vrot.slane %v8151, 1
        %v8180 = vsel %vm2884, %v8177, %v8179
        %v8181 = vrot.slane %v8152, 1
        %v8182 = vsel %vm2884, %v8179, %v8181
        %v8183 = vrot.slane %v8153, 1
        %v8184 = vsel %vm2884, %v8181, %v8183
        %v8185 = vrot.slane %v8154, 1
        %v8186 = vsel %vm2884, %v8183, %v8185
        %v8187 = vrot.slane %v8155, 1
        %v8188 = vsel %vm2884, %v8185, %v8187
        %v8189 = vrot.slane %v8156, 1
        %v8190 = vsel %vm2884, %v8187, %v8189
        %v8191 = vrot.slane %v8157, 1
        %v8192 = vsel %vm2884, %v8189, %v8191
        %v8193 = vrot.slane %v8158, 1
        %v8194 = vsel %vm2884, %v8191, %v8193
        %v8195 = vrot.slane %v8159, 1
        %v8196 = vsel %vm2884, %v8193, %v8195
        %v8231 = vunpack.c.l.b16 %v8051
        %v8232 = vunpack.c.l.b16 %v8052
        %v8233 = vunpack.c.l.b16 %v8053
        %v8234 = vunpack.c.l.b16 %v8054
        %v8235 = vunpack.c.l.b16 %v8055
        %v8236 = vunpack.c.l.b16 %v8056
        %v8237 = vunpack.c.l.b16 %v8057
        %v8238 = vunpack.c.l.b16 %v8058
        %v8239 = vunpack.c.l.b16 %v8059
        %v8240 = vunpack.c.l.b16 %v8060
        %v8241 = vunpack.c.l.b16 %v8061
        %v8242 = vunpack.c.l.b16 %v8062
        %v8243 = vunpack.c.l.b16 %v8063
        %v8244 = vunpack.c.l.b16 %v8064
        %v8245 = vunpack.c.l.b16 %v8065
        %v8246 = vunpack.c.l.b16 %v8066
        %v8247 = vpack.c.b16 %v8232, %v8231
        %v8248 = vpack.c.b16 %v8234, %v8233
        %v8249 = vpack.c.b16 %v8236, %v8235
        %v8250 = vpack.c.b16 %v8238, %v8237
        %v8251 = vpack.c.b16 %v8240, %v8239
        %v8252 = vpack.c.b16 %v8242, %v8241
        %v8253 = vpack.c.b16 %v8244, %v8243
        %v8254 = vpack.c.b16 %v8246, %v8245
        %8263 = vmatpush.bf16.msra.mxu0 %v8254
        %8264 = vmatpush.bf16.msra.mxu0 %v8253
        %8265 = vmatpush.bf16.msra.mxu0 %v8252
        %8266 = vmatpush.bf16.msra.mxu0 %v8251
        %8267 = vmatpush.bf16.msra.mxu0 %v8250
        %8268 = vmatpush.bf16.msra.mxu0 %v8249
        %8269 = vmatpush.bf16.msra.mxu0 %v8248
        %8270 = vmatpush.bf16.msra.mxu0 %v8247
        %8271 = vmatmul.bf16.gmra.mxu0 %v8162
        %v8272 = vpop.f32.mrf.mxu0
        %v8273 = vadd.f32 0.0, %v8272
        %v8274 = vpop.f32.mrf.mxu0
        %v8275 = vadd.f32 0.0, %v8274
        %8276 = vmatmul.bf16.gmra.mxu0 %v8164
        %v8277 = vpop.f32.mrf.mxu0
        %v8278 = vadd.f32 0.0, %v8277
        %v8279 = vpop.f32.mrf.mxu0
        %v8280 = vadd.f32 0.0, %v8279
        %8281 = vmatmul.bf16.gmra.mxu0 %v8166
        %v8282 = vpop.f32.mrf.mxu0
        %v8283 = vadd.f32 0.0, %v8282
        %v8284 = vpop.f32.mrf.mxu0
        %v8285 = vadd.f32 0.0, %v8284
        %8286 = vmatmul.bf16.gmra.mxu0 %v8168
        %v8287 = vpop.f32.mrf.mxu0
        %v8288 = vadd.f32 0.0, %v8287
        %v8289 = vpop.f32.mrf.mxu0
        %v8290 = vadd.f32 0.0, %v8289
        %8291 = vmatmul.bf16.gmra.mxu0 %v8170
        %v8292 = vpop.f32.mrf.mxu0
        %v8293 = vadd.f32 0.0, %v8292
        %v8294 = vpop.f32.mrf.mxu0
        %v8295 = vadd.f32 0.0, %v8294
        %8296 = vmatmul.bf16.gmra.mxu0 %v8172
        %v8297 = vpop.f32.mrf.mxu0
        %v8298 = vadd.f32 0.0, %v8297
        %v8299 = vpop.f32.mrf.mxu0
        %v8300 = vadd.f32 0.0, %v8299
        %8301 = vmatmul.bf16.gmra.mxu0 %v8174
        %v8302 = vpop.f32.mrf.mxu0
        %v8303 = vadd.f32 0.0, %v8302
        %v8304 = vpop.f32.mrf.mxu0
        %v8305 = vadd.f32 0.0, %v8304
        %8306 = vmatmul.bf16.gmra.mxu0 %v8176
        %v8307 = vpop.f32.mrf.mxu0
        %v8308 = vadd.f32 0.0, %v8307
        %v8309 = vpop.f32.mrf.mxu0
        %v8310 = vadd.f32 0.0, %v8309
        %8311 = vmatmul.bf16.gmra.mxu0 %v8178
        %v8312 = vpop.f32.mrf.mxu0
        %v8313 = vadd.f32 0.0, %v8312
        %v8314 = vpop.f32.mrf.mxu0
        %v8315 = vadd.f32 0.0, %v8314
        %8316 = vmatmul.bf16.gmra.mxu0 %v8180
        %v8317 = vpop.f32.mrf.mxu0
        %v8318 = vadd.f32 0.0, %v8317
        %v8319 = vpop.f32.mrf.mxu0
        %v8320 = vadd.f32 0.0, %v8319
        %8321 = vmatmul.bf16.gmra.mxu0 %v8182
        %v8322 = vpop.f32.mrf.mxu0
        %v8323 = vadd.f32 0.0, %v8322
        %v8324 = vpop.f32.mrf.mxu0
        %v8325 = vadd.f32 0.0, %v8324
        %8326 = vmatmul.bf16.gmra.mxu0 %v8184
        %v8327 = vpop.f32.mrf.mxu0
        %v8328 = vadd.f32 0.0, %v8327
        %v8329 = vpop.f32.mrf.mxu0
        %v8330 = vadd.f32 0.0, %v8329
        %8331 = vmatmul.bf16.gmra.mxu0 %v8186
        %v8332 = vpop.f32.mrf.mxu0
        %v8333 = vadd.f32 0.0, %v8332
        %v8334 = vpop.f32.mrf.mxu0
        %v8335 = vadd.f32 0.0, %v8334
        %8336 = vmatmul.bf16.gmra.mxu0 %v8188
        %v8337 = vpop.f32.mrf.mxu0
        %v8338 = vadd.f32 0.0, %v8337
        %v8339 = vpop.f32.mrf.mxu0
        %v8340 = vadd.f32 0.0, %v8339
        %8341 = vmatmul.bf16.gmra.mxu0 %v8190
        %v8342 = vpop.f32.mrf.mxu0
        %v8343 = vadd.f32 0.0, %v8342
        %v8344 = vpop.f32.mrf.mxu0
        %v8345 = vadd.f32 0.0, %v8344
        %8346 = vmatmul.bf16.gmra.mxu0 %v8192
        %v8347 = vpop.f32.mrf.mxu0
        %v8348 = vadd.f32 0.0, %v8347
        %v8349 = vpop.f32.mrf.mxu0
        %v8350 = vadd.f32 0.0, %v8349
        %8351 = vmatmul.bf16.gmra.mxu0 %v8194
        %v8352 = vpop.f32.mrf.mxu0
        %v8353 = vadd.f32 0.0, %v8352
        %v8354 = vpop.f32.mrf.mxu0
        %v8355 = vadd.f32 0.0, %v8354
        %8356 = vmatmul.bf16.gmra.mxu0 %v8196
        %v8357 = vpop.f32.mrf.mxu0
        %v8358 = vadd.f32 0.0, %v8357
        %v8359 = vpop.f32.mrf.mxu0
        %v8360 = vadd.f32 0.0, %v8359
        %8361 = vdwg.mxu0
        %v8362 = vadd.f32 %v7977, %v8273
        %v8363 = vadd.f32 %v7978, %v8275
        %v8364 = vadd.f32 %v7979, %v8278
        %v8365 = vadd.f32 %v7980, %v8280
        %v8366 = vadd.f32 %v7981, %v8283
        %v8367 = vadd.f32 %v7982, %v8285
        %v8368 = vadd.f32 %v7983, %v8288
        %v8369 = vadd.f32 %v7984, %v8290
        %v8370 = vadd.f32 %v7985, %v8293
        %v8371 = vadd.f32 %v7986, %v8295
        %v8372 = vadd.f32 %v7987, %v8298
        %v8373 = vadd.f32 %v7988, %v8300
        %v8374 = vadd.f32 %v7989, %v8303
        %v8375 = vadd.f32 %v7990, %v8305
        %v8376 = vadd.f32 %v7991, %v8308
        %v8377 = vadd.f32 %v7992, %v8310
        %v8378 = vadd.f32 %v7993, %v8313
        %v8379 = vadd.f32 %v7994, %v8315
        %v8380 = vadd.f32 %v7995, %v8318
        %v8381 = vadd.f32 %v7996, %v8320
        %v8382 = vadd.f32 %v7997, %v8323
        %v8383 = vadd.f32 %v7998, %v8325
        %v8384 = vadd.f32 %v7999, %v8328
        %v8385 = vadd.f32 %v8000, %v8330
        %v8386 = vadd.f32 %v8001, %v8333
        %v8387 = vadd.f32 %v8002, %v8335
        %v8388 = vadd.f32 %v8003, %v8338
        %v8389 = vadd.f32 %v8004, %v8340
        %v8390 = vadd.f32 %v8005, %v8343
        %v8391 = vadd.f32 %v8006, %v8345
        %v8392 = vadd.f32 %v8007, %v8348
        %v8393 = vadd.f32 %v8008, %v8350
        %v8394 = vadd.f32 %v8009, %v8353
        %v8395 = vadd.f32 %v8010, %v8355
        %v8396 = vadd.f32 %v8011, %v8358
        %v8397 = vadd.f32 %v8012, %v8360
        %v8398 = vld [vmem:[#allocation3 + $0x98] sm:$0x3]
        %s8399 = scalar_lea.vmem [#allocation9], 256
        %v8400 = vld [vmem:[%s8399] sm:$0xf]
        %v8401 = vld [vmem:[%s8399 + $0x4] sm:$0xf]
        %v8402 = vld [vmem:[%s8399 + $0x8] sm:$0xf]
        %v8403 = vld [vmem:[%s8399 + $0xc] sm:$0xf]
        %v8404 = vld [vmem:[%s8399 + $0x10] sm:$0xf]
        %v8405 = vld [vmem:[%s8399 + $0x14] sm:$0xf]
        %v8406 = vld [vmem:[%s8399 + $0x18] sm:$0xf]
        %v8407 = vld [vmem:[%s8399 + $0x1c] sm:$0xf]
        %v8408 = vld [vmem:[%s8399 + $0x20] sm:$0xf]
        %v8409 = vld [vmem:[%s8399 + $0x24] sm:$0xf]
        %v8410 = vld [vmem:[%s8399 + $0x28] sm:$0xf]
        %v8411 = vld [vmem:[%s8399 + $0x2c] sm:$0xf]
        %v8412 = vld [vmem:[%s8399 + $0x30] sm:$0xf]
        %v8413 = vld [vmem:[%s8399 + $0x34] sm:$0xf]
        %v8414 = vld [vmem:[%s8399 + $0x38] sm:$0xf]
        %v8415 = vld [vmem:[%s8399 + $0x3c] sm:$0xf]
        %v8417 = vunpack.c.l.b16 %v8398
        %v8418 = vpack.c.b16 %v8417, %v8417
        %v8420 = vshrl.u32 %v8141, 16
        %v8422 = vrot.slane %v8420, 1
        %v8423 = vshll.u32 %v8141, 16
        %v8425 = vrot.slane %v8423, 2
        %v8426 = vor.u32 %v8422, %v8425
        %v8428 = vshrl.u32 %v8142, 16
        %v8430 = vrot.slane %v8428, 1
        %v8431 = vshll.u32 %v8142, 16
        %v8433 = vrot.slane %v8431, 2
        %v8434 = vor.u32 %v8430, %v8433
        %v8435 = vsel %vm3529, %v8426, %v8434
        %v8437 = vshrl.u32 %v8143, 16
        %v8439 = vrot.slane %v8437, 1
        %v8440 = vshll.u32 %v8143, 16
        %v8442 = vrot.slane %v8440, 2
        %v8443 = vor.u32 %v8439, %v8442
        %v8444 = vsel %vm3529, %v8434, %v8443
        %v8446 = vshrl.u32 %v8144, 16
        %v8448 = vrot.slane %v8446, 1
        %v8449 = vshll.u32 %v8144, 16
        %v8451 = vrot.slane %v8449, 2
        %v8452 = vor.u32 %v8448, %v8451
        %v8453 = vsel %vm3529, %v8443, %v8452
        %v8455 = vshrl.u32 %v8145, 16
        %v8457 = vrot.slane %v8455, 1
        %v8458 = vshll.u32 %v8145, 16
        %v8460 = vrot.slane %v8458, 2
        %v8461 = vor.u32 %v8457, %v8460
        %v8462 = vsel %vm3529, %v8452, %v8461
        %v8464 = vshrl.u32 %v8146, 16
        %v8466 = vrot.slane %v8464, 1
        %v8467 = vshll.u32 %v8146, 16
        %v8469 = vrot.slane %v8467, 2
        %v8470 = vor.u32 %v8466, %v8469
        %v8471 = vsel %vm3529, %v8461, %v8470
        %v8473 = vshrl.u32 %v8147, 16
        %v8475 = vrot.slane %v8473, 1
        %v8476 = vshll.u32 %v8147, 16
        %v8478 = vrot.slane %v8476, 2
        %v8479 = vor.u32 %v8475, %v8478
        %v8480 = vsel %vm3529, %v8470, %v8479
        %v8482 = vshrl.u32 %v8148, 16
        %v8484 = vrot.slane %v8482, 1
        %v8485 = vshll.u32 %v8148, 16
        %v8487 = vrot.slane %v8485, 2
        %v8488 = vor.u32 %v8484, %v8487
        %v8489 = vsel %vm3529, %v8479, %v8488
        %v8491 = vshrl.u32 %v8149, 16
        %v8493 = vrot.slane %v8491, 1
        %v8494 = vshll.u32 %v8149, 16
        %v8496 = vrot.slane %v8494, 2
        %v8497 = vor.u32 %v8493, %v8496
        %v8498 = vsel %vm3529, %v8488, %v8497
        %v8500 = vshrl.u32 %v8150, 16
        %v8502 = vrot.slane %v8500, 1
        %v8503 = vshll.u32 %v8150, 16
        %v8505 = vrot.slane %v8503, 2
        %v8506 = vor.u32 %v8502, %v8505
        %v8507 = vsel %vm3529, %v8497, %v8506
        %v8509 = vshrl.u32 %v8151, 16
        %v8511 = vrot.slane %v8509, 1
        %v8512 = vshll.u32 %v8151, 16
        %v8514 = vrot.slane %v8512, 2
        %v8515 = vor.u32 %v8511, %v8514
        %v8516 = vsel %vm3529, %v8506, %v8515
        %v8518 = vshrl.u32 %v8152, 16
        %v8520 = vrot.slane %v8518, 1
        %v8521 = vshll.u32 %v8152, 16
        %v8523 = vrot.slane %v8521, 2
        %v8524 = vor.u32 %v8520, %v8523
        %v8525 = vsel %vm3529, %v8515, %v8524
        %v8527 = vshrl.u32 %v8153, 16
        %v8529 = vrot.slane %v8527, 1
        %v8530 = vshll.u32 %v8153, 16
        %v8532 = vrot.slane %v8530, 2
        %v8533 = vor.u32 %v8529, %v8532
        %v8534 = vsel %vm3529, %v8524, %v8533
        %v8536 = vshrl.u32 %v8154, 16
        %v8538 = vrot.slane %v8536, 1
        %v8539 = vshll.u32 %v8154, 16
        %v8541 = vrot.slane %v8539, 2
        %v8542 = vor.u32 %v8538, %v8541
        %v8543 = vsel %vm3529, %v8533, %v8542
        %v8545 = vshrl.u32 %v8155, 16
        %v8547 = vrot.slane %v8545, 1
        %v8548 = vshll.u32 %v8155, 16
        %v8550 = vrot.slane %v8548, 2
        %v8551 = vor.u32 %v8547, %v8550
        %v8552 = vsel %vm3529, %v8542, %v8551
        %v8554 = vshrl.u32 %v8156, 16
        %v8556 = vrot.slane %v8554, 1
        %v8557 = vshll.u32 %v8156, 16
        %v8559 = vrot.slane %v8557, 2
        %v8560 = vor.u32 %v8556, %v8559
        %v8561 = vsel %vm3529, %v8551, %v8560
        %v8563 = vshrl.u32 %v8157, 16
        %v8565 = vrot.slane %v8563, 1
        %v8566 = vshll.u32 %v8157, 16
        %v8568 = vrot.slane %v8566, 2
        %v8569 = vor.u32 %v8565, %v8568
        %v8570 = vsel %vm3529, %v8560, %v8569
        %v8572 = vshrl.u32 %v8158, 16
        %v8574 = vrot.slane %v8572, 1
        %v8575 = vshll.u32 %v8158, 16
        %v8577 = vrot.slane %v8575, 2
        %v8578 = vor.u32 %v8574, %v8577
        %v8579 = vsel %vm3529, %v8569, %v8578
        %v8581 = vshrl.u32 %v8418, 16
        %v8583 = vrot.slane %v8581, 1
        %v8584 = vshll.u32 %v8418, 16
        %v8586 = vrot.slane %v8584, 2
        %v8587 = vor.u32 %v8583, %v8586
        %v8588 = vsel %vm3529, %v8578, %v8587
        %v8623 = vunpack.c.l.b16 %v8400
        %v8624 = vunpack.c.l.b16 %v8401
        %v8625 = vunpack.c.l.b16 %v8402
        %v8626 = vunpack.c.l.b16 %v8403
        %v8627 = vunpack.c.l.b16 %v8404
        %v8628 = vunpack.c.l.b16 %v8405
        %v8629 = vunpack.c.l.b16 %v8406
        %v8630 = vunpack.c.l.b16 %v8407
        %v8631 = vunpack.c.l.b16 %v8408
        %v8632 = vunpack.c.l.b16 %v8409
        %v8633 = vunpack.c.l.b16 %v8410
        %v8634 = vunpack.c.l.b16 %v8411
        %v8635 = vunpack.c.l.b16 %v8412
        %v8636 = vunpack.c.l.b16 %v8413
        %v8637 = vunpack.c.l.b16 %v8414
        %v8638 = vunpack.c.l.b16 %v8415
        %v8639 = vpack.c.b16 %v8624, %v8623
        %v8640 = vpack.c.b16 %v8626, %v8625
        %v8641 = vpack.c.b16 %v8628, %v8627
        %v8642 = vpack.c.b16 %v8630, %v8629
        %v8643 = vpack.c.b16 %v8632, %v8631
        %v8644 = vpack.c.b16 %v8634, %v8633
        %v8645 = vpack.c.b16 %v8636, %v8635
        %v8646 = vpack.c.b16 %v8638, %v8637
        %8655 = vmatpush.bf16.msra.mxu0 %v8646
        %8656 = vmatpush.bf16.msra.mxu0 %v8645
        %8657 = vmatpush.bf16.msra.mxu0 %v8644
        %8658 = vmatpush.bf16.msra.mxu0 %v8643
        %8659 = vmatpush.bf16.msra.mxu0 %v8642
        %8660 = vmatpush.bf16.msra.mxu0 %v8641
        %8661 = vmatpush.bf16.msra.mxu0 %v8640
        %8662 = vmatpush.bf16.msra.mxu0 %v8639
        %8663 = vmatmul.bf16.gmra.mxu0 %v8435
        %v8664 = vpop.f32.mrf.mxu0
        %v8665 = vadd.f32 0.0, %v8664
        %v8666 = vpop.f32.mrf.mxu0
        %v8667 = vadd.f32 0.0, %v8666
        %8668 = vmatmul.bf16.gmra.mxu0 %v8444
        %v8669 = vpop.f32.mrf.mxu0
        %v8670 = vadd.f32 0.0, %v8669
        %v8671 = vpop.f32.mrf.mxu0
        %v8672 = vadd.f32 0.0, %v8671
        %8673 = vmatmul.bf16.gmra.mxu0 %v8453
        %v8674 = vpop.f32.mrf.mxu0
        %v8675 = vadd.f32 0.0, %v8674
        %v8676 = vpop.f32.mrf.mxu0
        %v8677 = vadd.f32 0.0, %v8676
        %8678 = vmatmul.bf16.gmra.mxu0 %v8462
        %v8679 = vpop.f32.mrf.mxu0
        %v8680 = vadd.f32 0.0, %v8679
        %v8681 = vpop.f32.mrf.mxu0
        %v8682 = vadd.f32 0.0, %v8681
        %8683 = vmatmul.bf16.gmra.mxu0 %v8471
        %v8684 = vpop.f32.mrf.mxu0
        %v8685 = vadd.f32 0.0, %v8684
        %v8686 = vpop.f32.mrf.mxu0
        %v8687 = vadd.f32 0.0, %v8686
        %8688 = vmatmul.bf16.gmra.mxu0 %v8480
        %v8689 = vpop.f32.mrf.mxu0
        %v8690 = vadd.f32 0.0, %v8689
        %v8691 = vpop.f32.mrf.mxu0
        %v8692 = vadd.f32 0.0, %v8691
        %8693 = vmatmul.bf16.gmra.mxu0 %v8489
        %v8694 = vpop.f32.mrf.mxu0
        %v8695 = vadd.f32 0.0, %v8694
        %v8696 = vpop.f32.mrf.mxu0
        %v8697 = vadd.f32 0.0, %v8696
        %8698 = vmatmul.bf16.gmra.mxu0 %v8498
        %v8699 = vpop.f32.mrf.mxu0
        %v8700 = vadd.f32 0.0, %v8699
        %v8701 = vpop.f32.mrf.mxu0
        %v8702 = vadd.f32 0.0, %v8701
        %8703 = vmatmul.bf16.gmra.mxu0 %v8507
        %v8704 = vpop.f32.mrf.mxu0
        %v8705 = vadd.f32 0.0, %v8704
        %v8706 = vpop.f32.mrf.mxu0
        %v8707 = vadd.f32 0.0, %v8706
        %8708 = vmatmul.bf16.gmra.mxu0 %v8516
        %v8709 = vpop.f32.mrf.mxu0
        %v8710 = vadd.f32 0.0, %v8709
        %v8711 = vpop.f32.mrf.mxu0
        %v8712 = vadd.f32 0.0, %v8711
        %8713 = vmatmul.bf16.gmra.mxu0 %v8525
        %v8714 = vpop.f32.mrf.mxu0
        %v8715 = vadd.f32 0.0, %v8714
        %v8716 = vpop.f32.mrf.mxu0
        %v8717 = vadd.f32 0.0, %v8716
        %8718 = vmatmul.bf16.gmra.mxu0 %v8534
        %v8719 = vpop.f32.mrf.mxu0
        %v8720 = vadd.f32 0.0, %v8719
        %v8721 = vpop.f32.mrf.mxu0
        %v8722 = vadd.f32 0.0, %v8721
        %8723 = vmatmul.bf16.gmra.mxu0 %v8543
        %v8724 = vpop.f32.mrf.mxu0
        %v8725 = vadd.f32 0.0, %v8724
        %v8726 = vpop.f32.mrf.mxu0
        %v8727 = vadd.f32 0.0, %v8726
        %8728 = vmatmul.bf16.gmra.mxu0 %v8552
        %v8729 = vpop.f32.mrf.mxu0
        %v8730 = vadd.f32 0.0, %v8729
        %v8731 = vpop.f32.mrf.mxu0
        %v8732 = vadd.f32 0.0, %v8731
        %8733 = vmatmul.bf16.gmra.mxu0 %v8561
        %v8734 = vpop.f32.mrf.mxu0
        %v8735 = vadd.f32 0.0, %v8734
        %v8736 = vpop.f32.mrf.mxu0
        %v8737 = vadd.f32 0.0, %v8736
        %8738 = vmatmul.bf16.gmra.mxu0 %v8570
        %v8739 = vpop.f32.mrf.mxu0
        %v8740 = vadd.f32 0.0, %v8739
        %v8741 = vpop.f32.mrf.mxu0
        %v8742 = vadd.f32 0.0, %v8741
        %8743 = vmatmul.bf16.gmra.mxu0 %v8579
        %v8744 = vpop.f32.mrf.mxu0
        %v8745 = vadd.f32 0.0, %v8744
        %v8746 = vpop.f32.mrf.mxu0
        %v8747 = vadd.f32 0.0, %v8746
        %8748 = vmatmul.bf16.gmra.mxu0 %v8588
        %v8749 = vpop.f32.mrf.mxu0
        %v8750 = vadd.f32 0.0, %v8749
        %v8751 = vpop.f32.mrf.mxu0
        %v8752 = vadd.f32 0.0, %v8751
        %8753 = vdwg.mxu0
        %v8754 = vadd.f32 %v8362, %v8665
        %v8755 = vadd.f32 %v8363, %v8667
        %v8756 = vadd.f32 %v8364, %v8670
        %v8757 = vadd.f32 %v8365, %v8672
        %v8758 = vadd.f32 %v8366, %v8675
        %v8759 = vadd.f32 %v8367, %v8677
        %v8760 = vadd.f32 %v8368, %v8680
        %v8761 = vadd.f32 %v8369, %v8682
        %v8762 = vadd.f32 %v8370, %v8685
        %v8763 = vadd.f32 %v8371, %v8687
        %v8764 = vadd.f32 %v8372, %v8690
        %v8765 = vadd.f32 %v8373, %v8692
        %v8766 = vadd.f32 %v8374, %v8695
        %v8767 = vadd.f32 %v8375, %v8697
        %v8768 = vadd.f32 %v8376, %v8700
        %v8769 = vadd.f32 %v8377, %v8702
        %v8770 = vadd.f32 %v8378, %v8705
        %v8771 = vadd.f32 %v8379, %v8707
        %v8772 = vadd.f32 %v8380, %v8710
        %v8773 = vadd.f32 %v8381, %v8712
        %v8774 = vadd.f32 %v8382, %v8715
        %v8775 = vadd.f32 %v8383, %v8717
        %v8776 = vadd.f32 %v8384, %v8720
        %v8777 = vadd.f32 %v8385, %v8722
        %v8778 = vadd.f32 %v8386, %v8725
        %v8779 = vadd.f32 %v8387, %v8727
        %v8780 = vadd.f32 %v8388, %v8730
        %v8781 = vadd.f32 %v8389, %v8732
        %v8782 = vadd.f32 %v8390, %v8735
        %v8783 = vadd.f32 %v8391, %v8737
        %v8784 = vadd.f32 %v8392, %v8740
        %v8785 = vadd.f32 %v8393, %v8742
        %v8786 = vadd.f32 %v8394, %v8745
        %v8787 = vadd.f32 %v8395, %v8747
        %v8788 = vadd.f32 %v8396, %v8750
        %v8789 = vadd.f32 %v8397, %v8752
        %v8790 = vld [vmem:[#allocation3 + $0x8] sm:$0xc]
        %s8791 = scalar_lea.vmem [#allocation9], 320
        %v8792 = vld [vmem:[%s8791] sm:$0xf]
        %v8793 = vld [vmem:[%s8791 + $0x4] sm:$0xf]
        %v8794 = vld [vmem:[%s8791 + $0x8] sm:$0xf]
        %v8795 = vld [vmem:[%s8791 + $0xc] sm:$0xf]
        %v8796 = vld [vmem:[%s8791 + $0x10] sm:$0xf]
        %v8797 = vld [vmem:[%s8791 + $0x14] sm:$0xf]
        %v8798 = vld [vmem:[%s8791 + $0x18] sm:$0xf]
        %v8799 = vld [vmem:[%s8791 + $0x1c] sm:$0xf]
        %v8800 = vld [vmem:[%s8791 + $0x20] sm:$0xf]
        %v8801 = vld [vmem:[%s8791 + $0x24] sm:$0xf]
        %v8802 = vld [vmem:[%s8791 + $0x28] sm:$0xf]
        %v8803 = vld [vmem:[%s8791 + $0x2c] sm:$0xf]
        %v8804 = vld [vmem:[%s8791 + $0x30] sm:$0xf]
        %v8805 = vld [vmem:[%s8791 + $0x34] sm:$0xf]
        %v8806 = vld [vmem:[%s8791 + $0x38] sm:$0xf]
        %v8807 = vld [vmem:[%s8791 + $0x3c] sm:$0xf]
        %v8809 = vunpack.c.l.b16 %v8790
        %v8810 = vpack.c.b16 %v8105, %v8809
        %v8811 = vrot.slane %v8810, 2
        %v8812 = vrot.slane %v8142, 2
        %v8813 = vsel %vm3922, %v8811, %v8812
        %v8814 = vrot.slane %v8143, 2
        %v8815 = vsel %vm3922, %v8812, %v8814
        %v8816 = vrot.slane %v8144, 2
        %v8817 = vsel %vm3922, %v8814, %v8816
        %v8818 = vrot.slane %v8145, 2
        %v8819 = vsel %vm3922, %v8816, %v8818
        %v8820 = vrot.slane %v8146, 2
        %v8821 = vsel %vm3922, %v8818, %v8820
        %v8822 = vrot.slane %v8147, 2
        %v8823 = vsel %vm3922, %v8820, %v8822
        %v8824 = vrot.slane %v8148, 2
        %v8825 = vsel %vm3922, %v8822, %v8824
        %v8826 = vrot.slane %v8149, 2
        %v8827 = vsel %vm3922, %v8824, %v8826
        %v8828 = vrot.slane %v8150, 2
        %v8829 = vsel %vm3922, %v8826, %v8828
        %v8830 = vrot.slane %v8151, 2
        %v8831 = vsel %vm3922, %v8828, %v8830
        %v8832 = vrot.slane %v8152, 2
        %v8833 = vsel %vm3922, %v8830, %v8832
        %v8834 = vrot.slane %v8153, 2
        %v8835 = vsel %vm3922, %v8832, %v8834
        %v8836 = vrot.slane %v8154, 2
        %v8837 = vsel %vm3922, %v8834, %v8836
        %v8838 = vrot.slane %v8155, 2
        %v8839 = vsel %vm3922, %v8836, %v8838
        %v8840 = vrot.slane %v8156, 2
        %v8841 = vsel %vm3922, %v8838, %v8840
        %v8842 = vrot.slane %v8157, 2
        %v8843 = vsel %vm3922, %v8840, %v8842
        %v8844 = vrot.slane %v8158, 2
        %v8845 = vsel %vm3922, %v8842, %v8844
        %v8846 = vrot.slane %v8418, 2
        %v8847 = vsel %vm3922, %v8844, %v8846
        %v8882 = vunpack.c.l.b16 %v8792
        %v8883 = vunpack.c.l.b16 %v8793
        %v8884 = vunpack.c.l.b16 %v8794
        %v8885 = vunpack.c.l.b16 %v8795
        %v8886 = vunpack.c.l.b16 %v8796
        %v8887 = vunpack.c.l.b16 %v8797
        %v8888 = vunpack.c.l.b16 %v8798
        %v8889 = vunpack.c.l.b16 %v8799
        %v8890 = vunpack.c.l.b16 %v8800
        %v8891 = vunpack.c.l.b16 %v8801
        %v8892 = vunpack.c.l.b16 %v8802
        %v8893 = vunpack.c.l.b16 %v8803
        %v8894 = vunpack.c.l.b16 %v8804
        %v8895 = vunpack.c.l.b16 %v8805
        %v8896 = vunpack.c.l.b16 %v8806
        %v8897 = vunpack.c.l.b16 %v8807
        %v8898 = vpack.c.b16 %v8883, %v8882
        %v8899 = vpack.c.b16 %v8885, %v8884
        %v8900 = vpack.c.b16 %v8887, %v8886
        %v8901 = vpack.c.b16 %v8889, %v8888
        %v8902 = vpack.c.b16 %v8891, %v8890
        %v8903 = vpack.c.b16 %v8893, %v8892
        %v8904 = vpack.c.b16 %v8895, %v8894
        %v8905 = vpack.c.b16 %v8897, %v8896
        %8914 = vmatpush.bf16.msra.mxu0 %v8905
        %8915 = vmatpush.bf16.msra.mxu0 %v8904
        %8916 = vmatpush.bf16.msra.mxu0 %v8903
        %8917 = vmatpush.bf16.msra.mxu0 %v8902
        %8918 = vmatpush.bf16.msra.mxu0 %v8901
        %8919 = vmatpush.bf16.msra.mxu0 %v8900
        %8920 = vmatpush.bf16.msra.mxu0 %v8899
        %8921 = vmatpush.bf16.msra.mxu0 %v8898
        %8922 = vmatmul.bf16.gmra.mxu0 %v8813
        %v8923 = vpop.f32.mrf.mxu0
        %v8924 = vadd.f32 0.0, %v8923
        %v8925 = vpop.f32.mrf.mxu0
        %v8926 = vadd.f32 0.0, %v8925
        %8927 = vmatmul.bf16.gmra.mxu0 %v8815
        %v8928 = vpop.f32.mrf.mxu0
        %v8929 = vadd.f32 0.0, %v8928
        %v8930 = vpop.f32.mrf.mxu0
        %v8931 = vadd.f32 0.0, %v8930
        %8932 = vmatmul.bf16.gmra.mxu0 %v8817
        %v8933 = vpop.f32.mrf.mxu0
        %v8934 = vadd.f32 0.0, %v8933
        %v8935 = vpop.f32.mrf.mxu0
        %v8936 = vadd.f32 0.0, %v8935
        %8937 = vmatmul.bf16.gmra.mxu0 %v8819
        %v8938 = vpop.f32.mrf.mxu0
        %v8939 = vadd.f32 0.0, %v8938
        %v8940 = vpop.f32.mrf.mxu0
        %v8941 = vadd.f32 0.0, %v8940
        %8942 = vmatmul.bf16.gmra.mxu0 %v8821
        %v8943 = vpop.f32.mrf.mxu0
        %v8944 = vadd.f32 0.0, %v8943
        %v8945 = vpop.f32.mrf.mxu0
        %v8946 = vadd.f32 0.0, %v8945
        %8947 = vmatmul.bf16.gmra.mxu0 %v8823
        %v8948 = vpop.f32.mrf.mxu0
        %v8949 = vadd.f32 0.0, %v8948
        %v8950 = vpop.f32.mrf.mxu0
        %v8951 = vadd.f32 0.0, %v8950
        %8952 = vmatmul.bf16.gmra.mxu0 %v8825
        %v8953 = vpop.f32.mrf.mxu0
        %v8954 = vadd.f32 0.0, %v8953
        %v8955 = vpop.f32.mrf.mxu0
        %v8956 = vadd.f32 0.0, %v8955
        %8957 = vmatmul.bf16.gmra.mxu0 %v8827
        %v8958 = vpop.f32.mrf.mxu0
        %v8959 = vadd.f32 0.0, %v8958
        %v8960 = vpop.f32.mrf.mxu0
        %v8961 = vadd.f32 0.0, %v8960
        %8962 = vmatmul.bf16.gmra.mxu0 %v8829
        %v8963 = vpop.f32.mrf.mxu0
        %v8964 = vadd.f32 0.0, %v8963
        %v8965 = vpop.f32.mrf.mxu0
        %v8966 = vadd.f32 0.0, %v8965
        %8967 = vmatmul.bf16.gmra.mxu0 %v8831
        %v8968 = vpop.f32.mrf.mxu0
        %v8969 = vadd.f32 0.0, %v8968
        %v8970 = vpop.f32.mrf.mxu0
        %v8971 = vadd.f32 0.0, %v8970
        %8972 = vmatmul.bf16.gmra.mxu0 %v8833
        %v8973 = vpop.f32.mrf.mxu0
        %v8974 = vadd.f32 0.0, %v8973
        %v8975 = vpop.f32.mrf.mxu0
        %v8976 = vadd.f32 0.0, %v8975
        %8977 = vmatmul.bf16.gmra.mxu0 %v8835
        %v8978 = vpop.f32.mrf.mxu0
        %v8979 = vadd.f32 0.0, %v8978
        %v8980 = vpop.f32.mrf.mxu0
        %v8981 = vadd.f32 0.0, %v8980
        %8982 = vmatmul.bf16.gmra.mxu0 %v8837
        %v8983 = vpop.f32.mrf.mxu0
        %v8984 = vadd.f32 0.0, %v8983
        %v8985 = vpop.f32.mrf.mxu0
        %v8986 = vadd.f32 0.0, %v8985
        %8987 = vmatmul.bf16.gmra.mxu0 %v8839
        %v8988 = vpop.f32.mrf.mxu0
        %v8989 = vadd.f32 0.0, %v8988
        %v8990 = vpop.f32.mrf.mxu0
        %v8991 = vadd.f32 0.0, %v8990
        %8992 = vmatmul.bf16.gmra.mxu0 %v8841
        %v8993 = vpop.f32.mrf.mxu0
        %v8994 = vadd.f32 0.0, %v8993
        %v8995 = vpop.f32.mrf.mxu0
        %v8996 = vadd.f32 0.0, %v8995
        %8997 = vmatmul.bf16.gmra.mxu0 %v8843
        %v8998 = vpop.f32.mrf.mxu0
        %v8999 = vadd.f32 0.0, %v8998
        %v9000 = vpop.f32.mrf.mxu0
        %v9001 = vadd.f32 0.0, %v9000
        %9002 = vmatmul.bf16.gmra.mxu0 %v8845
        %v9003 = vpop.f32.mrf.mxu0
        %v9004 = vadd.f32 0.0, %v9003
        %v9005 = vpop.f32.mrf.mxu0
        %v9006 = vadd.f32 0.0, %v9005
        %9007 = vmatmul.bf16.gmra.mxu0 %v8847
        %v9008 = vpop.f32.mrf.mxu0
        %v9009 = vadd.f32 0.0, %v9008
        %v9010 = vpop.f32.mrf.mxu0
        %v9011 = vadd.f32 0.0, %v9010
        %9012 = vdwg.mxu0
        %v9013 = vadd.f32 %v8754, %v8924
        %v9014 = vadd.f32 %v8755, %v8926
        %v9015 = vadd.f32 %v8756, %v8929
        %v9016 = vadd.f32 %v8757, %v8931
        %v9017 = vadd.f32 %v8758, %v8934
        %v9018 = vadd.f32 %v8759, %v8936
        %v9019 = vadd.f32 %v8760, %v8939
        %v9020 = vadd.f32 %v8761, %v8941
        %v9021 = vadd.f32 %v8762, %v8944
        %v9022 = vadd.f32 %v8763, %v8946
        %v9023 = vadd.f32 %v8764, %v8949
        %v9024 = vadd.f32 %v8765, %v8951
        %v9025 = vadd.f32 %v8766, %v8954
        %v9026 = vadd.f32 %v8767, %v8956
        %v9027 = vadd.f32 %v8768, %v8959
        %v9028 = vadd.f32 %v8769, %v8961
        %v9029 = vadd.f32 %v8770, %v8964
        %v9030 = vadd.f32 %v8771, %v8966
        %v9031 = vadd.f32 %v8772, %v8969
        %v9032 = vadd.f32 %v8773, %v8971
        %v9033 = vadd.f32 %v8774, %v8974
        %v9034 = vadd.f32 %v8775, %v8976
        %v9035 = vadd.f32 %v8776, %v8979
        %v9036 = vadd.f32 %v8777, %v8981
        %v9037 = vadd.f32 %v8778, %v8984
        %v9038 = vadd.f32 %v8779, %v8986
        %v9039 = vadd.f32 %v8780, %v8989
        %v9040 = vadd.f32 %v8781, %v8991
        %v9041 = vadd.f32 %v8782, %v8994
        %v9042 = vadd.f32 %v8783, %v8996
        %v9043 = vadd.f32 %v8784, %v8999
        %v9044 = vadd.f32 %v8785, %v9001
        %v9045 = vadd.f32 %v8786, %v9004
        %v9046 = vadd.f32 %v8787, %v9006
        %v9047 = vadd.f32 %v8788, %v9009
        %v9048 = vadd.f32 %v8789, %v9011
        %v9049 = vld [vmem:[#allocation3 + $0x10] sm:$0xc]
        %v9050 = vld [vmem:[#allocation3 + $0x14] sm:$0xf]
        %v9051 = vld [vmem:[#allocation3 + $0x18] sm:$0xf]
        %v9052 = vld [vmem:[#allocation3 + $0x1c] sm:$0xf]
        %v9053 = vld [vmem:[#allocation3 + $0x20] sm:$0xf]
        %v9054 = vld [vmem:[#allocation3 + $0x24] sm:$0xf]
        %v9055 = vld [vmem:[#allocation3 + $0x28] sm:$0xf]
        %v9056 = vld [vmem:[#allocation3 + $0x2c] sm:$0xf]
        %v9057 = vld [vmem:[#allocation3 + $0x30] sm:$0xf]
        %v9058 = vld [vmem:[#allocation3 + $0x34] sm:$0xf]
        %v9059 = vld [vmem:[#allocation3 + $0x38] sm:$0xf]
        %v9060 = vld [vmem:[#allocation3 + $0x3c] sm:$0xf]
        %v9061 = vld [vmem:[#allocation3 + $0x40] sm:$0xf]
        %v9062 = vld [vmem:[#allocation3 + $0x44] sm:$0xf]
        %v9063 = vld [vmem:[#allocation3 + $0x48] sm:$0xf]
        %v9064 = vld [vmem:[#allocation3 + $0x4c] sm:$0xf]
        %v9065 = vld [vmem:[#allocation3 + $0x50] sm:$0xf]
        %v9066 = vld [vmem:[#allocation3 + $0x54] sm:$0xf]
        %v9067 = vld [vmem:[#allocation3 + $0x58] sm:$0xf]
        %v9068 = vld [vmem:[#allocation3 + $0x5c] sm:$0xf]
        %v9069 = vld [vmem:[#allocation3 + $0x60] sm:$0xf]
        %v9070 = vld [vmem:[#allocation3 + $0x64] sm:$0xf]
        %v9071 = vld [vmem:[#allocation3 + $0x68] sm:$0xf]
        %v9072 = vld [vmem:[#allocation3 + $0x6c] sm:$0xf]
        %v9073 = vld [vmem:[#allocation3 + $0x70] sm:$0xf]
        %v9074 = vld [vmem:[#allocation3 + $0x74] sm:$0xf]
        %v9075 = vld [vmem:[#allocation3 + $0x78] sm:$0xf]
        %v9076 = vld [vmem:[#allocation3 + $0x7c] sm:$0xf]
        %v9077 = vld [vmem:[#allocation3 + $0x80] sm:$0xf]
        %v9078 = vld [vmem:[#allocation3 + $0x84] sm:$0xf]
        %v9079 = vld [vmem:[#allocation3 + $0x88] sm:$0xf]
        %v9080 = vld [vmem:[#allocation3 + $0x8c] sm:$0xf]
        %v9081 = vld [vmem:[#allocation3 + $0x90] sm:$0xf]
        %v9082 = vld [vmem:[#allocation3 + $0x94] sm:$0xf]
        %v9083 = vld [vmem:[#allocation3 + $0x98] sm:$0xf]
        %v9084 = vld [vmem:[#allocation3 + $0x9c] sm:$0xf]
        %v9085 = vld [vmem:[#allocation3 + $0xa0] sm:$0x3]
        %s9086 = scalar_lea.vmem [#allocation9], 384
        %v9087 = vld [vmem:[%s9086] sm:$0xf]
        %v9088 = vld [vmem:[%s9086 + $0x4] sm:$0xf]
        %v9089 = vld [vmem:[%s9086 + $0x8] sm:$0xf]
        %v9090 = vld [vmem:[%s9086 + $0xc] sm:$0xf]
        %v9091 = vld [vmem:[%s9086 + $0x10] sm:$0xf]
        %v9092 = vld [vmem:[%s9086 + $0x14] sm:$0xf]
        %v9093 = vld [vmem:[%s9086 + $0x18] sm:$0xf]
        %v9094 = vld [vmem:[%s9086 + $0x1c] sm:$0xf]
        %v9095 = vld [vmem:[%s9086 + $0x20] sm:$0xf]
        %v9096 = vld [vmem:[%s9086 + $0x24] sm:$0xf]
        %v9097 = vld [vmem:[%s9086 + $0x28] sm:$0xf]
        %v9098 = vld [vmem:[%s9086 + $0x2c] sm:$0xf]
        %v9099 = vld [vmem:[%s9086 + $0x30] sm:$0xf]
        %v9100 = vld [vmem:[%s9086 + $0x34] sm:$0xf]
        %v9101 = vld [vmem:[%s9086 + $0x38] sm:$0xf]
        %v9102 = vld [vmem:[%s9086 + $0x3c] sm:$0xf]
        %v9140 = vunpack.c.l.b16 %v9049
        %v9141 = vunpack.c.l.b16 %v9050
        %v9142 = vunpack.c.l.b16 %v9051
        %v9143 = vunpack.c.l.b16 %v9052
        %v9144 = vunpack.c.l.b16 %v9053
        %v9145 = vunpack.c.l.b16 %v9054
        %v9146 = vunpack.c.l.b16 %v9055
        %v9147 = vunpack.c.l.b16 %v9056
        %v9148 = vunpack.c.l.b16 %v9057
        %v9149 = vunpack.c.l.b16 %v9058
        %v9150 = vunpack.c.l.b16 %v9059
        %v9151 = vunpack.c.l.b16 %v9060
        %v9152 = vunpack.c.l.b16 %v9061
        %v9153 = vunpack.c.l.b16 %v9062
        %v9154 = vunpack.c.l.b16 %v9063
        %v9155 = vunpack.c.l.b16 %v9064
        %v9156 = vunpack.c.l.b16 %v9065
        %v9157 = vunpack.c.l.b16 %v9066
        %v9158 = vunpack.c.l.b16 %v9067
        %v9159 = vunpack.c.l.b16 %v9068
        %v9160 = vunpack.c.l.b16 %v9069
        %v9161 = vunpack.c.l.b16 %v9070
        %v9162 = vunpack.c.l.b16 %v9071
        %v9163 = vunpack.c.l.b16 %v9072
        %v9164 = vunpack.c.l.b16 %v9073
        %v9165 = vunpack.c.l.b16 %v9074
        %v9166 = vunpack.c.l.b16 %v9075
        %v9167 = vunpack.c.l.b16 %v9076
        %v9168 = vunpack.c.l.b16 %v9077
        %v9169 = vunpack.c.l.b16 %v9078
        %v9170 = vunpack.c.l.b16 %v9079
        %v9171 = vunpack.c.l.b16 %v9080
        %v9172 = vunpack.c.l.b16 %v9081
        %v9173 = vunpack.c.l.b16 %v9082
        %v9174 = vunpack.c.l.b16 %v9083
        %v9175 = vunpack.c.l.b16 %v9084
        %v9176 = vunpack.c.l.b16 %v9085
        %v9177 = vpack.c.b16 %v9141, %v9140
        %v9178 = vpack.c.b16 %v9143, %v9142
        %v9179 = vpack.c.b16 %v9145, %v9144
        %v9180 = vpack.c.b16 %v9147, %v9146
        %v9181 = vpack.c.b16 %v9149, %v9148
        %v9182 = vpack.c.b16 %v9151, %v9150
        %v9183 = vpack.c.b16 %v9153, %v9152
        %v9184 = vpack.c.b16 %v9155, %v9154
        %v9185 = vpack.c.b16 %v9157, %v9156
        %v9186 = vpack.c.b16 %v9159, %v9158
        %v9187 = vpack.c.b16 %v9161, %v9160
        %v9188 = vpack.c.b16 %v9163, %v9162
        %v9189 = vpack.c.b16 %v9165, %v9164
        %v9190 = vpack.c.b16 %v9167, %v9166
        %v9191 = vpack.c.b16 %v9169, %v9168
        %v9192 = vpack.c.b16 %v9171, %v9170
        %v9193 = vpack.c.b16 %v9173, %v9172
        %v9194 = vpack.c.b16 %v9175, %v9174
        %v9195 = vpack.c.b16 %v9176, %v9176
        %v9196 = vrot.slane %v9177, 2
        %v9197 = vrot.slane %v9178, 2
        %v9198 = vsel %vm3922, %v9196, %v9197
        %v9199 = vrot.slane %v9179, 2
        %v9200 = vsel %vm3922, %v9197, %v9199
        %v9201 = vrot.slane %v9180, 2
        %v9202 = vsel %vm3922, %v9199, %v9201
        %v9203 = vrot.slane %v9181, 2
        %v9204 = vsel %vm3922, %v9201, %v9203
        %v9205 = vrot.slane %v9182, 2
        %v9206 = vsel %vm3922, %v9203, %v9205
        %v9207 = vrot.slane %v9183, 2
        %v9208 = vsel %vm3922, %v9205, %v9207
        %v9209 = vrot.slane %v9184, 2
        %v9210 = vsel %vm3922, %v9207, %v9209
        %v9211 = vrot.slane %v9185, 2
        %v9212 = vsel %vm3922, %v9209, %v9211
        %v9213 = vrot.slane %v9186, 2
        %v9214 = vsel %vm3922, %v9211, %v9213
        %v9215 = vrot.slane %v9187, 2
        %v9216 = vsel %vm3922, %v9213, %v9215
        %v9217 = vrot.slane %v9188, 2
        %v9218 = vsel %vm3922, %v9215, %v9217
        %v9219 = vrot.slane %v9189, 2
        %v9220 = vsel %vm3922, %v9217, %v9219
        %v9221 = vrot.slane %v9190, 2
        %v9222 = vsel %vm3922, %v9219, %v9221
        %v9223 = vrot.slane %v9191, 2
        %v9224 = vsel %vm3922, %v9221, %v9223
        %v9225 = vrot.slane %v9192, 2
        %v9226 = vsel %vm3922, %v9223, %v9225
        %v9227 = vrot.slane %v9193, 2
        %v9228 = vsel %vm3922, %v9225, %v9227
        %v9229 = vrot.slane %v9194, 2
        %v9230 = vsel %vm3922, %v9227, %v9229
        %v9231 = vrot.slane %v9195, 2
        %v9232 = vsel %vm3922, %v9229, %v9231
        %v9267 = vunpack.c.l.b16 %v9087
        %v9268 = vunpack.c.l.b16 %v9088
        %v9269 = vunpack.c.l.b16 %v9089
        %v9270 = vunpack.c.l.b16 %v9090
        %v9271 = vunpack.c.l.b16 %v9091
        %v9272 = vunpack.c.l.b16 %v9092
        %v9273 = vunpack.c.l.b16 %v9093
        %v9274 = vunpack.c.l.b16 %v9094
        %v9275 = vunpack.c.l.b16 %v9095
        %v9276 = vunpack.c.l.b16 %v9096
        %v9277 = vunpack.c.l.b16 %v9097
        %v9278 = vunpack.c.l.b16 %v9098
        %v9279 = vunpack.c.l.b16 %v9099
        %v9280 = vunpack.c.l.b16 %v9100
        %v9281 = vunpack.c.l.b16 %v9101
        %v9282 = vunpack.c.l.b16 %v9102
        %v9283 = vpack.c.b16 %v9268, %v9267
        %v9284 = vpack.c.b16 %v9270, %v9269
        %v9285 = vpack.c.b16 %v9272, %v9271
        %v9286 = vpack.c.b16 %v9274, %v9273
        %v9287 = vpack.c.b16 %v9276, %v9275
        %v9288 = vpack.c.b16 %v9278, %v9277
        %v9289 = vpack.c.b16 %v9280, %v9279
        %v9290 = vpack.c.b16 %v9282, %v9281
        %9299 = vmatpush.bf16.msra.mxu0 %v9290
        %9300 = vmatpush.bf16.msra.mxu0 %v9289
        %9301 = vmatpush.bf16.msra.mxu0 %v9288
        %9302 = vmatpush.bf16.msra.mxu0 %v9287
        %9303 = vmatpush.bf16.msra.mxu0 %v9286
        %9304 = vmatpush.bf16.msra.mxu0 %v9285
        %9305 = vmatpush.bf16.msra.mxu0 %v9284
        %9306 = vmatpush.bf16.msra.mxu0 %v9283
        %9307 = vmatmul.bf16.gmra.mxu0 %v9198
        %v9308 = vpop.f32.mrf.mxu0
        %v9309 = vadd.f32 0.0, %v9308
        %v9310 = vpop.f32.mrf.mxu0
        %v9311 = vadd.f32 0.0, %v9310
        %9312 = vmatmul.bf16.gmra.mxu0 %v9200
        %v9313 = vpop.f32.mrf.mxu0
        %v9314 = vadd.f32 0.0, %v9313
        %v9315 = vpop.f32.mrf.mxu0
        %v9316 = vadd.f32 0.0, %v9315
        %9317 = vmatmul.bf16.gmra.mxu0 %v9202
        %v9318 = vpop.f32.mrf.mxu0
        %v9319 = vadd.f32 0.0, %v9318
        %v9320 = vpop.f32.mrf.mxu0
        %v9321 = vadd.f32 0.0, %v9320
        %9322 = vmatmul.bf16.gmra.mxu0 %v9204
        %v9323 = vpop.f32.mrf.mxu0
        %v9324 = vadd.f32 0.0, %v9323
        %v9325 = vpop.f32.mrf.mxu0
        %v9326 = vadd.f32 0.0, %v9325
        %9327 = vmatmul.bf16.gmra.mxu0 %v9206
        %v9328 = vpop.f32.mrf.mxu0
        %v9329 = vadd.f32 0.0, %v9328
        %v9330 = vpop.f32.mrf.mxu0
        %v9331 = vadd.f32 0.0, %v9330
        %9332 = vmatmul.bf16.gmra.mxu0 %v9208
        %v9333 = vpop.f32.mrf.mxu0
        %v9334 = vadd.f32 0.0, %v9333
        %v9335 = vpop.f32.mrf.mxu0
        %v9336 = vadd.f32 0.0, %v9335
        %9337 = vmatmul.bf16.gmra.mxu0 %v9210
        %v9338 = vpop.f32.mrf.mxu0
        %v9339 = vadd.f32 0.0, %v9338
        %v9340 = vpop.f32.mrf.mxu0
        %v9341 = vadd.f32 0.0, %v9340
        %9342 = vmatmul.bf16.gmra.mxu0 %v9212
        %v9343 = vpop.f32.mrf.mxu0
        %v9344 = vadd.f32 0.0, %v9343
        %v9345 = vpop.f32.mrf.mxu0
        %v9346 = vadd.f32 0.0, %v9345
        %9347 = vmatmul.bf16.gmra.mxu0 %v9214
        %v9348 = vpop.f32.mrf.mxu0
        %v9349 = vadd.f32 0.0, %v9348
        %v9350 = vpop.f32.mrf.mxu0
        %v9351 = vadd.f32 0.0, %v9350
        %9352 = vmatmul.bf16.gmra.mxu0 %v9216
        %v9353 = vpop.f32.mrf.mxu0
        %v9354 = vadd.f32 0.0, %v9353
        %v9355 = vpop.f32.mrf.mxu0
        %v9356 = vadd.f32 0.0, %v9355
        %9357 = vmatmul.bf16.gmra.mxu0 %v9218
        %v9358 = vpop.f32.mrf.mxu0
        %v9359 = vadd.f32 0.0, %v9358
        %v9360 = vpop.f32.mrf.mxu0
        %v9361 = vadd.f32 0.0, %v9360
        %9362 = vmatmul.bf16.gmra.mxu0 %v9220
        %v9363 = vpop.f32.mrf.mxu0
        %v9364 = vadd.f32 0.0, %v9363
        %v9365 = vpop.f32.mrf.mxu0
        %v9366 = vadd.f32 0.0, %v9365
        %9367 = vmatmul.bf16.gmra.mxu0 %v9222
        %v9368 = vpop.f32.mrf.mxu0
        %v9369 = vadd.f32 0.0, %v9368
        %v9370 = vpop.f32.mrf.mxu0
        %v9371 = vadd.f32 0.0, %v9370
        %9372 = vmatmul.bf16.gmra.mxu0 %v9224
        %v9373 = vpop.f32.mrf.mxu0
        %v9374 = vadd.f32 0.0, %v9373
        %v9375 = vpop.f32.mrf.mxu0
        %v9376 = vadd.f32 0.0, %v9375
        %9377 = vmatmul.bf16.gmra.mxu0 %v9226
        %v9378 = vpop.f32.mrf.mxu0
        %v9379 = vadd.f32 0.0, %v9378
        %v9380 = vpop.f32.mrf.mxu0
        %v9381 = vadd.f32 0.0, %v9380
        %9382 = vmatmul.bf16.gmra.mxu0 %v9228
        %v9383 = vpop.f32.mrf.mxu0
        %v9384 = vadd.f32 0.0, %v9383
        %v9385 = vpop.f32.mrf.mxu0
        %v9386 = vadd.f32 0.0, %v9385
        %9387 = vmatmul.bf16.gmra.mxu0 %v9230
        %v9388 = vpop.f32.mrf.mxu0
        %v9389 = vadd.f32 0.0, %v9388
        %v9390 = vpop.f32.mrf.mxu0
        %v9391 = vadd.f32 0.0, %v9390
        %9392 = vmatmul.bf16.gmra.mxu0 %v9232
        %v9393 = vpop.f32.mrf.mxu0
        %v9394 = vadd.f32 0.0, %v9393
        %v9395 = vpop.f32.mrf.mxu0
        %v9396 = vadd.f32 0.0, %v9395
        %9397 = vdwg.mxu0
        %v9398 = vadd.f32 %v9013, %v9309
        %v9399 = vadd.f32 %v9014, %v9311
        %v9400 = vadd.f32 %v9015, %v9314
        %v9401 = vadd.f32 %v9016, %v9316
        %v9402 = vadd.f32 %v9017, %v9319
        %v9403 = vadd.f32 %v9018, %v9321
        %v9404 = vadd.f32 %v9019, %v9324
        %v9405 = vadd.f32 %v9020, %v9326
        %v9406 = vadd.f32 %v9021, %v9329
        %v9407 = vadd.f32 %v9022, %v9331
        %v9408 = vadd.f32 %v9023, %v9334
        %v9409 = vadd.f32 %v9024, %v9336
        %v9410 = vadd.f32 %v9025, %v9339
        %v9411 = vadd.f32 %v9026, %v9341
        %v9412 = vadd.f32 %v9027, %v9344
        %v9413 = vadd.f32 %v9028, %v9346
        %v9414 = vadd.f32 %v9029, %v9349
        %v9415 = vadd.f32 %v9030, %v9351
        %v9416 = vadd.f32 %v9031, %v9354
        %v9417 = vadd.f32 %v9032, %v9356
        %v9418 = vadd.f32 %v9033, %v9359
        %v9419 = vadd.f32 %v9034, %v9361
        %v9420 = vadd.f32 %v9035, %v9364
        %v9421 = vadd.f32 %v9036, %v9366
        %v9422 = vadd.f32 %v9037, %v9369
        %v9423 = vadd.f32 %v9038, %v9371
        %v9424 = vadd.f32 %v9039, %v9374
        %v9425 = vadd.f32 %v9040, %v9376
        %v9426 = vadd.f32 %v9041, %v9379
        %v9427 = vadd.f32 %v9042, %v9381
        %v9428 = vadd.f32 %v9043, %v9384
        %v9429 = vadd.f32 %v9044, %v9386
        %v9430 = vadd.f32 %v9045, %v9389
        %v9431 = vadd.f32 %v9046, %v9391
        %v9432 = vadd.f32 %v9047, %v9394
        %v9433 = vadd.f32 %v9048, %v9396
        %v9434 = vld [vmem:[#allocation3 + $0xa0] sm:$0x7]
        %s9435 = scalar_lea.vmem [#allocation9], 448
        %v9436 = vld [vmem:[%s9435] sm:$0xf]
        %v9437 = vld [vmem:[%s9435 + $0x4] sm:$0xf]
        %v9438 = vld [vmem:[%s9435 + $0x8] sm:$0xf]
        %v9439 = vld [vmem:[%s9435 + $0xc] sm:$0xf]
        %v9440 = vld [vmem:[%s9435 + $0x10] sm:$0xf]
        %v9441 = vld [vmem:[%s9435 + $0x14] sm:$0xf]
        %v9442 = vld [vmem:[%s9435 + $0x18] sm:$0xf]
        %v9443 = vld [vmem:[%s9435 + $0x1c] sm:$0xf]
        %v9444 = vld [vmem:[%s9435 + $0x20] sm:$0xf]
        %v9445 = vld [vmem:[%s9435 + $0x24] sm:$0xf]
        %v9446 = vld [vmem:[%s9435 + $0x28] sm:$0xf]
        %v9447 = vld [vmem:[%s9435 + $0x2c] sm:$0xf]
        %v9448 = vld [vmem:[%s9435 + $0x30] sm:$0xf]
        %v9449 = vld [vmem:[%s9435 + $0x34] sm:$0xf]
        %v9450 = vld [vmem:[%s9435 + $0x38] sm:$0xf]
        %v9451 = vld [vmem:[%s9435 + $0x3c] sm:$0xf]
        %v9453 = vunpack.c.l.b16 %v9434
        %v9454 = vpack.c.b16 %v9453, %v9453
        %v9456 = vshrl.u32 %v9177, 16
        %v9458 = vrot.slane %v9456, 2
        %v9459 = vshll.u32 %v9177, 16
        %v9461 = vrot.slane %v9459, 3
        %v9462 = vor.u32 %v9458, %v9461
        %v9464 = vshrl.u32 %v9178, 16
        %v9466 = vrot.slane %v9464, 2
        %v9467 = vshll.u32 %v9178, 16
        %v9469 = vrot.slane %v9467, 3
        %v9470 = vor.u32 %v9466, %v9469
        %v9471 = vsel %vm4567, %v9462, %v9470
        %v9473 = vshrl.u32 %v9179, 16
        %v9475 = vrot.slane %v9473, 2
        %v9476 = vshll.u32 %v9179, 16
        %v9478 = vrot.slane %v9476, 3
        %v9479 = vor.u32 %v9475, %v9478
        %v9480 = vsel %vm4567, %v9470, %v9479
        %v9482 = vshrl.u32 %v9180, 16
        %v9484 = vrot.slane %v9482, 2
        %v9485 = vshll.u32 %v9180, 16
        %v9487 = vrot.slane %v9485, 3
        %v9488 = vor.u32 %v9484, %v9487
        %v9489 = vsel %vm4567, %v9479, %v9488
        %v9491 = vshrl.u32 %v9181, 16
        %v9493 = vrot.slane %v9491, 2
        %v9494 = vshll.u32 %v9181, 16
        %v9496 = vrot.slane %v9494, 3
        %v9497 = vor.u32 %v9493, %v9496
        %v9498 = vsel %vm4567, %v9488, %v9497
        %v9500 = vshrl.u32 %v9182, 16
        %v9502 = vrot.slane %v9500, 2
        %v9503 = vshll.u32 %v9182, 16
        %v9505 = vrot.slane %v9503, 3
        %v9506 = vor.u32 %v9502, %v9505
        %v9507 = vsel %vm4567, %v9497, %v9506
        %v9509 = vshrl.u32 %v9183, 16
        %v9511 = vrot.slane %v9509, 2
        %v9512 = vshll.u32 %v9183, 16
        %v9514 = vrot.slane %v9512, 3
        %v9515 = vor.u32 %v9511, %v9514
        %v9516 = vsel %vm4567, %v9506, %v9515
        %v9518 = vshrl.u32 %v9184, 16
        %v9520 = vrot.slane %v9518, 2
        %v9521 = vshll.u32 %v9184, 16
        %v9523 = vrot.slane %v9521, 3
        %v9524 = vor.u32 %v9520, %v9523
        %v9525 = vsel %vm4567, %v9515, %v9524
        %v9527 = vshrl.u32 %v9185, 16
        %v9529 = vrot.slane %v9527, 2
        %v9530 = vshll.u32 %v9185, 16
        %v9532 = vrot.slane %v9530, 3
        %v9533 = vor.u32 %v9529, %v9532
        %v9534 = vsel %vm4567, %v9524, %v9533
        %v9536 = vshrl.u32 %v9186, 16
        %v9538 = vrot.slane %v9536, 2
        %v9539 = vshll.u32 %v9186, 16
        %v9541 = vrot.slane %v9539, 3
        %v9542 = vor.u32 %v9538, %v9541
        %v9543 = vsel %vm4567, %v9533, %v9542
        %v9545 = vshrl.u32 %v9187, 16
        %v9547 = vrot.slane %v9545, 2
        %v9548 = vshll.u32 %v9187, 16
        %v9550 = vrot.slane %v9548, 3
        %v9551 = vor.u32 %v9547, %v9550
        %v9552 = vsel %vm4567, %v9542, %v9551
        %v9554 = vshrl.u32 %v9188, 16
        %v9556 = vrot.slane %v9554, 2
        %v9557 = vshll.u32 %v9188, 16
        %v9559 = vrot.slane %v9557, 3
        %v9560 = vor.u32 %v9556, %v9559
        %v9561 = vsel %vm4567, %v9551, %v9560
        %v9563 = vshrl.u32 %v9189, 16
        %v9565 = vrot.slane %v9563, 2
        %v9566 = vshll.u32 %v9189, 16
        %v9568 = vrot.slane %v9566, 3
        %v9569 = vor.u32 %v9565, %v9568
        %v9570 = vsel %vm4567, %v9560, %v9569
        %v9572 = vshrl.u32 %v9190, 16
        %v9574 = vrot.slane %v9572, 2
        %v9575 = vshll.u32 %v9190, 16
        %v9577 = vrot.slane %v9575, 3
        %v9578 = vor.u32 %v9574, %v9577
        %v9579 = vsel %vm4567, %v9569, %v9578
        %v9581 = vshrl.u32 %v9191, 16
        %v9583 = vrot.slane %v9581, 2
        %v9584 = vshll.u32 %v9191, 16
        %v9586 = vrot.slane %v9584, 3
        %v9587 = vor.u32 %v9583, %v9586
        %v9588 = vsel %vm4567, %v9578, %v9587
        %v9590 = vshrl.u32 %v9192, 16
        %v9592 = vrot.slane %v9590, 2
        %v9593 = vshll.u32 %v9192, 16
        %v9595 = vrot.slane %v9593, 3
        %v9596 = vor.u32 %v9592, %v9595
        %v9597 = vsel %vm4567, %v9587, %v9596
        %v9599 = vshrl.u32 %v9193, 16
        %v9601 = vrot.slane %v9599, 2
        %v9602 = vshll.u32 %v9193, 16
        %v9604 = vrot.slane %v9602, 3
        %v9605 = vor.u32 %v9601, %v9604
        %v9606 = vsel %vm4567, %v9596, %v9605
        %v9608 = vshrl.u32 %v9194, 16
        %v9610 = vrot.slane %v9608, 2
        %v9611 = vshll.u32 %v9194, 16
        %v9613 = vrot.slane %v9611, 3
        %v9614 = vor.u32 %v9610, %v9613
        %v9615 = vsel %vm4567, %v9605, %v9614
        %v9617 = vshrl.u32 %v9454, 16
        %v9619 = vrot.slane %v9617, 2
        %v9620 = vshll.u32 %v9454, 16
        %v9622 = vrot.slane %v9620, 3
        %v9623 = vor.u32 %v9619, %v9622
        %v9624 = vsel %vm4567, %v9614, %v9623
        %v9659 = vunpack.c.l.b16 %v9436
        %v9660 = vunpack.c.l.b16 %v9437
        %v9661 = vunpack.c.l.b16 %v9438
        %v9662 = vunpack.c.l.b16 %v9439
        %v9663 = vunpack.c.l.b16 %v9440
        %v9664 = vunpack.c.l.b16 %v9441
        %v9665 = vunpack.c.l.b16 %v9442
        %v9666 = vunpack.c.l.b16 %v9443
        %v9667 = vunpack.c.l.b16 %v9444
        %v9668 = vunpack.c.l.b16 %v9445
        %v9669 = vunpack.c.l.b16 %v9446
        %v9670 = vunpack.c.l.b16 %v9447
        %v9671 = vunpack.c.l.b16 %v9448
        %v9672 = vunpack.c.l.b16 %v9449
        %v9673 = vunpack.c.l.b16 %v9450
        %v9674 = vunpack.c.l.b16 %v9451
        %v9675 = vpack.c.b16 %v9660, %v9659
        %v9676 = vpack.c.b16 %v9662, %v9661
        %v9677 = vpack.c.b16 %v9664, %v9663
        %v9678 = vpack.c.b16 %v9666, %v9665
        %v9679 = vpack.c.b16 %v9668, %v9667
        %v9680 = vpack.c.b16 %v9670, %v9669
        %v9681 = vpack.c.b16 %v9672, %v9671
        %v9682 = vpack.c.b16 %v9674, %v9673
        %9691 = vmatpush.bf16.msra.mxu0 %v9682
        %9692 = vmatpush.bf16.msra.mxu0 %v9681
        %9693 = vmatpush.bf16.msra.mxu0 %v9680
        %9694 = vmatpush.bf16.msra.mxu0 %v9679
        %9695 = vmatpush.bf16.msra.mxu0 %v9678
        %9696 = vmatpush.bf16.msra.mxu0 %v9677
        %9697 = vmatpush.bf16.msra.mxu0 %v9676
        %9698 = vmatpush.bf16.msra.mxu0 %v9675
        %9699 = vmatmul.bf16.gmra.mxu0 %v9471
        %v9700 = vpop.f32.mrf.mxu0
        %v9701 = vadd.f32 0.0, %v9700
        %v9702 = vpop.f32.mrf.mxu0
        %v9703 = vadd.f32 0.0, %v9702
        %9704 = vmatmul.bf16.gmra.mxu0 %v9480
        %v9705 = vpop.f32.mrf.mxu0
        %v9706 = vadd.f32 0.0, %v9705
        %v9707 = vpop.f32.mrf.mxu0
        %v9708 = vadd.f32 0.0, %v9707
        %9709 = vmatmul.bf16.gmra.mxu0 %v9489
        %v9710 = vpop.f32.mrf.mxu0
        %v9711 = vadd.f32 0.0, %v9710
        %v9712 = vpop.f32.mrf.mxu0
        %v9713 = vadd.f32 0.0, %v9712
        %9714 = vmatmul.bf16.gmra.mxu0 %v9498
        %v9715 = vpop.f32.mrf.mxu0
        %v9716 = vadd.f32 0.0, %v9715
        %v9717 = vpop.f32.mrf.mxu0
        %v9718 = vadd.f32 0.0, %v9717
        %9719 = vmatmul.bf16.gmra.mxu0 %v9507
        %v9720 = vpop.f32.mrf.mxu0
        %v9721 = vadd.f32 0.0, %v9720
        %v9722 = vpop.f32.mrf.mxu0
        %v9723 = vadd.f32 0.0, %v9722
        %9724 = vmatmul.bf16.gmra.mxu0 %v9516
        %v9725 = vpop.f32.mrf.mxu0
        %v9726 = vadd.f32 0.0, %v9725
        %v9727 = vpop.f32.mrf.mxu0
        %v9728 = vadd.f32 0.0, %v9727
        %9729 = vmatmul.bf16.gmra.mxu0 %v9525
        %v9730 = vpop.f32.mrf.mxu0
        %v9731 = vadd.f32 0.0, %v9730
        %v9732 = vpop.f32.mrf.mxu0
        %v9733 = vadd.f32 0.0, %v9732
        %9734 = vmatmul.bf16.gmra.mxu0 %v9534
        %v9735 = vpop.f32.mrf.mxu0
        %v9736 = vadd.f32 0.0, %v9735
        %v9737 = vpop.f32.mrf.mxu0
        %v9738 = vadd.f32 0.0, %v9737
        %9739 = vmatmul.bf16.gmra.mxu0 %v9543
        %v9740 = vpop.f32.mrf.mxu0
        %v9741 = vadd.f32 0.0, %v9740
        %v9742 = vpop.f32.mrf.mxu0
        %v9743 = vadd.f32 0.0, %v9742
        %9744 = vmatmul.bf16.gmra.mxu0 %v9552
        %v9745 = vpop.f32.mrf.mxu0
        %v9746 = vadd.f32 0.0, %v9745
        %v9747 = vpop.f32.mrf.mxu0
        %v9748 = vadd.f32 0.0, %v9747
        %9749 = vmatmul.bf16.gmra.mxu0 %v9561
        %v9750 = vpop.f32.mrf.mxu0
        %v9751 = vadd.f32 0.0, %v9750
        %v9752 = vpop.f32.mrf.mxu0
        %v9753 = vadd.f32 0.0, %v9752
        %9754 = vmatmul.bf16.gmra.mxu0 %v9570
        %v9755 = vpop.f32.mrf.mxu0
        %v9756 = vadd.f32 0.0, %v9755
        %v9757 = vpop.f32.mrf.mxu0
        %v9758 = vadd.f32 0.0, %v9757
        %9759 = vmatmul.bf16.gmra.mxu0 %v9579
        %v9760 = vpop.f32.mrf.mxu0
        %v9761 = vadd.f32 0.0, %v9760
        %v9762 = vpop.f32.mrf.mxu0
        %v9763 = vadd.f32 0.0, %v9762
        %9764 = vmatmul.bf16.gmra.mxu0 %v9588
        %v9765 = vpop.f32.mrf.mxu0
        %v9766 = vadd.f32 0.0, %v9765
        %v9767 = vpop.f32.mrf.mxu0
        %v9768 = vadd.f32 0.0, %v9767
        %9769 = vmatmul.bf16.gmra.mxu0 %v9597
        %v9770 = vpop.f32.mrf.mxu0
        %v9771 = vadd.f32 0.0, %v9770
        %v9772 = vpop.f32.mrf.mxu0
        %v9773 = vadd.f32 0.0, %v9772
        %9774 = vmatmul.bf16.gmra.mxu0 %v9606
        %v9775 = vpop.f32.mrf.mxu0
        %v9776 = vadd.f32 0.0, %v9775
        %v9777 = vpop.f32.mrf.mxu0
        %v9778 = vadd.f32 0.0, %v9777
        %9779 = vmatmul.bf16.gmra.mxu0 %v9615
        %v9780 = vpop.f32.mrf.mxu0
        %v9781 = vadd.f32 0.0, %v9780
        %v9782 = vpop.f32.mrf.mxu0
        %v9783 = vadd.f32 0.0, %v9782
        %9784 = vmatmul.bf16.gmra.mxu0 %v9624
        %v9785 = vpop.f32.mrf.mxu0
        %v9786 = vadd.f32 0.0, %v9785
        %v9787 = vpop.f32.mrf.mxu0
        %v9788 = vadd.f32 0.0, %v9787
        %9789 = vdwg.mxu0
        %v9790 = vadd.f32 %v9398, %v9701
        %v9791 = vadd.f32 %v9399, %v9703
        %v9792 = vadd.f32 %v9400, %v9706
        %v9793 = vadd.f32 %v9401, %v9708
        %v9794 = vadd.f32 %v9402, %v9711
        %v9795 = vadd.f32 %v9403, %v9713
        %v9796 = vadd.f32 %v9404, %v9716
        %v9797 = vadd.f32 %v9405, %v9718
        %v9798 = vadd.f32 %v9406, %v9721
        %v9799 = vadd.f32 %v9407, %v9723
        %v9800 = vadd.f32 %v9408, %v9726
        %v9801 = vadd.f32 %v9409, %v9728
        %v9802 = vadd.f32 %v9410, %v9731
        %v9803 = vadd.f32 %v9411, %v9733
        %v9804 = vadd.f32 %v9412, %v9736
        %v9805 = vadd.f32 %v9413, %v9738
        %v9806 = vadd.f32 %v9414, %v9741
        %v9807 = vadd.f32 %v9415, %v9743
        %v9808 = vadd.f32 %v9416, %v9746
        %v9809 = vadd.f32 %v9417, %v9748
        %v9810 = vadd.f32 %v9418, %v9751
        %v9811 = vadd.f32 %v9419, %v9753
        %v9812 = vadd.f32 %v9420, %v9756
        %v9813 = vadd.f32 %v9421, %v9758
        %v9814 = vadd.f32 %v9422, %v9761
        %v9815 = vadd.f32 %v9423, %v9763
        %v9816 = vadd.f32 %v9424, %v9766
        %v9817 = vadd.f32 %v9425, %v9768
        %v9818 = vadd.f32 %v9426, %v9771
        %v9819 = vadd.f32 %v9427, %v9773
        %v9820 = vadd.f32 %v9428, %v9776
        %v9821 = vadd.f32 %v9429, %v9778
        %v9822 = vadd.f32 %v9430, %v9781
        %v9823 = vadd.f32 %v9431, %v9783
        %v9824 = vadd.f32 %v9432, %v9786
        %v9825 = vadd.f32 %v9433, %v9788
        %v9826 = vld [vmem:[#allocation3 + $0x10] sm:$0x8]
        %s9827 = scalar_lea.vmem [#allocation9], 512
        %v9828 = vld [vmem:[%s9827] sm:$0xf]
        %v9829 = vld [vmem:[%s9827 + $0x4] sm:$0xf]
        %v9830 = vld [vmem:[%s9827 + $0x8] sm:$0xf]
        %v9831 = vld [vmem:[%s9827 + $0xc] sm:$0xf]
        %v9832 = vld [vmem:[%s9827 + $0x10] sm:$0xf]
        %v9833 = vld [vmem:[%s9827 + $0x14] sm:$0xf]
        %v9834 = vld [vmem:[%s9827 + $0x18] sm:$0xf]
        %v9835 = vld [vmem:[%s9827 + $0x1c] sm:$0xf]
        %v9836 = vld [vmem:[%s9827 + $0x20] sm:$0xf]
        %v9837 = vld [vmem:[%s9827 + $0x24] sm:$0xf]
        %v9838 = vld [vmem:[%s9827 + $0x28] sm:$0xf]
        %v9839 = vld [vmem:[%s9827 + $0x2c] sm:$0xf]
        %v9840 = vld [vmem:[%s9827 + $0x30] sm:$0xf]
        %v9841 = vld [vmem:[%s9827 + $0x34] sm:$0xf]
        %v9842 = vld [vmem:[%s9827 + $0x38] sm:$0xf]
        %v9843 = vld [vmem:[%s9827 + $0x3c] sm:$0xf]
        %v9845 = vunpack.c.l.b16 %v9826
        %v9846 = vpack.c.b16 %v9141, %v9845
        %v9847 = vrot.slane %v9846, 3
        %v9848 = vrot.slane %v9178, 3
        %v9849 = vsel %vm4960, %v9847, %v9848
        %v9850 = vrot.slane %v9179, 3
        %v9851 = vsel %vm4960, %v9848, %v9850
        %v9852 = vrot.slane %v9180, 3
        %v9853 = vsel %vm4960, %v9850, %v9852
        %v9854 = vrot.slane %v9181, 3
        %v9855 = vsel %vm4960, %v9852, %v9854
        %v9856 = vrot.slane %v9182, 3
        %v9857 = vsel %vm4960, %v9854, %v9856
        %v9858 = vrot.slane %v9183, 3
        %v9859 = vsel %vm4960, %v9856, %v9858
        %v9860 = vrot.slane %v9184, 3
        %v9861 = vsel %vm4960, %v9858, %v9860
        %v9862 = vrot.slane %v9185, 3
        %v9863 = vsel %vm4960, %v9860, %v9862
        %v9864 = vrot.slane %v9186, 3
        %v9865 = vsel %vm4960, %v9862, %v9864
        %v9866 = vrot.slane %v9187, 3
        %v9867 = vsel %vm4960, %v9864, %v9866
        %v9868 = vrot.slane %v9188, 3
        %v9869 = vsel %vm4960, %v9866, %v9868
        %v9870 = vrot.slane %v9189, 3
        %v9871 = vsel %vm4960, %v9868, %v9870
        %v9872 = vrot.slane %v9190, 3
        %v9873 = vsel %vm4960, %v9870, %v9872
        %v9874 = vrot.slane %v9191, 3
        %v9875 = vsel %vm4960, %v9872, %v9874
        %v9876 = vrot.slane %v9192, 3
        %v9877 = vsel %vm4960, %v9874, %v9876
        %v9878 = vrot.slane %v9193, 3
        %v9879 = vsel %vm4960, %v9876, %v9878
        %v9880 = vrot.slane %v9194, 3
        %v9881 = vsel %vm4960, %v9878, %v9880
        %v9882 = vrot.slane %v9454, 3
        %v9883 = vsel %vm4960, %v9880, %v9882
        %v9918 = vunpack.c.l.b16 %v9828
        %v9919 = vunpack.c.l.b16 %v9829
        %v9920 = vunpack.c.l.b16 %v9830
        %v9921 = vunpack.c.l.b16 %v9831
        %v9922 = vunpack.c.l.b16 %v9832
        %v9923 = vunpack.c.l.b16 %v9833
        %v9924 = vunpack.c.l.b16 %v9834
        %v9925 = vunpack.c.l.b16 %v9835
        %v9926 = vunpack.c.l.b16 %v9836
        %v9927 = vunpack.c.l.b16 %v9837
        %v9928 = vunpack.c.l.b16 %v9838
        %v9929 = vunpack.c.l.b16 %v9839
        %v9930 = vunpack.c.l.b16 %v9840
        %v9931 = vunpack.c.l.b16 %v9841
        %v9932 = vunpack.c.l.b16 %v9842
        %v9933 = vunpack.c.l.b16 %v9843
        %v9934 = vpack.c.b16 %v9919, %v9918
        %v9935 = vpack.c.b16 %v9921, %v9920
        %v9936 = vpack.c.b16 %v9923, %v9922
        %v9937 = vpack.c.b16 %v9925, %v9924
        %v9938 = vpack.c.b16 %v9927, %v9926
        %v9939 = vpack.c.b16 %v9929, %v9928
        %v9940 = vpack.c.b16 %v9931, %v9930
        %v9941 = vpack.c.b16 %v9933, %v9932
        %9950 = vmatpush.bf16.msra.mxu0 %v9941
        %9951 = vmatpush.bf16.msra.mxu0 %v9940
        %9952 = vmatpush.bf16.msra.mxu0 %v9939
        %9953 = vmatpush.bf16.msra.mxu0 %v9938
        %9954 = vmatpush.bf16.msra.mxu0 %v9937
        %9955 = vmatpush.bf16.msra.mxu0 %v9936
        %9956 = vmatpush.bf16.msra.mxu0 %v9935
        %9957 = vmatpush.bf16.msra.mxu0 %v9934
        %9958 = vmatmul.bf16.gmra.mxu0 %v9849
        %v9959 = vpop.f32.mrf.mxu0
        %v9960 = vadd.f32 0.0, %v9959
        %v9961 = vpop.f32.mrf.mxu0
        %v9962 = vadd.f32 0.0, %v9961
        %9963 = vmatmul.bf16.gmra.mxu0 %v9851
        %v9964 = vpop.f32.mrf.mxu0
        %v9965 = vadd.f32 0.0, %v9964
        %v9966 = vpop.f32.mrf.mxu0
        %v9967 = vadd.f32 0.0, %v9966
        %9968 = vmatmul.bf16.gmra.mxu0 %v9853
        %v9969 = vpop.f32.mrf.mxu0
        %v9970 = vadd.f32 0.0, %v9969
        %v9971 = vpop.f32.mrf.mxu0
        %v9972 = vadd.f32 0.0, %v9971
        %9973 = vmatmul.bf16.gmra.mxu0 %v9855
        %v9974 = vpop.f32.mrf.mxu0
        %v9975 = vadd.f32 0.0, %v9974
        %v9976 = vpop.f32.mrf.mxu0
        %v9977 = vadd.f32 0.0, %v9976
        %9978 = vmatmul.bf16.gmra.mxu0 %v9857
        %v9979 = vpop.f32.mrf.mxu0
        %v9980 = vadd.f32 0.0, %v9979
        %v9981 = vpop.f32.mrf.mxu0
        %v9982 = vadd.f32 0.0, %v9981
        %9983 = vmatmul.bf16.gmra.mxu0 %v9859
        %v9984 = vpop.f32.mrf.mxu0
        %v9985 = vadd.f32 0.0, %v9984
        %v9986 = vpop.f32.mrf.mxu0
        %v9987 = vadd.f32 0.0, %v9986
        %9988 = vmatmul.bf16.gmra.mxu0 %v9861
        %v9989 = vpop.f32.mrf.mxu0
        %v9990 = vadd.f32 0.0, %v9989
        %v9991 = vpop.f32.mrf.mxu0
        %v9992 = vadd.f32 0.0, %v9991
        %9993 = vmatmul.bf16.gmra.mxu0 %v9863
        %v9994 = vpop.f32.mrf.mxu0
        %v9995 = vadd.f32 0.0, %v9994
        %v9996 = vpop.f32.mrf.mxu0
        %v9997 = vadd.f32 0.0, %v9996
        %9998 = vmatmul.bf16.gmra.mxu0 %v9865
        %v9999 = vpop.f32.mrf.mxu0
        %v10000 = vadd.f32 0.0, %v9999
        %v10001 = vpop.f32.mrf.mxu0
        %v10002 = vadd.f32 0.0, %v10001
        %10003 = vmatmul.bf16.gmra.mxu0 %v9867
        %v10004 = vpop.f32.mrf.mxu0
        %v10005 = vadd.f32 0.0, %v10004
        %v10006 = vpop.f32.mrf.mxu0
        %v10007 = vadd.f32 0.0, %v10006
        %10008 = vmatmul.bf16.gmra.mxu0 %v9869
        %v10009 = vpop.f32.mrf.mxu0
        %v10010 = vadd.f32 0.0, %v10009
        %v10011 = vpop.f32.mrf.mxu0
        %v10012 = vadd.f32 0.0, %v10011
        %10013 = vmatmul.bf16.gmra.mxu0 %v9871
        %v10014 = vpop.f32.mrf.mxu0
        %v10015 = vadd.f32 0.0, %v10014
        %v10016 = vpop.f32.mrf.mxu0
        %v10017 = vadd.f32 0.0, %v10016
        %10018 = vmatmul.bf16.gmra.mxu0 %v9873
        %v10019 = vpop.f32.mrf.mxu0
        %v10020 = vadd.f32 0.0, %v10019
        %v10021 = vpop.f32.mrf.mxu0
        %v10022 = vadd.f32 0.0, %v10021
        %10023 = vmatmul.bf16.gmra.mxu0 %v9875
        %v10024 = vpop.f32.mrf.mxu0
        %v10025 = vadd.f32 0.0, %v10024
        %v10026 = vpop.f32.mrf.mxu0
        %v10027 = vadd.f32 0.0, %v10026
        %10028 = vmatmul.bf16.gmra.mxu0 %v9877
        %v10029 = vpop.f32.mrf.mxu0
        %v10030 = vadd.f32 0.0, %v10029
        %v10031 = vpop.f32.mrf.mxu0
        %v10032 = vadd.f32 0.0, %v10031
        %10033 = vmatmul.bf16.gmra.mxu0 %v9879
        %v10034 = vpop.f32.mrf.mxu0
        %v10035 = vadd.f32 0.0, %v10034
        %v10036 = vpop.f32.mrf.mxu0
        %v10037 = vadd.f32 0.0, %v10036
        %10038 = vmatmul.bf16.gmra.mxu0 %v9881
        %v10039 = vpop.f32.mrf.mxu0
        %v10040 = vadd.f32 0.0, %v10039
        %v10041 = vpop.f32.mrf.mxu0
        %v10042 = vadd.f32 0.0, %v10041
        %10043 = vmatmul.bf16.gmra.mxu0 %v9883
        %v10044 = vpop.f32.mrf.mxu0
        %v10045 = vadd.f32 0.0, %v10044
        %v10046 = vpop.f32.mrf.mxu0
        %v10047 = vadd.f32 0.0, %v10046
        %10048 = vdwg.mxu0
        %v10049 = vadd.f32 %v9790, %v9960
        %v10050 = vadd.f32 %v9791, %v9962
        %v10051 = vadd.f32 %v9792, %v9965
        %v10052 = vadd.f32 %v9793, %v9967
        %v10053 = vadd.f32 %v9794, %v9970
        %v10054 = vadd.f32 %v9795, %v9972
        %v10055 = vadd.f32 %v9796, %v9975
        %v10056 = vadd.f32 %v9797, %v9977
        %v10057 = vadd.f32 %v9798, %v9980
        %v10058 = vadd.f32 %v9799, %v9982
        %v10059 = vadd.f32 %v9800, %v9985
        %v10060 = vadd.f32 %v9801, %v9987
        %v10061 = vadd.f32 %v9802, %v9990
        %v10062 = vadd.f32 %v9803, %v9992
        %v10063 = vadd.f32 %v9804, %v9995
        %v10064 = vadd.f32 %v9805, %v9997
        %v10065 = vadd.f32 %v9806, %v10000
        %v10066 = vadd.f32 %v9807, %v10002
        %v10067 = vadd.f32 %v9808, %v10005
        %v10068 = vadd.f32 %v9809, %v10007
        %v10069 = vadd.f32 %v9810, %v10010
        %v10070 = vadd.f32 %v9811, %v10012
        %v10071 = vadd.f32 %v9812, %v10015
        %v10072 = vadd.f32 %v9813, %v10017
        %v10073 = vadd.f32 %v9814, %v10020
        %v10074 = vadd.f32 %v9815, %v10022
        %v10075 = vadd.f32 %v9816, %v10025
        %v10076 = vadd.f32 %v9817, %v10027
        %v10077 = vadd.f32 %v9818, %v10030
        %v10078 = vadd.f32 %v9819, %v10032
        %v10079 = vadd.f32 %v9820, %v10035
        %v10080 = vadd.f32 %v9821, %v10037
        %v10081 = vadd.f32 %v9822, %v10040
        %v10082 = vadd.f32 %v9823, %v10042
        %v10083 = vadd.f32 %v9824, %v10045
        %v10084 = vadd.f32 %v9825, %v10047
        %v10121 = vrot.slane %v10049, 2
        %v10122 = vrot.slane %v10049, 4
        %v10123 = vrot.slane %v10049, 6
        %v10124 = vrot.slane %v10050, 2
        %v10125 = vrot.slane %v10050, 4
        %v10126 = vrot.slane %v10050, 6
        %v10127 = vrot.slane %v10051, 2
        %v10128 = vrot.slane %v10051, 4
        %v10129 = vrot.slane %v10051, 6
        %v10130 = vrot.slane %v10052, 2
        %v10131 = vrot.slane %v10052, 4
        %v10132 = vrot.slane %v10052, 6
        %v10133 = vrot.slane %v10053, 4
        %v10134 = vrot.slane %v10053, 6
        %v10135 = vrot.slane %v10054, 2
        %v10136 = vrot.slane %v10054, 4
        %v10137 = vrot.slane %v10054, 6
        %v10138 = vrot.slane %v10055, 2
        %v10139 = vrot.slane %v10055, 6
        %v10140 = vrot.slane %v10056, 2
        %v10141 = vrot.slane %v10056, 4
        %v10142 = vrot.slane %v10056, 6
        %v10143 = vrot.slane %v10057, 2
        %v10144 = vrot.slane %v10057, 4
        %v10145 = vrot.slane %v10058, 2
        %v10146 = vrot.slane %v10058, 4
        %v10147 = vrot.slane %v10058, 6
        %v10148 = vrot.slane %v10059, 2
        %v10149 = vrot.slane %v10059, 4
        %v10150 = vrot.slane %v10059, 6
        %v10151 = vrot.slane %v10060, 2
        %v10152 = vrot.slane %v10060, 4
        %v10153 = vrot.slane %v10060, 6
        %v10154 = vrot.slane %v10061, 2
        %v10155 = vrot.slane %v10061, 4
        %v10156 = vrot.slane %v10061, 6
        %v10157 = vrot.slane %v10062, 4
        %v10158 = vrot.slane %v10062, 6
        %v10159 = vrot.slane %v10063, 2
        %v10160 = vrot.slane %v10063, 4
        %v10161 = vrot.slane %v10063, 6
        %v10162 = vrot.slane %v10064, 2
        %v10163 = vrot.slane %v10064, 6
        %v10164 = vrot.slane %v10065, 2
        %v10165 = vrot.slane %v10065, 4
        %v10166 = vrot.slane %v10065, 6
        %v10167 = vrot.slane %v10066, 2
        %v10168 = vrot.slane %v10066, 4
        %v10169 = vrot.slane %v10067, 2
        %v10170 = vrot.slane %v10067, 4
        %v10171 = vrot.slane %v10067, 6
        %v10172 = vrot.slane %v10068, 2
        %v10173 = vrot.slane %v10068, 4
        %v10174 = vrot.slane %v10068, 6
        %v10175 = vrot.slane %v10069, 2
        %v10176 = vrot.slane %v10069, 4
        %v10177 = vrot.slane %v10069, 6
        %v10178 = vrot.slane %v10070, 2
        %v10179 = vrot.slane %v10070, 4
        %v10180 = vrot.slane %v10070, 6
        %v10181 = vrot.slane %v10071, 4
        %v10182 = vrot.slane %v10071, 6
        %v10183 = vrot.slane %v10072, 2
        %v10184 = vrot.slane %v10072, 4
        %v10185 = vrot.slane %v10072, 6
        %v10186 = vrot.slane %v10073, 2
        %v10187 = vrot.slane %v10073, 6
        %v10188 = vrot.slane %v10074, 2
        %v10189 = vrot.slane %v10074, 4
        %v10190 = vrot.slane %v10074, 6
        %v10191 = vrot.slane %v10075, 2
        %v10192 = vrot.slane %v10075, 4
        %v10193 = vrot.slane %v10076, 2
        %v10194 = vrot.slane %v10076, 4
        %v10195 = vrot.slane %v10076, 6
        %v10196 = vrot.slane %v10077, 2
        %v10197 = vrot.slane %v10077, 4
        %v10198 = vrot.slane %v10077, 6
        %v10199 = vrot.slane %v10078, 2
        %v10200 = vrot.slane %v10078, 4
        %v10201 = vrot.slane %v10078, 6
        %v10202 = vrot.slane %v10079, 2
        %v10203 = vrot.slane %v10079, 4
        %v10204 = vrot.slane %v10079, 6
        %v10205 = vrot.slane %v10080, 4
        %v10206 = vrot.slane %v10080, 6
        %v10207 = vrot.slane %v10081, 2
        %v10208 = vrot.slane %v10081, 4
        %v10209 = vrot.slane %v10081, 6
        %v10210 = vrot.slane %v10082, 2
        %v10211 = vrot.slane %v10082, 6
        %v10212 = vrot.slane %v10083, 2
        %v10213 = vrot.slane %v10083, 4
        %v10214 = vrot.slane %v10083, 6
        %v10215 = vrot.slane %v10084, 2
        %v10216 = vrot.slane %v10084, 4
        %v10313 = vld [vmem:[%s13] sm:$0x1]
        %v10315 = vperm.slane %v10313, 0
        %v10317 = vrot.slane %v10315, 2
        %v10318 = vrot.slane %v10315, 4
        %v10319 = vrot.slane %v10315, 6
        %v10323 = vadd.f32 %v10049, %v10315
        %v10324 = vadd.f32 %v10121, %v10317
        %v10325 = vadd.f32 %v10122, %v10318
        %v10326 = vadd.f32 %v10123, %v10319
        %v10327 = vadd.f32 %v10050, %v10315
        %v10328 = vadd.f32 %v10124, %v10317
        %v10329 = vadd.f32 %v10125, %v10318
        %v10330 = vadd.f32 %v10126, %v10319
        %v10331 = vadd.f32 %v10127, %v10315
        %v10332 = vadd.f32 %v10128, %v10317
        %v10333 = vadd.f32 %v10129, %v10318
        %v10334 = vadd.f32 %v10052, %v10319
        %v10335 = vadd.f32 %v10130, %v10315
        %v10336 = vadd.f32 %v10131, %v10317
        %v10337 = vadd.f32 %v10132, %v10318
        %v10338 = vadd.f32 %v10053, %v10319
        %v10339 = vadd.f32 %v10133, %v10315
        %v10340 = vadd.f32 %v10134, %v10317
        %v10341 = vadd.f32 %v10054, %v10318
        %v10342 = vadd.f32 %v10135, %v10319
        %v10343 = vadd.f32 %v10136, %v10315
        %v10344 = vadd.f32 %v10137, %v10317
        %v10345 = vadd.f32 %v10055, %v10318
        %v10346 = vadd.f32 %v10138, %v10319
        %v10347 = vadd.f32 %v10139, %v10315
        %v10348 = vadd.f32 %v10056, %v10317
        %v10349 = vadd.f32 %v10140, %v10318
        %v10350 = vadd.f32 %v10141, %v10319
        %v10351 = vadd.f32 %v10142, %v10315
        %v10352 = vadd.f32 %v10057, %v10317
        %v10353 = vadd.f32 %v10143, %v10318
        %v10354 = vadd.f32 %v10144, %v10319
        %v10355 = vadd.f32 %v10058, %v10315
        %v10356 = vadd.f32 %v10145, %v10317
        %v10357 = vadd.f32 %v10146, %v10318
        %v10358 = vadd.f32 %v10147, %v10319
        %v10359 = vadd.f32 %v10059, %v10315
        %v10360 = vadd.f32 %v10148, %v10317
        %v10361 = vadd.f32 %v10149, %v10318
        %v10362 = vadd.f32 %v10150, %v10319
        %v10363 = vadd.f32 %v10151, %v10315
        %v10364 = vadd.f32 %v10152, %v10317
        %v10365 = vadd.f32 %v10153, %v10318
        %v10366 = vadd.f32 %v10061, %v10319
        %v10367 = vadd.f32 %v10154, %v10315
        %v10368 = vadd.f32 %v10155, %v10317
        %v10369 = vadd.f32 %v10156, %v10318
        %v10370 = vadd.f32 %v10062, %v10319
        %v10371 = vadd.f32 %v10157, %v10315
        %v10372 = vadd.f32 %v10158, %v10317
        %v10373 = vadd.f32 %v10063, %v10318
        %v10374 = vadd.f32 %v10159, %v10319
        %v10375 = vadd.f32 %v10160, %v10315
        %v10376 = vadd.f32 %v10161, %v10317
        %v10377 = vadd.f32 %v10064, %v10318
        %v10378 = vadd.f32 %v10162, %v10319
        %v10379 = vadd.f32 %v10163, %v10315
        %v10380 = vadd.f32 %v10065, %v10317
        %v10381 = vadd.f32 %v10164, %v10318
        %v10382 = vadd.f32 %v10165, %v10319
        %v10383 = vadd.f32 %v10166, %v10315
        %v10384 = vadd.f32 %v10066, %v10317
        %v10385 = vadd.f32 %v10167, %v10318
        %v10386 = vadd.f32 %v10168, %v10319
        %v10387 = vadd.f32 %v10067, %v10315
        %v10388 = vadd.f32 %v10169, %v10317
        %v10389 = vadd.f32 %v10170, %v10318
        %v10390 = vadd.f32 %v10171, %v10319
        %v10391 = vadd.f32 %v10068, %v10315
        %v10392 = vadd.f32 %v10172, %v10317
        %v10393 = vadd.f32 %v10173, %v10318
        %v10394 = vadd.f32 %v10174, %v10319
        %v10395 = vadd.f32 %v10175, %v10315
        %v10396 = vadd.f32 %v10176, %v10317
        %v10397 = vadd.f32 %v10177, %v10318
        %v10398 = vadd.f32 %v10070, %v10319
        %v10399 = vadd.f32 %v10178, %v10315
        %v10400 = vadd.f32 %v10179, %v10317
        %v10401 = vadd.f32 %v10180, %v10318
        %v10402 = vadd.f32 %v10071, %v10319
        %v10403 = vadd.f32 %v10181, %v10315
        %v10404 = vadd.f32 %v10182, %v10317
        %v10405 = vadd.f32 %v10072, %v10318
        %v10406 = vadd.f32 %v10183, %v10319
        %v10407 = vadd.f32 %v10184, %v10315
        %v10408 = vadd.f32 %v10185, %v10317
        %v10409 = vadd.f32 %v10073, %v10318
        %v10410 = vadd.f32 %v10186, %v10319
        %v10411 = vadd.f32 %v10187, %v10315
        %v10412 = vadd.f32 %v10074, %v10317
        %v10413 = vadd.f32 %v10188, %v10318
        %v10414 = vadd.f32 %v10189, %v10319
        %v10415 = vadd.f32 %v10190, %v10315
        %v10416 = vadd.f32 %v10075, %v10317
        %v10417 = vadd.f32 %v10191, %v10318
        %v10418 = vadd.f32 %v10192, %v10319
        %v10419 = vadd.f32 %v10076, %v10315
        %v10420 = vadd.f32 %v10193, %v10317
        %v10421 = vadd.f32 %v10194, %v10318
        %v10422 = vadd.f32 %v10195, %v10319
        %v10423 = vadd.f32 %v10077, %v10315
        %v10424 = vadd.f32 %v10196, %v10317
        %v10425 = vadd.f32 %v10197, %v10318
        %v10426 = vadd.f32 %v10198, %v10319
        %v10427 = vadd.f32 %v10199, %v10315
        %v10428 = vadd.f32 %v10200, %v10317
        %v10429 = vadd.f32 %v10201, %v10318
        %v10430 = vadd.f32 %v10079, %v10319
        %v10431 = vadd.f32 %v10202, %v10315
        %v10432 = vadd.f32 %v10203, %v10317
        %v10433 = vadd.f32 %v10204, %v10318
        %v10434 = vadd.f32 %v10080, %v10319
        %v10435 = vadd.f32 %v10205, %v10315
        %v10436 = vadd.f32 %v10206, %v10317
        %v10437 = vadd.f32 %v10081, %v10318
        %v10438 = vadd.f32 %v10207, %v10319
        %v10439 = vadd.f32 %v10208, %v10315
        %v10440 = vadd.f32 %v10209, %v10317
        %v10441 = vadd.f32 %v10082, %v10318
        %v10442 = vadd.f32 %v10210, %v10319
        %v10443 = vadd.f32 %v10211, %v10315
        %v10444 = vadd.f32 %v10083, %v10317
        %v10445 = vadd.f32 %v10212, %v10318
        %v10446 = vadd.f32 %v10213, %v10319
        %v10447 = vadd.f32 %v10214, %v10315
        %v10448 = vadd.f32 %v10084, %v10317
        %v10449 = vadd.f32 %v10215, %v10318
        %v10450 = vadd.f32 %v10216, %v10319
        %v10451 = vld [vmem:[%s506] sm:$0xff]
        %v10452 = vld [vmem:[%s506 + $0x8] sm:$0xff]
        %v10453 = vld [vmem:[%s506 + $0x10] sm:$0xff]
        %v10454 = vld [vmem:[%s506 + $0x18] sm:$0xff]
        %v10455 = vld [vmem:[%s506 + $0x20] sm:$0xff]
        %v10456 = vld [vmem:[%s506 + $0x28] sm:$0xff]
        %v10457 = vld [vmem:[%s506 + $0x30] sm:$0xff]
        %v10458 = vld [vmem:[%s506 + $0x38] sm:$0xff]
        %v10459 = vld [vmem:[%s506 + $0x40] sm:$0xff]
        %v10460 = vld [vmem:[%s506 + $0x48] sm:$0xff]
        %v10461 = vld [vmem:[%s506 + $0x50] sm:$0xff]
        %v10462 = vld [vmem:[%s506 + $0x58] sm:$0xff]
        %v10463 = vld [vmem:[%s506 + $0x60] sm:$0xff]
        %v10464 = vld [vmem:[%s506 + $0x68] sm:$0xff]
        %v10465 = vld [vmem:[%s506 + $0x70] sm:$0xff]
        %v10466 = vld [vmem:[%s506 + $0x78] sm:$0xff]
        %v10467 = vld [vmem:[%s506 + $0x80] sm:$0xff]
        %v10468 = vld [vmem:[%s506 + $0x88] sm:$0xff]
        %v10469 = vld [vmem:[%s506 + $0x90] sm:$0xff]
        %v10470 = vld [vmem:[%s506 + $0x98] sm:$0xff]
        %v10471 = vld [vmem:[%s506 + $0xa0] sm:$0xff]
        %v10472 = vld [vmem:[%s506 + $0xa8] sm:$0xff]
        %v10473 = vld [vmem:[%s506 + $0xb0] sm:$0xff]
        %v10474 = vld [vmem:[%s506 + $0xb8] sm:$0xff]
        %v10475 = vld [vmem:[%s506 + $0xc0] sm:$0xff]
        %v10476 = vld [vmem:[%s506 + $0xc8] sm:$0xff]
        %v10477 = vld [vmem:[%s506 + $0xd0] sm:$0xff]
        %v10478 = vld [vmem:[%s506 + $0xd8] sm:$0xff]
        %v10479 = vld [vmem:[%s506 + $0xe0] sm:$0xff]
        %v10480 = vld [vmem:[%s506 + $0xe8] sm:$0xff]
        %v10481 = vld [vmem:[%s506 + $0xf0] sm:$0xff]
        %v10482 = vld [vmem:[%s506 + $0xf8] sm:$0xff]
        %v10515 = vrot.slane %v10451, 2
        %v10516 = vrot.slane %v10451, 4
        %v10517 = vrot.slane %v10451, 6
        %v10518 = vrot.slane %v10452, 2
        %v10519 = vrot.slane %v10452, 4
        %v10520 = vrot.slane %v10452, 6
        %v10521 = vrot.slane %v10453, 2
        %v10522 = vrot.slane %v10453, 4
        %v10523 = vrot.slane %v10453, 6
        %v10524 = vrot.slane %v10454, 2
        %v10525 = vrot.slane %v10454, 4
        %v10526 = vrot.slane %v10454, 6
        %v10527 = vrot.slane %v10455, 2
        %v10528 = vrot.slane %v10455, 4
        %v10529 = vrot.slane %v10455, 6
        %v10530 = vrot.slane %v10456, 2
        %v10531 = vrot.slane %v10456, 4
        %v10532 = vrot.slane %v10456, 6
        %v10533 = vrot.slane %v10457, 2
        %v10534 = vrot.slane %v10457, 4
        %v10535 = vrot.slane %v10457, 6
        %v10536 = vrot.slane %v10458, 2
        %v10537 = vrot.slane %v10458, 4
        %v10538 = vrot.slane %v10458, 6
        %v10539 = vrot.slane %v10459, 2
        %v10540 = vrot.slane %v10459, 4
        %v10541 = vrot.slane %v10459, 6
        %v10542 = vrot.slane %v10460, 2
        %v10543 = vrot.slane %v10460, 4
        %v10544 = vrot.slane %v10460, 6
        %v10545 = vrot.slane %v10461, 2
        %v10546 = vrot.slane %v10461, 4
        %v10547 = vrot.slane %v10461, 6
        %v10548 = vrot.slane %v10462, 2
        %v10549 = vrot.slane %v10462, 4
        %v10550 = vrot.slane %v10462, 6
        %v10551 = vrot.slane %v10463, 2
        %v10552 = vrot.slane %v10463, 4
        %v10553 = vrot.slane %v10463, 6
        %v10554 = vrot.slane %v10464, 2
        %v10555 = vrot.slane %v10464, 4
        %v10556 = vrot.slane %v10464, 6
        %v10557 = vrot.slane %v10465, 2
        %v10558 = vrot.slane %v10465, 4
        %v10559 = vrot.slane %v10465, 6
        %v10560 = vrot.slane %v10466, 2
        %v10561 = vrot.slane %v10466, 4
        %v10562 = vrot.slane %v10466, 6
        %v10563 = vrot.slane %v10467, 2
        %v10564 = vrot.slane %v10467, 4
        %v10565 = vrot.slane %v10467, 6
        %v10566 = vrot.slane %v10468, 2
        %v10567 = vrot.slane %v10468, 4
        %v10568 = vrot.slane %v10468, 6
        %v10569 = vrot.slane %v10469, 2
        %v10570 = vrot.slane %v10469, 4
        %v10571 = vrot.slane %v10469, 6
        %v10572 = vrot.slane %v10470, 2
        %v10573 = vrot.slane %v10470, 4
        %v10574 = vrot.slane %v10470, 6
        %v10575 = vrot.slane %v10471, 2
        %v10576 = vrot.slane %v10471, 4
        %v10577 = vrot.slane %v10471, 6
        %v10578 = vrot.slane %v10472, 2
        %v10579 = vrot.slane %v10472, 4
        %v10580 = vrot.slane %v10472, 6
        %v10581 = vrot.slane %v10473, 2
        %v10582 = vrot.slane %v10473, 4
        %v10583 = vrot.slane %v10473, 6
        %v10584 = vrot.slane %v10474, 2
        %v10585 = vrot.slane %v10474, 4
        %v10586 = vrot.slane %v10474, 6
        %v10587 = vrot.slane %v10475, 2
        %v10588 = vrot.slane %v10475, 4
        %v10589 = vrot.slane %v10475, 6
        %v10590 = vrot.slane %v10476, 2
        %v10591 = vrot.slane %v10476, 4
        %v10592 = vrot.slane %v10476, 6
        %v10593 = vrot.slane %v10477, 2
        %v10594 = vrot.slane %v10477, 4
        %v10595 = vrot.slane %v10477, 6
        %v10596 = vrot.slane %v10478, 2
        %v10597 = vrot.slane %v10478, 4
        %v10598 = vrot.slane %v10478, 6
        %v10599 = vrot.slane %v10479, 2
        %v10600 = vrot.slane %v10479, 4
        %v10601 = vrot.slane %v10479, 6
        %v10602 = vrot.slane %v10480, 2
        %v10603 = vrot.slane %v10480, 4
        %v10604 = vrot.slane %v10480, 6
        %v10605 = vrot.slane %v10481, 2
        %v10606 = vrot.slane %v10481, 4
        %v10607 = vrot.slane %v10481, 6
        %v10608 = vrot.slane %v10482, 2
        %v10609 = vrot.slane %v10482, 4
        %v10610 = vrot.slane %v10482, 6
        %v10707 = vadd.f32 %v10323, %v10451
        %v10708 = vadd.f32 %v10324, %v10515
        %v10709 = vadd.f32 %v10325, %v10516
        %v10710 = vadd.f32 %v10326, %v10517
        %v10711 = vadd.f32 %v10327, %v10452
        %v10712 = vadd.f32 %v10328, %v10518
        %v10713 = vadd.f32 %v10329, %v10519
        %v10714 = vadd.f32 %v10330, %v10520
        %v10715 = vadd.f32 %v10331, %v10453
        %v10716 = vadd.f32 %v10332, %v10521
        %v10717 = vadd.f32 %v10333, %v10522
        %v10718 = vadd.f32 %v10334, %v10523
        %v10719 = vadd.f32 %v10335, %v10454
        %v10720 = vadd.f32 %v10336, %v10524
        %v10721 = vadd.f32 %v10337, %v10525
        %v10722 = vadd.f32 %v10338, %v10526
        %v10723 = vadd.f32 %v10339, %v10455
        %v10724 = vadd.f32 %v10340, %v10527
        %v10725 = vadd.f32 %v10341, %v10528
        %v10726 = vadd.f32 %v10342, %v10529
        %v10727 = vadd.f32 %v10343, %v10456
        %v10728 = vadd.f32 %v10344, %v10530
        %v10729 = vadd.f32 %v10345, %v10531
        %v10730 = vadd.f32 %v10346, %v10532
        %v10731 = vadd.f32 %v10347, %v10457
        %v10732 = vadd.f32 %v10348, %v10533
        %v10733 = vadd.f32 %v10349, %v10534
        %v10734 = vadd.f32 %v10350, %v10535
        %v10735 = vadd.f32 %v10351, %v10458
        %v10736 = vadd.f32 %v10352, %v10536
        %v10737 = vadd.f32 %v10353, %v10537
        %v10738 = vadd.f32 %v10354, %v10538
        %v10739 = vadd.f32 %v10355, %v10459
        %v10740 = vadd.f32 %v10356, %v10539
        %v10741 = vadd.f32 %v10357, %v10540
        %v10742 = vadd.f32 %v10358, %v10541
        %v10743 = vadd.f32 %v10359, %v10460
        %v10744 = vadd.f32 %v10360, %v10542
        %v10745 = vadd.f32 %v10361, %v10543
        %v10746 = vadd.f32 %v10362, %v10544
        %v10747 = vadd.f32 %v10363, %v10461
        %v10748 = vadd.f32 %v10364, %v10545
        %v10749 = vadd.f32 %v10365, %v10546
        %v10750 = vadd.f32 %v10366, %v10547
        %v10751 = vadd.f32 %v10367, %v10462
        %v10752 = vadd.f32 %v10368, %v10548
        %v10753 = vadd.f32 %v10369, %v10549
        %v10754 = vadd.f32 %v10370, %v10550
        %v10755 = vadd.f32 %v10371, %v10463
        %v10756 = vadd.f32 %v10372, %v10551
        %v10757 = vadd.f32 %v10373, %v10552
        %v10758 = vadd.f32 %v10374, %v10553
        %v10759 = vadd.f32 %v10375, %v10464
        %v10760 = vadd.f32 %v10376, %v10554
        %v10761 = vadd.f32 %v10377, %v10555
        %v10762 = vadd.f32 %v10378, %v10556
        %v10763 = vadd.f32 %v10379, %v10465
        %v10764 = vadd.f32 %v10380, %v10557
        %v10765 = vadd.f32 %v10381, %v10558
        %v10766 = vadd.f32 %v10382, %v10559
        %v10767 = vadd.f32 %v10383, %v10466
        %v10768 = vadd.f32 %v10384, %v10560
        %v10769 = vadd.f32 %v10385, %v10561
        %v10770 = vadd.f32 %v10386, %v10562
        %v10771 = vadd.f32 %v10387, %v10467
        %v10772 = vadd.f32 %v10388, %v10563
        %v10773 = vadd.f32 %v10389, %v10564
        %v10774 = vadd.f32 %v10390, %v10565
        %v10775 = vadd.f32 %v10391, %v10468
        %v10776 = vadd.f32 %v10392, %v10566
        %v10777 = vadd.f32 %v10393, %v10567
        %v10778 = vadd.f32 %v10394, %v10568
        %v10779 = vadd.f32 %v10395, %v10469
        %v10780 = vadd.f32 %v10396, %v10569
        %v10781 = vadd.f32 %v10397, %v10570
        %v10782 = vadd.f32 %v10398, %v10571
        %v10783 = vadd.f32 %v10399, %v10470
        %v10784 = vadd.f32 %v10400, %v10572
        %v10785 = vadd.f32 %v10401, %v10573
        %v10786 = vadd.f32 %v10402, %v10574
        %v10787 = vadd.f32 %v10403, %v10471
        %v10788 = vadd.f32 %v10404, %v10575
        %v10789 = vadd.f32 %v10405, %v10576
        %v10790 = vadd.f32 %v10406, %v10577
        %v10791 = vadd.f32 %v10407, %v10472
        %v10792 = vadd.f32 %v10408, %v10578
        %v10793 = vadd.f32 %v10409, %v10579
        %v10794 = vadd.f32 %v10410, %v10580
        %v10795 = vadd.f32 %v10411, %v10473
        %v10796 = vadd.f32 %v10412, %v10581
        %v10797 = vadd.f32 %v10413, %v10582
        %v10798 = vadd.f32 %v10414, %v10583
        %v10799 = vadd.f32 %v10415, %v10474
        %v10800 = vadd.f32 %v10416, %v10584
        %v10801 = vadd.f32 %v10417, %v10585
        %v10802 = vadd.f32 %v10418, %v10586
        %v10803 = vadd.f32 %v10419, %v10475
        %v10804 = vadd.f32 %v10420, %v10587
        %v10805 = vadd.f32 %v10421, %v10588
        %v10806 = vadd.f32 %v10422, %v10589
        %v10807 = vadd.f32 %v10423, %v10476
        %v10808 = vadd.f32 %v10424, %v10590
        %v10809 = vadd.f32 %v10425, %v10591
        %v10810 = vadd.f32 %v10426, %v10592
        %v10811 = vadd.f32 %v10427, %v10477
        %v10812 = vadd.f32 %v10428, %v10593
        %v10813 = vadd.f32 %v10429, %v10594
        %v10814 = vadd.f32 %v10430, %v10595
        %v10815 = vadd.f32 %v10431, %v10478
        %v10816 = vadd.f32 %v10432, %v10596
        %v10817 = vadd.f32 %v10433, %v10597
        %v10818 = vadd.f32 %v10434, %v10598
        %v10819 = vadd.f32 %v10435, %v10479
        %v10820 = vadd.f32 %v10436, %v10599
        %v10821 = vadd.f32 %v10437, %v10600
        %v10822 = vadd.f32 %v10438, %v10601
        %v10823 = vadd.f32 %v10439, %v10480
        %v10824 = vadd.f32 %v10440, %v10602
        %v10825 = vadd.f32 %v10441, %v10603
        %v10826 = vadd.f32 %v10442, %v10604
        %v10827 = vadd.f32 %v10443, %v10481
        %v10828 = vadd.f32 %v10444, %v10605
        %v10829 = vadd.f32 %v10445, %v10606
        %v10830 = vadd.f32 %v10446, %v10607
        %v10831 = vadd.f32 %v10447, %v10482
        %v10832 = vadd.f32 %v10448, %v10608
        %v10833 = vadd.f32 %v10449, %v10609
        %v10834 = vadd.f32 %v10450, %v10610
        %10963 = vst [vmem:[#allocation1] ss:$4 sm:$0xff] %v10707
        %s10964 = scalar_lea.vmem [#allocation1], 1
        %10965 = vst [vmem:[%s10964] ss:$4 sm:$0xff] %v10708
        %s10966 = scalar_lea.vmem [#allocation1], 2
        %10967 = vst [vmem:[%s10966] ss:$4 sm:$0xff] %v10709
        %s10968 = scalar_lea.vmem [#allocation1], 3
        %10969 = vst [vmem:[%s10968] ss:$4 sm:$0xff] %v10710
        %s10970 = scalar_lea.vmem [#allocation1], 32
        %10971 = vst [vmem:[%s10970] ss:$4 sm:$0xff] %v10711
        %s10972 = scalar_lea.vmem [#allocation1], 33
        %10973 = vst [vmem:[%s10972] ss:$4 sm:$0xff] %v10712
        %s10974 = scalar_lea.vmem [#allocation1], 34
        %10975 = vst [vmem:[%s10974] ss:$4 sm:$0xff] %v10713
        %s10976 = scalar_lea.vmem [#allocation1], 35
        %10977 = vst [vmem:[%s10976] ss:$4 sm:$0xff] %v10714
        %v10978 = vld.sshfl [vmem:[#allocation1] sm:$0xff pattern:$0x73625140]
        %v10979 = vld.sshfl [vmem:[#allocation1 + $0x20] sm:$0xff pattern:$0x73625140]
        %10980 = vst [vmem:[#allocation1] ss:$4 sm:$0xff] %v10715
        %10981 = vst [vmem:[%s10964] ss:$4 sm:$0xff] %v10716
        %10982 = vst [vmem:[%s10966] ss:$4 sm:$0xff] %v10717
        %10983 = vst [vmem:[%s10968] ss:$4 sm:$0xff] %v10718
        %10984 = vst [vmem:[%s10970] ss:$4 sm:$0xff] %v10719
        %10985 = vst [vmem:[%s10972] ss:$4 sm:$0xff] %v10720
        %10986 = vst [vmem:[%s10974] ss:$4 sm:$0xff] %v10721
        %10987 = vst [vmem:[%s10976] ss:$4 sm:$0xff] %v10722
        %v10988 = vld.sshfl [vmem:[#allocation1] sm:$0xff pattern:$0x73625140]
        %v10989 = vld.sshfl [vmem:[#allocation1 + $0x20] sm:$0xff pattern:$0x73625140]
        %10990 = vst [vmem:[#allocation1] ss:$4 sm:$0xff] %v10723
        %10991 = vst [vmem:[%s10964] ss:$4 sm:$0xff] %v10724
        %10992 = vst [vmem:[%s10966] ss:$4 sm:$0xff] %v10725
        %10993 = vst [vmem:[%s10968] ss:$4 sm:$0xff] %v10726
        %10994 = vst [vmem:[%s10970] ss:$4 sm:$0xff] %v10727
        %10995 = vst [vmem:[%s10972] ss:$4 sm:$0xff] %v10728
        %10996 = vst [vmem:[%s10974] ss:$4 sm:$0xff] %v10729
        %10997 = vst [vmem:[%s10976] ss:$4 sm:$0xff] %v10730
        %v10998 = vld.sshfl [vmem:[#allocation1] sm:$0xff pattern:$0x73625140]
        %v10999 = vld.sshfl [vmem:[#allocation1 + $0x20] sm:$0xff pattern:$0x73625140]
        %11000 = vst [vmem:[#allocation1] ss:$4 sm:$0xff] %v10731
        %11001 = vst [vmem:[%s10964] ss:$4 sm:$0xff] %v10732
        %11002 = vst [vmem:[%s10966] ss:$4 sm:$0xff] %v10733
        %11003 = vst [vmem:[%s10968] ss:$4 sm:$0xff] %v10734
        %11004 = vst [vmem:[%s10970] ss:$4 sm:$0xff] %v10735
        %11005 = vst [vmem:[%s10972] ss:$4 sm:$0xff] %v10736
        %11006 = vst [vmem:[%s10974] ss:$4 sm:$0xff] %v10737
        %11007 = vst [vmem:[%s10976] ss:$4 sm:$0xff] %v10738
        %v11008 = vld.sshfl [vmem:[#allocation1] sm:$0xff pattern:$0x73625140]
        %v11009 = vld.sshfl [vmem:[#allocation1 + $0x20] sm:$0xff pattern:$0x73625140]
        %11010 = vst [vmem:[#allocation1] ss:$4 sm:$0xff] %v10739
        %11011 = vst [vmem:[%s10964] ss:$4 sm:$0xff] %v10740
        %11012 = vst [vmem:[%s10966] ss:$4 sm:$0xff] %v10741
        %11013 = vst [vmem:[%s10968] ss:$4 sm:$0xff] %v10742
        %11014 = vst [vmem:[%s10970] ss:$4 sm:$0xff] %v10743
        %11015 = vst [vmem:[%s10972] ss:$4 sm:$0xff] %v10744
        %11016 = vst [vmem:[%s10974] ss:$4 sm:$0xff] %v10745
        %11017 = vst [vmem:[%s10976] ss:$4 sm:$0xff] %v10746
        %v11018 = vld.sshfl [vmem:[#allocation1] sm:$0xff pattern:$0x73625140]
        %v11019 = vld.sshfl [vmem:[#allocation1 + $0x20] sm:$0xff pattern:$0x73625140]
        %11020 = vst [vmem:[#allocation1] ss:$4 sm:$0xff] %v10747
        %11021 = vst [vmem:[%s10964] ss:$4 sm:$0xff] %v10748
        %11022 = vst [vmem:[%s10966] ss:$4 sm:$0xff] %v10749
        %11023 = vst [vmem:[%s10968] ss:$4 sm:$0xff] %v10750
        %11024 = vst [vmem:[%s10970] ss:$4 sm:$0xff] %v10751
        %11025 = vst [vmem:[%s10972] ss:$4 sm:$0xff] %v10752
        %11026 = vst [vmem:[%s10974] ss:$4 sm:$0xff] %v10753
        %11027 = vst [vmem:[%s10976] ss:$4 sm:$0xff] %v10754
        %v11028 = vld.sshfl [vmem:[#allocation1] sm:$0xff pattern:$0x73625140]
        %v11029 = vld.sshfl [vmem:[#allocation1 + $0x20] sm:$0xff pattern:$0x73625140]
        %11030 = vst [vmem:[#allocation1] ss:$4 sm:$0xff] %v10755
        %11031 = vst [vmem:[%s10964] ss:$4 sm:$0xff] %v10756
        %11032 = vst [vmem:[%s10966] ss:$4 sm:$0xff] %v10757
        %11033 = vst [vmem:[%s10968] ss:$4 sm:$0xff] %v10758
        %11034 = vst [vmem:[%s10970] ss:$4 sm:$0xff] %v10759
        %11035 = vst [vmem:[%s10972] ss:$4 sm:$0xff] %v10760
        %11036 = vst [vmem:[%s10974] ss:$4 sm:$0xff] %v10761
        %11037 = vst [vmem:[%s10976] ss:$4 sm:$0xff] %v10762
        %v11038 = vld.sshfl [vmem:[#allocation1] sm:$0xff pattern:$0x73625140]
        %v11039 = vld.sshfl [vmem:[#allocation1 + $0x20] sm:$0xff pattern:$0x73625140]
        %11040 = vst [vmem:[#allocation1] ss:$4 sm:$0xff] %v10763
        %11041 = vst [vmem:[%s10964] ss:$4 sm:$0xff] %v10764
        %11042 = vst [vmem:[%s10966] ss:$4 sm:$0xff] %v10765
        %11043 = vst [vmem:[%s10968] ss:$4 sm:$0xff] %v10766
        %11044 = vst [vmem:[%s10970] ss:$4 sm:$0xff] %v10767
        %11045 = vst [vmem:[%s10972] ss:$4 sm:$0xff] %v10768
        %11046 = vst [vmem:[%s10974] ss:$4 sm:$0xff] %v10769
        %11047 = vst [vmem:[%s10976] ss:$4 sm:$0xff] %v10770
        %v11048 = vld.sshfl [vmem:[#allocation1] sm:$0xff pattern:$0x73625140]
        %v11049 = vld.sshfl [vmem:[#allocation1 + $0x20] sm:$0xff pattern:$0x73625140]
        %11050 = vst [vmem:[#allocation1] ss:$4 sm:$0xff] %v10771
        %11051 = vst [vmem:[%s10964] ss:$4 sm:$0xff] %v10772
        %11052 = vst [vmem:[%s10966] ss:$4 sm:$0xff] %v10773
        %11053 = vst [vmem:[%s10968] ss:$4 sm:$0xff] %v10774
        %11054 = vst [vmem:[%s10970] ss:$4 sm:$0xff] %v10775
        %11055 = vst [vmem:[%s10972] ss:$4 sm:$0xff] %v10776
        %11056 = vst [vmem:[%s10974] ss:$4 sm:$0xff] %v10777
        %11057 = vst [vmem:[%s10976] ss:$4 sm:$0xff] %v10778
        %v11058 = vld.sshfl [vmem:[#allocation1] sm:$0xff pattern:$0x73625140]
        %v11059 = vld.sshfl [vmem:[#allocation1 + $0x20] sm:$0xff pattern:$0x73625140]
        %11060 = vst [vmem:[#allocation1] ss:$4 sm:$0xff] %v10779
        %11061 = vst [vmem:[%s10964] ss:$4 sm:$0xff] %v10780
        %11062 = vst [vmem:[%s10966] ss:$4 sm:$0xff] %v10781
        %11063 = vst [vmem:[%s10968] ss:$4 sm:$0xff] %v10782
        %11064 = vst [vmem:[%s10970] ss:$4 sm:$0xff] %v10783
        %11065 = vst [vmem:[%s10972] ss:$4 sm:$0xff] %v10784
        %11066 = vst [vmem:[%s10974] ss:$4 sm:$0xff] %v10785
        %11067 = vst [vmem:[%s10976] ss:$4 sm:$0xff] %v10786
        %v11068 = vld.sshfl [vmem:[#allocation1] sm:$0xff pattern:$0x73625140]
        %v11069 = vld.sshfl [vmem:[#allocation1 + $0x20] sm:$0xff pattern:$0x73625140]
        %11070 = vst [vmem:[#allocation1] ss:$4 sm:$0xff] %v10787
        %11071 = vst [vmem:[%s10964] ss:$4 sm:$0xff] %v10788
        %11072 = vst [vmem:[%s10966] ss:$4 sm:$0xff] %v10789
        %11073 = vst [vmem:[%s10968] ss:$4 sm:$0xff] %v10790
        %11074 = vst [vmem:[%s10970] ss:$4 sm:$0xff] %v10791
        %11075 = vst [vmem:[%s10972] ss:$4 sm:$0xff] %v10792
        %11076 = vst [vmem:[%s10974] ss:$4 sm:$0xff] %v10793
        %11077 = vst [vmem:[%s10976] ss:$4 sm:$0xff] %v10794
        %v11078 = vld.sshfl [vmem:[#allocation1] sm:$0xff pattern:$0x73625140]
        %v11079 = vld.sshfl [vmem:[#allocation1 + $0x20] sm:$0xff pattern:$0x73625140]
        %11080 = vst [vmem:[#allocation1] ss:$4 sm:$0xff] %v10795
        %11081 = vst [vmem:[%s10964] ss:$4 sm:$0xff] %v10796
        %11082 = vst [vmem:[%s10966] ss:$4 sm:$0xff] %v10797
        %11083 = vst [vmem:[%s10968] ss:$4 sm:$0xff] %v10798
        %11084 = vst [vmem:[%s10970] ss:$4 sm:$0xff] %v10799
        %11085 = vst [vmem:[%s10972] ss:$4 sm:$0xff] %v10800
        %11086 = vst [vmem:[%s10974] ss:$4 sm:$0xff] %v10801
        %11087 = vst [vmem:[%s10976] ss:$4 sm:$0xff] %v10802
        %v11088 = vld.sshfl [vmem:[#allocation1] sm:$0xff pattern:$0x73625140]
        %v11089 = vld.sshfl [vmem:[#allocation1 + $0x20] sm:$0xff pattern:$0x73625140]
        %11090 = vst [vmem:[#allocation1] ss:$4 sm:$0xff] %v10803
        %11091 = vst [vmem:[%s10964] ss:$4 sm:$0xff] %v10804
        %11092 = vst [vmem:[%s10966] ss:$4 sm:$0xff] %v10805
        %11093 = vst [vmem:[%s10968] ss:$4 sm:$0xff] %v10806
        %11094 = vst [vmem:[%s10970] ss:$4 sm:$0xff] %v10807
        %11095 = vst [vmem:[%s10972] ss:$4 sm:$0xff] %v10808
        %11096 = vst [vmem:[%s10974] ss:$4 sm:$0xff] %v10809
        %11097 = vst [vmem:[%s10976] ss:$4 sm:$0xff] %v10810
        %v11098 = vld.sshfl [vmem:[#allocation1] sm:$0xff pattern:$0x73625140]
        %v11099 = vld.sshfl [vmem:[#allocation1 + $0x20] sm:$0xff pattern:$0x73625140]
        %11100 = vst [vmem:[#allocation1] ss:$4 sm:$0xff] %v10811
        %11101 = vst [vmem:[%s10964] ss:$4 sm:$0xff] %v10812
        %11102 = vst [vmem:[%s10966] ss:$4 sm:$0xff] %v10813
        %11103 = vst [vmem:[%s10968] ss:$4 sm:$0xff] %v10814
        %11104 = vst [vmem:[%s10970] ss:$4 sm:$0xff] %v10815
        %11105 = vst [vmem:[%s10972] ss:$4 sm:$0xff] %v10816
        %11106 = vst [vmem:[%s10974] ss:$4 sm:$0xff] %v10817
        %11107 = vst [vmem:[%s10976] ss:$4 sm:$0xff] %v10818
        %v11108 = vld.sshfl [vmem:[#allocation1] sm:$0xff pattern:$0x73625140]
        %v11109 = vld.sshfl [vmem:[#allocation1 + $0x20] sm:$0xff pattern:$0x73625140]
        %11110 = vst [vmem:[#allocation1] ss:$4 sm:$0xff] %v10819
        %11111 = vst [vmem:[%s10964] ss:$4 sm:$0xff] %v10820
        %11112 = vst [vmem:[%s10966] ss:$4 sm:$0xff] %v10821
        %11113 = vst [vmem:[%s10968] ss:$4 sm:$0xff] %v10822
        %11114 = vst [vmem:[%s10970] ss:$4 sm:$0xff] %v10823
        %11115 = vst [vmem:[%s10972] ss:$4 sm:$0xff] %v10824
        %11116 = vst [vmem:[%s10974] ss:$4 sm:$0xff] %v10825
        %11117 = vst [vmem:[%s10976] ss:$4 sm:$0xff] %v10826
        %v11118 = vld.sshfl [vmem:[#allocation1] sm:$0xff pattern:$0x73625140]
        %v11119 = vld.sshfl [vmem:[#allocation1 + $0x20] sm:$0xff pattern:$0x73625140]
        %11120 = vst [vmem:[#allocation1] ss:$4 sm:$0xff] %v10827
        %11121 = vst [vmem:[%s10964] ss:$4 sm:$0xff] %v10828
        %11122 = vst [vmem:[%s10966] ss:$4 sm:$0xff] %v10829
        %11123 = vst [vmem:[%s10968] ss:$4 sm:$0xff] %v10830
        %11124 = vst [vmem:[%s10970] ss:$4 sm:$0xff] %v10831
        %11125 = vst [vmem:[%s10972] ss:$4 sm:$0xff] %v10832
        %11126 = vst [vmem:[%s10974] ss:$4 sm:$0xff] %v10833
        %11127 = vst [vmem:[%s10976] ss:$4 sm:$0xff] %v10834
        %v11128 = vld.sshfl [vmem:[#allocation1] sm:$0xff pattern:$0x73625140]
        %v11129 = vld.sshfl [vmem:[#allocation1 + $0x20] sm:$0xff pattern:$0x73625140]
        %11162 = vst [vmem:[%s569] sm:$0xff] %v10978
        %11163 = vst [vmem:[%s569 + $0x8] sm:$0xff] %v10979
        %11164 = vst [vmem:[%s569 + $0x10] sm:$0xff] %v10988
        %11165 = vst [vmem:[%s569 + $0x18] sm:$0xff] %v10989
        %11166 = vst [vmem:[%s569 + $0x20] sm:$0xff] %v10998
        %11167 = vst [vmem:[%s569 + $0x28] sm:$0xff] %v10999
        %11168 = vst [vmem:[%s569 + $0x30] sm:$0xff] %v11008
        %11169 = vst [vmem:[%s569 + $0x38] sm:$0xff] %v11009
        %11170 = vst [vmem:[%s569 + $0x40] sm:$0xff] %v11018
        %11171 = vst [vmem:[%s569 + $0x48] sm:$0xff] %v11019
        %11172 = vst [vmem:[%s569 + $0x50] sm:$0xff] %v11028
        %11173 = vst [vmem:[%s569 + $0x58] sm:$0xff] %v11029
        %11174 = vst [vmem:[%s569 + $0x60] sm:$0xff] %v11038
        %11175 = vst [vmem:[%s569 + $0x68] sm:$0xff] %v11039
        %11176 = vst [vmem:[%s569 + $0x70] sm:$0xff] %v11048
        %11177 = vst [vmem:[%s569 + $0x78] sm:$0xff] %v11049
        %11178 = vst [vmem:[%s569 + $0x80] sm:$0xff] %v11058
        %11179 = vst [vmem:[%s569 + $0x88] sm:$0xff] %v11059
        %11180 = vst [vmem:[%s569 + $0x90] sm:$0xff] %v11068
        %11181 = vst [vmem:[%s569 + $0x98] sm:$0xff] %v11069
        %11182 = vst [vmem:[%s569 + $0xa0] sm:$0xff] %v11078
        %11183 = vst [vmem:[%s569 + $0xa8] sm:$0xff] %v11079
        %11184 = vst [vmem:[%s569 + $0xb0] sm:$0xff] %v11088
        %11185 = vst [vmem:[%s569 + $0xb8] sm:$0xff] %v11089
        %11186 = vst [vmem:[%s569 + $0xc0] sm:$0xff] %v11098
        %11187 = vst [vmem:[%s569 + $0xc8] sm:$0xff] %v11099
        %11188 = vst [vmem:[%s569 + $0xd0] sm:$0xff] %v11108
        %11189 = vst [vmem:[%s569 + $0xd8] sm:$0xff] %v11109
        %11190 = vst [vmem:[%s569 + $0xe0] sm:$0xff] %v11118
        %11191 = vst [vmem:[%s569 + $0xe8] sm:$0xff] %v11119
        %11192 = vst [vmem:[%s569 + $0xf0] sm:$0xff] %v11128
        %11193 = vst [vmem:[%s569 + $0xf8] sm:$0xff] %v11129
        %s11194 = sand.u32 %s371, 1
        %s11195 = scalar_lea.sflag [#allocation6], %s11194
        %s11196 = sand.u32 %s371, 1
        %s11197 = smul.addr %s11196, 256
        %s11198 = scalar_lea.vmem [#allocation10], %s11197
        // Predicated region
        $region93: #{tpu_custom_call.1} parent=79 // pred_check
          %p11199 = pneg %p381
        $region94: #{tpu_custom_call.1} parent=79 // pred_check_branch
          %11201 = sbr.rel (%p11199) target = $region96
        $region95: #{tpu_custom_call.1} parent=79 // pred_region
          %11203 = vsyncadd %s11195, 0
          %s11204 = smul.addr %s33, 32
          %s11205 = smul.addr %s11204, 8
          %s11206 = scalar_lea.hbm %s15, %s11205
          %s11207 = sshll.u32 %s11198, 4
          %s11208 = int_to_ptr.vmem [resolvable:$true] %s11207
          %s11209 = sshll.u32 %s11206, 4
          %s11210 = int_to_ptr.hbm [resolvable:$true] %s11209
          %11215 = dma.vmem_to_hbm [thread:$0]  %s11208, 4096, %s11210, %s11195, 128, 128, 8
        $region96: #{tpu_custom_call.1} parent=79 // pred_fallthru
          _
      $region80: #{tpu_custom_call.1} parent=5 // pred_fallthru
        _
      %p11216 = scmp.le.s32.totalorder 2, %s28
      // Predicated region
      $region97: #{tpu_custom_call.1} parent=5 // pred_check
        %p11217 = pneg %p11216
      $region98: #{tpu_custom_call.1} parent=5 // pred_check_branch
        %11219 = sbr.rel (%p11217) target = $region100
      $region99: #{tpu_custom_call.1} parent=5 // pred_region
        %s11220 = ssub.s32 %s28, 2
        // Predicated region
        $region101: #{tpu_custom_call.1} parent=99 // pred_check
          %p11221 = pneg %p387
        $region102: #{tpu_custom_call.1} parent=99 // pred_check_branch
          %11223 = sbr.rel (%p11221) target = $region104
        $region103: #{tpu_custom_call.1} parent=99 // pred_region
          %s11224 = sand.u32 %s372, 1
          %s11225 = scalar_lea.sflag [#allocation6], %s11224
          %s11226 = sand.u32 %s372, 1
          %s11227 = smul.addr %s11226, 256
          %s11228 = scalar_lea.vmem [#allocation10], %s11227
          %11230 = dma.done %s11225, 4096
        $region104: #{tpu_custom_call.1} parent=99 // pred_fallthru
          _
      $region100: #{tpu_custom_call.1} parent=5 // pred_fallthru
        _
    $region6: #{tpu_custom_call.1} parent=1 // loop_footer
      %s32 = sadd.s32 1, %s28
    $region7: #{tpu_custom_call.1} parent=1 // loop_footer_branch
      %27 = sbr.rel target = $region3
    $region8: #{tpu_custom_call.1} parent=1 // loop_exit
      _
    %11231 = vsyncpa [#allocation5], 1
    %s11232 = scalar_lea.sflag [#allocation5], 1
    %11233 = vsyncpa %s11232, 1
    %11234 = vsyncpa [#allocation8], 1
    %11235 = vsyncpa [#allocation6], 1
    %s11236 = scalar_lea.sflag [#allocation6], 1
    %11237 = vsyncpa %s11236, 1

</llo_original>
